<compile_context>
chip_gen: v7x
topology: tpu7x:2x2x1
jax: 0.10.0
libtpu: 0.0.40
codegen_flags: <defaults>
</compile_context>

<pallas_src>
import math

import jax
import jax.numpy as jnp
from jax import lax
from jax.experimental import pallas as pl
from jax.experimental.pallas import tpu as pltpu

# ------------------------- config (small synthetic ViT) ----------------------
B = 2
C_IN = 4
IMG = 16
PATCH = 2
EMBED = 32
HEADS = 4
HEAD_DIM = EMBED // HEADS
MLP_HIDDEN = 4 * EMBED
DEPTH = 2
N_TOKENS = (IMG // PATCH) * (IMG // PATCH)   # 64
PPC = C_IN * PATCH * PATCH                   # 16 (c, p, q) flattened
EPS = 1e-6                                   # timm ViT LayerNorm eps

# (M,K) x (N,K) -> (M,N): contraction on both last dims ("nt" matmul).
_NT = (((1,), (1,)), ((), ()))


def _layernorm(x, w, b):
    mu = jnp.mean(x, axis=-1, keepdims=True)
    var = jnp.mean((x - mu) ** 2, axis=-1, keepdims=True)
    return (x - mu) * lax.rsqrt(var + EPS) * w + b


# ------------------------------ fused Pallas kernel ---------------------------
def _vit_fused_kernel(xp_ref, pw_ref, posb_ref,
                      ln1w_ref, ln1b_ref, aqk_ref, gqb_ref, bvo_ref, ab_ref,
                      ln2w_ref, ln2b_ref, fc1w_ref, fc1b_ref, fc2w_ref, fc2b_ref,
                      nw_ref, nb_ref, out_ref):
    f32 = jnp.float32
    bf16 = jnp.bfloat16

    # --- patch embedding: strided conv == matmul over flattened patches.
    # conv bias + pos_embed pre-folded into posb; pos_drop is identity (eval).
    xp = xp_ref[0].astype(bf16)                                     # (N, PPC)
    h = jnp.dot(xp, pw_ref[...], preferred_element_type=f32) + posb_ref[0]

    for d in range(DEPTH):                                          # unrolled
        # ---- multi-head self-attention with folded per-head weights ----
        hn = _layernorm(h, ln1w_ref[d], ln1b_ref[d])                # (N, D) f32
        hnb = hn.astype(bf16)

        def head_body(hidx, acc, _hnb=hnb, _d=d):
            idx = _d * HEADS + hidx
            a_h = aqk_ref[idx]          # (D, D)  (Wq_h*scale) @ Wk_h^T
            b_h = bvo_ref[idx]          # (D, D)  Wv_h @ Wo_h
            g_h = gqb_ref[idx]          # (1, D)  Wk_h @ (bq_h*scale)
            t = jnp.dot(_hnb, a_h, preferred_element_type=f32)      # (N, D)
            s = lax.dot_general(t.astype(bf16), _hnb, _NT,
                                preferred_element_type=f32)         # (N, N)
            # key-axis bias term; per-row / global constants are dropped
            # (softmax is shift-invariant per row).
            s = s + lax.dot_general(g_h, _hnb, _NT,
                                    preferred_element_type=f32)     # (1, N)
            s = s - jnp.max(s, axis=-1, keepdims=True)
            e = jnp.exp(s)
            p = e / jnp.sum(e, axis=-1, keepdims=True)               # exact softmax
            u = jnp.dot(_hnb, b_h, preferred_element_type=f32)      # (N, D)
            return acc + jnp.dot(p.astype(bf16), u.astype(bf16),
                                 preferred_element_type=f32)

        attn = lax.fori_loop(0, HEADS, head_body,
                             jnp.zeros((N_TOKENS, EMBED), f32), unroll=True)
        h = h + attn + ab_ref[d]                                     # residual

        # ---- MLP ----
        hn2 = _layernorm(h, ln2w_ref[d], ln2b_ref[d]).astype(bf16)
        m = jnp.dot(hn2, fc1w_ref[d], preferred_element_type=f32) + fc1b_ref[d]
        # TODO(synk): timm ViT uses exact (erf) GELU; tanh approximation used
        # for a Mosaic-safe lowering (~1e-3 relative difference).
        m = jax.nn.gelu(m, approximate=True)
        h = h + jnp.dot(m.astype(bf16), fc2w_ref[d],
                        preferred_element_type=f32) + fc2b_ref[d]    # residual

    # --- final LayerNorm, stored already transposed: (EMBED, N_TOKENS) ---
    y = _layernorm(h, nw_ref[...], nb_ref[...])
    out_ref[0] = jnp.transpose(y).astype(out_ref.dtype)


# ------------------------------ JAX glue ---------------------------------------
def extract_patches(x_nchw):
    # Non-overlapping PATCHxPATCH conv == matmul over (c, p, q)-flattened patches.
    b, c, hgt, wid = x_nchw.shape
    hp, wp = hgt // PATCH, wid // PATCH
    x = x_nchw.reshape(b, c, hp, PATCH, wp, PATCH)
    x = x.transpose(0, 2, 4, 1, 3, 5)          # (B, hp, wp, C, P, P)
    return x.reshape(b, hp * wp, c * PATCH * PATCH)


def init_params(key):
    ks = jax.random.split(key, 3 + DEPTH)
    # Conv2d weight (D, C, P, P) -> matmul weight (C*P*P, D), matching (c,p,q) order.
    wconv = jax.random.normal(ks[0], (EMBED, C_IN, PATCH, PATCH), jnp.float32) * 0.02
    patch_b = jax.random.normal(ks[1], (EMBED,), jnp.float32) * 0.02
    # TODO(synk): pos_embed trunc_normal_(std=0.02) approximated with a plain normal.
    pos = jax.random.normal(ks[2], (1, N_TOKENS, EMBED), jnp.float32) * 0.02

    params = {
        "patch_w": wconv.reshape(EMBED, PPC).T.astype(jnp.bfloat16),   # (PPC, D)
        "pos_bias": pos + patch_b[None, None, :],     # conv bias folded into pos
        "norm_w": jnp.ones((1, EMBED), jnp.float32),
        "norm_b": jnp.zeros((1, EMBED), jnp.float32),
    }

    scale = HEAD_DIM ** -0.5
    aqk, gqb, bvo = [], [], []
    abias, ln1w, ln1b, ln2w, ln2b = [], [], [], [], []
    fc1w, fc1b, fc2w, fc2b = [], [], [], []
    for d in range(DEPTH):
        kk = jax.random.split(ks[3 + d], 8)
        qkv_w = jax.random.normal(kk[0], (EMBED, 3 * EMBED), jnp.float32) * 0.02
        qkv_b = jax.random.normal(kk[1], (3 * EMBED,), jnp.float32) * 0.02
        proj_w = jax.random.normal(kk[2], (EMBED, EMBED), jnp.float32) * 0.02
        proj_b = jax.random.normal(kk[3], (EMBED,), jnp.float32) * 0.02
        fw1 = jax.random.normal(kk[4], (EMBED, MLP_HIDDEN), jnp.float32) * 0.02
        fb1 = jax.random.normal(kk[5], (MLP_HIDDEN,), jnp.float32) * 0.02
        fw2 = jax.random.normal(kk[6], (MLP_HIDDEN, EMBED), jnp.float32) * 0.02
        fb2 = jax.random.normal(kk[7], (EMBED,), jnp.float32) * 0.02

        wq, wk, wv = (qkv_w[:, :EMBED], qkv_w[:, EMBED:2 * EMBED],
                      qkv_w[:, 2 * EMBED:])
        bq, bv = qkv_b[:EMBED], qkv_b[2 * EMBED:]

        # One-time per-head weight folding (zero kernel cost, lane-dense 32x32):
        for hh in range(HEADS):
            sl = slice(hh * HEAD_DIM, (hh + 1) * HEAD_DIM)
            wq_h = wq[:, sl] * scale            # scale folded into Q side
            wk_h = wk[:, sl]
            wv_h = wv[:, sl]
            wo_h = proj_w[sl, :]                # rows of proj for this head
            aqk.append(wq_h @ wk_h.T)                              # (D, D)
            bvo.append(wv_h @ wo_h)                                # (D, D)
            gqb.append((wk_h @ (bq[sl] * scale)).reshape(1, EMBED))  # key bias
        # proj bias + (V bias routed through softmax rows that sum to 1).
        abias.append((proj_b + bv @ proj_w).reshape(1, EMBED))

        ln1w.append(jnp.ones((1, EMBED), jnp.float32))
        ln1b.append(jnp.zeros((1, EMBED), jnp.float32))
        ln2w.append(jnp.ones((1, EMBED), jnp.float32))
        ln2b.append(jnp.zeros((1, EMBED), jnp.float32))
        fc1w.append(fw1)
        fc1b.append(fb1.reshape(1, MLP_HIDDEN))
        fc2w.append(fw2)
        fc2b.append(fb2.reshape(1, EMBED))

    params["attn_qk"] = jnp.stack(aqk).astype(jnp.bfloat16)   # (DEPTH*H, D, D)
    params["attn_qb"] = jnp.stack(gqb).astype(jnp.bfloat16)   # (DEPTH*H, 1, D)
    params["attn_vo"] = jnp.stack(bvo).astype(jnp.bfloat16)   # (DEPTH*H, D, D)
    params["attn_bias"] = jnp.stack(abias)                    # (DEPTH, 1, D) f32
    params["ln1_w"] = jnp.stack(ln1w)
    params["ln1_b"] = jnp.stack(ln1b)
    params["ln2_w"] = jnp.stack(ln2w)
    params["ln2_b"] = jnp.stack(ln2b)
    params["fc1_w"] = jnp.stack(fc1w).astype(jnp.bfloat16)    # (DEPTH, D, 4D)
    params["fc1_b"] = jnp.stack(fc1b)                         # f32
    params["fc2_w"] = jnp.stack(fc2w).astype(jnp.bfloat16)    # (DEPTH, 4D, D)
    params["fc2_b"] = jnp.stack(fc2b)                         # f32
    return params


def transformer_forward(x_nchw, params):
    xp = extract_patches(x_nchw)                               # (B, N, PPC)
    p = params

    def rep(arr):
        # Full-array block, resident across all grid steps (constant block index).
        zeros = (0,) * arr.ndim
        return pl.BlockSpec(arr.shape, lambda i, _z=zeros: _z)

    h = pl.pallas_call(
        _vit_fused_kernel,
        out_shape=jax.ShapeDtypeStruct((B, EMBED, N_TOKENS), jnp.float32),
        grid=(B,),
        in_specs=[
            pl.BlockSpec((1, N_TOKENS, PPC), lambda i: (i, 0, 0)),
            rep(p["patch_w"]), rep(p["pos_bias"]),
            rep(p["ln1_w"]), rep(p["ln1_b"]),
            rep(p["attn_qk"]), rep(p["attn_qb"]), rep(p["attn_vo"]),
            rep(p["attn_bias"]),
            rep(p["ln2_w"]), rep(p["ln2_b"]),
            rep(p["fc1_w"]), rep(p["fc1_b"]), rep(p["fc2_w"]), rep(p["fc2_b"]),
            rep(p["norm_w"]), rep(p["norm_b"]),
        ],
        out_specs=pl.BlockSpec((1, EMBED, N_TOKENS), lambda i: (i, 0, 0)),
        compiler_params=pltpu.CompilerParams(dimension_semantics=("parallel",)),
    )(xp, p["patch_w"], p["pos_bias"],
      p["ln1_w"], p["ln1_b"],
      p["attn_qk"], p["attn_qb"], p["attn_vo"], p["attn_bias"],
      p["ln2_w"], p["ln2_b"],
      p["fc1_w"], p["fc1_b"], p["fc2_w"], p["fc2_b"],
      p["norm_w"], p["norm_b"])

    seq = int(math.sqrt(N_TOKENS))
    # Kernel already emitted (B, EMBED, N); only the free view remains.
    return h.reshape(-1, EMBED, seq, seq)


if __name__ == "__main__":
    key = jax.random.PRNGKey(0)
    kx, kp = jax.random.split(key)
    x = jax.random.normal(kx, (B, C_IN, IMG, IMG), jnp.float32)    # NCHW like PyTorch
    params = init_params(kp)
    fwd = jax.jit(transformer_forward)
    out = fwd(x, params)
    jax.block_until_ready(out)
    assert out.shape == (B, EMBED, IMG // PATCH, IMG // PATCH), out.shape
    assert out.dtype == jnp.float32
    assert bool(jnp.all(jnp.isfinite(out)))
    print("KERNEL_OK")
</pallas_src>

<mosaic_0001>
module attributes {stable_mosaic.version = 11 : i64} {
  func.func @_vit_fused_kernel(%arg0: i32, %arg1: memref<1x64x16xf32, #tpu.memory_space<vmem>>, %arg2: memref<16x32xbf16, #tpu.memory_space<vmem>>, %arg3: memref<1x64x32xf32, #tpu.memory_space<vmem>>, %arg4: memref<2x1x32xf32, #tpu.memory_space<vmem>>, %arg5: memref<2x1x32xf32, #tpu.memory_space<vmem>>, %arg6: memref<8x32x32xbf16, #tpu.memory_space<vmem>>, %arg7: memref<8x1x32xbf16, #tpu.memory_space<vmem>>, %arg8: memref<8x32x32xbf16, #tpu.memory_space<vmem>>, %arg9: memref<2x1x32xf32, #tpu.memory_space<vmem>>, %arg10: memref<2x1x32xf32, #tpu.memory_space<vmem>>, %arg11: memref<2x1x32xf32, #tpu.memory_space<vmem>>, %arg12: memref<2x32x128xbf16, #tpu.memory_space<vmem>>, %arg13: memref<2x1x128xf32, #tpu.memory_space<vmem>>, %arg14: memref<2x128x32xbf16, #tpu.memory_space<vmem>>, %arg15: memref<2x1x32xf32, #tpu.memory_space<vmem>>, %arg16: memref<1x32xf32, #tpu.memory_space<vmem>>, %arg17: memref<1x32xf32, #tpu.memory_space<vmem>>, %arg18: memref<1x32x64xf32, #tpu.memory_space<vmem>>) attributes {dimension_semantics = [#tpu.dimension_semantics<parallel>], iteration_bounds = array<i64: 2>, scalar_prefetch = 0 : i64, scratch_operands = 0 : i64, tpu.core_type = #tpu.core_type<tc>, window_params = [{transform_indices = @transform_0, window_bounds = array<i64: 1, 64, 16>}, {pipeline_mode = #tpu.pipeline_mode<synchronous>, transform_indices = @transform_1, window_bounds = array<i64: 16, 32>}, {pipeline_mode = #tpu.pipeline_mode<synchronous>, transform_indices = @transform_2, window_bounds = array<i64: 1, 64, 32>}, {pipeline_mode = #tpu.pipeline_mode<synchronous>, transform_indices = @transform_3, window_bounds = array<i64: 2, 1, 32>}, {pipeline_mode = #tpu.pipeline_mode<synchronous>, transform_indices = @transform_4, window_bounds = array<i64: 2, 1, 32>}, {pipeline_mode = #tpu.pipeline_mode<synchronous>, transform_indices = @transform_5, window_bounds = array<i64: 8, 32, 32>}, {pipeline_mode = #tpu.pipeline_mode<synchronous>, transform_indices = @transform_6, window_bounds = array<i64: 8, 1, 32>}, {pipeline_mode = #tpu.pipeline_mode<synchronous>, transform_indices = @transform_7, window_bounds = array<i64: 8, 32, 32>}, {pipeline_mode = #tpu.pipeline_mode<synchronous>, transform_indices = @transform_8, window_bounds = array<i64: 2, 1, 32>}, {pipeline_mode = #tpu.pipeline_mode<synchronous>, transform_indices = @transform_9, window_bounds = array<i64: 2, 1, 32>}, {pipeline_mode = #tpu.pipeline_mode<synchronous>, transform_indices = @transform_10, window_bounds = array<i64: 2, 1, 32>}, {pipeline_mode = #tpu.pipeline_mode<synchronous>, transform_indices = @transform_11, window_bounds = array<i64: 2, 32, 128>}, {pipeline_mode = #tpu.pipeline_mode<synchronous>, transform_indices = @transform_12, window_bounds = array<i64: 2, 1, 128>}, {pipeline_mode = #tpu.pipeline_mode<synchronous>, transform_indices = @transform_13, window_bounds = array<i64: 2, 128, 32>}, {pipeline_mode = #tpu.pipeline_mode<synchronous>, transform_indices = @transform_14, window_bounds = array<i64: 2, 1, 32>}, {pipeline_mode = #tpu.pipeline_mode<synchronous>, transform_indices = @transform_15, window_bounds = array<i64: 1, 32>}, {pipeline_mode = #tpu.pipeline_mode<synchronous>, transform_indices = @transform_16, window_bounds = array<i64: 1, 32>}, {transform_indices = @transform_17, window_bounds = array<i64: 1, 32, 64>}]} {
    %c0 = arith.constant 0 : index
    %c0_0 = arith.constant 0 : index
    %c0_1 = arith.constant 0 : index
    %0 = vector.load %arg1[%c0, %c0_0, %c0_1] : memref<1x64x16xf32, #tpu.memory_space<vmem>>, vector<1x64x16xf32>
    %1 = vector.shape_cast %0 : vector<1x64x16xf32> to vector<64x16xf32>
    %2 = arith.truncf %1 : vector<64x16xf32> to vector<64x16xbf16>
    %c0_2 = arith.constant 0 : index
    %c0_3 = arith.constant 0 : index
    %3 = vector.load %arg2[%c0_2, %c0_3] : memref<16x32xbf16, #tpu.memory_space<vmem>>, vector<16x32xbf16>
    %cst = arith.constant dense<0.000000e+00> : vector<64x32xf32>
    %4 = tpu.matmul %2, %3, %cst {dimension_numbers = #tpu.dot_dimension_numbers<[1], [0], [0], [1], [0, 0, 1, 1], [], []>} : vector<64x16xbf16>, vector<16x32xbf16>, vector<64x32xf32> -> vector<64x32xf32>
    %c0_4 = arith.constant 0 : index
    %c0_5 = arith.constant 0 : index
    %c0_6 = arith.constant 0 : index
    %5 = vector.load %arg3[%c0_4, %c0_5, %c0_6] : memref<1x64x32xf32, #tpu.memory_space<vmem>>, vector<1x64x32xf32>
    %6 = vector.shape_cast %5 : vector<1x64x32xf32> to vector<64x32xf32>
    %7 = arith.addf %4, %6 : vector<64x32xf32>
    %c0_7 = arith.constant 0 : index
    %c0_8 = arith.constant 0 : index
    %c0_9 = arith.constant 0 : index
    %8 = vector.load %arg4[%c0_7, %c0_8, %c0_9] : memref<2x1x32xf32, #tpu.memory_space<vmem>>, vector<1x1x32xf32>
    %9 = vector.shape_cast %8 : vector<1x1x32xf32> to vector<1x32xf32>
    %c0_10 = arith.constant 0 : index
    %c0_11 = arith.constant 0 : index
    %c0_12 = arith.constant 0 : index
    %10 = vector.load %arg5[%c0_10, %c0_11, %c0_12] : memref<2x1x32xf32, #tpu.memory_space<vmem>>, vector<1x1x32xf32>
    %11 = vector.shape_cast %10 : vector<1x1x32xf32> to vector<1x32xf32>
    %cst_13 = arith.constant dense<0.000000e+00> : vector<64xf32>
    %12 = vector.multi_reduction <add>, %7, %cst_13 [1] : vector<64x32xf32> to vector<64xf32>
    %13 = vector.shape_cast %12 : vector<64xf32> to vector<64x1xf32>
    %cst_14 = arith.constant 3.200000e+01 : f32
    %14 = vector.broadcast %cst_14 : f32 to vector<64x1xf32>
    %15 = arith.divf %13, %14 : vector<64x1xf32>
    %16 = vector.broadcast %15 : vector<64x1xf32> to vector<64x32xf32>
    %17 = arith.subf %7, %16 : vector<64x32xf32>
    %18 = arith.mulf %17, %17 : vector<64x32xf32>
    %cst_15 = arith.constant dense<0.000000e+00> : vector<64xf32>
    %19 = vector.multi_reduction <add>, %18, %cst_15 [1] : vector<64x32xf32> to vector<64xf32>
    %20 = vector.shape_cast %19 : vector<64xf32> to vector<64x1xf32>
    %cst_16 = arith.constant 3.200000e+01 : f32
    %21 = vector.broadcast %cst_16 : f32 to vector<64x1xf32>
    %22 = arith.divf %20, %21 : vector<64x1xf32>
    %23 = vector.broadcast %15 : vector<64x1xf32> to vector<64x32xf32>
    %24 = arith.subf %7, %23 : vector<64x32xf32>
    %cst_17 = arith.constant 9.99999997E-7 : f32
    %25 = vector.broadcast %cst_17 : f32 to vector<64x1xf32>
    %26 = arith.addf %22, %25 : vector<64x1xf32>
    %27 = math.rsqrt %26 : vector<64x1xf32>
    %28 = vector.broadcast %27 : vector<64x1xf32> to vector<64x32xf32>
    %29 = arith.mulf %24, %28 : vector<64x32xf32>
    %30 = vector.broadcast %9 : vector<1x32xf32> to vector<64x32xf32>
    %31 = arith.mulf %29, %30 : vector<64x32xf32>
    %32 = vector.broadcast %11 : vector<1x32xf32> to vector<64x32xf32>
    %33 = arith.addf %31, %32 : vector<64x32xf32>
    %34 = arith.truncf %33 : vector<64x32xf32> to vector<64x32xbf16>
    %cst_18 = arith.constant 0.000000e+00 : f32
    %35 = vector.broadcast %cst_18 : f32 to vector<64x32xf32>
    %c0_i32 = arith.constant 0 : i32
    %c0_i32_19 = arith.constant 0 : i32
    %36 = arith.addi %c0_i32_19, %c0_i32 : i32
    %37 = arith.index_cast %36 : i32 to index
    %c0_20 = arith.constant 0 : index
    %c0_21 = arith.constant 0 : index
    %38 = vector.load %arg6[%37, %c0_20, %c0_21] : memref<8x32x32xbf16, #tpu.memory_space<vmem>>, vector<1x32x32xbf16>
    %39 = vector.shape_cast %38 : vector<1x32x32xbf16> to vector<32x32xbf16>
    %40 = arith.index_cast %36 : i32 to index
    %c0_22 = arith.constant 0 : index
    %c0_23 = arith.constant 0 : index
    %41 = vector.load %arg8[%40, %c0_22, %c0_23] : memref<8x32x32xbf16, #tpu.memory_space<vmem>>, vector<1x32x32xbf16>
    %42 = vector.shape_cast %41 : vector<1x32x32xbf16> to vector<32x32xbf16>
    %43 = arith.index_cast %36 : i32 to index
    %c0_24 = arith.constant 0 : index
    %c0_25 = arith.constant 0 : index
    %44 = vector.load %arg7[%43, %c0_24, %c0_25] : memref<8x1x32xbf16, #tpu.memory_space<vmem>>, vector<1x1x32xbf16>
    %45 = vector.shape_cast %44 : vector<1x1x32xbf16> to vector<1x32xbf16>
    %cst_26 = arith.constant dense<0.000000e+00> : vector<64x32xf32>
    %46 = tpu.matmul %34, %39, %cst_26 {dimension_numbers = #tpu.dot_dimension_numbers<[1], [0], [0], [1], [0, 0, 1, 1], [], []>} : vector<64x32xbf16>, vector<32x32xbf16>, vector<64x32xf32> -> vector<64x32xf32>
    %47 = arith.truncf %46 : vector<64x32xf32> to vector<64x32xbf16>
    %cst_27 = arith.constant dense<0.000000e+00> : vector<64x64xf32>
    %48 = tpu.matmul %47, %34, %cst_27 {dimension_numbers = #tpu.dot_dimension_numbers<[1], [1], [0], [0], [0, 0, 1, 0], [], []>} : vector<64x32xbf16>, vector<64x32xbf16>, vector<64x64xf32> -> vector<64x64xf32>
    %cst_28 = arith.constant dense<0.000000e+00> : vector<1x64xf32>
    %49 = tpu.matmul %45, %34, %cst_28 {dimension_numbers = #tpu.dot_dimension_numbers<[1], [1], [0], [0], [0, 0, 1, 0], [], []>} : vector<1x32xbf16>, vector<64x32xbf16>, vector<1x64xf32> -> vector<1x64xf32>
    %50 = vector.broadcast %49 : vector<1x64xf32> to vector<64x64xf32>
    %51 = arith.addf %48, %50 : vector<64x64xf32>
    %cst_29 = arith.constant dense<0xFF800000> : vector<64xf32>
    %52 = vector.multi_reduction <maximumf>, %51, %cst_29 [1] : vector<64x64xf32> to vector<64xf32>
    %53 = vector.shape_cast %52 : vector<64xf32> to vector<64x1xf32>
    %54 = vector.broadcast %53 : vector<64x1xf32> to vector<64x64xf32>
    %55 = arith.subf %51, %54 : vector<64x64xf32>
    %56 = math.exp %55 : vector<64x64xf32>
    %cst_30 = arith.constant dense<0.000000e+00> : vector<64xf32>
    %57 = vector.multi_reduction <add>, %56, %cst_30 [1] : vector<64x64xf32> to vector<64xf32>
    %58 = vector.shape_cast %57 : vector<64xf32> to vector<64x1xf32>
    %59 = vector.broadcast %58 : vector<64x1xf32> to vector<64x64xf32>
    %60 = arith.divf %56, %59 : vector<64x64xf32>
    %cst_31 = arith.constant dense<0.000000e+00> : vector<64x32xf32>
    %61 = tpu.matmul %34, %42, %cst_31 {dimension_numbers = #tpu.dot_dimension_numbers<[1], [0], [0], [1], [0, 0, 1, 1], [], []>} : vector<64x32xbf16>, vector<32x32xbf16>, vector<64x32xf32> -> vector<64x32xf32>
    %62 = arith.truncf %60 : vector<64x64xf32> to vector<64x64xbf16>
    %63 = arith.truncf %61 : vector<64x32xf32> to vector<64x32xbf16>
    %cst_32 = arith.constant dense<0.000000e+00> : vector<64x32xf32>
    %64 = tpu.matmul %62, %63, %cst_32 {dimension_numbers = #tpu.dot_dimension_numbers<[1], [0], [0], [1], [0, 0, 1, 1], [], []>} : vector<64x64xbf16>, vector<64x32xbf16>, vector<64x32xf32> -> vector<64x32xf32>
    %65 = arith.addf %35, %64 : vector<64x32xf32>
    %c1_i32 = arith.constant 1 : i32
    %c0_i32_33 = arith.constant 0 : i32
    %66 = arith.addi %c0_i32_33, %c1_i32 : i32
    %67 = arith.index_cast %66 : i32 to index
    %c0_34 = arith.constant 0 : index
    %c0_35 = arith.constant 0 : index
    %68 = vector.load %arg6[%67, %c0_34, %c0_35] : memref<8x32x32xbf16, #tpu.memory_space<vmem>>, vector<1x32x32xbf16>
    %69 = vector.shape_cast %68 : vector<1x32x32xbf16> to vector<32x32xbf16>
    %70 = arith.index_cast %66 : i32 to index
    %c0_36 = arith.constant 0 : index
    %c0_37 = arith.constant 0 : index
    %71 = vector.load %arg8[%70, %c0_36, %c0_37] : memref<8x32x32xbf16, #tpu.memory_space<vmem>>, vector<1x32x32xbf16>
    %72 = vector.shape_cast %71 : vector<1x32x32xbf16> to vector<32x32xbf16>
    %73 = arith.index_cast %66 : i32 to index
    %c0_38 = arith.constant 0 : index
    %c0_39 = arith.constant 0 : index
    %74 = vector.load %arg7[%73, %c0_38, %c0_39] : memref<8x1x32xbf16, #tpu.memory_space<vmem>>, vector<1x1x32xbf16>
    %75 = vector.shape_cast %74 : vector<1x1x32xbf16> to vector<1x32xbf16>
    %cst_40 = arith.constant dense<0.000000e+00> : vector<64x32xf32>
    %76 = tpu.matmul %34, %69, %cst_40 {dimension_numbers = #tpu.dot_dimension_numbers<[1], [0], [0], [1], [0, 0, 1, 1], [], []>} : vector<64x32xbf16>, vector<32x32xbf16>, vector<64x32xf32> -> vector<64x32xf32>
    %77 = arith.truncf %76 : vector<64x32xf32> to vector<64x32xbf16>
    %cst_41 = arith.constant dense<0.000000e+00> : vector<64x64xf32>
    %78 = tpu.matmul %77, %34, %cst_41 {dimension_numbers = #tpu.dot_dimension_numbers<[1], [1], [0], [0], [0, 0, 1, 0], [], []>} : vector<64x32xbf16>, vector<64x32xbf16>, vector<64x64xf32> -> vector<64x64xf32>
    %cst_42 = arith.constant dense<0.000000e+00> : vector<1x64xf32>
    %79 = tpu.matmul %75, %34, %cst_42 {dimension_numbers = #tpu.dot_dimension_numbers<[1], [1], [0], [0], [0, 0, 1, 0], [], []>} : vector<1x32xbf16>, vector<64x32xbf16>, vector<1x64xf32> -> vector<1x64xf32>
    %80 = vector.broadcast %79 : vector<1x64xf32> to vector<64x64xf32>
    %81 = arith.addf %78, %80 : vector<64x64xf32>
    %cst_43 = arith.constant dense<0xFF800000> : vector<64xf32>
    %82 = vector.multi_reduction <maximumf>, %81, %cst_43 [1] : vector<64x64xf32> to vector<64xf32>
    %83 = vector.shape_cast %82 : vector<64xf32> to vector<64x1xf32>
    %84 = vector.broadcast %83 : vector<64x1xf32> to vector<64x64xf32>
    %85 = arith.subf %81, %84 : vector<64x64xf32>
    %86 = math.exp %85 : vector<64x64xf32>
    %cst_44 = arith.constant dense<0.000000e+00> : vector<64xf32>
    %87 = vector.multi_reduction <add>, %86, %cst_44 [1] : vector<64x64xf32> to vector<64xf32>
    %88 = vector.shape_cast %87 : vector<64xf32> to vector<64x1xf32>
    %89 = vector.broadcast %88 : vector<64x1xf32> to vector<64x64xf32>
    %90 = arith.divf %86, %89 : vector<64x64xf32>
    %cst_45 = arith.constant dense<0.000000e+00> : vector<64x32xf32>
    %91 = tpu.matmul %34, %72, %cst_45 {dimension_numbers = #tpu.dot_dimension_numbers<[1], [0], [0], [1], [0, 0, 1, 1], [], []>} : vector<64x32xbf16>, vector<32x32xbf16>, vector<64x32xf32> -> vector<64x32xf32>
    %92 = arith.truncf %90 : vector<64x64xf32> to vector<64x64xbf16>
    %93 = arith.truncf %91 : vector<64x32xf32> to vector<64x32xbf16>
    %cst_46 = arith.constant dense<0.000000e+00> : vector<64x32xf32>
    %94 = tpu.matmul %92, %93, %cst_46 {dimension_numbers = #tpu.dot_dimension_numbers<[1], [0], [0], [1], [0, 0, 1, 1], [], []>} : vector<64x64xbf16>, vector<64x32xbf16>, vector<64x32xf32> -> vector<64x32xf32>
    %95 = arith.addf %65, %94 : vector<64x32xf32>
    %c2_i32 = arith.constant 2 : i32
    %c0_i32_47 = arith.constant 0 : i32
    %96 = arith.addi %c0_i32_47, %c2_i32 : i32
    %97 = arith.index_cast %96 : i32 to index
    %c0_48 = arith.constant 0 : index
    %c0_49 = arith.constant 0 : index
    %98 = vector.load %arg6[%97, %c0_48, %c0_49] : memref<8x32x32xbf16, #tpu.memory_space<vmem>>, vector<1x32x32xbf16>
    %99 = vector.shape_cast %98 : vector<1x32x32xbf16> to vector<32x32xbf16>
    %100 = arith.index_cast %96 : i32 to index
    %c0_50 = arith.constant 0 : index
    %c0_51 = arith.constant 0 : index
    %101 = vector.load %arg8[%100, %c0_50, %c0_51] : memref<8x32x32xbf16, #tpu.memory_space<vmem>>, vector<1x32x32xbf16>
    %102 = vector.shape_cast %101 : vector<1x32x32xbf16> to vector<32x32xbf16>
    %103 = arith.index_cast %96 : i32 to index
    %c0_52 = arith.constant 0 : index
    %c0_53 = arith.constant 0 : index
    %104 = vector.load %arg7[%103, %c0_52, %c0_53] : memref<8x1x32xbf16, #tpu.memory_space<vmem>>, vector<1x1x32xbf16>
    %105 = vector.shape_cast %104 : vector<1x1x32xbf16> to vector<1x32xbf16>
    %cst_54 = arith.constant dense<0.000000e+00> : vector<64x32xf32>
    %106 = tpu.matmul %34, %99, %cst_54 {dimension_numbers = #tpu.dot_dimension_numbers<[1], [0], [0], [1], [0, 0, 1, 1], [], []>} : vector<64x32xbf16>, vector<32x32xbf16>, vector<64x32xf32> -> vector<64x32xf32>
    %107 = arith.truncf %106 : vector<64x32xf32> to vector<64x32xbf16>
    %cst_55 = arith.constant dense<0.000000e+00> : vector<64x64xf32>
    %108 = tpu.matmul %107, %34, %cst_55 {dimension_numbers = #tpu.dot_dimension_numbers<[1], [1], [0], [0], [0, 0, 1, 0], [], []>} : vector<64x32xbf16>, vector<64x32xbf16>, vector<64x64xf32> -> vector<64x64xf32>
    %cst_56 = arith.constant dense<0.000000e+00> : vector<1x64xf32>
    %109 = tpu.matmul %105, %34, %cst_56 {dimension_numbers = #tpu.dot_dimension_numbers<[1], [1], [0], [0], [0, 0, 1, 0], [], []>} : vector<1x32xbf16>, vector<64x32xbf16>, vector<1x64xf32> -> vector<1x64xf32>
    %110 = vector.broadcast %109 : vector<1x64xf32> to vector<64x64xf32>
    %111 = arith.addf %108, %110 : vector<64x64xf32>
    %cst_57 = arith.constant dense<0xFF800000> : vector<64xf32>
    %112 = vector.multi_reduction <maximumf>, %111, %cst_57 [1] : vector<64x64xf32> to vector<64xf32>
    %113 = vector.shape_cast %112 : vector<64xf32> to vector<64x1xf32>
    %114 = vector.broadcast %113 : vector<64x1xf32> to vector<64x64xf32>
    %115 = arith.subf %111, %114 : vector<64x64xf32>
    %116 = math.exp %115 : vector<64x64xf32>
    %cst_58 = arith.constant dense<0.000000e+00> : vector<64xf32>
    %117 = vector.multi_reduction <add>, %116, %cst_58 [1] : vector<64x64xf32> to vector<64xf32>
    %118 = vector.shape_cast %117 : vector<64xf32> to vector<64x1xf32>
    %119 = vector.broadcast %118 : vector<64x1xf32> to vector<64x64xf32>
    %120 = arith.divf %116, %119 : vector<64x64xf32>
    %cst_59 = arith.constant dense<0.000000e+00> : vector<64x32xf32>
    %121 = tpu.matmul %34, %102, %cst_59 {dimension_numbers = #tpu.dot_dimension_numbers<[1], [0], [0], [1], [0, 0, 1, 1], [], []>} : vector<64x32xbf16>, vector<32x32xbf16>, vector<64x32xf32> -> vector<64x32xf32>
    %122 = arith.truncf %120 : vector<64x64xf32> to vector<64x64xbf16>
    %123 = arith.truncf %121 : vector<64x32xf32> to vector<64x32xbf16>
    %cst_60 = arith.constant dense<0.000000e+00> : vector<64x32xf32>
    %124 = tpu.matmul %122, %123, %cst_60 {dimension_numbers = #tpu.dot_dimension_numbers<[1], [0], [0], [1], [0, 0, 1, 1], [], []>} : vector<64x64xbf16>, vector<64x32xbf16>, vector<64x32xf32> -> vector<64x32xf32>
    %125 = arith.addf %95, %124 : vector<64x32xf32>
    %c3_i32 = arith.constant 3 : i32
    %c0_i32_61 = arith.constant 0 : i32
    %126 = arith.addi %c0_i32_61, %c3_i32 : i32
    %127 = arith.index_cast %126 : i32 to index
    %c0_62 = arith.constant 0 : index
    %c0_63 = arith.constant 0 : index
    %128 = vector.load %arg6[%127, %c0_62, %c0_63] : memref<8x32x32xbf16, #tpu.memory_space<vmem>>, vector<1x32x32xbf16>
    %129 = vector.shape_cast %128 : vector<1x32x32xbf16> to vector<32x32xbf16>
    %130 = arith.index_cast %126 : i32 to index
    %c0_64 = arith.constant 0 : index
    %c0_65 = arith.constant 0 : index
    %131 = vector.load %arg8[%130, %c0_64, %c0_65] : memref<8x32x32xbf16, #tpu.memory_space<vmem>>, vector<1x32x32xbf16>
    %132 = vector.shape_cast %131 : vector<1x32x32xbf16> to vector<32x32xbf16>
    %133 = arith.index_cast %126 : i32 to index
    %c0_66 = arith.constant 0 : index
    %c0_67 = arith.constant 0 : index
    %134 = vector.load %arg7[%133, %c0_66, %c0_67] : memref<8x1x32xbf16, #tpu.memory_space<vmem>>, vector<1x1x32xbf16>
    %135 = vector.shape_cast %134 : vector<1x1x32xbf16> to vector<1x32xbf16>
    %cst_68 = arith.constant dense<0.000000e+00> : vector<64x32xf32>
    %136 = tpu.matmul %34, %129, %cst_68 {dimension_numbers = #tpu.dot_dimension_numbers<[1], [0], [0], [1], [0, 0, 1, 1], [], []>} : vector<64x32xbf16>, vector<32x32xbf16>, vector<64x32xf32> -> vector<64x32xf32>
    %137 = arith.truncf %136 : vector<64x32xf32> to vector<64x32xbf16>
    %cst_69 = arith.constant dense<0.000000e+00> : vector<64x64xf32>
    %138 = tpu.matmul %137, %34, %cst_69 {dimension_numbers = #tpu.dot_dimension_numbers<[1], [1], [0], [0], [0, 0, 1, 0], [], []>} : vector<64x32xbf16>, vector<64x32xbf16>, vector<64x64xf32> -> vector<64x64xf32>
    %cst_70 = arith.constant dense<0.000000e+00> : vector<1x64xf32>
    %139 = tpu.matmul %135, %34, %cst_70 {dimension_numbers = #tpu.dot_dimension_numbers<[1], [1], [0], [0], [0, 0, 1, 0], [], []>} : vector<1x32xbf16>, vector<64x32xbf16>, vector<1x64xf32> -> vector<1x64xf32>
    %140 = vector.broadcast %139 : vector<1x64xf32> to vector<64x64xf32>
    %141 = arith.addf %138, %140 : vector<64x64xf32>
    %cst_71 = arith.constant dense<0xFF800000> : vector<64xf32>
    %142 = vector.multi_reduction <maximumf>, %141, %cst_71 [1] : vector<64x64xf32> to vector<64xf32>
    %143 = vector.shape_cast %142 : vector<64xf32> to vector<64x1xf32>
    %144 = vector.broadcast %143 : vector<64x1xf32> to vector<64x64xf32>
    %145 = arith.subf %141, %144 : vector<64x64xf32>
    %146 = math.exp %145 : vector<64x64xf32>
    %cst_72 = arith.constant dense<0.000000e+00> : vector<64xf32>
    %147 = vector.multi_reduction <add>, %146, %cst_72 [1] : vector<64x64xf32> to vector<64xf32>
    %148 = vector.shape_cast %147 : vector<64xf32> to vector<64x1xf32>
    %149 = vector.broadcast %148 : vector<64x1xf32> to vector<64x64xf32>
    %150 = arith.divf %146, %149 : vector<64x64xf32>
    %cst_73 = arith.constant dense<0.000000e+00> : vector<64x32xf32>
    %151 = tpu.matmul %34, %132, %cst_73 {dimension_numbers = #tpu.dot_dimension_numbers<[1], [0], [0], [1], [0, 0, 1, 1], [], []>} : vector<64x32xbf16>, vector<32x32xbf16>, vector<64x32xf32> -> vector<64x32xf32>
    %152 = arith.truncf %150 : vector<64x64xf32> to vector<64x64xbf16>
    %153 = arith.truncf %151 : vector<64x32xf32> to vector<64x32xbf16>
    %cst_74 = arith.constant dense<0.000000e+00> : vector<64x32xf32>
    %154 = tpu.matmul %152, %153, %cst_74 {dimension_numbers = #tpu.dot_dimension_numbers<[1], [0], [0], [1], [0, 0, 1, 1], [], []>} : vector<64x64xbf16>, vector<64x32xbf16>, vector<64x32xf32> -> vector<64x32xf32>
    %155 = arith.addf %125, %154 : vector<64x32xf32>
    %c4_i32 = arith.constant 4 : i32
    %156 = arith.addf %7, %155 : vector<64x32xf32>
    %c0_75 = arith.constant 0 : index
    %c0_76 = arith.constant 0 : index
    %c0_77 = arith.constant 0 : index
    %157 = vector.load %arg9[%c0_75, %c0_76, %c0_77] : memref<2x1x32xf32, #tpu.memory_space<vmem>>, vector<1x1x32xf32>
    %158 = vector.shape_cast %157 : vector<1x1x32xf32> to vector<1x32xf32>
    %159 = vector.broadcast %158 : vector<1x32xf32> to vector<64x32xf32>
    %160 = arith.addf %156, %159 : vector<64x32xf32>
    %c0_78 = arith.constant 0 : index
    %c0_79 = arith.constant 0 : index
    %c0_80 = arith.constant 0 : index
    %161 = vector.load %arg10[%c0_78, %c0_79, %c0_80] : memref<2x1x32xf32, #tpu.memory_space<vmem>>, vector<1x1x32xf32>
    %162 = vector.shape_cast %161 : vector<1x1x32xf32> to vector<1x32xf32>
    %c0_81 = arith.constant 0 : index
    %c0_82 = arith.constant 0 : index
    %c0_83 = arith.constant 0 : index
    %163 = vector.load %arg11[%c0_81, %c0_82, %c0_83] : memref<2x1x32xf32, #tpu.memory_space<vmem>>, vector<1x1x32xf32>
    %164 = vector.shape_cast %163 : vector<1x1x32xf32> to vector<1x32xf32>
    %cst_84 = arith.constant dense<0.000000e+00> : vector<64xf32>
    %165 = vector.multi_reduction <add>, %160, %cst_84 [1] : vector<64x32xf32> to vector<64xf32>
    %166 = vector.shape_cast %165 : vector<64xf32> to vector<64x1xf32>
    %cst_85 = arith.constant 3.200000e+01 : f32
    %167 = vector.broadcast %cst_85 : f32 to vector<64x1xf32>
    %168 = arith.divf %166, %167 : vector<64x1xf32>
    %169 = vector.broadcast %168 : vector<64x1xf32> to vector<64x32xf32>
    %170 = arith.subf %160, %169 : vector<64x32xf32>
    %171 = arith.mulf %170, %170 : vector<64x32xf32>
    %cst_86 = arith.constant dense<0.000000e+00> : vector<64xf32>
    %172 = vector.multi_reduction <add>, %171, %cst_86 [1] : vector<64x32xf32> to vector<64xf32>
    %173 = vector.shape_cast %172 : vector<64xf32> to vector<64x1xf32>
    %cst_87 = arith.constant 3.200000e+01 : f32
    %174 = vector.broadcast %cst_87 : f32 to vector<64x1xf32>
    %175 = arith.divf %173, %174 : vector<64x1xf32>
    %176 = vector.broadcast %168 : vector<64x1xf32> to vector<64x32xf32>
    %177 = arith.subf %160, %176 : vector<64x32xf32>
    %cst_88 = arith.constant 9.99999997E-7 : f32
    %178 = vector.broadcast %cst_88 : f32 to vector<64x1xf32>
    %179 = arith.addf %175, %178 : vector<64x1xf32>
    %180 = math.rsqrt %179 : vector<64x1xf32>
    %181 = vector.broadcast %180 : vector<64x1xf32> to vector<64x32xf32>
    %182 = arith.mulf %177, %181 : vector<64x32xf32>
    %183 = vector.broadcast %162 : vector<1x32xf32> to vector<64x32xf32>
    %184 = arith.mulf %182, %183 : vector<64x32xf32>
    %185 = vector.broadcast %164 : vector<1x32xf32> to vector<64x32xf32>
    %186 = arith.addf %184, %185 : vector<64x32xf32>
    %187 = arith.truncf %186 : vector<64x32xf32> to vector<64x32xbf16>
    %c0_89 = arith.constant 0 : index
    %c0_90 = arith.constant 0 : index
    %c0_91 = arith.constant 0 : index
    %188 = vector.load %arg12[%c0_89, %c0_90, %c0_91] : memref<2x32x128xbf16, #tpu.memory_space<vmem>>, vector<1x32x128xbf16>
    %189 = vector.shape_cast %188 : vector<1x32x128xbf16> to vector<32x128xbf16>
    %cst_92 = arith.constant dense<0.000000e+00> : vector<64x128xf32>
    %190 = tpu.matmul %187, %189, %cst_92 {dimension_numbers = #tpu.dot_dimension_numbers<[1], [0], [0], [1], [0, 0, 1, 1], [], []>} : vector<64x32xbf16>, vector<32x128xbf16>, vector<64x128xf32> -> vector<64x128xf32>
    %c0_93 = arith.constant 0 : index
    %c0_94 = arith.constant 0 : index
    %c0_95 = arith.constant 0 : index
    %191 = vector.load %arg13[%c0_93, %c0_94, %c0_95] : memref<2x1x128xf32, #tpu.memory_space<vmem>>, vector<1x1x128xf32>
    %192 = vector.shape_cast %191 : vector<1x1x128xf32> to vector<1x128xf32>
    %193 = vector.broadcast %192 : vector<1x128xf32> to vector<64x128xf32>
    %194 = arith.addf %190, %193 : vector<64x128xf32>
    %195 = arith.mulf %194, %194 : vector<64x128xf32>
    %196 = arith.mulf %194, %195 : vector<64x128xf32>
    %cst_96 = arith.constant 4.471500e-02 : f32
    %197 = vector.broadcast %cst_96 : f32 to vector<64x128xf32>
    %198 = arith.mulf %197, %196 : vector<64x128xf32>
    %199 = arith.addf %194, %198 : vector<64x128xf32>
    %cst_97 = arith.constant 0.797884583 : f32
    %200 = vector.broadcast %cst_97 : f32 to vector<64x128xf32>
    %201 = arith.mulf %200, %199 : vector<64x128xf32>
    %202 = math.tanh %201 : vector<64x128xf32>
    %cst_98 = arith.constant 1.000000e+00 : f32
    %203 = vector.broadcast %cst_98 : f32 to vector<64x128xf32>
    %204 = arith.addf %203, %202 : vector<64x128xf32>
    %cst_99 = arith.constant 5.000000e-01 : f32
    %205 = vector.broadcast %cst_99 : f32 to vector<64x128xf32>
    %206 = arith.mulf %205, %204 : vector<64x128xf32>
    %207 = arith.mulf %194, %206 : vector<64x128xf32>
    %208 = arith.truncf %207 : vector<64x128xf32> to vector<64x128xbf16>
    %c0_100 = arith.constant 0 : index
    %c0_101 = arith.constant 0 : index
    %c0_102 = arith.constant 0 : index
    %209 = vector.load %arg14[%c0_100, %c0_101, %c0_102] : memref<2x128x32xbf16, #tpu.memory_space<vmem>>, vector<1x128x32xbf16>
    %210 = vector.shape_cast %209 : vector<1x128x32xbf16> to vector<128x32xbf16>
    %cst_103 = arith.constant dense<0.000000e+00> : vector<64x32xf32>
    %211 = tpu.matmul %208, %210, %cst_103 {dimension_numbers = #tpu.dot_dimension_numbers<[1], [0], [0], [1], [0, 0, 1, 1], [], []>} : vector<64x128xbf16>, vector<128x32xbf16>, vector<64x32xf32> -> vector<64x32xf32>
    %212 = arith.addf %160, %211 : vector<64x32xf32>
    %c0_104 = arith.constant 0 : index
    %c0_105 = arith.constant 0 : index
    %c0_106 = arith.constant 0 : index
    %213 = vector.load %arg15[%c0_104, %c0_105, %c0_106] : memref<2x1x32xf32, #tpu.memory_space<vmem>>, vector<1x1x32xf32>
    %214 = vector.shape_cast %213 : vector<1x1x32xf32> to vector<1x32xf32>
    %215 = vector.broadcast %214 : vector<1x32xf32> to vector<64x32xf32>
    %216 = arith.addf %212, %215 : vector<64x32xf32>
    %c1 = arith.constant 1 : index
    %c0_107 = arith.constant 0 : index
    %c0_108 = arith.constant 0 : index
    %217 = vector.load %arg4[%c1, %c0_107, %c0_108] : memref<2x1x32xf32, #tpu.memory_space<vmem>>, vector<1x1x32xf32>
    %218 = vector.shape_cast %217 : vector<1x1x32xf32> to vector<1x32xf32>
    %c1_109 = arith.constant 1 : index
    %c0_110 = arith.constant 0 : index
    %c0_111 = arith.constant 0 : index
    %219 = vector.load %arg5[%c1_109, %c0_110, %c0_111] : memref<2x1x32xf32, #tpu.memory_space<vmem>>, vector<1x1x32xf32>
    %220 = vector.shape_cast %219 : vector<1x1x32xf32> to vector<1x32xf32>
    %cst_112 = arith.constant dense<0.000000e+00> : vector<64xf32>
    %221 = vector.multi_reduction <add>, %216, %cst_112 [1] : vector<64x32xf32> to vector<64xf32>
    %222 = vector.shape_cast %221 : vector<64xf32> to vector<64x1xf32>
    %cst_113 = arith.constant 3.200000e+01 : f32
    %223 = vector.broadcast %cst_113 : f32 to vector<64x1xf32>
    %224 = arith.divf %222, %223 : vector<64x1xf32>
    %225 = vector.broadcast %224 : vector<64x1xf32> to vector<64x32xf32>
    %226 = arith.subf %216, %225 : vector<64x32xf32>
    %227 = arith.mulf %226, %226 : vector<64x32xf32>
    %cst_114 = arith.constant dense<0.000000e+00> : vector<64xf32>
    %228 = vector.multi_reduction <add>, %227, %cst_114 [1] : vector<64x32xf32> to vector<64xf32>
    %229 = vector.shape_cast %228 : vector<64xf32> to vector<64x1xf32>
    %cst_115 = arith.constant 3.200000e+01 : f32
    %230 = vector.broadcast %cst_115 : f32 to vector<64x1xf32>
    %231 = arith.divf %229, %230 : vector<64x1xf32>
    %232 = vector.broadcast %224 : vector<64x1xf32> to vector<64x32xf32>
    %233 = arith.subf %216, %232 : vector<64x32xf32>
    %cst_116 = arith.constant 9.99999997E-7 : f32
    %234 = vector.broadcast %cst_116 : f32 to vector<64x1xf32>
    %235 = arith.addf %231, %234 : vector<64x1xf32>
    %236 = math.rsqrt %235 : vector<64x1xf32>
    %237 = vector.broadcast %236 : vector<64x1xf32> to vector<64x32xf32>
    %238 = arith.mulf %233, %237 : vector<64x32xf32>
    %239 = vector.broadcast %218 : vector<1x32xf32> to vector<64x32xf32>
    %240 = arith.mulf %238, %239 : vector<64x32xf32>
    %241 = vector.broadcast %220 : vector<1x32xf32> to vector<64x32xf32>
    %242 = arith.addf %240, %241 : vector<64x32xf32>
    %243 = arith.truncf %242 : vector<64x32xf32> to vector<64x32xbf16>
    %cst_117 = arith.constant 0.000000e+00 : f32
    %244 = vector.broadcast %cst_117 : f32 to vector<64x32xf32>
    %c0_i32_118 = arith.constant 0 : i32
    %c4_i32_119 = arith.constant 4 : i32
    %245 = arith.addi %c4_i32_119, %c0_i32_118 : i32
    %246 = arith.index_cast %245 : i32 to index
    %c0_120 = arith.constant 0 : index
    %c0_121 = arith.constant 0 : index
    %247 = vector.load %arg6[%246, %c0_120, %c0_121] : memref<8x32x32xbf16, #tpu.memory_space<vmem>>, vector<1x32x32xbf16>
    %248 = vector.shape_cast %247 : vector<1x32x32xbf16> to vector<32x32xbf16>
    %249 = arith.index_cast %245 : i32 to index
    %c0_122 = arith.constant 0 : index
    %c0_123 = arith.constant 0 : index
    %250 = vector.load %arg8[%249, %c0_122, %c0_123] : memref<8x32x32xbf16, #tpu.memory_space<vmem>>, vector<1x32x32xbf16>
    %251 = vector.shape_cast %250 : vector<1x32x32xbf16> to vector<32x32xbf16>
    %252 = arith.index_cast %245 : i32 to index
    %c0_124 = arith.constant 0 : index
    %c0_125 = arith.constant 0 : index
    %253 = vector.load %arg7[%252, %c0_124, %c0_125] : memref<8x1x32xbf16, #tpu.memory_space<vmem>>, vector<1x1x32xbf16>
    %254 = vector.shape_cast %253 : vector<1x1x32xbf16> to vector<1x32xbf16>
    %cst_126 = arith.constant dense<0.000000e+00> : vector<64x32xf32>
    %255 = tpu.matmul %243, %248, %cst_126 {dimension_numbers = #tpu.dot_dimension_numbers<[1], [0], [0], [1], [0, 0, 1, 1], [], []>} : vector<64x32xbf16>, vector<32x32xbf16>, vector<64x32xf32> -> vector<64x32xf32>
    %256 = arith.truncf %255 : vector<64x32xf32> to vector<64x32xbf16>
    %cst_127 = arith.constant dense<0.000000e+00> : vector<64x64xf32>
    %257 = tpu.matmul %256, %243, %cst_127 {dimension_numbers = #tpu.dot_dimension_numbers<[1], [1], [0], [0], [0, 0, 1, 0], [], []>} : vector<64x32xbf16>, vector<64x32xbf16>, vector<64x64xf32> -> vector<64x64xf32>
    %cst_128 = arith.constant dense<0.000000e+00> : vector<1x64xf32>
    %258 = tpu.matmul %254, %243, %cst_128 {dimension_numbers = #tpu.dot_dimension_numbers<[1], [1], [0], [0], [0, 0, 1, 0], [], []>} : vector<1x32xbf16>, vector<64x32xbf16>, vector<1x64xf32> -> vector<1x64xf32>
    %259 = vector.broadcast %258 : vector<1x64xf32> to vector<64x64xf32>
    %260 = arith.addf %257, %259 : vector<64x64xf32>
    %cst_129 = arith.constant dense<0xFF800000> : vector<64xf32>
    %261 = vector.multi_reduction <maximumf>, %260, %cst_129 [1] : vector<64x64xf32> to vector<64xf32>
    %262 = vector.shape_cast %261 : vector<64xf32> to vector<64x1xf32>
    %263 = vector.broadcast %262 : vector<64x1xf32> to vector<64x64xf32>
    %264 = arith.subf %260, %263 : vector<64x64xf32>
    %265 = math.exp %264 : vector<64x64xf32>
    %cst_130 = arith.constant dense<0.000000e+00> : vector<64xf32>
    %266 = vector.multi_reduction <add>, %265, %cst_130 [1] : vector<64x64xf32> to vector<64xf32>
    %267 = vector.shape_cast %266 : vector<64xf32> to vector<64x1xf32>
    %268 = vector.broadcast %267 : vector<64x1xf32> to vector<64x64xf32>
    %269 = arith.divf %265, %268 : vector<64x64xf32>
    %cst_131 = arith.constant dense<0.000000e+00> : vector<64x32xf32>
    %270 = tpu.matmul %243, %251, %cst_131 {dimension_numbers = #tpu.dot_dimension_numbers<[1], [0], [0], [1], [0, 0, 1, 1], [], []>} : vector<64x32xbf16>, vector<32x32xbf16>, vector<64x32xf32> -> vector<64x32xf32>
    %271 = arith.truncf %269 : vector<64x64xf32> to vector<64x64xbf16>
    %272 = arith.truncf %270 : vector<64x32xf32> to vector<64x32xbf16>
    %cst_132 = arith.constant dense<0.000000e+00> : vector<64x32xf32>
    %273 = tpu.matmul %271, %272, %cst_132 {dimension_numbers = #tpu.dot_dimension_numbers<[1], [0], [0], [1], [0, 0, 1, 1], [], []>} : vector<64x64xbf16>, vector<64x32xbf16>, vector<64x32xf32> -> vector<64x32xf32>
    %274 = arith.addf %244, %273 : vector<64x32xf32>
    %c1_i32_133 = arith.constant 1 : i32
    %c4_i32_134 = arith.constant 4 : i32
    %275 = arith.addi %c4_i32_134, %c1_i32_133 : i32
    %276 = arith.index_cast %275 : i32 to index
    %c0_135 = arith.constant 0 : index
    %c0_136 = arith.constant 0 : index
    %277 = vector.load %arg6[%276, %c0_135, %c0_136] : memref<8x32x32xbf16, #tpu.memory_space<vmem>>, vector<1x32x32xbf16>
    %278 = vector.shape_cast %277 : vector<1x32x32xbf16> to vector<32x32xbf16>
    %279 = arith.index_cast %275 : i32 to index
    %c0_137 = arith.constant 0 : index
    %c0_138 = arith.constant 0 : index
    %280 = vector.load %arg8[%279, %c0_137, %c0_138] : memref<8x32x32xbf16, #tpu.memory_space<vmem>>, vector<1x32x32xbf16>
    %281 = vector.shape_cast %280 : vector<1x32x32xbf16> to vector<32x32xbf16>
    %282 = arith.index_cast %275 : i32 to index
    %c0_139 = arith.constant 0 : index
    %c0_140 = arith.constant 0 : index
    %283 = vector.load %arg7[%282, %c0_139, %c0_140] : memref<8x1x32xbf16, #tpu.memory_space<vmem>>, vector<1x1x32xbf16>
    %284 = vector.shape_cast %283 : vector<1x1x32xbf16> to vector<1x32xbf16>
    %cst_141 = arith.constant dense<0.000000e+00> : vector<64x32xf32>
    %285 = tpu.matmul %243, %278, %cst_141 {dimension_numbers = #tpu.dot_dimension_numbers<[1], [0], [0], [1], [0, 0, 1, 1], [], []>} : vector<64x32xbf16>, vector<32x32xbf16>, vector<64x32xf32> -> vector<64x32xf32>
    %286 = arith.truncf %285 : vector<64x32xf32> to vector<64x32xbf16>
    %cst_142 = arith.constant dense<0.000000e+00> : vector<64x64xf32>
    %287 = tpu.matmul %286, %243, %cst_142 {dimension_numbers = #tpu.dot_dimension_numbers<[1], [1], [0], [0], [0, 0, 1, 0], [], []>} : vector<64x32xbf16>, vector<64x32xbf16>, vector<64x64xf32> -> vector<64x64xf32>
    %cst_143 = arith.constant dense<0.000000e+00> : vector<1x64xf32>
    %288 = tpu.matmul %284, %243, %cst_143 {dimension_numbers = #tpu.dot_dimension_numbers<[1], [1], [0], [0], [0, 0, 1, 0], [], []>} : vector<1x32xbf16>, vector<64x32xbf16>, vector<1x64xf32> -> vector<1x64xf32>
    %289 = vector.broadcast %288 : vector<1x64xf32> to vector<64x64xf32>
    %290 = arith.addf %287, %289 : vector<64x64xf32>
    %cst_144 = arith.constant dense<0xFF800000> : vector<64xf32>
    %291 = vector.multi_reduction <maximumf>, %290, %cst_144 [1] : vector<64x64xf32> to vector<64xf32>
    %292 = vector.shape_cast %291 : vector<64xf32> to vector<64x1xf32>
    %293 = vector.broadcast %292 : vector<64x1xf32> to vector<64x64xf32>
    %294 = arith.subf %290, %293 : vector<64x64xf32>
    %295 = math.exp %294 : vector<64x64xf32>
    %cst_145 = arith.constant dense<0.000000e+00> : vector<64xf32>
    %296 = vector.multi_reduction <add>, %295, %cst_145 [1] : vector<64x64xf32> to vector<64xf32>
    %297 = vector.shape_cast %296 : vector<64xf32> to vector<64x1xf32>
    %298 = vector.broadcast %297 : vector<64x1xf32> to vector<64x64xf32>
    %299 = arith.divf %295, %298 : vector<64x64xf32>
    %cst_146 = arith.constant dense<0.000000e+00> : vector<64x32xf32>
    %300 = tpu.matmul %243, %281, %cst_146 {dimension_numbers = #tpu.dot_dimension_numbers<[1], [0], [0], [1], [0, 0, 1, 1], [], []>} : vector<64x32xbf16>, vector<32x32xbf16>, vector<64x32xf32> -> vector<64x32xf32>
    %301 = arith.truncf %299 : vector<64x64xf32> to vector<64x64xbf16>
    %302 = arith.truncf %300 : vector<64x32xf32> to vector<64x32xbf16>
    %cst_147 = arith.constant dense<0.000000e+00> : vector<64x32xf32>
    %303 = tpu.matmul %301, %302, %cst_147 {dimension_numbers = #tpu.dot_dimension_numbers<[1], [0], [0], [1], [0, 0, 1, 1], [], []>} : vector<64x64xbf16>, vector<64x32xbf16>, vector<64x32xf32> -> vector<64x32xf32>
    %304 = arith.addf %274, %303 : vector<64x32xf32>
    %c2_i32_148 = arith.constant 2 : i32
    %c4_i32_149 = arith.constant 4 : i32
    %305 = arith.addi %c4_i32_149, %c2_i32_148 : i32
    %306 = arith.index_cast %305 : i32 to index
    %c0_150 = arith.constant 0 : index
    %c0_151 = arith.constant 0 : index
    %307 = vector.load %arg6[%306, %c0_150, %c0_151] : memref<8x32x32xbf16, #tpu.memory_space<vmem>>, vector<1x32x32xbf16>
    %308 = vector.shape_cast %307 : vector<1x32x32xbf16> to vector<32x32xbf16>
    %309 = arith.index_cast %305 : i32 to index
    %c0_152 = arith.constant 0 : index
    %c0_153 = arith.constant 0 : index
    %310 = vector.load %arg8[%309, %c0_152, %c0_153] : memref<8x32x32xbf16, #tpu.memory_space<vmem>>, vector<1x32x32xbf16>
    %311 = vector.shape_cast %310 : vector<1x32x32xbf16> to vector<32x32xbf16>
    %312 = arith.index_cast %305 : i32 to index
    %c0_154 = arith.constant 0 : index
    %c0_155 = arith.constant 0 : index
    %313 = vector.load %arg7[%312, %c0_154, %c0_155] : memref<8x1x32xbf16, #tpu.memory_space<vmem>>, vector<1x1x32xbf16>
    %314 = vector.shape_cast %313 : vector<1x1x32xbf16> to vector<1x32xbf16>
    %cst_156 = arith.constant dense<0.000000e+00> : vector<64x32xf32>
    %315 = tpu.matmul %243, %308, %cst_156 {dimension_numbers = #tpu.dot_dimension_numbers<[1], [0], [0], [1], [0, 0, 1, 1], [], []>} : vector<64x32xbf16>, vector<32x32xbf16>, vector<64x32xf32> -> vector<64x32xf32>
    %316 = arith.truncf %315 : vector<64x32xf32> to vector<64x32xbf16>
    %cst_157 = arith.constant dense<0.000000e+00> : vector<64x64xf32>
    %317 = tpu.matmul %316, %243, %cst_157 {dimension_numbers = #tpu.dot_dimension_numbers<[1], [1], [0], [0], [0, 0, 1, 0], [], []>} : vector<64x32xbf16>, vector<64x32xbf16>, vector<64x64xf32> -> vector<64x64xf32>
    %cst_158 = arith.constant dense<0.000000e+00> : vector<1x64xf32>
    %318 = tpu.matmul %314, %243, %cst_158 {dimension_numbers = #tpu.dot_dimension_numbers<[1], [1], [0], [0], [0, 0, 1, 0], [], []>} : vector<1x32xbf16>, vector<64x32xbf16>, vector<1x64xf32> -> vector<1x64xf32>
    %319 = vector.broadcast %318 : vector<1x64xf32> to vector<64x64xf32>
    %320 = arith.addf %317, %319 : vector<64x64xf32>
    %cst_159 = arith.constant dense<0xFF800000> : vector<64xf32>
    %321 = vector.multi_reduction <maximumf>, %320, %cst_159 [1] : vector<64x64xf32> to vector<64xf32>
    %322 = vector.shape_cast %321 : vector<64xf32> to vector<64x1xf32>
    %323 = vector.broadcast %322 : vector<64x1xf32> to vector<64x64xf32>
    %324 = arith.subf %320, %323 : vector<64x64xf32>
    %325 = math.exp %324 : vector<64x64xf32>
    %cst_160 = arith.constant dense<0.000000e+00> : vector<64xf32>
    %326 = vector.multi_reduction <add>, %325, %cst_160 [1] : vector<64x64xf32> to vector<64xf32>
    %327 = vector.shape_cast %326 : vector<64xf32> to vector<64x1xf32>
    %328 = vector.broadcast %327 : vector<64x1xf32> to vector<64x64xf32>
    %329 = arith.divf %325, %328 : vector<64x64xf32>
    %cst_161 = arith.constant dense<0.000000e+00> : vector<64x32xf32>
    %330 = tpu.matmul %243, %311, %cst_161 {dimension_numbers = #tpu.dot_dimension_numbers<[1], [0], [0], [1], [0, 0, 1, 1], [], []>} : vector<64x32xbf16>, vector<32x32xbf16>, vector<64x32xf32> -> vector<64x32xf32>
    %331 = arith.truncf %329 : vector<64x64xf32> to vector<64x64xbf16>
    %332 = arith.truncf %330 : vector<64x32xf32> to vector<64x32xbf16>
    %cst_162 = arith.constant dense<0.000000e+00> : vector<64x32xf32>
    %333 = tpu.matmul %331, %332, %cst_162 {dimension_numbers = #tpu.dot_dimension_numbers<[1], [0], [0], [1], [0, 0, 1, 1], [], []>} : vector<64x64xbf16>, vector<64x32xbf16>, vector<64x32xf32> -> vector<64x32xf32>
    %334 = arith.addf %304, %333 : vector<64x32xf32>
    %c3_i32_163 = arith.constant 3 : i32
    %c4_i32_164 = arith.constant 4 : i32
    %335 = arith.addi %c4_i32_164, %c3_i32_163 : i32
    %336 = arith.index_cast %335 : i32 to index
    %c0_165 = arith.constant 0 : index
    %c0_166 = arith.constant 0 : index
    %337 = vector.load %arg6[%336, %c0_165, %c0_166] : memref<8x32x32xbf16, #tpu.memory_space<vmem>>, vector<1x32x32xbf16>
    %338 = vector.shape_cast %337 : vector<1x32x32xbf16> to vector<32x32xbf16>
    %339 = arith.index_cast %335 : i32 to index
    %c0_167 = arith.constant 0 : index
    %c0_168 = arith.constant 0 : index
    %340 = vector.load %arg8[%339, %c0_167, %c0_168] : memref<8x32x32xbf16, #tpu.memory_space<vmem>>, vector<1x32x32xbf16>
    %341 = vector.shape_cast %340 : vector<1x32x32xbf16> to vector<32x32xbf16>
    %342 = arith.index_cast %335 : i32 to index
    %c0_169 = arith.constant 0 : index
    %c0_170 = arith.constant 0 : index
    %343 = vector.load %arg7[%342, %c0_169, %c0_170] : memref<8x1x32xbf16, #tpu.memory_space<vmem>>, vector<1x1x32xbf16>
    %344 = vector.shape_cast %343 : vector<1x1x32xbf16> to vector<1x32xbf16>
    %cst_171 = arith.constant dense<0.000000e+00> : vector<64x32xf32>
    %345 = tpu.matmul %243, %338, %cst_171 {dimension_numbers = #tpu.dot_dimension_numbers<[1], [0], [0], [1], [0, 0, 1, 1], [], []>} : vector<64x32xbf16>, vector<32x32xbf16>, vector<64x32xf32> -> vector<64x32xf32>
    %346 = arith.truncf %345 : vector<64x32xf32> to vector<64x32xbf16>
    %cst_172 = arith.constant dense<0.000000e+00> : vector<64x64xf32>
    %347 = tpu.matmul %346, %243, %cst_172 {dimension_numbers = #tpu.dot_dimension_numbers<[1], [1], [0], [0], [0, 0, 1, 0], [], []>} : vector<64x32xbf16>, vector<64x32xbf16>, vector<64x64xf32> -> vector<64x64xf32>
    %cst_173 = arith.constant dense<0.000000e+00> : vector<1x64xf32>
    %348 = tpu.matmul %344, %243, %cst_173 {dimension_numbers = #tpu.dot_dimension_numbers<[1], [1], [0], [0], [0, 0, 1, 0], [], []>} : vector<1x32xbf16>, vector<64x32xbf16>, vector<1x64xf32> -> vector<1x64xf32>
    %349 = vector.broadcast %348 : vector<1x64xf32> to vector<64x64xf32>
    %350 = arith.addf %347, %349 : vector<64x64xf32>
    %cst_174 = arith.constant dense<0xFF800000> : vector<64xf32>
    %351 = vector.multi_reduction <maximumf>, %350, %cst_174 [1] : vector<64x64xf32> to vector<64xf32>
    %352 = vector.shape_cast %351 : vector<64xf32> to vector<64x1xf32>
    %353 = vector.broadcast %352 : vector<64x1xf32> to vector<64x64xf32>
    %354 = arith.subf %350, %353 : vector<64x64xf32>
    %355 = math.exp %354 : vector<64x64xf32>
    %cst_175 = arith.constant dense<0.000000e+00> : vector<64xf32>
    %356 = vector.multi_reduction <add>, %355, %cst_175 [1] : vector<64x64xf32> to vector<64xf32>
    %357 = vector.shape_cast %356 : vector<64xf32> to vector<64x1xf32>
    %358 = vector.broadcast %357 : vector<64x1xf32> to vector<64x64xf32>
    %359 = arith.divf %355, %358 : vector<64x64xf32>
    %cst_176 = arith.constant dense<0.000000e+00> : vector<64x32xf32>
    %360 = tpu.matmul %243, %341, %cst_176 {dimension_numbers = #tpu.dot_dimension_numbers<[1], [0], [0], [1], [0, 0, 1, 1], [], []>} : vector<64x32xbf16>, vector<32x32xbf16>, vector<64x32xf32> -> vector<64x32xf32>
    %361 = arith.truncf %359 : vector<64x64xf32> to vector<64x64xbf16>
    %362 = arith.truncf %360 : vector<64x32xf32> to vector<64x32xbf16>
    %cst_177 = arith.constant dense<0.000000e+00> : vector<64x32xf32>
    %363 = tpu.matmul %361, %362, %cst_177 {dimension_numbers = #tpu.dot_dimension_numbers<[1], [0], [0], [1], [0, 0, 1, 1], [], []>} : vector<64x64xbf16>, vector<64x32xbf16>, vector<64x32xf32> -> vector<64x32xf32>
    %364 = arith.addf %334, %363 : vector<64x32xf32>
    %c4_i32_178 = arith.constant 4 : i32
    %365 = arith.addf %216, %364 : vector<64x32xf32>
    %c1_179 = arith.constant 1 : index
    %c0_180 = arith.constant 0 : index
    %c0_181 = arith.constant 0 : index
    %366 = vector.load %arg9[%c1_179, %c0_180, %c0_181] : memref<2x1x32xf32, #tpu.memory_space<vmem>>, vector<1x1x32xf32>
    %367 = vector.shape_cast %366 : vector<1x1x32xf32> to vector<1x32xf32>
    %368 = vector.broadcast %367 : vector<1x32xf32> to vector<64x32xf32>
    %369 = arith.addf %365, %368 : vector<64x32xf32>
    %c1_182 = arith.constant 1 : index
    %c0_183 = arith.constant 0 : index
    %c0_184 = arith.constant 0 : index
    %370 = vector.load %arg10[%c1_182, %c0_183, %c0_184] : memref<2x1x32xf32, #tpu.memory_space<vmem>>, vector<1x1x32xf32>
    %371 = vector.shape_cast %370 : vector<1x1x32xf32> to vector<1x32xf32>
    %c1_185 = arith.constant 1 : index
    %c0_186 = arith.constant 0 : index
    %c0_187 = arith.constant 0 : index
    %372 = vector.load %arg11[%c1_185, %c0_186, %c0_187] : memref<2x1x32xf32, #tpu.memory_space<vmem>>, vector<1x1x32xf32>
    %373 = vector.shape_cast %372 : vector<1x1x32xf32> to vector<1x32xf32>
    %cst_188 = arith.constant dense<0.000000e+00> : vector<64xf32>
    %374 = vector.multi_reduction <add>, %369, %cst_188 [1] : vector<64x32xf32> to vector<64xf32>
    %375 = vector.shape_cast %374 : vector<64xf32> to vector<64x1xf32>
    %cst_189 = arith.constant 3.200000e+01 : f32
    %376 = vector.broadcast %cst_189 : f32 to vector<64x1xf32>
    %377 = arith.divf %375, %376 : vector<64x1xf32>
    %378 = vector.broadcast %377 : vector<64x1xf32> to vector<64x32xf32>
    %379 = arith.subf %369, %378 : vector<64x32xf32>
    %380 = arith.mulf %379, %379 : vector<64x32xf32>
    %cst_190 = arith.constant dense<0.000000e+00> : vector<64xf32>
    %381 = vector.multi_reduction <add>, %380, %cst_190 [1] : vector<64x32xf32> to vector<64xf32>
    %382 = vector.shape_cast %381 : vector<64xf32> to vector<64x1xf32>
    %cst_191 = arith.constant 3.200000e+01 : f32
    %383 = vector.broadcast %cst_191 : f32 to vector<64x1xf32>
    %384 = arith.divf %382, %383 : vector<64x1xf32>
    %385 = vector.broadcast %377 : vector<64x1xf32> to vector<64x32xf32>
    %386 = arith.subf %369, %385 : vector<64x32xf32>
    %cst_192 = arith.constant 9.99999997E-7 : f32
    %387 = vector.broadcast %cst_192 : f32 to vector<64x1xf32>
    %388 = arith.addf %384, %387 : vector<64x1xf32>
    %389 = math.rsqrt %388 : vector<64x1xf32>
    %390 = vector.broadcast %389 : vector<64x1xf32> to vector<64x32xf32>
    %391 = arith.mulf %386, %390 : vector<64x32xf32>
    %392 = vector.broadcast %371 : vector<1x32xf32> to vector<64x32xf32>
    %393 = arith.mulf %391, %392 : vector<64x32xf32>
    %394 = vector.broadcast %373 : vector<1x32xf32> to vector<64x32xf32>
    %395 = arith.addf %393, %394 : vector<64x32xf32>
    %396 = arith.truncf %395 : vector<64x32xf32> to vector<64x32xbf16>
    %c1_193 = arith.constant 1 : index
    %c0_194 = arith.constant 0 : index
    %c0_195 = arith.constant 0 : index
    %397 = vector.load %arg12[%c1_193, %c0_194, %c0_195] : memref<2x32x128xbf16, #tpu.memory_space<vmem>>, vector<1x32x128xbf16>
    %398 = vector.shape_cast %397 : vector<1x32x128xbf16> to vector<32x128xbf16>
    %cst_196 = arith.constant dense<0.000000e+00> : vector<64x128xf32>
    %399 = tpu.matmul %396, %398, %cst_196 {dimension_numbers = #tpu.dot_dimension_numbers<[1], [0], [0], [1], [0, 0, 1, 1], [], []>} : vector<64x32xbf16>, vector<32x128xbf16>, vector<64x128xf32> -> vector<64x128xf32>
    %c1_197 = arith.constant 1 : index
    %c0_198 = arith.constant 0 : index
    %c0_199 = arith.constant 0 : index
    %400 = vector.load %arg13[%c1_197, %c0_198, %c0_199] : memref<2x1x128xf32, #tpu.memory_space<vmem>>, vector<1x1x128xf32>
    %401 = vector.shape_cast %400 : vector<1x1x128xf32> to vector<1x128xf32>
    %402 = vector.broadcast %401 : vector<1x128xf32> to vector<64x128xf32>
    %403 = arith.addf %399, %402 : vector<64x128xf32>
    %404 = arith.mulf %403, %403 : vector<64x128xf32>
    %405 = arith.mulf %403, %404 : vector<64x128xf32>
    %cst_200 = arith.constant 4.471500e-02 : f32
    %406 = vector.broadcast %cst_200 : f32 to vector<64x128xf32>
    %407 = arith.mulf %406, %405 : vector<64x128xf32>
    %408 = arith.addf %403, %407 : vector<64x128xf32>
    %cst_201 = arith.constant 0.797884583 : f32
    %409 = vector.broadcast %cst_201 : f32 to vector<64x128xf32>
    %410 = arith.mulf %409, %408 : vector<64x128xf32>
    %411 = math.tanh %410 : vector<64x128xf32>
    %cst_202 = arith.constant 1.000000e+00 : f32
    %412 = vector.broadcast %cst_202 : f32 to vector<64x128xf32>
    %413 = arith.addf %412, %411 : vector<64x128xf32>
    %cst_203 = arith.constant 5.000000e-01 : f32
    %414 = vector.broadcast %cst_203 : f32 to vector<64x128xf32>
    %415 = arith.mulf %414, %413 : vector<64x128xf32>
    %416 = arith.mulf %403, %415 : vector<64x128xf32>
    %417 = arith.truncf %416 : vector<64x128xf32> to vector<64x128xbf16>
    %c1_204 = arith.constant 1 : index
    %c0_205 = arith.constant 0 : index
    %c0_206 = arith.constant 0 : index
    %418 = vector.load %arg14[%c1_204, %c0_205, %c0_206] : memref<2x128x32xbf16, #tpu.memory_space<vmem>>, vector<1x128x32xbf16>
    %419 = vector.shape_cast %418 : vector<1x128x32xbf16> to vector<128x32xbf16>
    %cst_207 = arith.constant dense<0.000000e+00> : vector<64x32xf32>
    %420 = tpu.matmul %417, %419, %cst_207 {dimension_numbers = #tpu.dot_dimension_numbers<[1], [0], [0], [1], [0, 0, 1, 1], [], []>} : vector<64x128xbf16>, vector<128x32xbf16>, vector<64x32xf32> -> vector<64x32xf32>
    %421 = arith.addf %369, %420 : vector<64x32xf32>
    %c1_208 = arith.constant 1 : index
    %c0_209 = arith.constant 0 : index
    %c0_210 = arith.constant 0 : index
    %422 = vector.load %arg15[%c1_208, %c0_209, %c0_210] : memref<2x1x32xf32, #tpu.memory_space<vmem>>, vector<1x1x32xf32>
    %423 = vector.shape_cast %422 : vector<1x1x32xf32> to vector<1x32xf32>
    %424 = vector.broadcast %423 : vector<1x32xf32> to vector<64x32xf32>
    %425 = arith.addf %421, %424 : vector<64x32xf32>
    %c0_211 = arith.constant 0 : index
    %c0_212 = arith.constant 0 : index
    %426 = vector.load %arg16[%c0_211, %c0_212] : memref<1x32xf32, #tpu.memory_space<vmem>>, vector<1x32xf32>
    %c0_213 = arith.constant 0 : index
    %c0_214 = arith.constant 0 : index
    %427 = vector.load %arg17[%c0_213, %c0_214] : memref<1x32xf32, #tpu.memory_space<vmem>>, vector<1x32xf32>
    %cst_215 = arith.constant dense<0.000000e+00> : vector<64xf32>
    %428 = vector.multi_reduction <add>, %425, %cst_215 [1] : vector<64x32xf32> to vector<64xf32>
    %429 = vector.shape_cast %428 : vector<64xf32> to vector<64x1xf32>
    %cst_216 = arith.constant 3.200000e+01 : f32
    %430 = vector.broadcast %cst_216 : f32 to vector<64x1xf32>
    %431 = arith.divf %429, %430 : vector<64x1xf32>
    %432 = vector.broadcast %431 : vector<64x1xf32> to vector<64x32xf32>
    %433 = arith.subf %425, %432 : vector<64x32xf32>
    %434 = arith.mulf %433, %433 : vector<64x32xf32>
    %cst_217 = arith.constant dense<0.000000e+00> : vector<64xf32>
    %435 = vector.multi_reduction <add>, %434, %cst_217 [1] : vector<64x32xf32> to vector<64xf32>
    %436 = vector.shape_cast %435 : vector<64xf32> to vector<64x1xf32>
    %cst_218 = arith.constant 3.200000e+01 : f32
    %437 = vector.broadcast %cst_218 : f32 to vector<64x1xf32>
    %438 = arith.divf %436, %437 : vector<64x1xf32>
    %439 = vector.broadcast %431 : vector<64x1xf32> to vector<64x32xf32>
    %440 = arith.subf %425, %439 : vector<64x32xf32>
    %cst_219 = arith.constant 9.99999997E-7 : f32
    %441 = vector.broadcast %cst_219 : f32 to vector<64x1xf32>
    %442 = arith.addf %438, %441 : vector<64x1xf32>
    %443 = math.rsqrt %442 : vector<64x1xf32>
    %444 = vector.broadcast %443 : vector<64x1xf32> to vector<64x32xf32>
    %445 = arith.mulf %440, %444 : vector<64x32xf32>
    %446 = vector.broadcast %426 : vector<1x32xf32> to vector<64x32xf32>
    %447 = arith.mulf %445, %446 : vector<64x32xf32>
    %448 = vector.broadcast %427 : vector<1x32xf32> to vector<64x32xf32>
    %449 = arith.addf %447, %448 : vector<64x32xf32>
    %450 = tpu.transpose %449, [1, 0] : vector<64x32xf32> -> vector<32x64xf32>
    %c0_220 = arith.constant 0 : index
    %c0_221 = arith.constant 0 : index
    %c0_222 = arith.constant 0 : index
    %451 = vector.load %arg18[%c0_220, %c0_221, %c0_222] : memref<1x32x64xf32, #tpu.memory_space<vmem>>, vector<1x32x64xf32>
    %452 = vector.shape_cast %451 : vector<1x32x64xf32> to vector<32x64xf32>
    %453 = vector.shape_cast %450 : vector<32x64xf32> to vector<1x32x64xf32>
    tpu.vector_store %arg18[%c0_220, %c0_221, %c0_222], %453 {strides = array<i32>} : memref<1x32x64xf32, #tpu.memory_space<vmem>>, vector<1x32x64xf32>,
    return
  }
  func.func @transform_0(%arg0: i32) -> (i32, i32, i32) {
    %c0_i32 = arith.constant 0 : i32
    %c0_i32_0 = arith.constant 0 : i32
    %c0_i32_1 = arith.constant 0 : i32
    return %arg0, %c0_i32, %c0_i32_0 : i32, i32, i32
  }
  func.func @transform_1(%arg0: i32) -> (i32, i32) {
    %c0_i32 = arith.constant 0 : i32
    %c0_i32_0 = arith.constant 0 : i32
    %c0_i32_1 = arith.constant 0 : i32
    return %c0_i32, %c0_i32_0 : i32, i32
  }
  func.func @transform_2(%arg0: i32) -> (i32, i32, i32) {
    %c0_i32 = arith.constant 0 : i32
    %c0_i32_0 = arith.constant 0 : i32
    %c0_i32_1 = arith.constant 0 : i32
    %c0_i32_2 = arith.constant 0 : i32
    return %c0_i32, %c0_i32_0, %c0_i32_1 : i32, i32, i32
  }
  func.func @transform_3(%arg0: i32) -> (i32, i32, i32) {
    %c0_i32 = arith.constant 0 : i32
    %c0_i32_0 = arith.constant 0 : i32
    %c0_i32_1 = arith.constant 0 : i32
    %c0_i32_2 = arith.constant 0 : i32
    return %c0_i32, %c0_i32_0, %c0_i32_1 : i32, i32, i32
  }
  func.func @transform_4(%arg0: i32) -> (i32, i32, i32) {
    %c0_i32 = arith.constant 0 : i32
    %c0_i32_0 = arith.constant 0 : i32
    %c0_i32_1 = arith.constant 0 : i32
    %c0_i32_2 = arith.constant 0 : i32
    return %c0_i32, %c0_i32_0, %c0_i32_1 : i32, i32, i32
  }
  func.func @transform_5(%arg0: i32) -> (i32, i32, i32) {
    %c0_i32 = arith.constant 0 : i32
    %c0_i32_0 = arith.constant 0 : i32
    %c0_i32_1 = arith.constant 0 : i32
    %c0_i32_2 = arith.constant 0 : i32
    return %c0_i32, %c0_i32_0, %c0_i32_1 : i32, i32, i32
  }
  func.func @transform_6(%arg0: i32) -> (i32, i32, i32) {
    %c0_i32 = arith.constant 0 : i32
    %c0_i32_0 = arith.constant 0 : i32
    %c0_i32_1 = arith.constant 0 : i32
    %c0_i32_2 = arith.constant 0 : i32
    return %c0_i32, %c0_i32_0, %c0_i32_1 : i32, i32, i32
  }
  func.func @transform_7(%arg0: i32) -> (i32, i32, i32) {
    %c0_i32 = arith.constant 0 : i32
    %c0_i32_0 = arith.constant 0 : i32
    %c0_i32_1 = arith.constant 0 : i32
    %c0_i32_2 = arith.constant 0 : i32
    return %c0_i32, %c0_i32_0, %c0_i32_1 : i32, i32, i32
  }
  func.func @transform_8(%arg0: i32) -> (i32, i32, i32) {
    %c0_i32 = arith.constant 0 : i32
    %c0_i32_0 = arith.constant 0 : i32
    %c0_i32_1 = arith.constant 0 : i32
    %c0_i32_2 = arith.constant 0 : i32
    return %c0_i32, %c0_i32_0, %c0_i32_1 : i32, i32, i32
  }
  func.func @transform_9(%arg0: i32) -> (i32, i32, i32) {
    %c0_i32 = arith.constant 0 : i32
    %c0_i32_0 = arith.constant 0 : i32
    %c0_i32_1 = arith.constant 0 : i32
    %c0_i32_2 = arith.constant 0 : i32
    return %c0_i32, %c0_i32_0, %c0_i32_1 : i32, i32, i32
  }
  func.func @transform_10(%arg0: i32) -> (i32, i32, i32) {
    %c0_i32 = arith.constant 0 : i32
    %c0_i32_0 = arith.constant 0 : i32
    %c0_i32_1 = arith.constant 0 : i32
    %c0_i32_2 = arith.constant 0 : i32
    return %c0_i32, %c0_i32_0, %c0_i32_1 : i32, i32, i32
  }
  func.func @transform_11(%arg0: i32) -> (i32, i32, i32) {
    %c0_i32 = arith.constant 0 : i32
    %c0_i32_0 = arith.constant 0 : i32
    %c0_i32_1 = arith.constant 0 : i32
    %c0_i32_2 = arith.constant 0 : i32
    return %c0_i32, %c0_i32_0, %c0_i32_1 : i32, i32, i32
  }
  func.func @transform_12(%arg0: i32) -> (i32, i32, i32) {
    %c0_i32 = arith.constant 0 : i32
    %c0_i32_0 = arith.constant 0 : i32
    %c0_i32_1 = arith.constant 0 : i32
    %c0_i32_2 = arith.constant 0 : i32
    return %c0_i32, %c0_i32_0, %c0_i32_1 : i32, i32, i32
  }
  func.func @transform_13(%arg0: i32) -> (i32, i32, i32) {
    %c0_i32 = arith.constant 0 : i32
    %c0_i32_0 = arith.constant 0 : i32
    %c0_i32_1 = arith.constant 0 : i32
    %c0_i32_2 = arith.constant 0 : i32
    return %c0_i32, %c0_i32_0, %c0_i32_1 : i32, i32, i32
  }
  func.func @transform_14(%arg0: i32) -> (i32, i32, i32) {
    %c0_i32 = arith.constant 0 : i32
    %c0_i32_0 = arith.constant 0 : i32
    %c0_i32_1 = arith.constant 0 : i32
    %c0_i32_2 = arith.constant 0 : i32
    return %c0_i32, %c0_i32_0, %c0_i32_1 : i32, i32, i32
  }
  func.func @transform_15(%arg0: i32) -> (i32, i32) {
    %c0_i32 = arith.constant 0 : i32
    %c0_i32_0 = arith.constant 0 : i32
    %c0_i32_1 = arith.constant 0 : i32
    return %c0_i32, %c0_i32_0 : i32, i32
  }
  func.func @transform_16(%arg0: i32) -> (i32, i32) {
    %c0_i32 = arith.constant 0 : i32
    %c0_i32_0 = arith.constant 0 : i32
    %c0_i32_1 = arith.constant 0 : i32
    return %c0_i32, %c0_i32_0 : i32, i32
  }
  func.func @transform_17(%arg0: i32) -> (i32, i32, i32) {
    %c0_i32 = arith.constant 0 : i32
    %c0_i32_0 = arith.constant 0 : i32
    %c0_i32_1 = arith.constant 0 : i32
    return %arg0, %c0_i32, %c0_i32_0 : i32, i32, i32
  }
}

</mosaic_0001>

<llo_original>
// kernel: transformer_forward.1
$region0: #{transformer_forward.1}
  #allocation0 [shape = 'u32[]', space=smem, size = 0x4, offset = 0x4, fixed_abs, tag = 'smem constant byte address 0x4 - core index']
  #allocation1 [shape = 'u32[144,128]{1,0:T(1,128)}', space=vmem, size = 0x12000, scoped, tag = 'internal scratch']
  %s0 = inlined_call_operand.vmem [shape: f32[2,64,16], index: 0, kind: input, shape index: {}]
  %s1 = inlined_call_operand.vmem [shape: bf16[16,32], index: 1, kind: input, shape index: {}]
  %s2 = inlined_call_operand.vmem [shape: f32[1,64,32], index: 2, kind: input, shape index: {}]
  %s3 = inlined_call_operand.vmem [shape: f32[2,1,32], index: 3, kind: input, shape index: {}]
  %s4 = inlined_call_operand.vmem [shape: f32[2,1,32], index: 4, kind: input, shape index: {}]
  %s5 = inlined_call_operand.vmem [shape: bf16[8,32,32], index: 5, kind: input, shape index: {}]
  %s6 = inlined_call_operand.vmem [shape: bf16[8,1,32], index: 6, kind: input, shape index: {}]
  %s7 = inlined_call_operand.vmem [shape: bf16[8,32,32], index: 7, kind: input, shape index: {}]
  %s8 = inlined_call_operand.vmem [shape: f32[2,1,32], index: 8, kind: input, shape index: {}]
  %s9 = inlined_call_operand.vmem [shape: f32[2,1,32], index: 9, kind: input, shape index: {}]
  %s10 = inlined_call_operand.vmem [shape: f32[2,1,32], index: 10, kind: input, shape index: {}]
  %s11 = inlined_call_operand.vmem [shape: bf16[2,32,128], index: 11, kind: input, shape index: {}]
  %s12 = inlined_call_operand.vmem [shape: f32[2,1,128], index: 12, kind: input, shape index: {}]
  %s13 = inlined_call_operand.vmem [shape: bf16[2,128,32], index: 13, kind: input, shape index: {}]
  %s14 = inlined_call_operand.vmem [shape: f32[2,1,32], index: 14, kind: input, shape index: {}]
  %s15 = inlined_call_operand.vmem [shape: f32[1,32], index: 15, kind: input, shape index: {}]
  %s16 = inlined_call_operand.vmem [shape: f32[1,32], index: 16, kind: input, shape index: {}]
  %s17 = inlined_call_operand.vmem [shape: f32[2,32,64], index: 17, kind: output, shape index: {}]
  %s18 = sld [smem:[#allocation0]]
  $region101: #{transformer_forward.1} parent=0
    _
  %s20 = ssub.s32 1, %s18
  %s21 = scalar_select 0, %s20, %s18
  loop: start=0, step=1, limit=4
  $region2: #{transformer_forward.1} parent=0 // loop_pre_header
    _
  $region3: #{transformer_forward.1} parent=0 // loop_header
    %s23 = sphi 0, %s27
    %p24 = scmp.ge.s32.totalorder %s23, 4
    %s33 = sphi 0, %s35
    %s36 = sphi 0, %s33
    %s37 = sphi 0, %s36
    %s53 = sphi 0, %s37
    %s57 = sphi 0, %s57
    %s59 = sphi 0, %s57
    %s60 = sphi 0, %s59
    %s74 = sphi 0, %s60
    %s78 = sphi 0, %s78
    %s80 = sphi 0, %s78
    %s81 = sphi 0, %s80
    %s95 = sphi 0, %s81
    %s99 = sphi 0, %s99
    %s101 = sphi 0, %s99
    %s102 = sphi 0, %s101
    %s116 = sphi 0, %s102
    %s120 = sphi 0, %s120
    %s122 = sphi 0, %s120
    %s123 = sphi 0, %s122
    %s137 = sphi 0, %s123
    %s141 = sphi 0, %s141
    %s143 = sphi 0, %s141
    %s144 = sphi 0, %s143
    %s158 = sphi 0, %s144
    %s162 = sphi 0, %s162
    %s164 = sphi 0, %s162
    %s165 = sphi 0, %s164
    %s179 = sphi 0, %s165
    %s183 = sphi 0, %s183
    %s185 = sphi 0, %s183
    %s186 = sphi 0, %s185
    %s200 = sphi 0, %s186
    %s204 = sphi 0, %s204
    %s206 = sphi 0, %s204
    %s207 = sphi 0, %s206
    %s221 = sphi 0, %s207
    %s225 = sphi 0, %s225
    %s227 = sphi 0, %s225
    %s228 = sphi 0, %s227
    %s242 = sphi 0, %s228
    %s246 = sphi 0, %s246
    %s248 = sphi 0, %s246
    %s249 = sphi 0, %s248
    %s263 = sphi 0, %s249
    %s267 = sphi 0, %s267
    %s269 = sphi 0, %s267
    %s270 = sphi 0, %s269
    %s284 = sphi 0, %s270
    %s288 = sphi 0, %s288
    %s290 = sphi 0, %s288
    %s291 = sphi 0, %s290
    %s305 = sphi 0, %s291
    %s309 = sphi 0, %s309
    %s311 = sphi 0, %s309
    %s312 = sphi 0, %s311
    %s326 = sphi 0, %s312
    %s330 = sphi 0, %s330
    %s332 = sphi 0, %s330
    %s333 = sphi 0, %s332
    %s347 = sphi 0, %s333
    %s351 = sphi 0, %s351
    %s353 = sphi 0, %s351
    %s354 = sphi 0, %s353
    %s368 = sphi 0, %s354
    %s372 = sphi 0, %s372
    %s374 = sphi 0, %s372
    %s375 = sphi 0, %s374
    %s389 = sphi 0, %s375
    %s395 = sphi 0, %s397
    %s398 = sphi 0, %s395
    %s399 = sphi 0, %s398
    %s415 = sphi 0, %s399
  $region4: #{transformer_forward.1} parent=0 // loop_header_branch
    %26 = sbr.rel (%p24) target = $region8
  $region5: #{transformer_forward.1} parent=0 // loop_body
    %s28 = ssub.s32 %s23, 1
    %s29 = ssub.s32 %s23, 2
    %s30 = sadd.s32 %s23, 1
    %s31 = ssub.s32 %s23, %s30
    %p32 = scmp.eq.s32.totalorder %s31, 0
    %s34 = sadd.s32 %s33, 1
    %s35 = scalar_select %p32, %s33, %s34
    %p38 = pneg %p32
    %p39 = scmp.eq.s32.totalorder %s23, 1
    %p40 = por %p38, %p39
    %p41 = scmp.ne.s32.totalorder %s33, %s36
    %p42 = scmp.eq.s32.totalorder %s23, 0
    %p43 = por %p41, %p42
    %p44 = scmp.ne.s32.totalorder %s33, %s36
    %p45 = scmp.eq.s32.totalorder %s28, 1
    %p46 = por %p44, %p45
    %p47 = scmp.ne.s32.totalorder %s36, %s37
    %p48 = scmp.eq.s32.totalorder %s28, 0
    %p49 = por %p47, %p48
    %p50 = scmp.ne.s32.totalorder %s36, %s37
    %p51 = scmp.eq.s32.totalorder %s29, 1
    %p52 = por %p50, %p51
    %p54 = scmp.ne.s32.totalorder %s37, %s53
    %p55 = scmp.eq.s32.totalorder %s29, 0
    %p56 = por %p54, %p55
    %s58 = sadd.s32 %s57, 1
    %p61 = scmp.eq.s32.totalorder %s23, 1
    %p62 = scmp.ne.s32.totalorder %s57, %s59
    %p63 = scmp.eq.s32.totalorder %s23, 0
    %p64 = por %p62, %p63
    %p65 = scmp.ne.s32.totalorder %s57, %s59
    %p66 = scmp.eq.s32.totalorder %s28, 1
    %p67 = por %p65, %p66
    %p68 = scmp.ne.s32.totalorder %s59, %s60
    %p69 = scmp.eq.s32.totalorder %s28, 0
    %p70 = por %p68, %p69
    %p71 = scmp.ne.s32.totalorder %s59, %s60
    %p72 = scmp.eq.s32.totalorder %s29, 1
    %p73 = por %p71, %p72
    %p75 = scmp.ne.s32.totalorder %s60, %s74
    %p76 = scmp.eq.s32.totalorder %s29, 0
    %p77 = por %p75, %p76
    %s79 = sadd.s32 %s78, 1
    %p82 = scmp.eq.s32.totalorder %s23, 1
    %p83 = scmp.ne.s32.totalorder %s78, %s80
    %p84 = scmp.eq.s32.totalorder %s23, 0
    %p85 = por %p83, %p84
    %p86 = scmp.ne.s32.totalorder %s78, %s80
    %p87 = scmp.eq.s32.totalorder %s28, 1
    %p88 = por %p86, %p87
    %p89 = scmp.ne.s32.totalorder %s80, %s81
    %p90 = scmp.eq.s32.totalorder %s28, 0
    %p91 = por %p89, %p90
    %p92 = scmp.ne.s32.totalorder %s80, %s81
    %p93 = scmp.eq.s32.totalorder %s29, 1
    %p94 = por %p92, %p93
    %p96 = scmp.ne.s32.totalorder %s81, %s95
    %p97 = scmp.eq.s32.totalorder %s29, 0
    %p98 = por %p96, %p97
    %s100 = sadd.s32 %s99, 1
    %p103 = scmp.eq.s32.totalorder %s23, 1
    %p104 = scmp.ne.s32.totalorder %s99, %s101
    %p105 = scmp.eq.s32.totalorder %s23, 0
    %p106 = por %p104, %p105
    %p107 = scmp.ne.s32.totalorder %s99, %s101
    %p108 = scmp.eq.s32.totalorder %s28, 1
    %p109 = por %p107, %p108
    %p110 = scmp.ne.s32.totalorder %s101, %s102
    %p111 = scmp.eq.s32.totalorder %s28, 0
    %p112 = por %p110, %p111
    %p113 = scmp.ne.s32.totalorder %s101, %s102
    %p114 = scmp.eq.s32.totalorder %s29, 1
    %p115 = por %p113, %p114
    %p117 = scmp.ne.s32.totalorder %s102, %s116
    %p118 = scmp.eq.s32.totalorder %s29, 0
    %p119 = por %p117, %p118
    %s121 = sadd.s32 %s120, 1
    %p124 = scmp.eq.s32.totalorder %s23, 1
    %p125 = scmp.ne.s32.totalorder %s120, %s122
    %p126 = scmp.eq.s32.totalorder %s23, 0
    %p127 = por %p125, %p126
    %p128 = scmp.ne.s32.totalorder %s120, %s122
    %p129 = scmp.eq.s32.totalorder %s28, 1
    %p130 = por %p128, %p129
    %p131 = scmp.ne.s32.totalorder %s122, %s123
    %p132 = scmp.eq.s32.totalorder %s28, 0
    %p133 = por %p131, %p132
    %p134 = scmp.ne.s32.totalorder %s122, %s123
    %p135 = scmp.eq.s32.totalorder %s29, 1
    %p136 = por %p134, %p135
    %p138 = scmp.ne.s32.totalorder %s123, %s137
    %p139 = scmp.eq.s32.totalorder %s29, 0
    %p140 = por %p138, %p139
    %s142 = sadd.s32 %s141, 1
    %p145 = scmp.eq.s32.totalorder %s23, 1
    %p146 = scmp.ne.s32.totalorder %s141, %s143
    %p147 = scmp.eq.s32.totalorder %s23, 0
    %p148 = por %p146, %p147
    %p149 = scmp.ne.s32.totalorder %s141, %s143
    %p150 = scmp.eq.s32.totalorder %s28, 1
    %p151 = por %p149, %p150
    %p152 = scmp.ne.s32.totalorder %s143, %s144
    %p153 = scmp.eq.s32.totalorder %s28, 0
    %p154 = por %p152, %p153
    %p155 = scmp.ne.s32.totalorder %s143, %s144
    %p156 = scmp.eq.s32.totalorder %s29, 1
    %p157 = por %p155, %p156
    %p159 = scmp.ne.s32.totalorder %s144, %s158
    %p160 = scmp.eq.s32.totalorder %s29, 0
    %p161 = por %p159, %p160
    %s163 = sadd.s32 %s162, 1
    %p166 = scmp.eq.s32.totalorder %s23, 1
    %p167 = scmp.ne.s32.totalorder %s162, %s164
    %p168 = scmp.eq.s32.totalorder %s23, 0
    %p169 = por %p167, %p168
    %p170 = scmp.ne.s32.totalorder %s162, %s164
    %p171 = scmp.eq.s32.totalorder %s28, 1
    %p172 = por %p170, %p171
    %p173 = scmp.ne.s32.totalorder %s164, %s165
    %p174 = scmp.eq.s32.totalorder %s28, 0
    %p175 = por %p173, %p174
    %p176 = scmp.ne.s32.totalorder %s164, %s165
    %p177 = scmp.eq.s32.totalorder %s29, 1
    %p178 = por %p176, %p177
    %p180 = scmp.ne.s32.totalorder %s165, %s179
    %p181 = scmp.eq.s32.totalorder %s29, 0
    %p182 = por %p180, %p181
    %s184 = sadd.s32 %s183, 1
    %p187 = scmp.eq.s32.totalorder %s23, 1
    %p188 = scmp.ne.s32.totalorder %s183, %s185
    %p189 = scmp.eq.s32.totalorder %s23, 0
    %p190 = por %p188, %p189
    %p191 = scmp.ne.s32.totalorder %s183, %s185
    %p192 = scmp.eq.s32.totalorder %s28, 1
    %p193 = por %p191, %p192
    %p194 = scmp.ne.s32.totalorder %s185, %s186
    %p195 = scmp.eq.s32.totalorder %s28, 0
    %p196 = por %p194, %p195
    %p197 = scmp.ne.s32.totalorder %s185, %s186
    %p198 = scmp.eq.s32.totalorder %s29, 1
    %p199 = por %p197, %p198
    %p201 = scmp.ne.s32.totalorder %s186, %s200
    %p202 = scmp.eq.s32.totalorder %s29, 0
    %p203 = por %p201, %p202
    %s205 = sadd.s32 %s204, 1
    %p208 = scmp.eq.s32.totalorder %s23, 1
    %p209 = scmp.ne.s32.totalorder %s204, %s206
    %p210 = scmp.eq.s32.totalorder %s23, 0
    %p211 = por %p209, %p210
    %p212 = scmp.ne.s32.totalorder %s204, %s206
    %p213 = scmp.eq.s32.totalorder %s28, 1
    %p214 = por %p212, %p213
    %p215 = scmp.ne.s32.totalorder %s206, %s207
    %p216 = scmp.eq.s32.totalorder %s28, 0
    %p217 = por %p215, %p216
    %p218 = scmp.ne.s32.totalorder %s206, %s207
    %p219 = scmp.eq.s32.totalorder %s29, 1
    %p220 = por %p218, %p219
    %p222 = scmp.ne.s32.totalorder %s207, %s221
    %p223 = scmp.eq.s32.totalorder %s29, 0
    %p224 = por %p222, %p223
    %s226 = sadd.s32 %s225, 1
    %p229 = scmp.eq.s32.totalorder %s23, 1
    %p230 = scmp.ne.s32.totalorder %s225, %s227
    %p231 = scmp.eq.s32.totalorder %s23, 0
    %p232 = por %p230, %p231
    %p233 = scmp.ne.s32.totalorder %s225, %s227
    %p234 = scmp.eq.s32.totalorder %s28, 1
    %p235 = por %p233, %p234
    %p236 = scmp.ne.s32.totalorder %s227, %s228
    %p237 = scmp.eq.s32.totalorder %s28, 0
    %p238 = por %p236, %p237
    %p239 = scmp.ne.s32.totalorder %s227, %s228
    %p240 = scmp.eq.s32.totalorder %s29, 1
    %p241 = por %p239, %p240
    %p243 = scmp.ne.s32.totalorder %s228, %s242
    %p244 = scmp.eq.s32.totalorder %s29, 0
    %p245 = por %p243, %p244
    %s247 = sadd.s32 %s246, 1
    %p250 = scmp.eq.s32.totalorder %s23, 1
    %p251 = scmp.ne.s32.totalorder %s246, %s248
    %p252 = scmp.eq.s32.totalorder %s23, 0
    %p253 = por %p251, %p252
    %p254 = scmp.ne.s32.totalorder %s246, %s248
    %p255 = scmp.eq.s32.totalorder %s28, 1
    %p256 = por %p254, %p255
    %p257 = scmp.ne.s32.totalorder %s248, %s249
    %p258 = scmp.eq.s32.totalorder %s28, 0
    %p259 = por %p257, %p258
    %p260 = scmp.ne.s32.totalorder %s248, %s249
    %p261 = scmp.eq.s32.totalorder %s29, 1
    %p262 = por %p260, %p261
    %p264 = scmp.ne.s32.totalorder %s249, %s263
    %p265 = scmp.eq.s32.totalorder %s29, 0
    %p266 = por %p264, %p265
    %s268 = sadd.s32 %s267, 1
    %p271 = scmp.eq.s32.totalorder %s23, 1
    %p272 = scmp.ne.s32.totalorder %s267, %s269
    %p273 = scmp.eq.s32.totalorder %s23, 0
    %p274 = por %p272, %p273
    %p275 = scmp.ne.s32.totalorder %s267, %s269
    %p276 = scmp.eq.s32.totalorder %s28, 1
    %p277 = por %p275, %p276
    %p278 = scmp.ne.s32.totalorder %s269, %s270
    %p279 = scmp.eq.s32.totalorder %s28, 0
    %p280 = por %p278, %p279
    %p281 = scmp.ne.s32.totalorder %s269, %s270
    %p282 = scmp.eq.s32.totalorder %s29, 1
    %p283 = por %p281, %p282
    %p285 = scmp.ne.s32.totalorder %s270, %s284
    %p286 = scmp.eq.s32.totalorder %s29, 0
    %p287 = por %p285, %p286
    %s289 = sadd.s32 %s288, 1
    %p292 = scmp.eq.s32.totalorder %s23, 1
    %p293 = scmp.ne.s32.totalorder %s288, %s290
    %p294 = scmp.eq.s32.totalorder %s23, 0
    %p295 = por %p293, %p294
    %p296 = scmp.ne.s32.totalorder %s288, %s290
    %p297 = scmp.eq.s32.totalorder %s28, 1
    %p298 = por %p296, %p297
    %p299 = scmp.ne.s32.totalorder %s290, %s291
    %p300 = scmp.eq.s32.totalorder %s28, 0
    %p301 = por %p299, %p300
    %p302 = scmp.ne.s32.totalorder %s290, %s291
    %p303 = scmp.eq.s32.totalorder %s29, 1
    %p304 = por %p302, %p303
    %p306 = scmp.ne.s32.totalorder %s291, %s305
    %p307 = scmp.eq.s32.totalorder %s29, 0
    %p308 = por %p306, %p307
    %s310 = sadd.s32 %s309, 1
    %p313 = scmp.eq.s32.totalorder %s23, 1
    %p314 = scmp.ne.s32.totalorder %s309, %s311
    %p315 = scmp.eq.s32.totalorder %s23, 0
    %p316 = por %p314, %p315
    %p317 = scmp.ne.s32.totalorder %s309, %s311
    %p318 = scmp.eq.s32.totalorder %s28, 1
    %p319 = por %p317, %p318
    %p320 = scmp.ne.s32.totalorder %s311, %s312
    %p321 = scmp.eq.s32.totalorder %s28, 0
    %p322 = por %p320, %p321
    %p323 = scmp.ne.s32.totalorder %s311, %s312
    %p324 = scmp.eq.s32.totalorder %s29, 1
    %p325 = por %p323, %p324
    %p327 = scmp.ne.s32.totalorder %s312, %s326
    %p328 = scmp.eq.s32.totalorder %s29, 0
    %p329 = por %p327, %p328
    %s331 = sadd.s32 %s330, 1
    %p334 = scmp.eq.s32.totalorder %s23, 1
    %p335 = scmp.ne.s32.totalorder %s330, %s332
    %p336 = scmp.eq.s32.totalorder %s23, 0
    %p337 = por %p335, %p336
    %p338 = scmp.ne.s32.totalorder %s330, %s332
    %p339 = scmp.eq.s32.totalorder %s28, 1
    %p340 = por %p338, %p339
    %p341 = scmp.ne.s32.totalorder %s332, %s333
    %p342 = scmp.eq.s32.totalorder %s28, 0
    %p343 = por %p341, %p342
    %p344 = scmp.ne.s32.totalorder %s332, %s333
    %p345 = scmp.eq.s32.totalorder %s29, 1
    %p346 = por %p344, %p345
    %p348 = scmp.ne.s32.totalorder %s333, %s347
    %p349 = scmp.eq.s32.totalorder %s29, 0
    %p350 = por %p348, %p349
    %s352 = sadd.s32 %s351, 1
    %p355 = scmp.eq.s32.totalorder %s23, 1
    %p356 = scmp.ne.s32.totalorder %s351, %s353
    %p357 = scmp.eq.s32.totalorder %s23, 0
    %p358 = por %p356, %p357
    %p359 = scmp.ne.s32.totalorder %s351, %s353
    %p360 = scmp.eq.s32.totalorder %s28, 1
    %p361 = por %p359, %p360
    %p362 = scmp.ne.s32.totalorder %s353, %s354
    %p363 = scmp.eq.s32.totalorder %s28, 0
    %p364 = por %p362, %p363
    %p365 = scmp.ne.s32.totalorder %s353, %s354
    %p366 = scmp.eq.s32.totalorder %s29, 1
    %p367 = por %p365, %p366
    %p369 = scmp.ne.s32.totalorder %s354, %s368
    %p370 = scmp.eq.s32.totalorder %s29, 0
    %p371 = por %p369, %p370
    %s373 = sadd.s32 %s372, 1
    %p376 = scmp.eq.s32.totalorder %s23, 1
    %p377 = scmp.ne.s32.totalorder %s372, %s374
    %p378 = scmp.eq.s32.totalorder %s23, 0
    %p379 = por %p377, %p378
    %p380 = scmp.ne.s32.totalorder %s372, %s374
    %p381 = scmp.eq.s32.totalorder %s28, 1
    %p382 = por %p380, %p381
    %p383 = scmp.ne.s32.totalorder %s374, %s375
    %p384 = scmp.eq.s32.totalorder %s28, 0
    %p385 = por %p383, %p384
    %p386 = scmp.ne.s32.totalorder %s374, %s375
    %p387 = scmp.eq.s32.totalorder %s29, 1
    %p388 = por %p386, %p387
    %p390 = scmp.ne.s32.totalorder %s375, %s389
    %p391 = scmp.eq.s32.totalorder %s29, 0
    %p392 = por %p390, %p391
    %s393 = ssub.s32 %s23, %s30
    %p394 = scmp.eq.s32.totalorder %s393, 0
    %s396 = sadd.s32 %s395, 1
    %s397 = scalar_select %p394, %s395, %s396
    %p400 = pneg %p394
    %p401 = scmp.eq.s32.totalorder %s23, 1
    %p402 = por %p400, %p401
    %p403 = scmp.ne.s32.totalorder %s395, %s398
    %p404 = scmp.eq.s32.totalorder %s23, 0
    %p405 = por %p403, %p404
    %p406 = scmp.ne.s32.totalorder %s395, %s398
    %p407 = scmp.eq.s32.totalorder %s28, 1
    %p408 = por %p406, %p407
    %p409 = scmp.ne.s32.totalorder %s398, %s399
    %p410 = scmp.eq.s32.totalorder %s28, 0
    %p411 = por %p409, %p410
    %p412 = scmp.ne.s32.totalorder %s398, %s399
    %p413 = scmp.eq.s32.totalorder %s29, 1
    %p414 = por %p412, %p413
    %p416 = scmp.ne.s32.totalorder %s399, %s415
    %p417 = scmp.eq.s32.totalorder %s29, 0
    %p418 = por %p416, %p417
    %p419 = scmp.le.s32.totalorder 1, %s23
    %p420 = scmp.lt.s32.totalorder %s23, 3
    %p421 = pnand %p419, %p420
    %p422 = pneg %p421
    // Predicated region
    $region9: #{transformer_forward.1} parent=5 // pred_check
      _
    $region10: #{transformer_forward.1} parent=5 // pred_check_branch
      %424 = sbr.rel (%p421) target = $region12
    $region11: #{transformer_forward.1} parent=5 // pred_region
      %s425 = ssub.s32 %s23, 1
      // Predicated region
      $region13: #{transformer_forward.1} parent=11 // pred_check
        %p426 = pneg %p70
      $region14: #{transformer_forward.1} parent=11 // pred_check_branch
        %428 = sbr.rel (%p426) target = $region16
      $region15: #{transformer_forward.1} parent=11 // pred_region
        _
      $region16: #{transformer_forward.1} parent=11 // pred_fallthru
        _
      // Predicated region
      $region17: #{transformer_forward.1} parent=11 // pred_check
        %p429 = pneg %p91
      $region18: #{transformer_forward.1} parent=11 // pred_check_branch
        %431 = sbr.rel (%p429) target = $region20
      $region19: #{transformer_forward.1} parent=11 // pred_region
        _
      $region20: #{transformer_forward.1} parent=11 // pred_fallthru
        _
      // Predicated region
      $region21: #{transformer_forward.1} parent=11 // pred_check
        %p432 = pneg %p112
      $region22: #{transformer_forward.1} parent=11 // pred_check_branch
        %434 = sbr.rel (%p432) target = $region24
      $region23: #{transformer_forward.1} parent=11 // pred_region
        _
      $region24: #{transformer_forward.1} parent=11 // pred_fallthru
        _
      // Predicated region
      $region25: #{transformer_forward.1} parent=11 // pred_check
        %p435 = pneg %p133
      $region26: #{transformer_forward.1} parent=11 // pred_check_branch
        %437 = sbr.rel (%p435) target = $region28
      $region27: #{transformer_forward.1} parent=11 // pred_region
        _
      $region28: #{transformer_forward.1} parent=11 // pred_fallthru
        _
      // Predicated region
      $region29: #{transformer_forward.1} parent=11 // pred_check
        %p438 = pneg %p154
      $region30: #{transformer_forward.1} parent=11 // pred_check_branch
        %440 = sbr.rel (%p438) target = $region32
      $region31: #{transformer_forward.1} parent=11 // pred_region
        _
      $region32: #{transformer_forward.1} parent=11 // pred_fallthru
        _
      // Predicated region
      $region33: #{transformer_forward.1} parent=11 // pred_check
        %p441 = pneg %p175
      $region34: #{transformer_forward.1} parent=11 // pred_check_branch
        %443 = sbr.rel (%p441) target = $region36
      $region35: #{transformer_forward.1} parent=11 // pred_region
        _
      $region36: #{transformer_forward.1} parent=11 // pred_fallthru
        _
      // Predicated region
      $region37: #{transformer_forward.1} parent=11 // pred_check
        %p444 = pneg %p196
      $region38: #{transformer_forward.1} parent=11 // pred_check_branch
        %446 = sbr.rel (%p444) target = $region40
      $region39: #{transformer_forward.1} parent=11 // pred_region
        _
      $region40: #{transformer_forward.1} parent=11 // pred_fallthru
        _
      // Predicated region
      $region41: #{transformer_forward.1} parent=11 // pred_check
        %p447 = pneg %p217
      $region42: #{transformer_forward.1} parent=11 // pred_check_branch
        %449 = sbr.rel (%p447) target = $region44
      $region43: #{transformer_forward.1} parent=11 // pred_region
        _
      $region44: #{transformer_forward.1} parent=11 // pred_fallthru
        _
      // Predicated region
      $region45: #{transformer_forward.1} parent=11 // pred_check
        %p450 = pneg %p238
      $region46: #{transformer_forward.1} parent=11 // pred_check_branch
        %452 = sbr.rel (%p450) target = $region48
      $region47: #{transformer_forward.1} parent=11 // pred_region
        _
      $region48: #{transformer_forward.1} parent=11 // pred_fallthru
        _
      // Predicated region
      $region49: #{transformer_forward.1} parent=11 // pred_check
        %p453 = pneg %p259
      $region50: #{transformer_forward.1} parent=11 // pred_check_branch
        %455 = sbr.rel (%p453) target = $region52
      $region51: #{transformer_forward.1} parent=11 // pred_region
        _
      $region52: #{transformer_forward.1} parent=11 // pred_fallthru
        _
      // Predicated region
      $region53: #{transformer_forward.1} parent=11 // pred_check
        %p456 = pneg %p280
      $region54: #{transformer_forward.1} parent=11 // pred_check_branch
        %458 = sbr.rel (%p456) target = $region56
      $region55: #{transformer_forward.1} parent=11 // pred_region
        _
      $region56: #{transformer_forward.1} parent=11 // pred_fallthru
        _
      // Predicated region
      $region57: #{transformer_forward.1} parent=11 // pred_check
        %p459 = pneg %p301
      $region58: #{transformer_forward.1} parent=11 // pred_check_branch
        %461 = sbr.rel (%p459) target = $region60
      $region59: #{transformer_forward.1} parent=11 // pred_region
        _
      $region60: #{transformer_forward.1} parent=11 // pred_fallthru
        _
      // Predicated region
      $region61: #{transformer_forward.1} parent=11 // pred_check
        %p462 = pneg %p322
      $region62: #{transformer_forward.1} parent=11 // pred_check_branch
        %464 = sbr.rel (%p462) target = $region64
      $region63: #{transformer_forward.1} parent=11 // pred_region
        _
      $region64: #{transformer_forward.1} parent=11 // pred_fallthru
        _
      // Predicated region
      $region65: #{transformer_forward.1} parent=11 // pred_check
        %p465 = pneg %p343
      $region66: #{transformer_forward.1} parent=11 // pred_check_branch
        %467 = sbr.rel (%p465) target = $region68
      $region67: #{transformer_forward.1} parent=11 // pred_region
        _
      $region68: #{transformer_forward.1} parent=11 // pred_fallthru
        _
      // Predicated region
      $region69: #{transformer_forward.1} parent=11 // pred_check
        %p468 = pneg %p364
      $region70: #{transformer_forward.1} parent=11 // pred_check_branch
        %470 = sbr.rel (%p468) target = $region72
      $region71: #{transformer_forward.1} parent=11 // pred_region
        _
      $region72: #{transformer_forward.1} parent=11 // pred_fallthru
        _
      // Predicated region
      $region73: #{transformer_forward.1} parent=11 // pred_check
        %p471 = pneg %p385
      $region74: #{transformer_forward.1} parent=11 // pred_check_branch
        %473 = sbr.rel (%p471) target = $region76
      $region75: #{transformer_forward.1} parent=11 // pred_region
        _
      $region76: #{transformer_forward.1} parent=11 // pred_fallthru
        _
    $region12: #{transformer_forward.1} parent=5 // pred_fallthru
      _
    %p474 = scmp.lt.s32.totalorder %s23, 2
    // Predicated region
    $region77: #{transformer_forward.1} parent=5 // pred_check
      %p475 = pneg %p474
    $region78: #{transformer_forward.1} parent=5 // pred_check_branch
      %477 = sbr.rel (%p475) target = $region80
    $region79: #{transformer_forward.1} parent=5 // pred_region
      // Predicated region
      $region81: #{transformer_forward.1} parent=79 // pred_check
        %p478 = pneg %p43
      $region82: #{transformer_forward.1} parent=79 // pred_check_branch
        %480 = sbr.rel (%p478) target = $region84
      $region83: #{transformer_forward.1} parent=79 // pred_region
        %p481 = scmp.lt.s32.totalorder %s23, 1
        %s482 = scalar_select %p481, %s23, 1
        %s483 = smul.addr %s482, 8
        %s484 = smul.addr %s483, 8
        %s485 = scalar_lea.vmem %s0, %s484
      $region84: #{transformer_forward.1} parent=79 // pred_fallthru
        _
    $region80: #{transformer_forward.1} parent=5 // pred_fallthru
      _
    %p486 = scmp.le.s32.totalorder 1, %s23
    %p487 = scmp.lt.s32.totalorder %s23, 3
    %p488 = pnand %p486, %p487
    %p489 = pneg %p488
    // Predicated region
    $region85: #{transformer_forward.1} parent=5 // pred_check
      _
    $region86: #{transformer_forward.1} parent=5 // pred_check_branch
      %491 = sbr.rel (%p488) target = $region88
    $region87: #{transformer_forward.1} parent=5 // pred_region
      %s492 = ssub.s32 %s23, 1
      %p493 = scmp.lt.s32.totalorder %s28, 1
      %s494 = scalar_select %p493, %s28, 1
      %s495 = smul.addr %s494, 8
      %s496 = smul.addr %s495, 8
      %s497 = scalar_lea.vmem %s0, %s496
      %p498 = pneg %p49
      %p499 = pneg %p46
      %p500 = pneg %p70
      %p501 = pneg %p67
      %p502 = pneg %p91
      %p503 = pneg %p88
      %p504 = pneg %p112
      %p505 = pneg %p109
      %p506 = pneg %p133
      %p507 = pneg %p130
      %p508 = pneg %p154
      %p509 = pneg %p151
      %p510 = pneg %p175
      %p511 = pneg %p172
      %p512 = pneg %p196
      %p513 = pneg %p193
      %p514 = pneg %p217
      %p515 = pneg %p214
      %p516 = pneg %p238
      %p517 = pneg %p235
      %p518 = pneg %p259
      %p519 = pneg %p256
      %p520 = pneg %p280
      %p521 = pneg %p277
      %p522 = pneg %p301
      %p523 = pneg %p298
      %p524 = pneg %p322
      %p525 = pneg %p319
      %p526 = pneg %p343
      %p527 = pneg %p340
      %p528 = pneg %p364
      %p529 = pneg %p361
      %p530 = pneg %p385
      %p531 = pneg %p382
      %p532 = pneg %p411
      %p533 = pneg %p408
      %p534 = scmp.lt.s32.totalorder %s28, 1
      %s535 = scalar_select %p534, %s28, 1
      %s536 = smul.addr %s535, 4
      %s537 = smul.addr %s536, 8
      %s538 = scalar_lea.vmem %s17, %s537
      %p539 = scmp.lt.s32.totalorder %s28, 1
      %s540 = scalar_select %p539, %s28, 1
      %s541 = smul.addr %s540, 8
      %s542 = smul.addr %s541, 8
      %s543 = scalar_lea.vmem %s0, %s542
      %p544 = scmp.lt.s32.totalorder %s28, 1
      %s545 = scalar_select %p544, %s28, 1
      %s546 = smul.addr %s545, 4
      %s547 = smul.addr %s546, 8
      %s548 = scalar_lea.vmem %s17, %s547
      %v550 = vld [vmem:[%s543] sm:$0xff]
      %v551 = vld [vmem:[%s543 + $0x8] sm:$0xff]
      %v552 = vld [vmem:[%s543 + $0x10] sm:$0xff]
      %v553 = vld [vmem:[%s543 + $0x18] sm:$0xff]
      %v554 = vld [vmem:[%s543 + $0x20] sm:$0xff]
      %v555 = vld [vmem:[%s543 + $0x28] sm:$0xff]
      %v556 = vld [vmem:[%s543 + $0x30] sm:$0xff]
      %v557 = vld [vmem:[%s543 + $0x38] sm:$0xff]
      %v558 = vpack.c.bf16 %v551, %v550
      %v559 = vpack.c.bf16 %v553, %v552
      %v560 = vpack.c.bf16 %v555, %v554
      %v561 = vpack.c.bf16 %v557, %v556
      %v562 = vld [vmem:[%s1] sm:$0xf]
      %v563 = vld [vmem:[%s1 + $0x4] sm:$0xf]
      %v564 = vld [vmem:[%s2] sm:$0xff]
      %v565 = vld [vmem:[%s2 + $0x8] sm:$0xff]
      %v566 = vld [vmem:[%s2 + $0x10] sm:$0xff]
      %v567 = vld [vmem:[%s2 + $0x18] sm:$0xff]
      %v568 = vld [vmem:[%s2 + $0x20] sm:$0xff]
      %v569 = vld [vmem:[%s2 + $0x28] sm:$0xff]
      %v570 = vld [vmem:[%s2 + $0x30] sm:$0xff]
      %v571 = vld [vmem:[%s2 + $0x38] sm:$0xff]
      %v574 = vunpack.c.l.b16 %v562
      %v575 = vunpack.c.l.b16 %v563
      %v576 = vpack.c.b16 %v575, %v574
      %vm578 = vcmask 130048
      %v580 = vsel %vm578, %v558, 0
      %v583 = vsel %vm578, %v559, 0
      %v586 = vsel %vm578, %v560, 0
      %v589 = vsel %vm578, %v561, 0
      %591 = vmatprep.subr.bf16.mxu0 0
      %592 = vmatpush1.bf16.msra.mxu0 %v576
      %593 = vmatprep.subr.bf16.mxu0 0
      %594 = vmatpush1.bf16.msra.mxu0 0
      %595 = vmatprep.subr.bf16.mxu0 0
      %596 = vmatpush1.bf16.msra.mxu0 0
      %597 = vmatprep.subr.bf16.mxu0 0
      %598 = vmatpush1.bf16.msra.mxu0 0
      %599 = vmatprep.subr.bf16.mxu0 0
      %600 = vmatpush1.bf16.msra.mxu0 0
      %601 = vmatprep.subr.bf16.mxu0 0
      %602 = vmatpush1.bf16.msra.mxu0 0
      %603 = vmatprep.subr.bf16.mxu0 0
      %604 = vmatpush1.bf16.msra.mxu0 0
      %605 = vmatprep.subr.bf16.mxu0 0
      %606 = vmatpush1.bf16.msra.mxu0 0
      %607 = vmatprep.subr.bf16.mxu0 0
      %608 = vmatpush1.bf16.msra.mxu0 0
      %609 = vmatprep.subr.bf16.mxu0 0
      %610 = vmatpush1.bf16.msra.mxu0 0
      %611 = vmatprep.subr.bf16.mxu0 0
      %612 = vmatpush1.bf16.msra.mxu0 0
      %613 = vmatprep.subr.bf16.mxu0 0
      %614 = vmatpush1.bf16.msra.mxu0 0
      %615 = vmatprep.subr.bf16.mxu0 0
      %616 = vmatpush1.bf16.msra.mxu0 0
      %617 = vmatprep.subr.bf16.mxu0 0
      %618 = vmatpush1.bf16.msra.mxu0 0
      %619 = vmatprep.subr.bf16.mxu0 0
      %620 = vmatpush1.bf16.msra.mxu0 0
      %621 = vmatprep.subr.bf16.mxu0 0
      %622 = vmatpush1.bf16.msra.mxu0 0
      %623 = vmatprep.mubr.bf16.mxu0 0
      %624 = vmatmul.mubr.bf16.gmra.mrb[0].mxu0 %v580
      %v625 = vpop.f32.mrb[0].mxu0
      %v626 = vadd.f32 %v564, %v625
      %v627 = vpop.f32.mrb[0].mxu0
      %v628 = vpop.f32.mrb[0].mxu0
      %v629 = vadd.f32 %v565, %v628
      %v630 = vpop.f32.mrb[0].mxu0
      %631 = vmatprep.mubr.bf16.mxu0 0
      %632 = vmatmul.mubr.bf16.gmra.mrb[0].mxu0 %v583
      %v633 = vpop.f32.mrb[0].mxu0
      %v634 = vadd.f32 %v566, %v633
      %v635 = vpop.f32.mrb[0].mxu0
      %v636 = vpop.f32.mrb[0].mxu0
      %v637 = vadd.f32 %v567, %v636
      %v638 = vpop.f32.mrb[0].mxu0
      %639 = vmatprep.mubr.bf16.mxu0 0
      %640 = vmatmul.mubr.bf16.gmra.mrb[0].mxu0 %v586
      %v641 = vpop.f32.mrb[0].mxu0
      %v642 = vadd.f32 %v568, %v641
      %v643 = vpop.f32.mrb[0].mxu0
      %v644 = vpop.f32.mrb[0].mxu0
      %v645 = vadd.f32 %v569, %v644
      %v646 = vpop.f32.mrb[0].mxu0
      %647 = vmatprep.mubr.bf16.mxu0 0
      %648 = vmatmul.mubr.bf16.gmra.mrb[0].mxu0 %v589
      %v649 = vpop.f32.mrb[0].mxu0
      %v650 = vadd.f32 %v570, %v649
      %v651 = vpop.f32.mrb[0].mxu0
      %v652 = vpop.f32.mrb[0].mxu0
      %v653 = vadd.f32 %v571, %v652
      %v654 = vpop.f32.mrb[0].mxu0
      %655 = vdwg.mxu0
      %v656 = vld [vmem:[%s3] sm:$0x1]
      %v657 = vld [vmem:[%s4] sm:$0x1]
      %vm658 = vcmask 261120
      %v659 = vsel %vm658, %v626, 0.0
      %660 = vadd.xlane.f32.xlu0 %v659
      %v661 = vpop.xlane.xlu0 %660
      %v662 = vsel %vm658, %v629, 0.0
      %663 = vadd.xlane.f32.xlu0 %v662
      %v664 = vpop.xlane.xlu0 %663
      %v665 = vsel %vm658, %v634, 0.0
      %666 = vadd.xlane.f32.xlu0 %v665
      %v667 = vpop.xlane.xlu0 %666
      %v668 = vsel %vm658, %v637, 0.0
      %669 = vadd.xlane.f32.xlu0 %v668
      %v670 = vpop.xlane.xlu0 %669
      %v671 = vsel %vm658, %v642, 0.0
      %672 = vadd.xlane.f32.xlu0 %v671
      %v673 = vpop.xlane.xlu0 %672
      %v674 = vsel %vm658, %v645, 0.0
      %675 = vadd.xlane.f32.xlu0 %v674
      %v676 = vpop.xlane.xlu0 %675
      %v677 = vsel %vm658, %v650, 0.0
      %678 = vadd.xlane.f32.xlu0 %v677
      %v679 = vpop.xlane.xlu0 %678
      %v680 = vsel %vm658, %v653, 0.0
      %681 = vadd.xlane.f32.xlu0 %v680
      %v682 = vpop.xlane.xlu0 %681
      %v683 = vrcp.pop 32.0
      %v684 = vmul.f32 %v661, %v683
      %v685 = vmul.f32 %v664, %v683
      %v686 = vmul.f32 %v667, %v683
      %v687 = vmul.f32 %v670, %v683
      %v688 = vmul.f32 %v673, %v683
      %v689 = vmul.f32 %v676, %v683
      %v690 = vmul.f32 %v679, %v683
      %v691 = vmul.f32 %v682, %v683
      %v692 = vsub.f32 %v626, %v684
      %v693 = vsub.f32 %v629, %v685
      %v694 = vsub.f32 %v634, %v686
      %v695 = vsub.f32 %v637, %v687
      %v696 = vsub.f32 %v642, %v688
      %v697 = vsub.f32 %v645, %v689
      %v698 = vsub.f32 %v650, %v690
      %v699 = vsub.f32 %v653, %v691
      %v700 = vmul.f32 %v692, %v692
      %v701 = vmul.f32 %v693, %v693
      %v702 = vmul.f32 %v694, %v694
      %v703 = vmul.f32 %v695, %v695
      %v704 = vmul.f32 %v696, %v696
      %v705 = vmul.f32 %v697, %v697
      %v706 = vmul.f32 %v698, %v698
      %v707 = vmul.f32 %v699, %v699
      %v708 = vsel %vm658, %v700, 0.0
      %709 = vadd.xlane.f32.xlu0 %v708
      %v710 = vpop.xlane.xlu0 %709
      %v711 = vsel %vm658, %v701, 0.0
      %712 = vadd.xlane.f32.xlu0 %v711
      %v713 = vpop.xlane.xlu0 %712
      %v714 = vsel %vm658, %v702, 0.0
      %715 = vadd.xlane.f32.xlu0 %v714
      %v716 = vpop.xlane.xlu0 %715
      %v717 = vsel %vm658, %v703, 0.0
      %718 = vadd.xlane.f32.xlu0 %v717
      %v719 = vpop.xlane.xlu0 %718
      %v720 = vsel %vm658, %v704, 0.0
      %721 = vadd.xlane.f32.xlu0 %v720
      %v722 = vpop.xlane.xlu0 %721
      %v723 = vsel %vm658, %v705, 0.0
      %724 = vadd.xlane.f32.xlu0 %v723
      %v725 = vpop.xlane.xlu0 %724
      %v726 = vsel %vm658, %v706, 0.0
      %727 = vadd.xlane.f32.xlu0 %v726
      %v728 = vpop.xlane.xlu0 %727
      %v729 = vsel %vm658, %v707, 0.0
      %730 = vadd.xlane.f32.xlu0 %v729
      %v731 = vpop.xlane.xlu0 %730
      %v732 = vmul.f32 %v710, %v683
      %v733 = vmul.f32 %v713, %v683
      %v734 = vmul.f32 %v716, %v683
      %v735 = vmul.f32 %v719, %v683
      %v736 = vmul.f32 %v722, %v683
      %v737 = vmul.f32 %v725, %v683
      %v738 = vmul.f32 %v728, %v683
      %v739 = vmul.f32 %v731, %v683
      %v740 = vadd.f32 %v732, 1e-06
      %v741 = vadd.f32 %v733, 1e-06
      %v742 = vadd.f32 %v734, 1e-06
      %v743 = vadd.f32 %v735, 1e-06
      %v744 = vadd.f32 %v736, 1e-06
      %v745 = vadd.f32 %v737, 1e-06
      %v746 = vadd.f32 %v738, 1e-06
      %v747 = vadd.f32 %v739, 1e-06
      %v748 = vrsqrt.pop %v740
      %v749 = vrsqrt.pop %v741
      %v750 = vrsqrt.pop %v742
      %v751 = vrsqrt.pop %v743
      %v752 = vrsqrt.pop %v744
      %v753 = vrsqrt.pop %v745
      %v754 = vrsqrt.pop %v746
      %v755 = vrsqrt.pop %v747
      %v756 = vmul.f32 %v692, %v748
      %v757 = vmul.f32 %v693, %v749
      %v758 = vmul.f32 %v694, %v750
      %v759 = vmul.f32 %v695, %v751
      %v760 = vmul.f32 %v696, %v752
      %v761 = vmul.f32 %v697, %v753
      %v762 = vmul.f32 %v698, %v754
      %v763 = vmul.f32 %v699, %v755
      %v765 = vlaneseq
      %v766 = vshrl.u32 %v765, 7
      %v767 = vsub.s32 0, %v766
      %v768 = vrot.slane %v656, %v767
      %v770 = vmul.f32 %v756, %v768
      %v771 = vmul.f32 %v757, %v768
      %v772 = vmul.f32 %v758, %v768
      %v773 = vmul.f32 %v759, %v768
      %v774 = vmul.f32 %v760, %v768
      %v775 = vmul.f32 %v761, %v768
      %v776 = vmul.f32 %v762, %v768
      %v777 = vmul.f32 %v763, %v768
      %v779 = vlaneseq
      %v780 = vshrl.u32 %v779, 7
      %v781 = vsub.s32 0, %v780
      %v782 = vrot.slane %v657, %v781
      %v784 = vadd.f32 %v770, %v782
      %v785 = vadd.f32 %v771, %v782
      %v786 = vadd.f32 %v772, %v782
      %v787 = vadd.f32 %v773, %v782
      %v788 = vadd.f32 %v774, %v782
      %v789 = vadd.f32 %v775, %v782
      %v790 = vadd.f32 %v776, %v782
      %v791 = vadd.f32 %v777, %v782
      %v792 = vpack.c.bf16 %v785, %v784
      %v793 = vpack.c.bf16 %v787, %v786
      %v794 = vpack.c.bf16 %v789, %v788
      %v795 = vpack.c.bf16 %v791, %v790
      %v796 = vld [vmem:[%s5] sm:$0xf]
      %v797 = vld [vmem:[%s5 + $0x4] sm:$0xf]
      %v798 = vld [vmem:[%s5 + $0x8] sm:$0xf]
      %v799 = vld [vmem:[%s5 + $0xc] sm:$0xf]
      %v800 = vld [vmem:[%s7] sm:$0xf]
      %v801 = vld [vmem:[%s7 + $0x4] sm:$0xf]
      %v802 = vld [vmem:[%s7 + $0x8] sm:$0xf]
      %v803 = vld [vmem:[%s7 + $0xc] sm:$0xf]
      %v804 = vld [vmem:[%s6] sm:$0x1]
      %v809 = vunpack.c.l.b16 %v796
      %v810 = vunpack.c.l.b16 %v797
      %v811 = vunpack.c.l.b16 %v798
      %v812 = vunpack.c.l.b16 %v799
      %v813 = vpack.c.b16 %v810, %v809
      %v814 = vpack.c.b16 %v812, %v811
      %v818 = vsel %vm658, %v792, 0
      %v821 = vsel %vm658, %v793, 0
      %v824 = vsel %vm658, %v794, 0
      %v827 = vsel %vm658, %v795, 0
      %829 = vmatprep.subr.bf16.mxu0 0
      %830 = vmatpush1.bf16.msra.mxu0 %v813
      %831 = vmatprep.subr.bf16.mxu0 0
      %832 = vmatpush1.bf16.msra.mxu0 %v814
      %833 = vmatprep.subr.bf16.mxu0 0
      %834 = vmatpush1.bf16.msra.mxu0 0
      %835 = vmatprep.subr.bf16.mxu0 0
      %836 = vmatpush1.bf16.msra.mxu0 0
      %837 = vmatprep.subr.bf16.mxu0 0
      %838 = vmatpush1.bf16.msra.mxu0 0
      %839 = vmatprep.subr.bf16.mxu0 0
      %840 = vmatpush1.bf16.msra.mxu0 0
      %841 = vmatprep.subr.bf16.mxu0 0
      %842 = vmatpush1.bf16.msra.mxu0 0
      %843 = vmatprep.subr.bf16.mxu0 0
      %844 = vmatpush1.bf16.msra.mxu0 0
      %845 = vmatprep.subr.bf16.mxu0 0
      %846 = vmatpush1.bf16.msra.mxu0 0
      %847 = vmatprep.subr.bf16.mxu0 0
      %848 = vmatpush1.bf16.msra.mxu0 0
      %849 = vmatprep.subr.bf16.mxu0 0
      %850 = vmatpush1.bf16.msra.mxu0 0
      %851 = vmatprep.subr.bf16.mxu0 0
      %852 = vmatpush1.bf16.msra.mxu0 0
      %853 = vmatprep.subr.bf16.mxu0 0
      %854 = vmatpush1.bf16.msra.mxu0 0
      %855 = vmatprep.subr.bf16.mxu0 0
      %856 = vmatpush1.bf16.msra.mxu0 0
      %857 = vmatprep.subr.bf16.mxu0 0
      %858 = vmatpush1.bf16.msra.mxu0 0
      %859 = vmatprep.subr.bf16.mxu0 0
      %860 = vmatpush1.bf16.msra.mxu0 0
      %861 = vmatprep.mubr.bf16.mxu0 0
      %862 = vmatmul.mubr.bf16.gmra.mrb[0].mxu0 %v818
      %v863 = vpop.f32.mrb[0].mxu0
      %v864 = vadd.f32 0.0, %v863
      %v865 = vpop.f32.mrb[0].mxu0
      %v866 = vpop.f32.mrb[0].mxu0
      %v867 = vadd.f32 0.0, %v866
      %v868 = vpop.f32.mrb[0].mxu0
      %869 = vmatprep.mubr.bf16.mxu0 0
      %870 = vmatmul.mubr.bf16.gmra.mrb[0].mxu0 %v821
      %v871 = vpop.f32.mrb[0].mxu0
      %v872 = vadd.f32 0.0, %v871
      %v873 = vpop.f32.mrb[0].mxu0
      %v874 = vpop.f32.mrb[0].mxu0
      %v875 = vadd.f32 0.0, %v874
      %v876 = vpop.f32.mrb[0].mxu0
      %877 = vmatprep.mubr.bf16.mxu0 0
      %878 = vmatmul.mubr.bf16.gmra.mrb[0].mxu0 %v824
      %v879 = vpop.f32.mrb[0].mxu0
      %v880 = vadd.f32 0.0, %v879
      %v881 = vpop.f32.mrb[0].mxu0
      %v882 = vpop.f32.mrb[0].mxu0
      %v883 = vadd.f32 0.0, %v882
      %v884 = vpop.f32.mrb[0].mxu0
      %885 = vmatprep.mubr.bf16.mxu0 0
      %886 = vmatmul.mubr.bf16.gmra.mrb[0].mxu0 %v827
      %v887 = vpop.f32.mrb[0].mxu0
      %v888 = vadd.f32 0.0, %v887
      %v889 = vpop.f32.mrb[0].mxu0
      %v890 = vpop.f32.mrb[0].mxu0
      %v891 = vadd.f32 0.0, %v890
      %v892 = vpop.f32.mrb[0].mxu0
      %893 = vdwg.mxu0
      %v894 = vpack.c.bf16 %v867, %v864
      %v895 = vpack.c.bf16 %v875, %v872
      %v896 = vpack.c.bf16 %v883, %v880
      %v897 = vpack.c.bf16 %v891, %v888
      %v899 = vsel %vm658, %v804, 0
      %901 = vmatprep.subr.bf16.mxu0 0
      %902 = vmatpush1.bf16.xpose.msra.mxu0 %v818
      %903 = vmatprep.subr.bf16.mxu0 0
      %904 = vmatpush1.bf16.xpose.msra.mxu0 %v821
      %905 = vmatprep.subr.bf16.mxu0 0
      %906 = vmatpush1.bf16.xpose.msra.mxu0 %v824
      %907 = vmatprep.subr.bf16.mxu0 0
      %908 = vmatpush1.bf16.xpose.msra.mxu0 %v827
      %909 = vmatprep.subr.bf16.mxu0 0
      %910 = vmatpush1.bf16.xpose.msra.mxu0 0
      %911 = vmatprep.subr.bf16.mxu0 0
      %912 = vmatpush1.bf16.xpose.msra.mxu0 0
      %913 = vmatprep.subr.bf16.mxu0 0
      %914 = vmatpush1.bf16.xpose.msra.mxu0 0
      %915 = vmatprep.subr.bf16.mxu0 0
      %916 = vmatpush1.bf16.xpose.msra.mxu0 0
      %917 = vmatprep.subr.bf16.mxu0 0
      %918 = vmatpush1.bf16.xpose.msra.mxu0 0
      %919 = vmatprep.subr.bf16.mxu0 0
      %920 = vmatpush1.bf16.xpose.msra.mxu0 0
      %921 = vmatprep.subr.bf16.mxu0 0
      %922 = vmatpush1.bf16.xpose.msra.mxu0 0
      %923 = vmatprep.subr.bf16.mxu0 0
      %924 = vmatpush1.bf16.xpose.msra.mxu0 0
      %925 = vmatprep.subr.bf16.mxu0 0
      %926 = vmatpush1.bf16.xpose.msra.mxu0 0
      %927 = vmatprep.subr.bf16.mxu0 0
      %928 = vmatpush1.bf16.xpose.msra.mxu0 0
      %929 = vmatprep.subr.bf16.mxu0 0
      %930 = vmatpush1.bf16.xpose.msra.mxu0 0
      %931 = vmatprep.subr.bf16.mxu0 0
      %932 = vmatpush1.bf16.xpose.msra.mxu0 0
      %933 = vmatprep.mubr.bf16.mxu0 0
      %934 = vmatmul.mubr.bf16.gmra.mrb[0].mxu0 %v899
      %v935 = vpop.f32.mrb[0].mxu0
      %v936 = vadd.f32 0.0, %v935
      %v937 = vpop.f32.mrb[0].mxu0
      %v938 = vpop.f32.mrb[0].mxu0
      %v939 = vpop.f32.mrb[0].mxu0
      %940 = vdwg.mxu0
      %v941 = vlaneseq
      %v942 = vshrl.u32 %v941, 7
      %v943 = vsub.s32 0, %v942
      %v944 = vrot.slane %v936, %v943
      %v946 = vsel %vm658, %v894, 0
      %v949 = vsel %vm658, %v895, 0
      %v952 = vsel %vm658, %v896, 0
      %v955 = vsel %vm658, %v897, 0
      %957 = vmatprep.subr.bf16.mxu0 0
      %958 = vmatpush1.bf16.xpose.msra.mxu0 %v818
      %959 = vmatprep.subr.bf16.mxu0 0
      %960 = vmatpush1.bf16.xpose.msra.mxu0 %v821
      %961 = vmatprep.subr.bf16.mxu0 0
      %962 = vmatpush1.bf16.xpose.msra.mxu0 %v824
      %963 = vmatprep.subr.bf16.mxu0 0
      %964 = vmatpush1.bf16.xpose.msra.mxu0 %v827
      %965 = vmatprep.subr.bf16.mxu0 0
      %966 = vmatpush1.bf16.xpose.msra.mxu0 0
      %967 = vmatprep.subr.bf16.mxu0 0
      %968 = vmatpush1.bf16.xpose.msra.mxu0 0
      %969 = vmatprep.subr.bf16.mxu0 0
      %970 = vmatpush1.bf16.xpose.msra.mxu0 0
      %971 = vmatprep.subr.bf16.mxu0 0
      %972 = vmatpush1.bf16.xpose.msra.mxu0 0
      %973 = vmatprep.subr.bf16.mxu0 0
      %974 = vmatpush1.bf16.xpose.msra.mxu0 0
      %975 = vmatprep.subr.bf16.mxu0 0
      %976 = vmatpush1.bf16.xpose.msra.mxu0 0
      %977 = vmatprep.subr.bf16.mxu0 0
      %978 = vmatpush1.bf16.xpose.msra.mxu0 0
      %979 = vmatprep.subr.bf16.mxu0 0
      %980 = vmatpush1.bf16.xpose.msra.mxu0 0
      %981 = vmatprep.subr.bf16.mxu0 0
      %982 = vmatpush1.bf16.xpose.msra.mxu0 0
      %983 = vmatprep.subr.bf16.mxu0 0
      %984 = vmatpush1.bf16.xpose.msra.mxu0 0
      %985 = vmatprep.subr.bf16.mxu0 0
      %986 = vmatpush1.bf16.xpose.msra.mxu0 0
      %987 = vmatprep.subr.bf16.mxu0 0
      %988 = vmatpush1.bf16.xpose.msra.mxu0 0
      %989 = vmatprep.mubr.bf16.mxu0 0
      %990 = vmatmul.mubr.bf16.gmra.mrb[0].mxu0 %v946
      %v991 = vpop.f32.mrb[0].mxu0
      %v992 = vadd.f32 %v944, %v991
      %v993 = vpop.f32.mrb[0].mxu0
      %v994 = vpop.f32.mrb[0].mxu0
      %v995 = vadd.f32 %v944, %v994
      %v996 = vpop.f32.mrb[0].mxu0
      %997 = vmatprep.mubr.bf16.mxu0 0
      %998 = vmatmul.mubr.bf16.gmra.mrb[0].mxu0 %v949
      %v999 = vpop.f32.mrb[0].mxu0
      %v1000 = vadd.f32 %v944, %v999
      %v1001 = vpop.f32.mrb[0].mxu0
      %v1002 = vpop.f32.mrb[0].mxu0
      %v1003 = vadd.f32 %v944, %v1002
      %v1004 = vpop.f32.mrb[0].mxu0
      %1005 = vmatprep.mubr.bf16.mxu0 0
      %1006 = vmatmul.mubr.bf16.gmra.mrb[0].mxu0 %v952
      %v1007 = vpop.f32.mrb[0].mxu0
      %v1008 = vadd.f32 %v944, %v1007
      %v1009 = vpop.f32.mrb[0].mxu0
      %v1010 = vpop.f32.mrb[0].mxu0
      %v1011 = vadd.f32 %v944, %v1010
      %v1012 = vpop.f32.mrb[0].mxu0
      %1013 = vmatprep.mubr.bf16.mxu0 0
      %1014 = vmatmul.mubr.bf16.gmra.mrb[0].mxu0 %v955
      %v1015 = vpop.f32.mrb[0].mxu0
      %v1016 = vadd.f32 %v944, %v1015
      %v1017 = vpop.f32.mrb[0].mxu0
      %v1018 = vpop.f32.mrb[0].mxu0
      %v1019 = vadd.f32 %v944, %v1018
      %v1020 = vpop.f32.mrb[0].mxu0
      %1021 = vdwg.mxu0
      %vm1022 = vcmask 523264
      %v1023 = vsel %vm1022, %v992, -inf
      %1024 = vmax.xlane.f32.xlu0 %v1023
      %v1025 = vpop.xlane.xlu0 %1024
      %v1026 = vsel %vm1022, %v995, -inf
      %1027 = vmax.xlane.f32.xlu0 %v1026
      %v1028 = vpop.xlane.xlu0 %1027
      %v1029 = vsel %vm1022, %v1000, -inf
      %1030 = vmax.xlane.f32.xlu0 %v1029
      %v1031 = vpop.xlane.xlu0 %1030
      %v1032 = vsel %vm1022, %v1003, -inf
      %1033 = vmax.xlane.f32.xlu0 %v1032
      %v1034 = vpop.xlane.xlu0 %1033
      %v1035 = vsel %vm1022, %v1008, -inf
      %1036 = vmax.xlane.f32.xlu0 %v1035
      %v1037 = vpop.xlane.xlu0 %1036
      %v1038 = vsel %vm1022, %v1011, -inf
      %1039 = vmax.xlane.f32.xlu0 %v1038
      %v1040 = vpop.xlane.xlu0 %1039
      %v1041 = vsel %vm1022, %v1016, -inf
      %1042 = vmax.xlane.f32.xlu0 %v1041
      %v1043 = vpop.xlane.xlu0 %1042
      %v1044 = vsel %vm1022, %v1019, -inf
      %1045 = vmax.xlane.f32.xlu0 %v1044
      %v1046 = vpop.xlane.xlu0 %1045
      %v1047 = vsub.f32 %v992, %v1025
      %v1048 = vsub.f32 %v995, %v1028
      %v1049 = vsub.f32 %v1000, %v1031
      %v1050 = vsub.f32 %v1003, %v1034
      %v1051 = vsub.f32 %v1008, %v1037
      %v1052 = vsub.f32 %v1011, %v1040
      %v1053 = vsub.f32 %v1016, %v1043
      %v1054 = vsub.f32 %v1019, %v1046
      %v1055 = vmul.f32 %v1047, 1.442695
      %v1056 = vpow.pop %v1055
      %v1057 = vmul.f32 %v1048, 1.442695
      %v1058 = vpow.pop %v1057
      %v1059 = vmul.f32 %v1049, 1.442695
      %v1060 = vpow.pop %v1059
      %v1061 = vmul.f32 %v1050, 1.442695
      %v1062 = vpow.pop %v1061
      %v1063 = vmul.f32 %v1051, 1.442695
      %v1064 = vpow.pop %v1063
      %v1065 = vmul.f32 %v1052, 1.442695
      %v1066 = vpow.pop %v1065
      %v1067 = vmul.f32 %v1053, 1.442695
      %v1068 = vpow.pop %v1067
      %v1069 = vmul.f32 %v1054, 1.442695
      %v1070 = vpow.pop %v1069
      %v1071 = vsel %vm1022, %v1056, 0.0
      %1072 = vadd.xlane.f32.xlu0 %v1071
      %v1073 = vpop.xlane.xlu0 %1072
      %v1074 = vsel %vm1022, %v1058, 0.0
      %1075 = vadd.xlane.f32.xlu0 %v1074
      %v1076 = vpop.xlane.xlu0 %1075
      %v1077 = vsel %vm1022, %v1060, 0.0
      %1078 = vadd.xlane.f32.xlu0 %v1077
      %v1079 = vpop.xlane.xlu0 %1078
      %v1080 = vsel %vm1022, %v1062, 0.0
      %1081 = vadd.xlane.f32.xlu0 %v1080
      %v1082 = vpop.xlane.xlu0 %1081
      %v1083 = vsel %vm1022, %v1064, 0.0
      %1084 = vadd.xlane.f32.xlu0 %v1083
      %v1085 = vpop.xlane.xlu0 %1084
      %v1086 = vsel %vm1022, %v1066, 0.0
      %1087 = vadd.xlane.f32.xlu0 %v1086
      %v1088 = vpop.xlane.xlu0 %1087
      %v1089 = vsel %vm1022, %v1068, 0.0
      %1090 = vadd.xlane.f32.xlu0 %v1089
      %v1091 = vpop.xlane.xlu0 %1090
      %v1092 = vsel %vm1022, %v1070, 0.0
      %1093 = vadd.xlane.f32.xlu0 %v1092
      %v1094 = vpop.xlane.xlu0 %1093
      %v1095 = vrcp.pop %v1073
      %v1096 = vmul.f32 %v1056, %v1095
      %v1097 = vrcp.pop %v1076
      %v1098 = vmul.f32 %v1058, %v1097
      %v1099 = vrcp.pop %v1079
      %v1100 = vmul.f32 %v1060, %v1099
      %v1101 = vrcp.pop %v1082
      %v1102 = vmul.f32 %v1062, %v1101
      %v1103 = vrcp.pop %v1085
      %v1104 = vmul.f32 %v1064, %v1103
      %v1105 = vrcp.pop %v1088
      %v1106 = vmul.f32 %v1066, %v1105
      %v1107 = vrcp.pop %v1091
      %v1108 = vmul.f32 %v1068, %v1107
      %v1109 = vrcp.pop %v1094
      %v1110 = vmul.f32 %v1070, %v1109
      %v1115 = vunpack.c.l.b16 %v800
      %v1116 = vunpack.c.l.b16 %v801
      %v1117 = vunpack.c.l.b16 %v802
      %v1118 = vunpack.c.l.b16 %v803
      %v1119 = vpack.c.b16 %v1116, %v1115
      %v1120 = vpack.c.b16 %v1118, %v1117
      %1123 = vmatprep.subr.bf16.mxu0 0
      %1124 = vmatpush1.bf16.msra.mxu0 %v1119
      %1125 = vmatprep.subr.bf16.mxu0 0
      %1126 = vmatpush1.bf16.msra.mxu0 %v1120
      %1127 = vmatprep.subr.bf16.mxu0 0
      %1128 = vmatpush1.bf16.msra.mxu0 0
      %1129 = vmatprep.subr.bf16.mxu0 0
      %1130 = vmatpush1.bf16.msra.mxu0 0
      %1131 = vmatprep.subr.bf16.mxu0 0
      %1132 = vmatpush1.bf16.msra.mxu0 0
      %1133 = vmatprep.subr.bf16.mxu0 0
      %1134 = vmatpush1.bf16.msra.mxu0 0
      %1135 = vmatprep.subr.bf16.mxu0 0
      %1136 = vmatpush1.bf16.msra.mxu0 0
      %1137 = vmatprep.subr.bf16.mxu0 0
      %1138 = vmatpush1.bf16.msra.mxu0 0
      %1139 = vmatprep.subr.bf16.mxu0 0
      %1140 = vmatpush1.bf16.msra.mxu0 0
      %1141 = vmatprep.subr.bf16.mxu0 0
      %1142 = vmatpush1.bf16.msra.mxu0 0
      %1143 = vmatprep.subr.bf16.mxu0 0
      %1144 = vmatpush1.bf16.msra.mxu0 0
      %1145 = vmatprep.subr.bf16.mxu0 0
      %1146 = vmatpush1.bf16.msra.mxu0 0
      %1147 = vmatprep.subr.bf16.mxu0 0
      %1148 = vmatpush1.bf16.msra.mxu0 0
      %1149 = vmatprep.subr.bf16.mxu0 0
      %1150 = vmatpush1.bf16.msra.mxu0 0
      %1151 = vmatprep.subr.bf16.mxu0 0
      %1152 = vmatpush1.bf16.msra.mxu0 0
      %1153 = vmatprep.subr.bf16.mxu0 0
      %1154 = vmatpush1.bf16.msra.mxu0 0
      %1155 = vmatprep.mubr.bf16.mxu0 0
      %1156 = vmatmul.mubr.bf16.gmra.mrb[0].mxu0 %v818
      %v1157 = vpop.f32.mrb[0].mxu0
      %v1158 = vadd.f32 0.0, %v1157
      %v1159 = vpop.f32.mrb[0].mxu0
      %v1160 = vpop.f32.mrb[0].mxu0
      %v1161 = vadd.f32 0.0, %v1160
      %v1162 = vpop.f32.mrb[0].mxu0
      %1163 = vmatprep.mubr.bf16.mxu0 0
      %1164 = vmatmul.mubr.bf16.gmra.mrb[0].mxu0 %v821
      %v1165 = vpop.f32.mrb[0].mxu0
      %v1166 = vadd.f32 0.0, %v1165
      %v1167 = vpop.f32.mrb[0].mxu0
      %v1168 = vpop.f32.mrb[0].mxu0
      %v1169 = vadd.f32 0.0, %v1168
      %v1170 = vpop.f32.mrb[0].mxu0
      %1171 = vmatprep.mubr.bf16.mxu0 0
      %1172 = vmatmul.mubr.bf16.gmra.mrb[0].mxu0 %v824
      %v1173 = vpop.f32.mrb[0].mxu0
      %v1174 = vadd.f32 0.0, %v1173
      %v1175 = vpop.f32.mrb[0].mxu0
      %v1176 = vpop.f32.mrb[0].mxu0
      %v1177 = vadd.f32 0.0, %v1176
      %v1178 = vpop.f32.mrb[0].mxu0
      %1179 = vmatprep.mubr.bf16.mxu0 0
      %1180 = vmatmul.mubr.bf16.gmra.mrb[0].mxu0 %v827
      %v1181 = vpop.f32.mrb[0].mxu0
      %v1182 = vadd.f32 0.0, %v1181
      %v1183 = vpop.f32.mrb[0].mxu0
      %v1184 = vpop.f32.mrb[0].mxu0
      %v1185 = vadd.f32 0.0, %v1184
      %v1186 = vpop.f32.mrb[0].mxu0
      %1187 = vdwg.mxu0
      %v1188 = vpack.c.bf16 %v1098, %v1096
      %v1189 = vpack.c.bf16 %v1102, %v1100
      %v1190 = vpack.c.bf16 %v1106, %v1104
      %v1191 = vpack.c.bf16 %v1110, %v1108
      %v1192 = vpack.c.bf16 %v1161, %v1158
      %v1193 = vpack.c.bf16 %v1169, %v1166
      %v1194 = vpack.c.bf16 %v1177, %v1174
      %v1195 = vpack.c.bf16 %v1185, %v1182
      %s1196 = scalar_lea.vmem %s5, 16
      %v1197 = vld [vmem:[%s1196] sm:$0xf]
      %v1198 = vld [vmem:[%s1196 + $0x4] sm:$0xf]
      %v1199 = vld [vmem:[%s1196 + $0x8] sm:$0xf]
      %v1200 = vld [vmem:[%s1196 + $0xc] sm:$0xf]
      %s1201 = scalar_lea.vmem %s7, 16
      %v1202 = vld [vmem:[%s1201] sm:$0xf]
      %v1203 = vld [vmem:[%s1201 + $0x4] sm:$0xf]
      %v1204 = vld [vmem:[%s1201 + $0x8] sm:$0xf]
      %v1205 = vld [vmem:[%s1201 + $0xc] sm:$0xf]
      %s1206 = scalar_lea.vmem %s6, 1
      %v1207 = vld [vmem:[%s1206] sm:$0x1]
      %v1212 = vunpack.c.l.b16 %v1197
      %v1213 = vunpack.c.l.b16 %v1198
      %v1214 = vunpack.c.l.b16 %v1199
      %v1215 = vunpack.c.l.b16 %v1200
      %v1216 = vpack.c.b16 %v1213, %v1212
      %v1217 = vpack.c.b16 %v1215, %v1214
      %1220 = vmatprep.subr.bf16.mxu0 0
      %1221 = vmatpush1.bf16.msra.mxu0 %v1216
      %1222 = vmatprep.subr.bf16.mxu0 0
      %1223 = vmatpush1.bf16.msra.mxu0 %v1217
      %1224 = vmatprep.subr.bf16.mxu0 0
      %1225 = vmatpush1.bf16.msra.mxu0 0
      %1226 = vmatprep.subr.bf16.mxu0 0
      %1227 = vmatpush1.bf16.msra.mxu0 0
      %1228 = vmatprep.subr.bf16.mxu0 0
      %1229 = vmatpush1.bf16.msra.mxu0 0
      %1230 = vmatprep.subr.bf16.mxu0 0
      %1231 = vmatpush1.bf16.msra.mxu0 0
      %1232 = vmatprep.subr.bf16.mxu0 0
      %1233 = vmatpush1.bf16.msra.mxu0 0
      %1234 = vmatprep.subr.bf16.mxu0 0
      %1235 = vmatpush1.bf16.msra.mxu0 0
      %1236 = vmatprep.subr.bf16.mxu0 0
      %1237 = vmatpush1.bf16.msra.mxu0 0
      %1238 = vmatprep.subr.bf16.mxu0 0
      %1239 = vmatpush1.bf16.msra.mxu0 0
      %1240 = vmatprep.subr.bf16.mxu0 0
      %1241 = vmatpush1.bf16.msra.mxu0 0
      %1242 = vmatprep.subr.bf16.mxu0 0
      %1243 = vmatpush1.bf16.msra.mxu0 0
      %1244 = vmatprep.subr.bf16.mxu0 0
      %1245 = vmatpush1.bf16.msra.mxu0 0
      %1246 = vmatprep.subr.bf16.mxu0 0
      %1247 = vmatpush1.bf16.msra.mxu0 0
      %1248 = vmatprep.subr.bf16.mxu0 0
      %1249 = vmatpush1.bf16.msra.mxu0 0
      %1250 = vmatprep.subr.bf16.mxu0 0
      %1251 = vmatpush1.bf16.msra.mxu0 0
      %1252 = vmatprep.mubr.bf16.mxu0 0
      %1253 = vmatmul.mubr.bf16.gmra.mrb[0].mxu0 %v818
      %v1254 = vpop.f32.mrb[0].mxu0
      %v1255 = vadd.f32 0.0, %v1254
      %v1256 = vpop.f32.mrb[0].mxu0
      %v1257 = vpop.f32.mrb[0].mxu0
      %v1258 = vadd.f32 0.0, %v1257
      %v1259 = vpop.f32.mrb[0].mxu0
      %1260 = vmatprep.mubr.bf16.mxu0 0
      %1261 = vmatmul.mubr.bf16.gmra.mrb[0].mxu0 %v821
      %v1262 = vpop.f32.mrb[0].mxu0
      %v1263 = vadd.f32 0.0, %v1262
      %v1264 = vpop.f32.mrb[0].mxu0
      %v1265 = vpop.f32.mrb[0].mxu0
      %v1266 = vadd.f32 0.0, %v1265
      %v1267 = vpop.f32.mrb[0].mxu0
      %1268 = vmatprep.mubr.bf16.mxu0 0
      %1269 = vmatmul.mubr.bf16.gmra.mrb[0].mxu0 %v824
      %v1270 = vpop.f32.mrb[0].mxu0
      %v1271 = vadd.f32 0.0, %v1270
      %v1272 = vpop.f32.mrb[0].mxu0
      %v1273 = vpop.f32.mrb[0].mxu0
      %v1274 = vadd.f32 0.0, %v1273
      %v1275 = vpop.f32.mrb[0].mxu0
      %1276 = vmatprep.mubr.bf16.mxu0 0
      %1277 = vmatmul.mubr.bf16.gmra.mrb[0].mxu0 %v827
      %v1278 = vpop.f32.mrb[0].mxu0
      %v1279 = vadd.f32 0.0, %v1278
      %v1280 = vpop.f32.mrb[0].mxu0
      %v1281 = vpop.f32.mrb[0].mxu0
      %v1282 = vadd.f32 0.0, %v1281
      %v1283 = vpop.f32.mrb[0].mxu0
      %1284 = vdwg.mxu0
      %v1285 = vpack.c.bf16 %v1258, %v1255
      %v1286 = vpack.c.bf16 %v1266, %v1263
      %v1287 = vpack.c.bf16 %v1274, %v1271
      %v1288 = vpack.c.bf16 %v1282, %v1279
      %v1290 = vsel %vm658, %v1207, 0
      %1292 = vmatprep.subr.bf16.mxu0 0
      %1293 = vmatpush1.bf16.xpose.msra.mxu0 %v818
      %1294 = vmatprep.subr.bf16.mxu0 0
      %1295 = vmatpush1.bf16.xpose.msra.mxu0 %v821
      %1296 = vmatprep.subr.bf16.mxu0 0
      %1297 = vmatpush1.bf16.xpose.msra.mxu0 %v824
      %1298 = vmatprep.subr.bf16.mxu0 0
      %1299 = vmatpush1.bf16.xpose.msra.mxu0 %v827
      %1300 = vmatprep.subr.bf16.mxu0 0
      %1301 = vmatpush1.bf16.xpose.msra.mxu0 0
      %1302 = vmatprep.subr.bf16.mxu0 0
      %1303 = vmatpush1.bf16.xpose.msra.mxu0 0
      %1304 = vmatprep.subr.bf16.mxu0 0
      %1305 = vmatpush1.bf16.xpose.msra.mxu0 0
      %1306 = vmatprep.subr.bf16.mxu0 0
      %1307 = vmatpush1.bf16.xpose.msra.mxu0 0
      %1308 = vmatprep.subr.bf16.mxu0 0
      %1309 = vmatpush1.bf16.xpose.msra.mxu0 0
      %1310 = vmatprep.subr.bf16.mxu0 0
      %1311 = vmatpush1.bf16.xpose.msra.mxu0 0
      %1312 = vmatprep.subr.bf16.mxu0 0
      %1313 = vmatpush1.bf16.xpose.msra.mxu0 0
      %1314 = vmatprep.subr.bf16.mxu0 0
      %1315 = vmatpush1.bf16.xpose.msra.mxu0 0
      %1316 = vmatprep.subr.bf16.mxu0 0
      %1317 = vmatpush1.bf16.xpose.msra.mxu0 0
      %1318 = vmatprep.subr.bf16.mxu0 0
      %1319 = vmatpush1.bf16.xpose.msra.mxu0 0
      %1320 = vmatprep.subr.bf16.mxu0 0
      %1321 = vmatpush1.bf16.xpose.msra.mxu0 0
      %1322 = vmatprep.subr.bf16.mxu0 0
      %1323 = vmatpush1.bf16.xpose.msra.mxu0 0
      %1324 = vmatprep.mubr.bf16.mxu0 0
      %1325 = vmatmul.mubr.bf16.gmra.mrb[0].mxu0 %v1290
      %v1326 = vpop.f32.mrb[0].mxu0
      %v1327 = vadd.f32 0.0, %v1326
      %v1328 = vpop.f32.mrb[0].mxu0
      %v1329 = vpop.f32.mrb[0].mxu0
      %v1330 = vpop.f32.mrb[0].mxu0
      %1331 = vdwg.mxu0
      %v1332 = vlaneseq
      %v1333 = vshrl.u32 %v1332, 7
      %v1334 = vsub.s32 0, %v1333
      %v1335 = vrot.slane %v1327, %v1334
      %v1337 = vsel %vm658, %v1285, 0
      %v1340 = vsel %vm658, %v1286, 0
      %v1343 = vsel %vm658, %v1287, 0
      %v1346 = vsel %vm658, %v1288, 0
      %1348 = vmatprep.subr.bf16.mxu0 0
      %1349 = vmatpush1.bf16.xpose.msra.mxu0 %v818
      %1350 = vmatprep.subr.bf16.mxu0 0
      %1351 = vmatpush1.bf16.xpose.msra.mxu0 %v821
      %1352 = vmatprep.subr.bf16.mxu0 0
      %1353 = vmatpush1.bf16.xpose.msra.mxu0 %v824
      %1354 = vmatprep.subr.bf16.mxu0 0
      %1355 = vmatpush1.bf16.xpose.msra.mxu0 %v827
      %1356 = vmatprep.subr.bf16.mxu0 0
      %1357 = vmatpush1.bf16.xpose.msra.mxu0 0
      %1358 = vmatprep.subr.bf16.mxu0 0
      %1359 = vmatpush1.bf16.xpose.msra.mxu0 0
      %1360 = vmatprep.subr.bf16.mxu0 0
      %1361 = vmatpush1.bf16.xpose.msra.mxu0 0
      %1362 = vmatprep.subr.bf16.mxu0 0
      %1363 = vmatpush1.bf16.xpose.msra.mxu0 0
      %1364 = vmatprep.subr.bf16.mxu0 0
      %1365 = vmatpush1.bf16.xpose.msra.mxu0 0
      %1366 = vmatprep.subr.bf16.mxu0 0
      %1367 = vmatpush1.bf16.xpose.msra.mxu0 0
      %1368 = vmatprep.subr.bf16.mxu0 0
      %1369 = vmatpush1.bf16.xpose.msra.mxu0 0
      %1370 = vmatprep.subr.bf16.mxu0 0
      %1371 = vmatpush1.bf16.xpose.msra.mxu0 0
      %1372 = vmatprep.subr.bf16.mxu0 0
      %1373 = vmatpush1.bf16.xpose.msra.mxu0 0
      %1374 = vmatprep.subr.bf16.mxu0 0
      %1375 = vmatpush1.bf16.xpose.msra.mxu0 0
      %1376 = vmatprep.subr.bf16.mxu0 0
      %1377 = vmatpush1.bf16.xpose.msra.mxu0 0
      %1378 = vmatprep.subr.bf16.mxu0 0
      %1379 = vmatpush1.bf16.xpose.msra.mxu0 0
      %1380 = vmatprep.mubr.bf16.mxu0 0
      %1381 = vmatmul.mubr.bf16.gmra.mrb[0].mxu0 %v1337
      %v1382 = vpop.f32.mrb[0].mxu0
      %v1383 = vadd.f32 %v1335, %v1382
      %v1384 = vpop.f32.mrb[0].mxu0
      %v1385 = vpop.f32.mrb[0].mxu0
      %v1386 = vadd.f32 %v1335, %v1385
      %v1387 = vpop.f32.mrb[0].mxu0
      %1388 = vmatprep.mubr.bf16.mxu0 0
      %1389 = vmatmul.mubr.bf16.gmra.mrb[0].mxu0 %v1340
      %v1390 = vpop.f32.mrb[0].mxu0
      %v1391 = vadd.f32 %v1335, %v1390
      %v1392 = vpop.f32.mrb[0].mxu0
      %v1393 = vpop.f32.mrb[0].mxu0
      %v1394 = vadd.f32 %v1335, %v1393
      %v1395 = vpop.f32.mrb[0].mxu0
      %1396 = vmatprep.mubr.bf16.mxu0 0
      %1397 = vmatmul.mubr.bf16.gmra.mrb[0].mxu0 %v1343
      %v1398 = vpop.f32.mrb[0].mxu0
      %v1399 = vadd.f32 %v1335, %v1398
      %v1400 = vpop.f32.mrb[0].mxu0
      %v1401 = vpop.f32.mrb[0].mxu0
      %v1402 = vadd.f32 %v1335, %v1401
      %v1403 = vpop.f32.mrb[0].mxu0
      %1404 = vmatprep.mubr.bf16.mxu0 0
      %1405 = vmatmul.mubr.bf16.gmra.mrb[0].mxu0 %v1346
      %v1406 = vpop.f32.mrb[0].mxu0
      %v1407 = vadd.f32 %v1335, %v1406
      %v1408 = vpop.f32.mrb[0].mxu0
      %v1409 = vpop.f32.mrb[0].mxu0
      %v1410 = vadd.f32 %v1335, %v1409
      %v1411 = vpop.f32.mrb[0].mxu0
      %1412 = vdwg.mxu0
      %v1413 = vsel %vm1022, %v1383, -inf
      %1414 = vmax.xlane.f32.xlu0 %v1413
      %v1415 = vpop.xlane.xlu0 %1414
      %v1416 = vsel %vm1022, %v1386, -inf
      %1417 = vmax.xlane.f32.xlu0 %v1416
      %v1418 = vpop.xlane.xlu0 %1417
      %v1419 = vsel %vm1022, %v1391, -inf
      %1420 = vmax.xlane.f32.xlu0 %v1419
      %v1421 = vpop.xlane.xlu0 %1420
      %v1422 = vsel %vm1022, %v1394, -inf
      %1423 = vmax.xlane.f32.xlu0 %v1422
      %v1424 = vpop.xlane.xlu0 %1423
      %v1425 = vsel %vm1022, %v1399, -inf
      %1426 = vmax.xlane.f32.xlu0 %v1425
      %v1427 = vpop.xlane.xlu0 %1426
      %v1428 = vsel %vm1022, %v1402, -inf
      %1429 = vmax.xlane.f32.xlu0 %v1428
      %v1430 = vpop.xlane.xlu0 %1429
      %v1431 = vsel %vm1022, %v1407, -inf
      %1432 = vmax.xlane.f32.xlu0 %v1431
      %v1433 = vpop.xlane.xlu0 %1432
      %v1434 = vsel %vm1022, %v1410, -inf
      %1435 = vmax.xlane.f32.xlu0 %v1434
      %v1436 = vpop.xlane.xlu0 %1435
      %v1437 = vsub.f32 %v1383, %v1415
      %v1438 = vsub.f32 %v1386, %v1418
      %v1439 = vsub.f32 %v1391, %v1421
      %v1440 = vsub.f32 %v1394, %v1424
      %v1441 = vsub.f32 %v1399, %v1427
      %v1442 = vsub.f32 %v1402, %v1430
      %v1443 = vsub.f32 %v1407, %v1433
      %v1444 = vsub.f32 %v1410, %v1436
      %v1445 = vmul.f32 %v1437, 1.442695
      %v1446 = vpow.pop %v1445
      %v1447 = vmul.f32 %v1438, 1.442695
      %v1448 = vpow.pop %v1447
      %v1449 = vmul.f32 %v1439, 1.442695
      %v1450 = vpow.pop %v1449
      %v1451 = vmul.f32 %v1440, 1.442695
      %v1452 = vpow.pop %v1451
      %v1453 = vmul.f32 %v1441, 1.442695
      %v1454 = vpow.pop %v1453
      %v1455 = vmul.f32 %v1442, 1.442695
      %v1456 = vpow.pop %v1455
      %v1457 = vmul.f32 %v1443, 1.442695
      %v1458 = vpow.pop %v1457
      %v1459 = vmul.f32 %v1444, 1.442695
      %v1460 = vpow.pop %v1459
      %v1461 = vsel %vm1022, %v1446, 0.0
      %1462 = vadd.xlane.f32.xlu0 %v1461
      %v1463 = vpop.xlane.xlu0 %1462
      %v1464 = vsel %vm1022, %v1448, 0.0
      %1465 = vadd.xlane.f32.xlu0 %v1464
      %v1466 = vpop.xlane.xlu0 %1465
      %v1467 = vsel %vm1022, %v1450, 0.0
      %1468 = vadd.xlane.f32.xlu0 %v1467
      %v1469 = vpop.xlane.xlu0 %1468
      %v1470 = vsel %vm1022, %v1452, 0.0
      %1471 = vadd.xlane.f32.xlu0 %v1470
      %v1472 = vpop.xlane.xlu0 %1471
      %v1473 = vsel %vm1022, %v1454, 0.0
      %1474 = vadd.xlane.f32.xlu0 %v1473
      %v1475 = vpop.xlane.xlu0 %1474
      %v1476 = vsel %vm1022, %v1456, 0.0
      %1477 = vadd.xlane.f32.xlu0 %v1476
      %v1478 = vpop.xlane.xlu0 %1477
      %v1479 = vsel %vm1022, %v1458, 0.0
      %1480 = vadd.xlane.f32.xlu0 %v1479
      %v1481 = vpop.xlane.xlu0 %1480
      %v1482 = vsel %vm1022, %v1460, 0.0
      %1483 = vadd.xlane.f32.xlu0 %v1482
      %v1484 = vpop.xlane.xlu0 %1483
      %v1485 = vrcp.pop %v1463
      %v1486 = vmul.f32 %v1446, %v1485
      %v1487 = vrcp.pop %v1466
      %v1488 = vmul.f32 %v1448, %v1487
      %v1489 = vrcp.pop %v1469
      %v1490 = vmul.f32 %v1450, %v1489
      %v1491 = vrcp.pop %v1472
      %v1492 = vmul.f32 %v1452, %v1491
      %v1493 = vrcp.pop %v1475
      %v1494 = vmul.f32 %v1454, %v1493
      %v1495 = vrcp.pop %v1478
      %v1496 = vmul.f32 %v1456, %v1495
      %v1497 = vrcp.pop %v1481
      %v1498 = vmul.f32 %v1458, %v1497
      %v1499 = vrcp.pop %v1484
      %v1500 = vmul.f32 %v1460, %v1499
      %v1505 = vunpack.c.l.b16 %v1202
      %v1506 = vunpack.c.l.b16 %v1203
      %v1507 = vunpack.c.l.b16 %v1204
      %v1508 = vunpack.c.l.b16 %v1205
      %v1509 = vpack.c.b16 %v1506, %v1505
      %v1510 = vpack.c.b16 %v1508, %v1507
      %1513 = vmatprep.subr.bf16.mxu0 0
      %1514 = vmatpush1.bf16.msra.mxu0 %v1509
      %1515 = vmatprep.subr.bf16.mxu0 0
      %1516 = vmatpush1.bf16.msra.mxu0 %v1510
      %1517 = vmatprep.subr.bf16.mxu0 0
      %1518 = vmatpush1.bf16.msra.mxu0 0
      %1519 = vmatprep.subr.bf16.mxu0 0
      %1520 = vmatpush1.bf16.msra.mxu0 0
      %1521 = vmatprep.subr.bf16.mxu0 0
      %1522 = vmatpush1.bf16.msra.mxu0 0
      %1523 = vmatprep.subr.bf16.mxu0 0
      %1524 = vmatpush1.bf16.msra.mxu0 0
      %1525 = vmatprep.subr.bf16.mxu0 0
      %1526 = vmatpush1.bf16.msra.mxu0 0
      %1527 = vmatprep.subr.bf16.mxu0 0
      %1528 = vmatpush1.bf16.msra.mxu0 0
      %1529 = vmatprep.subr.bf16.mxu0 0
      %1530 = vmatpush1.bf16.msra.mxu0 0
      %1531 = vmatprep.subr.bf16.mxu0 0
      %1532 = vmatpush1.bf16.msra.mxu0 0
      %1533 = vmatprep.subr.bf16.mxu0 0
      %1534 = vmatpush1.bf16.msra.mxu0 0
      %1535 = vmatprep.subr.bf16.mxu0 0
      %1536 = vmatpush1.bf16.msra.mxu0 0
      %1537 = vmatprep.subr.bf16.mxu0 0
      %1538 = vmatpush1.bf16.msra.mxu0 0
      %1539 = vmatprep.subr.bf16.mxu0 0
      %1540 = vmatpush1.bf16.msra.mxu0 0
      %1541 = vmatprep.subr.bf16.mxu0 0
      %1542 = vmatpush1.bf16.msra.mxu0 0
      %1543 = vmatprep.subr.bf16.mxu0 0
      %1544 = vmatpush1.bf16.msra.mxu0 0
      %1545 = vmatprep.mubr.bf16.mxu0 0
      %1546 = vmatmul.mubr.bf16.gmra.mrb[0].mxu0 %v818
      %v1547 = vpop.f32.mrb[0].mxu0
      %v1548 = vadd.f32 0.0, %v1547
      %v1549 = vpop.f32.mrb[0].mxu0
      %v1550 = vpop.f32.mrb[0].mxu0
      %v1551 = vadd.f32 0.0, %v1550
      %v1552 = vpop.f32.mrb[0].mxu0
      %1553 = vmatprep.mubr.bf16.mxu0 0
      %1554 = vmatmul.mubr.bf16.gmra.mrb[0].mxu0 %v821
      %v1555 = vpop.f32.mrb[0].mxu0
      %v1556 = vadd.f32 0.0, %v1555
      %v1557 = vpop.f32.mrb[0].mxu0
      %v1558 = vpop.f32.mrb[0].mxu0
      %v1559 = vadd.f32 0.0, %v1558
      %v1560 = vpop.f32.mrb[0].mxu0
      %1561 = vmatprep.mubr.bf16.mxu0 0
      %1562 = vmatmul.mubr.bf16.gmra.mrb[0].mxu0 %v824
      %v1563 = vpop.f32.mrb[0].mxu0
      %v1564 = vadd.f32 0.0, %v1563
      %v1565 = vpop.f32.mrb[0].mxu0
      %v1566 = vpop.f32.mrb[0].mxu0
      %v1567 = vadd.f32 0.0, %v1566
      %v1568 = vpop.f32.mrb[0].mxu0
      %1569 = vmatprep.mubr.bf16.mxu0 0
      %1570 = vmatmul.mubr.bf16.gmra.mrb[0].mxu0 %v827
      %v1571 = vpop.f32.mrb[0].mxu0
      %v1572 = vadd.f32 0.0, %v1571
      %v1573 = vpop.f32.mrb[0].mxu0
      %v1574 = vpop.f32.mrb[0].mxu0
      %v1575 = vadd.f32 0.0, %v1574
      %v1576 = vpop.f32.mrb[0].mxu0
      %1577 = vdwg.mxu0
      %v1578 = vpack.c.bf16 %v1488, %v1486
      %v1579 = vpack.c.bf16 %v1492, %v1490
      %v1580 = vpack.c.bf16 %v1496, %v1494
      %v1581 = vpack.c.bf16 %v1500, %v1498
      %v1582 = vpack.c.bf16 %v1551, %v1548
      %v1583 = vpack.c.bf16 %v1559, %v1556
      %v1584 = vpack.c.bf16 %v1567, %v1564
      %v1585 = vpack.c.bf16 %v1575, %v1572
      %v1587 = vsel %vm1022, %v1578, 0
      %v1590 = vsel %vm1022, %v1579, 0
      %v1593 = vsel %vm1022, %v1580, 0
      %v1596 = vsel %vm1022, %v1581, 0
      %1598 = vmatprep.subr.bf16.mxu0 0
      %1599 = vmatpush1.bf16.msra.mxu0 %v1582
      %1600 = vmatprep.subr.bf16.mxu0 0
      %1601 = vmatpush1.bf16.msra.mxu0 %v1583
      %1602 = vmatprep.subr.bf16.mxu0 0
      %1603 = vmatpush1.bf16.msra.mxu0 %v1584
      %1604 = vmatprep.subr.bf16.mxu0 0
      %1605 = vmatpush1.bf16.msra.mxu0 %v1585
      %1606 = vmatprep.subr.bf16.mxu0 0
      %1607 = vmatpush1.bf16.msra.mxu0 0
      %1608 = vmatprep.subr.bf16.mxu0 0
      %1609 = vmatpush1.bf16.msra.mxu0 0
      %1610 = vmatprep.subr.bf16.mxu0 0
      %1611 = vmatpush1.bf16.msra.mxu0 0
      %1612 = vmatprep.subr.bf16.mxu0 0
      %1613 = vmatpush1.bf16.msra.mxu0 0
      %1614 = vmatprep.subr.bf16.mxu0 0
      %1615 = vmatpush1.bf16.msra.mxu0 0
      %1616 = vmatprep.subr.bf16.mxu0 0
      %1617 = vmatpush1.bf16.msra.mxu0 0
      %1618 = vmatprep.subr.bf16.mxu0 0
      %1619 = vmatpush1.bf16.msra.mxu0 0
      %1620 = vmatprep.subr.bf16.mxu0 0
      %1621 = vmatpush1.bf16.msra.mxu0 0
      %1622 = vmatprep.subr.bf16.mxu0 0
      %1623 = vmatpush1.bf16.msra.mxu0 0
      %1624 = vmatprep.subr.bf16.mxu0 0
      %1625 = vmatpush1.bf16.msra.mxu0 0
      %1626 = vmatprep.subr.bf16.mxu0 0
      %1627 = vmatpush1.bf16.msra.mxu0 0
      %1628 = vmatprep.subr.bf16.mxu0 0
      %1629 = vmatpush1.bf16.msra.mxu0 0
      %1630 = vmatprep.mubr.bf16.mxu0 0
      %1631 = vmatmul.mubr.bf16.gmra.mrb[0].mxu0 %v1587
      %v1632 = vpop.f32.mrb[0].mxu0
      %v1633 = vadd.f32 0.0, %v1632
      %v1634 = vpop.f32.mrb[0].mxu0
      %v1635 = vpop.f32.mrb[0].mxu0
      %v1636 = vadd.f32 0.0, %v1635
      %v1637 = vpop.f32.mrb[0].mxu0
      %1638 = vmatprep.mubr.bf16.mxu0 0
      %1639 = vmatmul.mubr.bf16.gmra.mrb[0].mxu0 %v1590
      %v1640 = vpop.f32.mrb[0].mxu0
      %v1641 = vadd.f32 0.0, %v1640
      %v1642 = vpop.f32.mrb[0].mxu0
      %v1643 = vpop.f32.mrb[0].mxu0
      %v1644 = vadd.f32 0.0, %v1643
      %v1645 = vpop.f32.mrb[0].mxu0
      %1646 = vmatprep.mubr.bf16.mxu0 0
      %1647 = vmatmul.mubr.bf16.gmra.mrb[0].mxu0 %v1593
      %v1648 = vpop.f32.mrb[0].mxu0
      %v1649 = vadd.f32 0.0, %v1648
      %v1650 = vpop.f32.mrb[0].mxu0
      %v1651 = vpop.f32.mrb[0].mxu0
      %v1652 = vadd.f32 0.0, %v1651
      %v1653 = vpop.f32.mrb[0].mxu0
      %1654 = vmatprep.mubr.bf16.mxu0 0
      %1655 = vmatmul.mubr.bf16.gmra.mrb[0].mxu0 %v1596
      %v1656 = vpop.f32.mrb[0].mxu0
      %v1657 = vadd.f32 0.0, %v1656
      %v1658 = vpop.f32.mrb[0].mxu0
      %v1659 = vpop.f32.mrb[0].mxu0
      %v1660 = vadd.f32 0.0, %v1659
      %v1661 = vpop.f32.mrb[0].mxu0
      %1662 = vdwg.mxu0
      %v1664 = vsel %vm1022, %v1188, 0
      %v1667 = vsel %vm1022, %v1189, 0
      %v1670 = vsel %vm1022, %v1190, 0
      %v1673 = vsel %vm1022, %v1191, 0
      %1675 = vmatprep.subr.bf16.mxu0 0
      %1676 = vmatpush1.bf16.msra.mxu0 %v1192
      %1677 = vmatprep.subr.bf16.mxu0 0
      %1678 = vmatpush1.bf16.msra.mxu0 %v1193
      %1679 = vmatprep.subr.bf16.mxu0 0
      %1680 = vmatpush1.bf16.msra.mxu0 %v1194
      %1681 = vmatprep.subr.bf16.mxu0 0
      %1682 = vmatpush1.bf16.msra.mxu0 %v1195
      %1683 = vmatprep.subr.bf16.mxu0 0
      %1684 = vmatpush1.bf16.msra.mxu0 0
      %1685 = vmatprep.subr.bf16.mxu0 0
      %1686 = vmatpush1.bf16.msra.mxu0 0
      %1687 = vmatprep.subr.bf16.mxu0 0
      %1688 = vmatpush1.bf16.msra.mxu0 0
      %1689 = vmatprep.subr.bf16.mxu0 0
      %1690 = vmatpush1.bf16.msra.mxu0 0
      %1691 = vmatprep.subr.bf16.mxu0 0
      %1692 = vmatpush1.bf16.msra.mxu0 0
      %1693 = vmatprep.subr.bf16.mxu0 0
      %1694 = vmatpush1.bf16.msra.mxu0 0
      %1695 = vmatprep.subr.bf16.mxu0 0
      %1696 = vmatpush1.bf16.msra.mxu0 0
      %1697 = vmatprep.subr.bf16.mxu0 0
      %1698 = vmatpush1.bf16.msra.mxu0 0
      %1699 = vmatprep.subr.bf16.mxu0 0
      %1700 = vmatpush1.bf16.msra.mxu0 0
      %1701 = vmatprep.subr.bf16.mxu0 0
      %1702 = vmatpush1.bf16.msra.mxu0 0
      %1703 = vmatprep.subr.bf16.mxu0 0
      %1704 = vmatpush1.bf16.msra.mxu0 0
      %1705 = vmatprep.subr.bf16.mxu0 0
      %1706 = vmatpush1.bf16.msra.mxu0 0
      %1707 = vmatprep.mubr.bf16.mxu0 0
      %1708 = vmatmul.mubr.bf16.gmra.mrb[0].mxu0 %v1664
      %v1709 = vpop.f32.mrb[0].mxu0
      %v1710 = vadd.f32 %v1633, %v1709
      %v1711 = vpop.f32.mrb[0].mxu0
      %v1712 = vpop.f32.mrb[0].mxu0
      %v1713 = vadd.f32 %v1636, %v1712
      %v1714 = vpop.f32.mrb[0].mxu0
      %1715 = vmatprep.mubr.bf16.mxu0 0
      %1716 = vmatmul.mubr.bf16.gmra.mrb[0].mxu0 %v1667
      %v1717 = vpop.f32.mrb[0].mxu0
      %v1718 = vadd.f32 %v1641, %v1717
      %v1719 = vpop.f32.mrb[0].mxu0
      %v1720 = vpop.f32.mrb[0].mxu0
      %v1721 = vadd.f32 %v1644, %v1720
      %v1722 = vpop.f32.mrb[0].mxu0
      %1723 = vmatprep.mubr.bf16.mxu0 0
      %1724 = vmatmul.mubr.bf16.gmra.mrb[0].mxu0 %v1670
      %v1725 = vpop.f32.mrb[0].mxu0
      %v1726 = vadd.f32 %v1649, %v1725
      %v1727 = vpop.f32.mrb[0].mxu0
      %v1728 = vpop.f32.mrb[0].mxu0
      %v1729 = vadd.f32 %v1652, %v1728
      %v1730 = vpop.f32.mrb[0].mxu0
      %1731 = vmatprep.mubr.bf16.mxu0 0
      %1732 = vmatmul.mubr.bf16.gmra.mrb[0].mxu0 %v1673
      %v1733 = vpop.f32.mrb[0].mxu0
      %v1734 = vadd.f32 %v1657, %v1733
      %v1735 = vpop.f32.mrb[0].mxu0
      %v1736 = vpop.f32.mrb[0].mxu0
      %v1737 = vadd.f32 %v1660, %v1736
      %v1738 = vpop.f32.mrb[0].mxu0
      %1739 = vdwg.mxu0
      %s1740 = scalar_lea.vmem %s5, 32
      %v1741 = vld [vmem:[%s1740] sm:$0xf]
      %v1742 = vld [vmem:[%s1740 + $0x4] sm:$0xf]
      %v1743 = vld [vmem:[%s1740 + $0x8] sm:$0xf]
      %v1744 = vld [vmem:[%s1740 + $0xc] sm:$0xf]
      %s1745 = scalar_lea.vmem %s7, 32
      %v1746 = vld [vmem:[%s1745] sm:$0xf]
      %v1747 = vld [vmem:[%s1745 + $0x4] sm:$0xf]
      %v1748 = vld [vmem:[%s1745 + $0x8] sm:$0xf]
      %v1749 = vld [vmem:[%s1745 + $0xc] sm:$0xf]
      %s1750 = scalar_lea.vmem %s6, 2
      %v1751 = vld [vmem:[%s1750] sm:$0x1]
      %v1756 = vunpack.c.l.b16 %v1741
      %v1757 = vunpack.c.l.b16 %v1742
      %v1758 = vunpack.c.l.b16 %v1743
      %v1759 = vunpack.c.l.b16 %v1744
      %v1760 = vpack.c.b16 %v1757, %v1756
      %v1761 = vpack.c.b16 %v1759, %v1758
      %1764 = vmatprep.subr.bf16.mxu0 0
      %1765 = vmatpush1.bf16.msra.mxu0 %v1760
      %1766 = vmatprep.subr.bf16.mxu0 0
      %1767 = vmatpush1.bf16.msra.mxu0 %v1761
      %1768 = vmatprep.subr.bf16.mxu0 0
      %1769 = vmatpush1.bf16.msra.mxu0 0
      %1770 = vmatprep.subr.bf16.mxu0 0
      %1771 = vmatpush1.bf16.msra.mxu0 0
      %1772 = vmatprep.subr.bf16.mxu0 0
      %1773 = vmatpush1.bf16.msra.mxu0 0
      %1774 = vmatprep.subr.bf16.mxu0 0
      %1775 = vmatpush1.bf16.msra.mxu0 0
      %1776 = vmatprep.subr.bf16.mxu0 0
      %1777 = vmatpush1.bf16.msra.mxu0 0
      %1778 = vmatprep.subr.bf16.mxu0 0
      %1779 = vmatpush1.bf16.msra.mxu0 0
      %1780 = vmatprep.subr.bf16.mxu0 0
      %1781 = vmatpush1.bf16.msra.mxu0 0
      %1782 = vmatprep.subr.bf16.mxu0 0
      %1783 = vmatpush1.bf16.msra.mxu0 0
      %1784 = vmatprep.subr.bf16.mxu0 0
      %1785 = vmatpush1.bf16.msra.mxu0 0
      %1786 = vmatprep.subr.bf16.mxu0 0
      %1787 = vmatpush1.bf16.msra.mxu0 0
      %1788 = vmatprep.subr.bf16.mxu0 0
      %1789 = vmatpush1.bf16.msra.mxu0 0
      %1790 = vmatprep.subr.bf16.mxu0 0
      %1791 = vmatpush1.bf16.msra.mxu0 0
      %1792 = vmatprep.subr.bf16.mxu0 0
      %1793 = vmatpush1.bf16.msra.mxu0 0
      %1794 = vmatprep.subr.bf16.mxu0 0
      %1795 = vmatpush1.bf16.msra.mxu0 0
      %1796 = vmatprep.mubr.bf16.mxu0 0
      %1797 = vmatmul.mubr.bf16.gmra.mrb[0].mxu0 %v818
      %v1798 = vpop.f32.mrb[0].mxu0
      %v1799 = vadd.f32 0.0, %v1798
      %v1800 = vpop.f32.mrb[0].mxu0
      %v1801 = vpop.f32.mrb[0].mxu0
      %v1802 = vadd.f32 0.0, %v1801
      %v1803 = vpop.f32.mrb[0].mxu0
      %1804 = vmatprep.mubr.bf16.mxu0 0
      %1805 = vmatmul.mubr.bf16.gmra.mrb[0].mxu0 %v821
      %v1806 = vpop.f32.mrb[0].mxu0
      %v1807 = vadd.f32 0.0, %v1806
      %v1808 = vpop.f32.mrb[0].mxu0
      %v1809 = vpop.f32.mrb[0].mxu0
      %v1810 = vadd.f32 0.0, %v1809
      %v1811 = vpop.f32.mrb[0].mxu0
      %1812 = vmatprep.mubr.bf16.mxu0 0
      %1813 = vmatmul.mubr.bf16.gmra.mrb[0].mxu0 %v824
      %v1814 = vpop.f32.mrb[0].mxu0
      %v1815 = vadd.f32 0.0, %v1814
      %v1816 = vpop.f32.mrb[0].mxu0
      %v1817 = vpop.f32.mrb[0].mxu0
      %v1818 = vadd.f32 0.0, %v1817
      %v1819 = vpop.f32.mrb[0].mxu0
      %1820 = vmatprep.mubr.bf16.mxu0 0
      %1821 = vmatmul.mubr.bf16.gmra.mrb[0].mxu0 %v827
      %v1822 = vpop.f32.mrb[0].mxu0
      %v1823 = vadd.f32 0.0, %v1822
      %v1824 = vpop.f32.mrb[0].mxu0
      %v1825 = vpop.f32.mrb[0].mxu0
      %v1826 = vadd.f32 0.0, %v1825
      %v1827 = vpop.f32.mrb[0].mxu0
      %1828 = vdwg.mxu0
      %v1829 = vpack.c.bf16 %v1802, %v1799
      %v1830 = vpack.c.bf16 %v1810, %v1807
      %v1831 = vpack.c.bf16 %v1818, %v1815
      %v1832 = vpack.c.bf16 %v1826, %v1823
      %v1834 = vsel %vm658, %v1751, 0
      %1836 = vmatprep.subr.bf16.mxu0 0
      %1837 = vmatpush1.bf16.xpose.msra.mxu0 %v818
      %1838 = vmatprep.subr.bf16.mxu0 0
      %1839 = vmatpush1.bf16.xpose.msra.mxu0 %v821
      %1840 = vmatprep.subr.bf16.mxu0 0
      %1841 = vmatpush1.bf16.xpose.msra.mxu0 %v824
      %1842 = vmatprep.subr.bf16.mxu0 0
      %1843 = vmatpush1.bf16.xpose.msra.mxu0 %v827
      %1844 = vmatprep.subr.bf16.mxu0 0
      %1845 = vmatpush1.bf16.xpose.msra.mxu0 0
      %1846 = vmatprep.subr.bf16.mxu0 0
      %1847 = vmatpush1.bf16.xpose.msra.mxu0 0
      %1848 = vmatprep.subr.bf16.mxu0 0
      %1849 = vmatpush1.bf16.xpose.msra.mxu0 0
      %1850 = vmatprep.subr.bf16.mxu0 0
      %1851 = vmatpush1.bf16.xpose.msra.mxu0 0
      %1852 = vmatprep.subr.bf16.mxu0 0
      %1853 = vmatpush1.bf16.xpose.msra.mxu0 0
      %1854 = vmatprep.subr.bf16.mxu0 0
      %1855 = vmatpush1.bf16.xpose.msra.mxu0 0
      %1856 = vmatprep.subr.bf16.mxu0 0
      %1857 = vmatpush1.bf16.xpose.msra.mxu0 0
      %1858 = vmatprep.subr.bf16.mxu0 0
      %1859 = vmatpush1.bf16.xpose.msra.mxu0 0
      %1860 = vmatprep.subr.bf16.mxu0 0
      %1861 = vmatpush1.bf16.xpose.msra.mxu0 0
      %1862 = vmatprep.subr.bf16.mxu0 0
      %1863 = vmatpush1.bf16.xpose.msra.mxu0 0
      %1864 = vmatprep.subr.bf16.mxu0 0
      %1865 = vmatpush1.bf16.xpose.msra.mxu0 0
      %1866 = vmatprep.subr.bf16.mxu0 0
      %1867 = vmatpush1.bf16.xpose.msra.mxu0 0
      %1868 = vmatprep.mubr.bf16.mxu0 0
      %1869 = vmatmul.mubr.bf16.gmra.mrb[0].mxu0 %v1834
      %v1870 = vpop.f32.mrb[0].mxu0
      %v1871 = vadd.f32 0.0, %v1870
      %v1872 = vpop.f32.mrb[0].mxu0
      %v1873 = vpop.f32.mrb[0].mxu0
      %v1874 = vpop.f32.mrb[0].mxu0
      %1875 = vdwg.mxu0
      %v1876 = vlaneseq
      %v1877 = vshrl.u32 %v1876, 7
      %v1878 = vsub.s32 0, %v1877
      %v1879 = vrot.slane %v1871, %v1878
      %v1881 = vsel %vm658, %v1829, 0
      %v1884 = vsel %vm658, %v1830, 0
      %v1887 = vsel %vm658, %v1831, 0
      %v1890 = vsel %vm658, %v1832, 0
      %1892 = vmatprep.subr.bf16.mxu0 0
      %1893 = vmatpush1.bf16.xpose.msra.mxu0 %v818
      %1894 = vmatprep.subr.bf16.mxu0 0
      %1895 = vmatpush1.bf16.xpose.msra.mxu0 %v821
      %1896 = vmatprep.subr.bf16.mxu0 0
      %1897 = vmatpush1.bf16.xpose.msra.mxu0 %v824
      %1898 = vmatprep.subr.bf16.mxu0 0
      %1899 = vmatpush1.bf16.xpose.msra.mxu0 %v827
      %1900 = vmatprep.subr.bf16.mxu0 0
      %1901 = vmatpush1.bf16.xpose.msra.mxu0 0
      %1902 = vmatprep.subr.bf16.mxu0 0
      %1903 = vmatpush1.bf16.xpose.msra.mxu0 0
      %1904 = vmatprep.subr.bf16.mxu0 0
      %1905 = vmatpush1.bf16.xpose.msra.mxu0 0
      %1906 = vmatprep.subr.bf16.mxu0 0
      %1907 = vmatpush1.bf16.xpose.msra.mxu0 0
      %1908 = vmatprep.subr.bf16.mxu0 0
      %1909 = vmatpush1.bf16.xpose.msra.mxu0 0
      %1910 = vmatprep.subr.bf16.mxu0 0
      %1911 = vmatpush1.bf16.xpose.msra.mxu0 0
      %1912 = vmatprep.subr.bf16.mxu0 0
      %1913 = vmatpush1.bf16.xpose.msra.mxu0 0
      %1914 = vmatprep.subr.bf16.mxu0 0
      %1915 = vmatpush1.bf16.xpose.msra.mxu0 0
      %1916 = vmatprep.subr.bf16.mxu0 0
      %1917 = vmatpush1.bf16.xpose.msra.mxu0 0
      %1918 = vmatprep.subr.bf16.mxu0 0
      %1919 = vmatpush1.bf16.xpose.msra.mxu0 0
      %1920 = vmatprep.subr.bf16.mxu0 0
      %1921 = vmatpush1.bf16.xpose.msra.mxu0 0
      %1922 = vmatprep.subr.bf16.mxu0 0
      %1923 = vmatpush1.bf16.xpose.msra.mxu0 0
      %1924 = vmatprep.mubr.bf16.mxu0 0
      %1925 = vmatmul.mubr.bf16.gmra.mrb[0].mxu0 %v1881
      %v1926 = vpop.f32.mrb[0].mxu0
      %v1927 = vadd.f32 %v1879, %v1926
      %v1928 = vpop.f32.mrb[0].mxu0
      %v1929 = vpop.f32.mrb[0].mxu0
      %v1930 = vadd.f32 %v1879, %v1929
      %v1931 = vpop.f32.mrb[0].mxu0
      %1932 = vmatprep.mubr.bf16.mxu0 0
      %1933 = vmatmul.mubr.bf16.gmra.mrb[0].mxu0 %v1884
      %v1934 = vpop.f32.mrb[0].mxu0
      %v1935 = vadd.f32 %v1879, %v1934
      %v1936 = vpop.f32.mrb[0].mxu0
      %v1937 = vpop.f32.mrb[0].mxu0
      %v1938 = vadd.f32 %v1879, %v1937
      %v1939 = vpop.f32.mrb[0].mxu0
      %1940 = vmatprep.mubr.bf16.mxu0 0
      %1941 = vmatmul.mubr.bf16.gmra.mrb[0].mxu0 %v1887
      %v1942 = vpop.f32.mrb[0].mxu0
      %v1943 = vadd.f32 %v1879, %v1942
      %v1944 = vpop.f32.mrb[0].mxu0
      %v1945 = vpop.f32.mrb[0].mxu0
      %v1946 = vadd.f32 %v1879, %v1945
      %v1947 = vpop.f32.mrb[0].mxu0
      %1948 = vmatprep.mubr.bf16.mxu0 0
      %1949 = vmatmul.mubr.bf16.gmra.mrb[0].mxu0 %v1890
      %v1950 = vpop.f32.mrb[0].mxu0
      %v1951 = vadd.f32 %v1879, %v1950
      %v1952 = vpop.f32.mrb[0].mxu0
      %v1953 = vpop.f32.mrb[0].mxu0
      %v1954 = vadd.f32 %v1879, %v1953
      %v1955 = vpop.f32.mrb[0].mxu0
      %1956 = vdwg.mxu0
      %v1957 = vsel %vm1022, %v1927, -inf
      %1958 = vmax.xlane.f32.xlu0 %v1957
      %v1959 = vpop.xlane.xlu0 %1958
      %v1960 = vsel %vm1022, %v1930, -inf
      %1961 = vmax.xlane.f32.xlu0 %v1960
      %v1962 = vpop.xlane.xlu0 %1961
      %v1963 = vsel %vm1022, %v1935, -inf
      %1964 = vmax.xlane.f32.xlu0 %v1963
      %v1965 = vpop.xlane.xlu0 %1964
      %v1966 = vsel %vm1022, %v1938, -inf
      %1967 = vmax.xlane.f32.xlu0 %v1966
      %v1968 = vpop.xlane.xlu0 %1967
      %v1969 = vsel %vm1022, %v1943, -inf
      %1970 = vmax.xlane.f32.xlu0 %v1969
      %v1971 = vpop.xlane.xlu0 %1970
      %v1972 = vsel %vm1022, %v1946, -inf
      %1973 = vmax.xlane.f32.xlu0 %v1972
      %v1974 = vpop.xlane.xlu0 %1973
      %v1975 = vsel %vm1022, %v1951, -inf
      %1976 = vmax.xlane.f32.xlu0 %v1975
      %v1977 = vpop.xlane.xlu0 %1976
      %v1978 = vsel %vm1022, %v1954, -inf
      %1979 = vmax.xlane.f32.xlu0 %v1978
      %v1980 = vpop.xlane.xlu0 %1979
      %v1981 = vsub.f32 %v1927, %v1959
      %v1982 = vsub.f32 %v1930, %v1962
      %v1983 = vsub.f32 %v1935, %v1965
      %v1984 = vsub.f32 %v1938, %v1968
      %v1985 = vsub.f32 %v1943, %v1971
      %v1986 = vsub.f32 %v1946, %v1974
      %v1987 = vsub.f32 %v1951, %v1977
      %v1988 = vsub.f32 %v1954, %v1980
      %v1989 = vmul.f32 %v1981, 1.442695
      %v1990 = vpow.pop %v1989
      %v1991 = vmul.f32 %v1982, 1.442695
      %v1992 = vpow.pop %v1991
      %v1993 = vmul.f32 %v1983, 1.442695
      %v1994 = vpow.pop %v1993
      %v1995 = vmul.f32 %v1984, 1.442695
      %v1996 = vpow.pop %v1995
      %v1997 = vmul.f32 %v1985, 1.442695
      %v1998 = vpow.pop %v1997
      %v1999 = vmul.f32 %v1986, 1.442695
      %v2000 = vpow.pop %v1999
      %v2001 = vmul.f32 %v1987, 1.442695
      %v2002 = vpow.pop %v2001
      %v2003 = vmul.f32 %v1988, 1.442695
      %v2004 = vpow.pop %v2003
      %v2005 = vsel %vm1022, %v1990, 0.0
      %2006 = vadd.xlane.f32.xlu0 %v2005
      %v2007 = vpop.xlane.xlu0 %2006
      %v2008 = vsel %vm1022, %v1992, 0.0
      %2009 = vadd.xlane.f32.xlu0 %v2008
      %v2010 = vpop.xlane.xlu0 %2009
      %v2011 = vsel %vm1022, %v1994, 0.0
      %2012 = vadd.xlane.f32.xlu0 %v2011
      %v2013 = vpop.xlane.xlu0 %2012
      %v2014 = vsel %vm1022, %v1996, 0.0
      %2015 = vadd.xlane.f32.xlu0 %v2014
      %v2016 = vpop.xlane.xlu0 %2015
      %v2017 = vsel %vm1022, %v1998, 0.0
      %2018 = vadd.xlane.f32.xlu0 %v2017
      %v2019 = vpop.xlane.xlu0 %2018
      %v2020 = vsel %vm1022, %v2000, 0.0
      %2021 = vadd.xlane.f32.xlu0 %v2020
      %v2022 = vpop.xlane.xlu0 %2021
      %v2023 = vsel %vm1022, %v2002, 0.0
      %2024 = vadd.xlane.f32.xlu0 %v2023
      %v2025 = vpop.xlane.xlu0 %2024
      %v2026 = vsel %vm1022, %v2004, 0.0
      %2027 = vadd.xlane.f32.xlu0 %v2026
      %v2028 = vpop.xlane.xlu0 %2027
      %v2029 = vrcp.pop %v2007
      %v2030 = vmul.f32 %v1990, %v2029
      %v2031 = vrcp.pop %v2010
      %v2032 = vmul.f32 %v1992, %v2031
      %v2033 = vrcp.pop %v2013
      %v2034 = vmul.f32 %v1994, %v2033
      %v2035 = vrcp.pop %v2016
      %v2036 = vmul.f32 %v1996, %v2035
      %v2037 = vrcp.pop %v2019
      %v2038 = vmul.f32 %v1998, %v2037
      %v2039 = vrcp.pop %v2022
      %v2040 = vmul.f32 %v2000, %v2039
      %v2041 = vrcp.pop %v2025
      %v2042 = vmul.f32 %v2002, %v2041
      %v2043 = vrcp.pop %v2028
      %v2044 = vmul.f32 %v2004, %v2043
      %v2049 = vunpack.c.l.b16 %v1746
      %v2050 = vunpack.c.l.b16 %v1747
      %v2051 = vunpack.c.l.b16 %v1748
      %v2052 = vunpack.c.l.b16 %v1749
      %v2053 = vpack.c.b16 %v2050, %v2049
      %v2054 = vpack.c.b16 %v2052, %v2051
      %2057 = vmatprep.subr.bf16.mxu0 0
      %2058 = vmatpush1.bf16.msra.mxu0 %v2053
      %2059 = vmatprep.subr.bf16.mxu0 0
      %2060 = vmatpush1.bf16.msra.mxu0 %v2054
      %2061 = vmatprep.subr.bf16.mxu0 0
      %2062 = vmatpush1.bf16.msra.mxu0 0
      %2063 = vmatprep.subr.bf16.mxu0 0
      %2064 = vmatpush1.bf16.msra.mxu0 0
      %2065 = vmatprep.subr.bf16.mxu0 0
      %2066 = vmatpush1.bf16.msra.mxu0 0
      %2067 = vmatprep.subr.bf16.mxu0 0
      %2068 = vmatpush1.bf16.msra.mxu0 0
      %2069 = vmatprep.subr.bf16.mxu0 0
      %2070 = vmatpush1.bf16.msra.mxu0 0
      %2071 = vmatprep.subr.bf16.mxu0 0
      %2072 = vmatpush1.bf16.msra.mxu0 0
      %2073 = vmatprep.subr.bf16.mxu0 0
      %2074 = vmatpush1.bf16.msra.mxu0 0
      %2075 = vmatprep.subr.bf16.mxu0 0
      %2076 = vmatpush1.bf16.msra.mxu0 0
      %2077 = vmatprep.subr.bf16.mxu0 0
      %2078 = vmatpush1.bf16.msra.mxu0 0
      %2079 = vmatprep.subr.bf16.mxu0 0
      %2080 = vmatpush1.bf16.msra.mxu0 0
      %2081 = vmatprep.subr.bf16.mxu0 0
      %2082 = vmatpush1.bf16.msra.mxu0 0
      %2083 = vmatprep.subr.bf16.mxu0 0
      %2084 = vmatpush1.bf16.msra.mxu0 0
      %2085 = vmatprep.subr.bf16.mxu0 0
      %2086 = vmatpush1.bf16.msra.mxu0 0
      %2087 = vmatprep.subr.bf16.mxu0 0
      %2088 = vmatpush1.bf16.msra.mxu0 0
      %2089 = vmatprep.mubr.bf16.mxu0 0
      %2090 = vmatmul.mubr.bf16.gmra.mrb[0].mxu0 %v818
      %v2091 = vpop.f32.mrb[0].mxu0
      %v2092 = vadd.f32 0.0, %v2091
      %v2093 = vpop.f32.mrb[0].mxu0
      %v2094 = vpop.f32.mrb[0].mxu0
      %v2095 = vadd.f32 0.0, %v2094
      %v2096 = vpop.f32.mrb[0].mxu0
      %2097 = vmatprep.mubr.bf16.mxu0 0
      %2098 = vmatmul.mubr.bf16.gmra.mrb[0].mxu0 %v821
      %v2099 = vpop.f32.mrb[0].mxu0
      %v2100 = vadd.f32 0.0, %v2099
      %v2101 = vpop.f32.mrb[0].mxu0
      %v2102 = vpop.f32.mrb[0].mxu0
      %v2103 = vadd.f32 0.0, %v2102
      %v2104 = vpop.f32.mrb[0].mxu0
      %2105 = vmatprep.mubr.bf16.mxu0 0
      %2106 = vmatmul.mubr.bf16.gmra.mrb[0].mxu0 %v824
      %v2107 = vpop.f32.mrb[0].mxu0
      %v2108 = vadd.f32 0.0, %v2107
      %v2109 = vpop.f32.mrb[0].mxu0
      %v2110 = vpop.f32.mrb[0].mxu0
      %v2111 = vadd.f32 0.0, %v2110
      %v2112 = vpop.f32.mrb[0].mxu0
      %2113 = vmatprep.mubr.bf16.mxu0 0
      %2114 = vmatmul.mubr.bf16.gmra.mrb[0].mxu0 %v827
      %v2115 = vpop.f32.mrb[0].mxu0
      %v2116 = vadd.f32 0.0, %v2115
      %v2117 = vpop.f32.mrb[0].mxu0
      %v2118 = vpop.f32.mrb[0].mxu0
      %v2119 = vadd.f32 0.0, %v2118
      %v2120 = vpop.f32.mrb[0].mxu0
      %2121 = vdwg.mxu0
      %v2122 = vpack.c.bf16 %v2032, %v2030
      %v2123 = vpack.c.bf16 %v2036, %v2034
      %v2124 = vpack.c.bf16 %v2040, %v2038
      %v2125 = vpack.c.bf16 %v2044, %v2042
      %v2126 = vpack.c.bf16 %v2095, %v2092
      %v2127 = vpack.c.bf16 %v2103, %v2100
      %v2128 = vpack.c.bf16 %v2111, %v2108
      %v2129 = vpack.c.bf16 %v2119, %v2116
      %v2131 = vsel %vm1022, %v2122, 0
      %v2134 = vsel %vm1022, %v2123, 0
      %v2137 = vsel %vm1022, %v2124, 0
      %v2140 = vsel %vm1022, %v2125, 0
      %2142 = vmatprep.subr.bf16.mxu0 0
      %2143 = vmatpush1.bf16.msra.mxu0 %v2126
      %2144 = vmatprep.subr.bf16.mxu0 0
      %2145 = vmatpush1.bf16.msra.mxu0 %v2127
      %2146 = vmatprep.subr.bf16.mxu0 0
      %2147 = vmatpush1.bf16.msra.mxu0 %v2128
      %2148 = vmatprep.subr.bf16.mxu0 0
      %2149 = vmatpush1.bf16.msra.mxu0 %v2129
      %2150 = vmatprep.subr.bf16.mxu0 0
      %2151 = vmatpush1.bf16.msra.mxu0 0
      %2152 = vmatprep.subr.bf16.mxu0 0
      %2153 = vmatpush1.bf16.msra.mxu0 0
      %2154 = vmatprep.subr.bf16.mxu0 0
      %2155 = vmatpush1.bf16.msra.mxu0 0
      %2156 = vmatprep.subr.bf16.mxu0 0
      %2157 = vmatpush1.bf16.msra.mxu0 0
      %2158 = vmatprep.subr.bf16.mxu0 0
      %2159 = vmatpush1.bf16.msra.mxu0 0
      %2160 = vmatprep.subr.bf16.mxu0 0
      %2161 = vmatpush1.bf16.msra.mxu0 0
      %2162 = vmatprep.subr.bf16.mxu0 0
      %2163 = vmatpush1.bf16.msra.mxu0 0
      %2164 = vmatprep.subr.bf16.mxu0 0
      %2165 = vmatpush1.bf16.msra.mxu0 0
      %2166 = vmatprep.subr.bf16.mxu0 0
      %2167 = vmatpush1.bf16.msra.mxu0 0
      %2168 = vmatprep.subr.bf16.mxu0 0
      %2169 = vmatpush1.bf16.msra.mxu0 0
      %2170 = vmatprep.subr.bf16.mxu0 0
      %2171 = vmatpush1.bf16.msra.mxu0 0
      %2172 = vmatprep.subr.bf16.mxu0 0
      %2173 = vmatpush1.bf16.msra.mxu0 0
      %2174 = vmatprep.mubr.bf16.mxu0 0
      %2175 = vmatmul.mubr.bf16.gmra.mrb[0].mxu0 %v2131
      %v2176 = vpop.f32.mrb[0].mxu0
      %v2177 = vadd.f32 0.0, %v2176
      %v2178 = vpop.f32.mrb[0].mxu0
      %v2179 = vpop.f32.mrb[0].mxu0
      %v2180 = vadd.f32 0.0, %v2179
      %v2181 = vpop.f32.mrb[0].mxu0
      %2182 = vmatprep.mubr.bf16.mxu0 0
      %2183 = vmatmul.mubr.bf16.gmra.mrb[0].mxu0 %v2134
      %v2184 = vpop.f32.mrb[0].mxu0
      %v2185 = vadd.f32 0.0, %v2184
      %v2186 = vpop.f32.mrb[0].mxu0
      %v2187 = vpop.f32.mrb[0].mxu0
      %v2188 = vadd.f32 0.0, %v2187
      %v2189 = vpop.f32.mrb[0].mxu0
      %2190 = vmatprep.mubr.bf16.mxu0 0
      %2191 = vmatmul.mubr.bf16.gmra.mrb[0].mxu0 %v2137
      %v2192 = vpop.f32.mrb[0].mxu0
      %v2193 = vadd.f32 0.0, %v2192
      %v2194 = vpop.f32.mrb[0].mxu0
      %v2195 = vpop.f32.mrb[0].mxu0
      %v2196 = vadd.f32 0.0, %v2195
      %v2197 = vpop.f32.mrb[0].mxu0
      %2198 = vmatprep.mubr.bf16.mxu0 0
      %2199 = vmatmul.mubr.bf16.gmra.mrb[0].mxu0 %v2140
      %v2200 = vpop.f32.mrb[0].mxu0
      %v2201 = vadd.f32 0.0, %v2200
      %v2202 = vpop.f32.mrb[0].mxu0
      %v2203 = vpop.f32.mrb[0].mxu0
      %v2204 = vadd.f32 0.0, %v2203
      %v2205 = vpop.f32.mrb[0].mxu0
      %2206 = vdwg.mxu0
      %v2207 = vadd.f32 %v1710, %v2177
      %v2208 = vadd.f32 %v1713, %v2180
      %v2209 = vadd.f32 %v1718, %v2185
      %v2210 = vadd.f32 %v1721, %v2188
      %v2211 = vadd.f32 %v1726, %v2193
      %v2212 = vadd.f32 %v1729, %v2196
      %v2213 = vadd.f32 %v1734, %v2201
      %v2214 = vadd.f32 %v1737, %v2204
      %s2215 = scalar_lea.vmem %s5, 48
      %v2216 = vld [vmem:[%s2215] sm:$0xf]
      %v2217 = vld [vmem:[%s2215 + $0x4] sm:$0xf]
      %v2218 = vld [vmem:[%s2215 + $0x8] sm:$0xf]
      %v2219 = vld [vmem:[%s2215 + $0xc] sm:$0xf]
      %s2220 = scalar_lea.vmem %s7, 48
      %v2221 = vld [vmem:[%s2220] sm:$0xf]
      %v2222 = vld [vmem:[%s2220 + $0x4] sm:$0xf]
      %v2223 = vld [vmem:[%s2220 + $0x8] sm:$0xf]
      %v2224 = vld [vmem:[%s2220 + $0xc] sm:$0xf]
      %s2225 = scalar_lea.vmem %s6, 3
      %v2226 = vld [vmem:[%s2225] sm:$0x1]
      %v2231 = vunpack.c.l.b16 %v2216
      %v2232 = vunpack.c.l.b16 %v2217
      %v2233 = vunpack.c.l.b16 %v2218
      %v2234 = vunpack.c.l.b16 %v2219
      %v2235 = vpack.c.b16 %v2232, %v2231
      %v2236 = vpack.c.b16 %v2234, %v2233
      %2239 = vmatprep.subr.bf16.mxu0 0
      %2240 = vmatpush1.bf16.msra.mxu0 %v2235
      %2241 = vmatprep.subr.bf16.mxu0 0
      %2242 = vmatpush1.bf16.msra.mxu0 %v2236
      %2243 = vmatprep.subr.bf16.mxu0 0
      %2244 = vmatpush1.bf16.msra.mxu0 0
      %2245 = vmatprep.subr.bf16.mxu0 0
      %2246 = vmatpush1.bf16.msra.mxu0 0
      %2247 = vmatprep.subr.bf16.mxu0 0
      %2248 = vmatpush1.bf16.msra.mxu0 0
      %2249 = vmatprep.subr.bf16.mxu0 0
      %2250 = vmatpush1.bf16.msra.mxu0 0
      %2251 = vmatprep.subr.bf16.mxu0 0
      %2252 = vmatpush1.bf16.msra.mxu0 0
      %2253 = vmatprep.subr.bf16.mxu0 0
      %2254 = vmatpush1.bf16.msra.mxu0 0
      %2255 = vmatprep.subr.bf16.mxu0 0
      %2256 = vmatpush1.bf16.msra.mxu0 0
      %2257 = vmatprep.subr.bf16.mxu0 0
      %2258 = vmatpush1.bf16.msra.mxu0 0
      %2259 = vmatprep.subr.bf16.mxu0 0
      %2260 = vmatpush1.bf16.msra.mxu0 0
      %2261 = vmatprep.subr.bf16.mxu0 0
      %2262 = vmatpush1.bf16.msra.mxu0 0
      %2263 = vmatprep.subr.bf16.mxu0 0
      %2264 = vmatpush1.bf16.msra.mxu0 0
      %2265 = vmatprep.subr.bf16.mxu0 0
      %2266 = vmatpush1.bf16.msra.mxu0 0
      %2267 = vmatprep.subr.bf16.mxu0 0
      %2268 = vmatpush1.bf16.msra.mxu0 0
      %2269 = vmatprep.subr.bf16.mxu0 0
      %2270 = vmatpush1.bf16.msra.mxu0 0
      %2271 = vmatprep.mubr.bf16.mxu0 0
      %2272 = vmatmul.mubr.bf16.gmra.mrb[0].mxu0 %v818
      %v2273 = vpop.f32.mrb[0].mxu0
      %v2274 = vadd.f32 0.0, %v2273
      %v2275 = vpop.f32.mrb[0].mxu0
      %v2276 = vpop.f32.mrb[0].mxu0
      %v2277 = vadd.f32 0.0, %v2276
      %v2278 = vpop.f32.mrb[0].mxu0
      %2279 = vmatprep.mubr.bf16.mxu0 0
      %2280 = vmatmul.mubr.bf16.gmra.mrb[0].mxu0 %v821
      %v2281 = vpop.f32.mrb[0].mxu0
      %v2282 = vadd.f32 0.0, %v2281
      %v2283 = vpop.f32.mrb[0].mxu0
      %v2284 = vpop.f32.mrb[0].mxu0
      %v2285 = vadd.f32 0.0, %v2284
      %v2286 = vpop.f32.mrb[0].mxu0
      %2287 = vmatprep.mubr.bf16.mxu0 0
      %2288 = vmatmul.mubr.bf16.gmra.mrb[0].mxu0 %v824
      %v2289 = vpop.f32.mrb[0].mxu0
      %v2290 = vadd.f32 0.0, %v2289
      %v2291 = vpop.f32.mrb[0].mxu0
      %v2292 = vpop.f32.mrb[0].mxu0
      %v2293 = vadd.f32 0.0, %v2292
      %v2294 = vpop.f32.mrb[0].mxu0
      %2295 = vmatprep.mubr.bf16.mxu0 0
      %2296 = vmatmul.mubr.bf16.gmra.mrb[0].mxu0 %v827
      %v2297 = vpop.f32.mrb[0].mxu0
      %v2298 = vadd.f32 0.0, %v2297
      %v2299 = vpop.f32.mrb[0].mxu0
      %v2300 = vpop.f32.mrb[0].mxu0
      %v2301 = vadd.f32 0.0, %v2300
      %v2302 = vpop.f32.mrb[0].mxu0
      %2303 = vdwg.mxu0
      %v2304 = vpack.c.bf16 %v2277, %v2274
      %v2305 = vpack.c.bf16 %v2285, %v2282
      %v2306 = vpack.c.bf16 %v2293, %v2290
      %v2307 = vpack.c.bf16 %v2301, %v2298
      %v2309 = vsel %vm658, %v2226, 0
      %2311 = vmatprep.subr.bf16.mxu0 0
      %2312 = vmatpush1.bf16.xpose.msra.mxu0 %v818
      %2313 = vmatprep.subr.bf16.mxu0 0
      %2314 = vmatpush1.bf16.xpose.msra.mxu0 %v821
      %2315 = vmatprep.subr.bf16.mxu0 0
      %2316 = vmatpush1.bf16.xpose.msra.mxu0 %v824
      %2317 = vmatprep.subr.bf16.mxu0 0
      %2318 = vmatpush1.bf16.xpose.msra.mxu0 %v827
      %2319 = vmatprep.subr.bf16.mxu0 0
      %2320 = vmatpush1.bf16.xpose.msra.mxu0 0
      %2321 = vmatprep.subr.bf16.mxu0 0
      %2322 = vmatpush1.bf16.xpose.msra.mxu0 0
      %2323 = vmatprep.subr.bf16.mxu0 0
      %2324 = vmatpush1.bf16.xpose.msra.mxu0 0
      %2325 = vmatprep.subr.bf16.mxu0 0
      %2326 = vmatpush1.bf16.xpose.msra.mxu0 0
      %2327 = vmatprep.subr.bf16.mxu0 0
      %2328 = vmatpush1.bf16.xpose.msra.mxu0 0
      %2329 = vmatprep.subr.bf16.mxu0 0
      %2330 = vmatpush1.bf16.xpose.msra.mxu0 0
      %2331 = vmatprep.subr.bf16.mxu0 0
      %2332 = vmatpush1.bf16.xpose.msra.mxu0 0
      %2333 = vmatprep.subr.bf16.mxu0 0
      %2334 = vmatpush1.bf16.xpose.msra.mxu0 0
      %2335 = vmatprep.subr.bf16.mxu0 0
      %2336 = vmatpush1.bf16.xpose.msra.mxu0 0
      %2337 = vmatprep.subr.bf16.mxu0 0
      %2338 = vmatpush1.bf16.xpose.msra.mxu0 0
      %2339 = vmatprep.subr.bf16.mxu0 0
      %2340 = vmatpush1.bf16.xpose.msra.mxu0 0
      %2341 = vmatprep.subr.bf16.mxu0 0
      %2342 = vmatpush1.bf16.xpose.msra.mxu0 0
      %2343 = vmatprep.mubr.bf16.mxu0 0
      %2344 = vmatmul.mubr.bf16.gmra.mrb[0].mxu0 %v2309
      %v2345 = vpop.f32.mrb[0].mxu0
      %v2346 = vadd.f32 0.0, %v2345
      %v2347 = vpop.f32.mrb[0].mxu0
      %v2348 = vpop.f32.mrb[0].mxu0
      %v2349 = vpop.f32.mrb[0].mxu0
      %2350 = vdwg.mxu0
      %v2351 = vlaneseq
      %v2352 = vshrl.u32 %v2351, 7
      %v2353 = vsub.s32 0, %v2352
      %v2354 = vrot.slane %v2346, %v2353
      %v2356 = vsel %vm658, %v2304, 0
      %v2359 = vsel %vm658, %v2305, 0
      %v2362 = vsel %vm658, %v2306, 0
      %v2365 = vsel %vm658, %v2307, 0
      %2367 = vmatprep.subr.bf16.mxu0 0
      %2368 = vmatpush1.bf16.xpose.msra.mxu0 %v818
      %2369 = vmatprep.subr.bf16.mxu0 0
      %2370 = vmatpush1.bf16.xpose.msra.mxu0 %v821
      %2371 = vmatprep.subr.bf16.mxu0 0
      %2372 = vmatpush1.bf16.xpose.msra.mxu0 %v824
      %2373 = vmatprep.subr.bf16.mxu0 0
      %2374 = vmatpush1.bf16.xpose.msra.mxu0 %v827
      %2375 = vmatprep.subr.bf16.mxu0 0
      %2376 = vmatpush1.bf16.xpose.msra.mxu0 0
      %2377 = vmatprep.subr.bf16.mxu0 0
      %2378 = vmatpush1.bf16.xpose.msra.mxu0 0
      %2379 = vmatprep.subr.bf16.mxu0 0
      %2380 = vmatpush1.bf16.xpose.msra.mxu0 0
      %2381 = vmatprep.subr.bf16.mxu0 0
      %2382 = vmatpush1.bf16.xpose.msra.mxu0 0
      %2383 = vmatprep.subr.bf16.mxu0 0
      %2384 = vmatpush1.bf16.xpose.msra.mxu0 0
      %2385 = vmatprep.subr.bf16.mxu0 0
      %2386 = vmatpush1.bf16.xpose.msra.mxu0 0
      %2387 = vmatprep.subr.bf16.mxu0 0
      %2388 = vmatpush1.bf16.xpose.msra.mxu0 0
      %2389 = vmatprep.subr.bf16.mxu0 0
      %2390 = vmatpush1.bf16.xpose.msra.mxu0 0
      %2391 = vmatprep.subr.bf16.mxu0 0
      %2392 = vmatpush1.bf16.xpose.msra.mxu0 0
      %2393 = vmatprep.subr.bf16.mxu0 0
      %2394 = vmatpush1.bf16.xpose.msra.mxu0 0
      %2395 = vmatprep.subr.bf16.mxu0 0
      %2396 = vmatpush1.bf16.xpose.msra.mxu0 0
      %2397 = vmatprep.subr.bf16.mxu0 0
      %2398 = vmatpush1.bf16.xpose.msra.mxu0 0
      %2399 = vmatprep.mubr.bf16.mxu0 0
      %2400 = vmatmul.mubr.bf16.gmra.mrb[0].mxu0 %v2356
      %v2401 = vpop.f32.mrb[0].mxu0
      %v2402 = vadd.f32 %v2354, %v2401
      %v2403 = vpop.f32.mrb[0].mxu0
      %v2404 = vpop.f32.mrb[0].mxu0
      %v2405 = vadd.f32 %v2354, %v2404
      %v2406 = vpop.f32.mrb[0].mxu0
      %2407 = vmatprep.mubr.bf16.mxu0 0
      %2408 = vmatmul.mubr.bf16.gmra.mrb[0].mxu0 %v2359
      %v2409 = vpop.f32.mrb[0].mxu0
      %v2410 = vadd.f32 %v2354, %v2409
      %v2411 = vpop.f32.mrb[0].mxu0
      %v2412 = vpop.f32.mrb[0].mxu0
      %v2413 = vadd.f32 %v2354, %v2412
      %v2414 = vpop.f32.mrb[0].mxu0
      %2415 = vmatprep.mubr.bf16.mxu0 0
      %2416 = vmatmul.mubr.bf16.gmra.mrb[0].mxu0 %v2362
      %v2417 = vpop.f32.mrb[0].mxu0
      %v2418 = vadd.f32 %v2354, %v2417
      %v2419 = vpop.f32.mrb[0].mxu0
      %v2420 = vpop.f32.mrb[0].mxu0
      %v2421 = vadd.f32 %v2354, %v2420
      %v2422 = vpop.f32.mrb[0].mxu0
      %2423 = vmatprep.mubr.bf16.mxu0 0
      %2424 = vmatmul.mubr.bf16.gmra.mrb[0].mxu0 %v2365
      %v2425 = vpop.f32.mrb[0].mxu0
      %v2426 = vadd.f32 %v2354, %v2425
      %v2427 = vpop.f32.mrb[0].mxu0
      %v2428 = vpop.f32.mrb[0].mxu0
      %v2429 = vadd.f32 %v2354, %v2428
      %v2430 = vpop.f32.mrb[0].mxu0
      %2431 = vdwg.mxu0
      %v2432 = vsel %vm1022, %v2402, -inf
      %2433 = vmax.xlane.f32.xlu0 %v2432
      %v2434 = vpop.xlane.xlu0 %2433
      %v2435 = vsel %vm1022, %v2405, -inf
      %2436 = vmax.xlane.f32.xlu0 %v2435
      %v2437 = vpop.xlane.xlu0 %2436
      %v2438 = vsel %vm1022, %v2410, -inf
      %2439 = vmax.xlane.f32.xlu0 %v2438
      %v2440 = vpop.xlane.xlu0 %2439
      %v2441 = vsel %vm1022, %v2413, -inf
      %2442 = vmax.xlane.f32.xlu0 %v2441
      %v2443 = vpop.xlane.xlu0 %2442
      %v2444 = vsel %vm1022, %v2418, -inf
      %2445 = vmax.xlane.f32.xlu0 %v2444
      %v2446 = vpop.xlane.xlu0 %2445
      %v2447 = vsel %vm1022, %v2421, -inf
      %2448 = vmax.xlane.f32.xlu0 %v2447
      %v2449 = vpop.xlane.xlu0 %2448
      %v2450 = vsel %vm1022, %v2426, -inf
      %2451 = vmax.xlane.f32.xlu0 %v2450
      %v2452 = vpop.xlane.xlu0 %2451
      %v2453 = vsel %vm1022, %v2429, -inf
      %2454 = vmax.xlane.f32.xlu0 %v2453
      %v2455 = vpop.xlane.xlu0 %2454
      %v2456 = vsub.f32 %v2402, %v2434
      %v2457 = vsub.f32 %v2405, %v2437
      %v2458 = vsub.f32 %v2410, %v2440
      %v2459 = vsub.f32 %v2413, %v2443
      %v2460 = vsub.f32 %v2418, %v2446
      %v2461 = vsub.f32 %v2421, %v2449
      %v2462 = vsub.f32 %v2426, %v2452
      %v2463 = vsub.f32 %v2429, %v2455
      %v2464 = vmul.f32 %v2456, 1.442695
      %v2465 = vpow.pop %v2464
      %v2466 = vmul.f32 %v2457, 1.442695
      %v2467 = vpow.pop %v2466
      %v2468 = vmul.f32 %v2458, 1.442695
      %v2469 = vpow.pop %v2468
      %v2470 = vmul.f32 %v2459, 1.442695
      %v2471 = vpow.pop %v2470
      %v2472 = vmul.f32 %v2460, 1.442695
      %v2473 = vpow.pop %v2472
      %v2474 = vmul.f32 %v2461, 1.442695
      %v2475 = vpow.pop %v2474
      %v2476 = vmul.f32 %v2462, 1.442695
      %v2477 = vpow.pop %v2476
      %v2478 = vmul.f32 %v2463, 1.442695
      %v2479 = vpow.pop %v2478
      %v2480 = vsel %vm1022, %v2465, 0.0
      %2481 = vadd.xlane.f32.xlu0 %v2480
      %v2482 = vpop.xlane.xlu0 %2481
      %v2483 = vsel %vm1022, %v2467, 0.0
      %2484 = vadd.xlane.f32.xlu0 %v2483
      %v2485 = vpop.xlane.xlu0 %2484
      %v2486 = vsel %vm1022, %v2469, 0.0
      %2487 = vadd.xlane.f32.xlu0 %v2486
      %v2488 = vpop.xlane.xlu0 %2487
      %v2489 = vsel %vm1022, %v2471, 0.0
      %2490 = vadd.xlane.f32.xlu0 %v2489
      %v2491 = vpop.xlane.xlu0 %2490
      %v2492 = vsel %vm1022, %v2473, 0.0
      %2493 = vadd.xlane.f32.xlu0 %v2492
      %v2494 = vpop.xlane.xlu0 %2493
      %v2495 = vsel %vm1022, %v2475, 0.0
      %2496 = vadd.xlane.f32.xlu0 %v2495
      %v2497 = vpop.xlane.xlu0 %2496
      %v2498 = vsel %vm1022, %v2477, 0.0
      %2499 = vadd.xlane.f32.xlu0 %v2498
      %v2500 = vpop.xlane.xlu0 %2499
      %v2501 = vsel %vm1022, %v2479, 0.0
      %2502 = vadd.xlane.f32.xlu0 %v2501
      %v2503 = vpop.xlane.xlu0 %2502
      %v2504 = vrcp.pop %v2482
      %v2505 = vmul.f32 %v2465, %v2504
      %v2506 = vrcp.pop %v2485
      %v2507 = vmul.f32 %v2467, %v2506
      %v2508 = vrcp.pop %v2488
      %v2509 = vmul.f32 %v2469, %v2508
      %v2510 = vrcp.pop %v2491
      %v2511 = vmul.f32 %v2471, %v2510
      %v2512 = vrcp.pop %v2494
      %v2513 = vmul.f32 %v2473, %v2512
      %v2514 = vrcp.pop %v2497
      %v2515 = vmul.f32 %v2475, %v2514
      %v2516 = vrcp.pop %v2500
      %v2517 = vmul.f32 %v2477, %v2516
      %v2518 = vrcp.pop %v2503
      %v2519 = vmul.f32 %v2479, %v2518
      %v2524 = vunpack.c.l.b16 %v2221
      %v2525 = vunpack.c.l.b16 %v2222
      %v2526 = vunpack.c.l.b16 %v2223
      %v2527 = vunpack.c.l.b16 %v2224
      %v2528 = vpack.c.b16 %v2525, %v2524
      %v2529 = vpack.c.b16 %v2527, %v2526
      %2532 = vmatprep.subr.bf16.mxu0 0
      %2533 = vmatpush1.bf16.msra.mxu0 %v2528
      %2534 = vmatprep.subr.bf16.mxu0 0
      %2535 = vmatpush1.bf16.msra.mxu0 %v2529
      %2536 = vmatprep.subr.bf16.mxu0 0
      %2537 = vmatpush1.bf16.msra.mxu0 0
      %2538 = vmatprep.subr.bf16.mxu0 0
      %2539 = vmatpush1.bf16.msra.mxu0 0
      %2540 = vmatprep.subr.bf16.mxu0 0
      %2541 = vmatpush1.bf16.msra.mxu0 0
      %2542 = vmatprep.subr.bf16.mxu0 0
      %2543 = vmatpush1.bf16.msra.mxu0 0
      %2544 = vmatprep.subr.bf16.mxu0 0
      %2545 = vmatpush1.bf16.msra.mxu0 0
      %2546 = vmatprep.subr.bf16.mxu0 0
      %2547 = vmatpush1.bf16.msra.mxu0 0
      %2548 = vmatprep.subr.bf16.mxu0 0
      %2549 = vmatpush1.bf16.msra.mxu0 0
      %2550 = vmatprep.subr.bf16.mxu0 0
      %2551 = vmatpush1.bf16.msra.mxu0 0
      %2552 = vmatprep.subr.bf16.mxu0 0
      %2553 = vmatpush1.bf16.msra.mxu0 0
      %2554 = vmatprep.subr.bf16.mxu0 0
      %2555 = vmatpush1.bf16.msra.mxu0 0
      %2556 = vmatprep.subr.bf16.mxu0 0
      %2557 = vmatpush1.bf16.msra.mxu0 0
      %2558 = vmatprep.subr.bf16.mxu0 0
      %2559 = vmatpush1.bf16.msra.mxu0 0
      %2560 = vmatprep.subr.bf16.mxu0 0
      %2561 = vmatpush1.bf16.msra.mxu0 0
      %2562 = vmatprep.subr.bf16.mxu0 0
      %2563 = vmatpush1.bf16.msra.mxu0 0
      %2564 = vmatprep.mubr.bf16.mxu0 0
      %2565 = vmatmul.mubr.bf16.gmra.mrb[0].mxu0 %v818
      %v2566 = vpop.f32.mrb[0].mxu0
      %v2567 = vadd.f32 0.0, %v2566
      %v2568 = vpop.f32.mrb[0].mxu0
      %v2569 = vpop.f32.mrb[0].mxu0
      %v2570 = vadd.f32 0.0, %v2569
      %v2571 = vpop.f32.mrb[0].mxu0
      %2572 = vmatprep.mubr.bf16.mxu0 0
      %2573 = vmatmul.mubr.bf16.gmra.mrb[0].mxu0 %v821
      %v2574 = vpop.f32.mrb[0].mxu0
      %v2575 = vadd.f32 0.0, %v2574
      %v2576 = vpop.f32.mrb[0].mxu0
      %v2577 = vpop.f32.mrb[0].mxu0
      %v2578 = vadd.f32 0.0, %v2577
      %v2579 = vpop.f32.mrb[0].mxu0
      %2580 = vmatprep.mubr.bf16.mxu0 0
      %2581 = vmatmul.mubr.bf16.gmra.mrb[0].mxu0 %v824
      %v2582 = vpop.f32.mrb[0].mxu0
      %v2583 = vadd.f32 0.0, %v2582
      %v2584 = vpop.f32.mrb[0].mxu0
      %v2585 = vpop.f32.mrb[0].mxu0
      %v2586 = vadd.f32 0.0, %v2585
      %v2587 = vpop.f32.mrb[0].mxu0
      %2588 = vmatprep.mubr.bf16.mxu0 0
      %2589 = vmatmul.mubr.bf16.gmra.mrb[0].mxu0 %v827
      %v2590 = vpop.f32.mrb[0].mxu0
      %v2591 = vadd.f32 0.0, %v2590
      %v2592 = vpop.f32.mrb[0].mxu0
      %v2593 = vpop.f32.mrb[0].mxu0
      %v2594 = vadd.f32 0.0, %v2593
      %v2595 = vpop.f32.mrb[0].mxu0
      %2596 = vdwg.mxu0
      %v2597 = vpack.c.bf16 %v2507, %v2505
      %v2598 = vpack.c.bf16 %v2511, %v2509
      %v2599 = vpack.c.bf16 %v2515, %v2513
      %v2600 = vpack.c.bf16 %v2519, %v2517
      %v2601 = vpack.c.bf16 %v2570, %v2567
      %v2602 = vpack.c.bf16 %v2578, %v2575
      %v2603 = vpack.c.bf16 %v2586, %v2583
      %v2604 = vpack.c.bf16 %v2594, %v2591
      %v2606 = vsel %vm1022, %v2597, 0
      %v2609 = vsel %vm1022, %v2598, 0
      %v2612 = vsel %vm1022, %v2599, 0
      %v2615 = vsel %vm1022, %v2600, 0
      %2617 = vmatprep.subr.bf16.mxu0 0
      %2618 = vmatpush1.bf16.msra.mxu0 %v2601
      %2619 = vmatprep.subr.bf16.mxu0 0
      %2620 = vmatpush1.bf16.msra.mxu0 %v2602
      %2621 = vmatprep.subr.bf16.mxu0 0
      %2622 = vmatpush1.bf16.msra.mxu0 %v2603
      %2623 = vmatprep.subr.bf16.mxu0 0
      %2624 = vmatpush1.bf16.msra.mxu0 %v2604
      %2625 = vmatprep.subr.bf16.mxu0 0
      %2626 = vmatpush1.bf16.msra.mxu0 0
      %2627 = vmatprep.subr.bf16.mxu0 0
      %2628 = vmatpush1.bf16.msra.mxu0 0
      %2629 = vmatprep.subr.bf16.mxu0 0
      %2630 = vmatpush1.bf16.msra.mxu0 0
      %2631 = vmatprep.subr.bf16.mxu0 0
      %2632 = vmatpush1.bf16.msra.mxu0 0
      %2633 = vmatprep.subr.bf16.mxu0 0
      %2634 = vmatpush1.bf16.msra.mxu0 0
      %2635 = vmatprep.subr.bf16.mxu0 0
      %2636 = vmatpush1.bf16.msra.mxu0 0
      %2637 = vmatprep.subr.bf16.mxu0 0
      %2638 = vmatpush1.bf16.msra.mxu0 0
      %2639 = vmatprep.subr.bf16.mxu0 0
      %2640 = vmatpush1.bf16.msra.mxu0 0
      %2641 = vmatprep.subr.bf16.mxu0 0
      %2642 = vmatpush1.bf16.msra.mxu0 0
      %2643 = vmatprep.subr.bf16.mxu0 0
      %2644 = vmatpush1.bf16.msra.mxu0 0
      %2645 = vmatprep.subr.bf16.mxu0 0
      %2646 = vmatpush1.bf16.msra.mxu0 0
      %2647 = vmatprep.subr.bf16.mxu0 0
      %2648 = vmatpush1.bf16.msra.mxu0 0
      %2649 = vmatprep.mubr.bf16.mxu0 0
      %2650 = vmatmul.mubr.bf16.gmra.mrb[0].mxu0 %v2606
      %v2651 = vpop.f32.mrb[0].mxu0
      %v2652 = vadd.f32 0.0, %v2651
      %v2653 = vpop.f32.mrb[0].mxu0
      %v2654 = vpop.f32.mrb[0].mxu0
      %v2655 = vadd.f32 0.0, %v2654
      %v2656 = vpop.f32.mrb[0].mxu0
      %2657 = vmatprep.mubr.bf16.mxu0 0
      %2658 = vmatmul.mubr.bf16.gmra.mrb[0].mxu0 %v2609
      %v2659 = vpop.f32.mrb[0].mxu0
      %v2660 = vadd.f32 0.0, %v2659
      %v2661 = vpop.f32.mrb[0].mxu0
      %v2662 = vpop.f32.mrb[0].mxu0
      %v2663 = vadd.f32 0.0, %v2662
      %v2664 = vpop.f32.mrb[0].mxu0
      %2665 = vmatprep.mubr.bf16.mxu0 0
      %2666 = vmatmul.mubr.bf16.gmra.mrb[0].mxu0 %v2612
      %v2667 = vpop.f32.mrb[0].mxu0
      %v2668 = vadd.f32 0.0, %v2667
      %v2669 = vpop.f32.mrb[0].mxu0
      %v2670 = vpop.f32.mrb[0].mxu0
      %v2671 = vadd.f32 0.0, %v2670
      %v2672 = vpop.f32.mrb[0].mxu0
      %2673 = vmatprep.mubr.bf16.mxu0 0
      %2674 = vmatmul.mubr.bf16.gmra.mrb[0].mxu0 %v2615
      %v2675 = vpop.f32.mrb[0].mxu0
      %v2676 = vadd.f32 0.0, %v2675
      %v2677 = vpop.f32.mrb[0].mxu0
      %v2678 = vpop.f32.mrb[0].mxu0
      %v2679 = vadd.f32 0.0, %v2678
      %v2680 = vpop.f32.mrb[0].mxu0
      %2681 = vdwg.mxu0
      %v2682 = vadd.f32 %v2207, %v2652
      %v2683 = vadd.f32 %v2208, %v2655
      %v2684 = vadd.f32 %v2209, %v2660
      %v2685 = vadd.f32 %v2210, %v2663
      %v2686 = vadd.f32 %v2211, %v2668
      %v2687 = vadd.f32 %v2212, %v2671
      %v2688 = vadd.f32 %v2213, %v2676
      %v2689 = vadd.f32 %v2214, %v2679
      %v2690 = vadd.f32 %v626, %v2682
      %v2691 = vadd.f32 %v629, %v2683
      %v2692 = vadd.f32 %v634, %v2684
      %v2693 = vadd.f32 %v637, %v2685
      %v2694 = vadd.f32 %v642, %v2686
      %v2695 = vadd.f32 %v645, %v2687
      %v2696 = vadd.f32 %v650, %v2688
      %v2697 = vadd.f32 %v653, %v2689
      %v2698 = vld [vmem:[%s8] sm:$0x1]
      %v2700 = vlaneseq
      %v2701 = vshrl.u32 %v2700, 7
      %v2702 = vsub.s32 0, %v2701
      %v2703 = vrot.slane %v2698, %v2702
      %v2705 = vadd.f32 %v2690, %v2703
      %v2706 = vadd.f32 %v2691, %v2703
      %v2707 = vadd.f32 %v2692, %v2703
      %v2708 = vadd.f32 %v2693, %v2703
      %v2709 = vadd.f32 %v2694, %v2703
      %v2710 = vadd.f32 %v2695, %v2703
      %v2711 = vadd.f32 %v2696, %v2703
      %v2712 = vadd.f32 %v2697, %v2703
      %v2713 = vld [vmem:[%s9] sm:$0x1]
      %v2714 = vld [vmem:[%s10] sm:$0x1]
      %v2715 = vsel %vm658, %v2705, 0.0
      %2716 = vadd.xlane.f32.xlu0 %v2715
      %v2717 = vpop.xlane.xlu0 %2716
      %v2718 = vsel %vm658, %v2706, 0.0
      %2719 = vadd.xlane.f32.xlu0 %v2718
      %v2720 = vpop.xlane.xlu0 %2719
      %v2721 = vsel %vm658, %v2707, 0.0
      %2722 = vadd.xlane.f32.xlu0 %v2721
      %v2723 = vpop.xlane.xlu0 %2722
      %v2724 = vsel %vm658, %v2708, 0.0
      %2725 = vadd.xlane.f32.xlu0 %v2724
      %v2726 = vpop.xlane.xlu0 %2725
      %v2727 = vsel %vm658, %v2709, 0.0
      %2728 = vadd.xlane.f32.xlu0 %v2727
      %v2729 = vpop.xlane.xlu0 %2728
      %v2730 = vsel %vm658, %v2710, 0.0
      %2731 = vadd.xlane.f32.xlu0 %v2730
      %v2732 = vpop.xlane.xlu0 %2731
      %v2733 = vsel %vm658, %v2711, 0.0
      %2734 = vadd.xlane.f32.xlu0 %v2733
      %v2735 = vpop.xlane.xlu0 %2734
      %v2736 = vsel %vm658, %v2712, 0.0
      %2737 = vadd.xlane.f32.xlu0 %v2736
      %v2738 = vpop.xlane.xlu0 %2737
      %v2739 = vmul.f32 %v2717, %v683
      %v2740 = vmul.f32 %v2720, %v683
      %v2741 = vmul.f32 %v2723, %v683
      %v2742 = vmul.f32 %v2726, %v683
      %v2743 = vmul.f32 %v2729, %v683
      %v2744 = vmul.f32 %v2732, %v683
      %v2745 = vmul.f32 %v2735, %v683
      %v2746 = vmul.f32 %v2738, %v683
      %v2747 = vsub.f32 %v2705, %v2739
      %v2748 = vsub.f32 %v2706, %v2740
      %v2749 = vsub.f32 %v2707, %v2741
      %v2750 = vsub.f32 %v2708, %v2742
      %v2751 = vsub.f32 %v2709, %v2743
      %v2752 = vsub.f32 %v2710, %v2744
      %v2753 = vsub.f32 %v2711, %v2745
      %v2754 = vsub.f32 %v2712, %v2746
      %v2755 = vmul.f32 %v2747, %v2747
      %v2756 = vmul.f32 %v2748, %v2748
      %v2757 = vmul.f32 %v2749, %v2749
      %v2758 = vmul.f32 %v2750, %v2750
      %v2759 = vmul.f32 %v2751, %v2751
      %v2760 = vmul.f32 %v2752, %v2752
      %v2761 = vmul.f32 %v2753, %v2753
      %v2762 = vmul.f32 %v2754, %v2754
      %v2763 = vsel %vm658, %v2755, 0.0
      %2764 = vadd.xlane.f32.xlu0 %v2763
      %v2765 = vpop.xlane.xlu0 %2764
      %v2766 = vsel %vm658, %v2756, 0.0
      %2767 = vadd.xlane.f32.xlu0 %v2766
      %v2768 = vpop.xlane.xlu0 %2767
      %v2769 = vsel %vm658, %v2757, 0.0
      %2770 = vadd.xlane.f32.xlu0 %v2769
      %v2771 = vpop.xlane.xlu0 %2770
      %v2772 = vsel %vm658, %v2758, 0.0
      %2773 = vadd.xlane.f32.xlu0 %v2772
      %v2774 = vpop.xlane.xlu0 %2773
      %v2775 = vsel %vm658, %v2759, 0.0
      %2776 = vadd.xlane.f32.xlu0 %v2775
      %v2777 = vpop.xlane.xlu0 %2776
      %v2778 = vsel %vm658, %v2760, 0.0
      %2779 = vadd.xlane.f32.xlu0 %v2778
      %v2780 = vpop.xlane.xlu0 %2779
      %v2781 = vsel %vm658, %v2761, 0.0
      %2782 = vadd.xlane.f32.xlu0 %v2781
      %v2783 = vpop.xlane.xlu0 %2782
      %v2784 = vsel %vm658, %v2762, 0.0
      %2785 = vadd.xlane.f32.xlu0 %v2784
      %v2786 = vpop.xlane.xlu0 %2785
      %v2787 = vmul.f32 %v2765, %v683
      %v2788 = vmul.f32 %v2768, %v683
      %v2789 = vmul.f32 %v2771, %v683
      %v2790 = vmul.f32 %v2774, %v683
      %v2791 = vmul.f32 %v2777, %v683
      %v2792 = vmul.f32 %v2780, %v683
      %v2793 = vmul.f32 %v2783, %v683
      %v2794 = vmul.f32 %v2786, %v683
      %v2795 = vadd.f32 %v2787, 1e-06
      %v2796 = vadd.f32 %v2788, 1e-06
      %v2797 = vadd.f32 %v2789, 1e-06
      %v2798 = vadd.f32 %v2790, 1e-06
      %v2799 = vadd.f32 %v2791, 1e-06
      %v2800 = vadd.f32 %v2792, 1e-06
      %v2801 = vadd.f32 %v2793, 1e-06
      %v2802 = vadd.f32 %v2794, 1e-06
      %v2803 = vrsqrt.pop %v2795
      %v2804 = vrsqrt.pop %v2796
      %v2805 = vrsqrt.pop %v2797
      %v2806 = vrsqrt.pop %v2798
      %v2807 = vrsqrt.pop %v2799
      %v2808 = vrsqrt.pop %v2800
      %v2809 = vrsqrt.pop %v2801
      %v2810 = vrsqrt.pop %v2802
      %v2811 = vmul.f32 %v2747, %v2803
      %v2812 = vmul.f32 %v2748, %v2804
      %v2813 = vmul.f32 %v2749, %v2805
      %v2814 = vmul.f32 %v2750, %v2806
      %v2815 = vmul.f32 %v2751, %v2807
      %v2816 = vmul.f32 %v2752, %v2808
      %v2817 = vmul.f32 %v2753, %v2809
      %v2818 = vmul.f32 %v2754, %v2810
      %v2820 = vlaneseq
      %v2821 = vshrl.u32 %v2820, 7
      %v2822 = vsub.s32 0, %v2821
      %v2823 = vrot.slane %v2713, %v2822
      %v2825 = vmul.f32 %v2811, %v2823
      %v2826 = vmul.f32 %v2812, %v2823
      %v2827 = vmul.f32 %v2813, %v2823
      %v2828 = vmul.f32 %v2814, %v2823
      %v2829 = vmul.f32 %v2815, %v2823
      %v2830 = vmul.f32 %v2816, %v2823
      %v2831 = vmul.f32 %v2817, %v2823
      %v2832 = vmul.f32 %v2818, %v2823
      %v2834 = vlaneseq
      %v2835 = vshrl.u32 %v2834, 7
      %v2836 = vsub.s32 0, %v2835
      %v2837 = vrot.slane %v2714, %v2836
      %v2839 = vadd.f32 %v2825, %v2837
      %v2840 = vadd.f32 %v2826, %v2837
      %v2841 = vadd.f32 %v2827, %v2837
      %v2842 = vadd.f32 %v2828, %v2837
      %v2843 = vadd.f32 %v2829, %v2837
      %v2844 = vadd.f32 %v2830, %v2837
      %v2845 = vadd.f32 %v2831, %v2837
      %v2846 = vadd.f32 %v2832, %v2837
      %v2847 = vpack.c.bf16 %v2840, %v2839
      %v2848 = vpack.c.bf16 %v2842, %v2841
      %v2849 = vpack.c.bf16 %v2844, %v2843
      %v2850 = vpack.c.bf16 %v2846, %v2845
      %v2851 = vld [vmem:[%s11] sm:$0xf]
      %v2852 = vld [vmem:[%s11 + $0x4] sm:$0xf]
      %v2853 = vld [vmem:[%s11 + $0x8] sm:$0xf]
      %v2854 = vld [vmem:[%s11 + $0xc] sm:$0xf]
      %v2855 = vld [vmem:[%s12] sm:$0x1]
      %v2857 = vlaneseq
      %v2858 = vshrl.u32 %v2857, 7
      %v2859 = vsub.s32 0, %v2858
      %v2860 = vrot.slane %v2855, %v2859
      %v2866 = vunpack.c.l.b16 %v2851
      %v2867 = vunpack.c.l.b16 %v2852
      %v2868 = vunpack.c.l.b16 %v2853
      %v2869 = vunpack.c.l.b16 %v2854
      %v2870 = vpack.c.b16 %v2867, %v2866
      %v2871 = vpack.c.b16 %v2869, %v2868
      %v2875 = vsel %vm658, %v2847, 0
      %v2878 = vsel %vm658, %v2848, 0
      %v2881 = vsel %vm658, %v2849, 0
      %v2884 = vsel %vm658, %v2850, 0
      %2886 = vmatprep.subr.bf16.mxu0 0
      %2887 = vmatpush1.bf16.msra.mxu0 %v2870
      %2888 = vmatprep.subr.bf16.mxu0 0
      %2889 = vmatpush1.bf16.msra.mxu0 %v2871
      %2890 = vmatprep.subr.bf16.mxu0 0
      %2891 = vmatpush1.bf16.msra.mxu0 0
      %2892 = vmatprep.subr.bf16.mxu0 0
      %2893 = vmatpush1.bf16.msra.mxu0 0
      %2894 = vmatprep.subr.bf16.mxu0 0
      %2895 = vmatpush1.bf16.msra.mxu0 0
      %2896 = vmatprep.subr.bf16.mxu0 0
      %2897 = vmatpush1.bf16.msra.mxu0 0
      %2898 = vmatprep.subr.bf16.mxu0 0
      %2899 = vmatpush1.bf16.msra.mxu0 0
      %2900 = vmatprep.subr.bf16.mxu0 0
      %2901 = vmatpush1.bf16.msra.mxu0 0
      %2902 = vmatprep.subr.bf16.mxu0 0
      %2903 = vmatpush1.bf16.msra.mxu0 0
      %2904 = vmatprep.subr.bf16.mxu0 0
      %2905 = vmatpush1.bf16.msra.mxu0 0
      %2906 = vmatprep.subr.bf16.mxu0 0
      %2907 = vmatpush1.bf16.msra.mxu0 0
      %2908 = vmatprep.subr.bf16.mxu0 0
      %2909 = vmatpush1.bf16.msra.mxu0 0
      %2910 = vmatprep.subr.bf16.mxu0 0
      %2911 = vmatpush1.bf16.msra.mxu0 0
      %2912 = vmatprep.subr.bf16.mxu0 0
      %2913 = vmatpush1.bf16.msra.mxu0 0
      %2914 = vmatprep.subr.bf16.mxu0 0
      %2915 = vmatpush1.bf16.msra.mxu0 0
      %2916 = vmatprep.subr.bf16.mxu0 0
      %2917 = vmatpush1.bf16.msra.mxu0 0
      %2918 = vmatprep.mubr.bf16.mxu0 0
      %2919 = vmatmul.mubr.bf16.gmra.mrb[0].mxu0 %v2875
      %v2920 = vpop.f32.mrb[0].mxu0
      %v2921 = vadd.f32 %v2860, %v2920
      %v2922 = vpop.f32.mrb[0].mxu0
      %v2923 = vpop.f32.mrb[0].mxu0
      %v2924 = vadd.f32 %v2860, %v2923
      %v2925 = vpop.f32.mrb[0].mxu0
      %2926 = vmatprep.mubr.bf16.mxu0 0
      %2927 = vmatmul.mubr.bf16.gmra.mrb[0].mxu0 %v2878
      %v2928 = vpop.f32.mrb[0].mxu0
      %v2929 = vadd.f32 %v2860, %v2928
      %v2930 = vpop.f32.mrb[0].mxu0
      %v2931 = vpop.f32.mrb[0].mxu0
      %v2932 = vadd.f32 %v2860, %v2931
      %v2933 = vpop.f32.mrb[0].mxu0
      %2934 = vmatprep.mubr.bf16.mxu0 0
      %2935 = vmatmul.mubr.bf16.gmra.mrb[0].mxu0 %v2881
      %v2936 = vpop.f32.mrb[0].mxu0
      %v2937 = vadd.f32 %v2860, %v2936
      %v2938 = vpop.f32.mrb[0].mxu0
      %v2939 = vpop.f32.mrb[0].mxu0
      %v2940 = vadd.f32 %v2860, %v2939
      %v2941 = vpop.f32.mrb[0].mxu0
      %2942 = vmatprep.mubr.bf16.mxu0 0
      %2943 = vmatmul.mubr.bf16.gmra.mrb[0].mxu0 %v2884
      %v2944 = vpop.f32.mrb[0].mxu0
      %v2945 = vadd.f32 %v2860, %v2944
      %v2946 = vpop.f32.mrb[0].mxu0
      %v2947 = vpop.f32.mrb[0].mxu0
      %v2948 = vadd.f32 %v2860, %v2947
      %v2949 = vpop.f32.mrb[0].mxu0
      %2950 = vdwg.mxu0
      %v2951 = vmul.f32 %v2921, %v2921
      %v2952 = vmul.f32 %v2924, %v2924
      %v2953 = vmul.f32 %v2929, %v2929
      %v2954 = vmul.f32 %v2932, %v2932
      %v2955 = vmul.f32 %v2937, %v2937
      %v2956 = vmul.f32 %v2940, %v2940
      %v2957 = vmul.f32 %v2945, %v2945
      %v2958 = vmul.f32 %v2948, %v2948
      %v2959 = vmul.f32 %v2921, %v2951
      %v2960 = vmul.f32 %v2924, %v2952
      %v2961 = vmul.f32 %v2929, %v2953
      %v2962 = vmul.f32 %v2932, %v2954
      %v2963 = vmul.f32 %v2937, %v2955
      %v2964 = vmul.f32 %v2940, %v2956
      %v2965 = vmul.f32 %v2945, %v2957
      %v2966 = vmul.f32 %v2948, %v2958
      %v2967 = vmul.f32 %v2959, 0.044715
      %v2968 = vmul.f32 %v2960, 0.044715
      %v2969 = vmul.f32 %v2961, 0.044715
      %v2970 = vmul.f32 %v2962, 0.044715
      %v2971 = vmul.f32 %v2963, 0.044715
      %v2972 = vmul.f32 %v2964, 0.044715
      %v2973 = vmul.f32 %v2965, 0.044715
      %v2974 = vmul.f32 %v2966, 0.044715
      %v2975 = vadd.f32 %v2921, %v2967
      %v2976 = vadd.f32 %v2924, %v2968
      %v2977 = vadd.f32 %v2929, %v2969
      %v2978 = vadd.f32 %v2932, %v2970
      %v2979 = vadd.f32 %v2937, %v2971
      %v2980 = vadd.f32 %v2940, %v2972
      %v2981 = vadd.f32 %v2945, %v2973
      %v2982 = vadd.f32 %v2948, %v2974
      %v2983 = vmul.f32 %v2975, 0.7978846
      %v2984 = vmul.f32 %v2976, 0.7978846
      %v2985 = vmul.f32 %v2977, 0.7978846
      %v2986 = vmul.f32 %v2978, 0.7978846
      %v2987 = vmul.f32 %v2979, 0.7978846
      %v2988 = vmul.f32 %v2980, 0.7978846
      %v2989 = vmul.f32 %v2981, 0.7978846
      %v2990 = vmul.f32 %v2982, 0.7978846
      %v2991 = vtanh.pop %v2983
      %v2992 = vtanh.pop %v2984
      %v2993 = vtanh.pop %v2985
      %v2994 = vtanh.pop %v2986
      %v2995 = vtanh.pop %v2987
      %v2996 = vtanh.pop %v2988
      %v2997 = vtanh.pop %v2989
      %v2998 = vtanh.pop %v2990
      %v2999 = vadd.f32 %v2991, 1.0
      %v3000 = vadd.f32 %v2992, 1.0
      %v3001 = vadd.f32 %v2993, 1.0
      %v3002 = vadd.f32 %v2994, 1.0
      %v3003 = vadd.f32 %v2995, 1.0
      %v3004 = vadd.f32 %v2996, 1.0
      %v3005 = vadd.f32 %v2997, 1.0
      %v3006 = vadd.f32 %v2998, 1.0
      %v3007 = vmul.f32 %v2999, 0.5
      %v3008 = vmul.f32 %v3000, 0.5
      %v3009 = vmul.f32 %v3001, 0.5
      %v3010 = vmul.f32 %v3002, 0.5
      %v3011 = vmul.f32 %v3003, 0.5
      %v3012 = vmul.f32 %v3004, 0.5
      %v3013 = vmul.f32 %v3005, 0.5
      %v3014 = vmul.f32 %v3006, 0.5
      %v3015 = vmul.f32 %v2921, %v3007
      %v3016 = vmul.f32 %v2924, %v3008
      %v3017 = vmul.f32 %v2929, %v3009
      %v3018 = vmul.f32 %v2932, %v3010
      %v3019 = vmul.f32 %v2937, %v3011
      %v3020 = vmul.f32 %v2940, %v3012
      %v3021 = vmul.f32 %v2945, %v3013
      %v3022 = vmul.f32 %v2948, %v3014
      %v3023 = vpack.c.bf16 %v3016, %v3015
      %v3024 = vpack.c.bf16 %v3018, %v3017
      %v3025 = vpack.c.bf16 %v3020, %v3019
      %v3026 = vpack.c.bf16 %v3022, %v3021
      %v3027 = vld [vmem:[%s13] sm:$0xf]
      %v3028 = vld [vmem:[%s13 + $0x4] sm:$0xf]
      %v3029 = vld [vmem:[%s13 + $0x8] sm:$0xf]
      %v3030 = vld [vmem:[%s13 + $0xc] sm:$0xf]
      %v3031 = vld [vmem:[%s13 + $0x10] sm:$0xf]
      %v3032 = vld [vmem:[%s13 + $0x14] sm:$0xf]
      %v3033 = vld [vmem:[%s13 + $0x18] sm:$0xf]
      %v3034 = vld [vmem:[%s13 + $0x1c] sm:$0xf]
      %v3035 = vld [vmem:[%s13 + $0x20] sm:$0xf]
      %v3036 = vld [vmem:[%s13 + $0x24] sm:$0xf]
      %v3037 = vld [vmem:[%s13 + $0x28] sm:$0xf]
      %v3038 = vld [vmem:[%s13 + $0x2c] sm:$0xf]
      %v3039 = vld [vmem:[%s13 + $0x30] sm:$0xf]
      %v3040 = vld [vmem:[%s13 + $0x34] sm:$0xf]
      %v3041 = vld [vmem:[%s13 + $0x38] sm:$0xf]
      %v3042 = vld [vmem:[%s13 + $0x3c] sm:$0xf]
      %v3059 = vunpack.c.l.b16 %v3027
      %v3060 = vunpack.c.l.b16 %v3028
      %v3061 = vunpack.c.l.b16 %v3029
      %v3062 = vunpack.c.l.b16 %v3030
      %v3063 = vunpack.c.l.b16 %v3031
      %v3064 = vunpack.c.l.b16 %v3032
      %v3065 = vunpack.c.l.b16 %v3033
      %v3066 = vunpack.c.l.b16 %v3034
      %v3067 = vunpack.c.l.b16 %v3035
      %v3068 = vunpack.c.l.b16 %v3036
      %v3069 = vunpack.c.l.b16 %v3037
      %v3070 = vunpack.c.l.b16 %v3038
      %v3071 = vunpack.c.l.b16 %v3039
      %v3072 = vunpack.c.l.b16 %v3040
      %v3073 = vunpack.c.l.b16 %v3041
      %v3074 = vunpack.c.l.b16 %v3042
      %v3075 = vpack.c.b16 %v3060, %v3059
      %v3076 = vpack.c.b16 %v3062, %v3061
      %v3077 = vpack.c.b16 %v3064, %v3063
      %v3078 = vpack.c.b16 %v3066, %v3065
      %v3079 = vpack.c.b16 %v3068, %v3067
      %v3080 = vpack.c.b16 %v3070, %v3069
      %v3081 = vpack.c.b16 %v3072, %v3071
      %v3082 = vpack.c.b16 %v3074, %v3073
      %3091 = vmatprep.subr.bf16.mxu0 0
      %3092 = vmatpush1.bf16.msra.mxu0 %v3075
      %3093 = vmatprep.subr.bf16.mxu0 0
      %3094 = vmatpush1.bf16.msra.mxu0 %v3076
      %3095 = vmatprep.subr.bf16.mxu0 0
      %3096 = vmatpush1.bf16.msra.mxu0 %v3077
      %3097 = vmatprep.subr.bf16.mxu0 0
      %3098 = vmatpush1.bf16.msra.mxu0 %v3078
      %3099 = vmatprep.subr.bf16.mxu0 0
      %3100 = vmatpush1.bf16.msra.mxu0 %v3079
      %3101 = vmatprep.subr.bf16.mxu0 0
      %3102 = vmatpush1.bf16.msra.mxu0 %v3080
      %3103 = vmatprep.subr.bf16.mxu0 0
      %3104 = vmatpush1.bf16.msra.mxu0 %v3081
      %3105 = vmatprep.subr.bf16.mxu0 0
      %3106 = vmatpush1.bf16.msra.mxu0 %v3082
      %3107 = vmatprep.subr.bf16.mxu0 0
      %3108 = vmatpush1.bf16.msra.mxu0 0
      %3109 = vmatprep.subr.bf16.mxu0 0
      %3110 = vmatpush1.bf16.msra.mxu0 0
      %3111 = vmatprep.subr.bf16.mxu0 0
      %3112 = vmatpush1.bf16.msra.mxu0 0
      %3113 = vmatprep.subr.bf16.mxu0 0
      %3114 = vmatpush1.bf16.msra.mxu0 0
      %3115 = vmatprep.subr.bf16.mxu0 0
      %3116 = vmatpush1.bf16.msra.mxu0 0
      %3117 = vmatprep.subr.bf16.mxu0 0
      %3118 = vmatpush1.bf16.msra.mxu0 0
      %3119 = vmatprep.subr.bf16.mxu0 0
      %3120 = vmatpush1.bf16.msra.mxu0 0
      %3121 = vmatprep.subr.bf16.mxu0 0
      %3122 = vmatpush1.bf16.msra.mxu0 0
      %3123 = vmatprep.mubr.bf16.mxu0 0
      %3124 = vmatmul.mubr.bf16.gmra.mrb[0].mxu0 %v3023
      %v3125 = vpop.f32.mrb[0].mxu0
      %v3126 = vadd.f32 0.0, %v3125
      %v3127 = vpop.f32.mrb[0].mxu0
      %v3128 = vpop.f32.mrb[0].mxu0
      %v3129 = vadd.f32 0.0, %v3128
      %v3130 = vpop.f32.mrb[0].mxu0
      %3131 = vmatprep.mubr.bf16.mxu0 0
      %3132 = vmatmul.mubr.bf16.gmra.mrb[0].mxu0 %v3024
      %v3133 = vpop.f32.mrb[0].mxu0
      %v3134 = vadd.f32 0.0, %v3133
      %v3135 = vpop.f32.mrb[0].mxu0
      %v3136 = vpop.f32.mrb[0].mxu0
      %v3137 = vadd.f32 0.0, %v3136
      %v3138 = vpop.f32.mrb[0].mxu0
      %3139 = vmatprep.mubr.bf16.mxu0 0
      %3140 = vmatmul.mubr.bf16.gmra.mrb[0].mxu0 %v3025
      %v3141 = vpop.f32.mrb[0].mxu0
      %v3142 = vadd.f32 0.0, %v3141
      %v3143 = vpop.f32.mrb[0].mxu0
      %v3144 = vpop.f32.mrb[0].mxu0
      %v3145 = vadd.f32 0.0, %v3144
      %v3146 = vpop.f32.mrb[0].mxu0
      %3147 = vmatprep.mubr.bf16.mxu0 0
      %3148 = vmatmul.mubr.bf16.gmra.mrb[0].mxu0 %v3026
      %v3149 = vpop.f32.mrb[0].mxu0
      %v3150 = vadd.f32 0.0, %v3149
      %v3151 = vpop.f32.mrb[0].mxu0
      %v3152 = vpop.f32.mrb[0].mxu0
      %v3153 = vadd.f32 0.0, %v3152
      %v3154 = vpop.f32.mrb[0].mxu0
      %3155 = vdwg.mxu0
      %v3156 = vadd.f32 %v2705, %v3126
      %v3157 = vadd.f32 %v2706, %v3129
      %v3158 = vadd.f32 %v2707, %v3134
      %v3159 = vadd.f32 %v2708, %v3137
      %v3160 = vadd.f32 %v2709, %v3142
      %v3161 = vadd.f32 %v2710, %v3145
      %v3162 = vadd.f32 %v2711, %v3150
      %v3163 = vadd.f32 %v2712, %v3153
      %v3164 = vld [vmem:[%s14] sm:$0x1]
      %v3166 = vlaneseq
      %v3167 = vshrl.u32 %v3166, 7
      %v3168 = vsub.s32 0, %v3167
      %v3169 = vrot.slane %v3164, %v3168
      %v3171 = vadd.f32 %v3156, %v3169
      %v3172 = vadd.f32 %v3157, %v3169
      %v3173 = vadd.f32 %v3158, %v3169
      %v3174 = vadd.f32 %v3159, %v3169
      %v3175 = vadd.f32 %v3160, %v3169
      %v3176 = vadd.f32 %v3161, %v3169
      %v3177 = vadd.f32 %v3162, %v3169
      %v3178 = vadd.f32 %v3163, %v3169
      %s3179 = scalar_lea.vmem %s3, 1
      %v3180 = vld [vmem:[%s3179] sm:$0x1]
      %s3181 = scalar_lea.vmem %s4, 1
      %v3182 = vld [vmem:[%s3181] sm:$0x1]
      %v3183 = vsel %vm658, %v3171, 0.0
      %3184 = vadd.xlane.f32.xlu0 %v3183
      %v3185 = vpop.xlane.xlu0 %3184
      %v3186 = vsel %vm658, %v3172, 0.0
      %3187 = vadd.xlane.f32.xlu0 %v3186
      %v3188 = vpop.xlane.xlu0 %3187
      %v3189 = vsel %vm658, %v3173, 0.0
      %3190 = vadd.xlane.f32.xlu0 %v3189
      %v3191 = vpop.xlane.xlu0 %3190
      %v3192 = vsel %vm658, %v3174, 0.0
      %3193 = vadd.xlane.f32.xlu0 %v3192
      %v3194 = vpop.xlane.xlu0 %3193
      %v3195 = vsel %vm658, %v3175, 0.0
      %3196 = vadd.xlane.f32.xlu0 %v3195
      %v3197 = vpop.xlane.xlu0 %3196
      %v3198 = vsel %vm658, %v3176, 0.0
      %3199 = vadd.xlane.f32.xlu0 %v3198
      %v3200 = vpop.xlane.xlu0 %3199
      %v3201 = vsel %vm658, %v3177, 0.0
      %3202 = vadd.xlane.f32.xlu0 %v3201
      %v3203 = vpop.xlane.xlu0 %3202
      %v3204 = vsel %vm658, %v3178, 0.0
      %3205 = vadd.xlane.f32.xlu0 %v3204
      %v3206 = vpop.xlane.xlu0 %3205
      %v3207 = vmul.f32 %v3185, %v683
      %v3208 = vmul.f32 %v3188, %v683
      %v3209 = vmul.f32 %v3191, %v683
      %v3210 = vmul.f32 %v3194, %v683
      %v3211 = vmul.f32 %v3197, %v683
      %v3212 = vmul.f32 %v3200, %v683
      %v3213 = vmul.f32 %v3203, %v683
      %v3214 = vmul.f32 %v3206, %v683
      %v3215 = vsub.f32 %v3171, %v3207
      %v3216 = vsub.f32 %v3172, %v3208
      %v3217 = vsub.f32 %v3173, %v3209
      %v3218 = vsub.f32 %v3174, %v3210
      %v3219 = vsub.f32 %v3175, %v3211
      %v3220 = vsub.f32 %v3176, %v3212
      %v3221 = vsub.f32 %v3177, %v3213
      %v3222 = vsub.f32 %v3178, %v3214
      %v3223 = vmul.f32 %v3215, %v3215
      %v3224 = vmul.f32 %v3216, %v3216
      %v3225 = vmul.f32 %v3217, %v3217
      %v3226 = vmul.f32 %v3218, %v3218
      %v3227 = vmul.f32 %v3219, %v3219
      %v3228 = vmul.f32 %v3220, %v3220
      %v3229 = vmul.f32 %v3221, %v3221
      %v3230 = vmul.f32 %v3222, %v3222
      %v3231 = vsel %vm658, %v3223, 0.0
      %3232 = vadd.xlane.f32.xlu0 %v3231
      %v3233 = vpop.xlane.xlu0 %3232
      %v3234 = vsel %vm658, %v3224, 0.0
      %3235 = vadd.xlane.f32.xlu0 %v3234
      %v3236 = vpop.xlane.xlu0 %3235
      %v3237 = vsel %vm658, %v3225, 0.0
      %3238 = vadd.xlane.f32.xlu0 %v3237
      %v3239 = vpop.xlane.xlu0 %3238
      %v3240 = vsel %vm658, %v3226, 0.0
      %3241 = vadd.xlane.f32.xlu0 %v3240
      %v3242 = vpop.xlane.xlu0 %3241
      %v3243 = vsel %vm658, %v3227, 0.0
      %3244 = vadd.xlane.f32.xlu0 %v3243
      %v3245 = vpop.xlane.xlu0 %3244
      %v3246 = vsel %vm658, %v3228, 0.0
      %3247 = vadd.xlane.f32.xlu0 %v3246
      %v3248 = vpop.xlane.xlu0 %3247
      %v3249 = vsel %vm658, %v3229, 0.0
      %3250 = vadd.xlane.f32.xlu0 %v3249
      %v3251 = vpop.xlane.xlu0 %3250
      %v3252 = vsel %vm658, %v3230, 0.0
      %3253 = vadd.xlane.f32.xlu0 %v3252
      %v3254 = vpop.xlane.xlu0 %3253
      %v3255 = vmul.f32 %v3233, %v683
      %v3256 = vmul.f32 %v3236, %v683
      %v3257 = vmul.f32 %v3239, %v683
      %v3258 = vmul.f32 %v3242, %v683
      %v3259 = vmul.f32 %v3245, %v683
      %v3260 = vmul.f32 %v3248, %v683
      %v3261 = vmul.f32 %v3251, %v683
      %v3262 = vmul.f32 %v3254, %v683
      %v3263 = vadd.f32 %v3255, 1e-06
      %v3264 = vadd.f32 %v3256, 1e-06
      %v3265 = vadd.f32 %v3257, 1e-06
      %v3266 = vadd.f32 %v3258, 1e-06
      %v3267 = vadd.f32 %v3259, 1e-06
      %v3268 = vadd.f32 %v3260, 1e-06
      %v3269 = vadd.f32 %v3261, 1e-06
      %v3270 = vadd.f32 %v3262, 1e-06
      %v3271 = vrsqrt.pop %v3263
      %v3272 = vrsqrt.pop %v3264
      %v3273 = vrsqrt.pop %v3265
      %v3274 = vrsqrt.pop %v3266
      %v3275 = vrsqrt.pop %v3267
      %v3276 = vrsqrt.pop %v3268
      %v3277 = vrsqrt.pop %v3269
      %v3278 = vrsqrt.pop %v3270
      %v3279 = vmul.f32 %v3215, %v3271
      %v3280 = vmul.f32 %v3216, %v3272
      %v3281 = vmul.f32 %v3217, %v3273
      %v3282 = vmul.f32 %v3218, %v3274
      %v3283 = vmul.f32 %v3219, %v3275
      %v3284 = vmul.f32 %v3220, %v3276
      %v3285 = vmul.f32 %v3221, %v3277
      %v3286 = vmul.f32 %v3222, %v3278
      %v3288 = vlaneseq
      %v3289 = vshrl.u32 %v3288, 7
      %v3290 = vsub.s32 0, %v3289
      %v3291 = vrot.slane %v3180, %v3290
      %v3293 = vmul.f32 %v3279, %v3291
      %v3294 = vmul.f32 %v3280, %v3291
      %v3295 = vmul.f32 %v3281, %v3291
      %v3296 = vmul.f32 %v3282, %v3291
      %v3297 = vmul.f32 %v3283, %v3291
      %v3298 = vmul.f32 %v3284, %v3291
      %v3299 = vmul.f32 %v3285, %v3291
      %v3300 = vmul.f32 %v3286, %v3291
      %v3302 = vlaneseq
      %v3303 = vshrl.u32 %v3302, 7
      %v3304 = vsub.s32 0, %v3303
      %v3305 = vrot.slane %v3182, %v3304
      %v3307 = vadd.f32 %v3293, %v3305
      %v3308 = vadd.f32 %v3294, %v3305
      %v3309 = vadd.f32 %v3295, %v3305
      %v3310 = vadd.f32 %v3296, %v3305
      %v3311 = vadd.f32 %v3297, %v3305
      %v3312 = vadd.f32 %v3298, %v3305
      %v3313 = vadd.f32 %v3299, %v3305
      %v3314 = vadd.f32 %v3300, %v3305
      %v3315 = vpack.c.bf16 %v3308, %v3307
      %v3316 = vpack.c.bf16 %v3310, %v3309
      %v3317 = vpack.c.bf16 %v3312, %v3311
      %v3318 = vpack.c.bf16 %v3314, %v3313
      %s3319 = scalar_lea.vmem %s5, 64
      %v3320 = vld [vmem:[%s3319] sm:$0xf]
      %v3321 = vld [vmem:[%s3319 + $0x4] sm:$0xf]
      %v3322 = vld [vmem:[%s3319 + $0x8] sm:$0xf]
      %v3323 = vld [vmem:[%s3319 + $0xc] sm:$0xf]
      %s3324 = scalar_lea.vmem %s7, 64
      %v3325 = vld [vmem:[%s3324] sm:$0xf]
      %v3326 = vld [vmem:[%s3324 + $0x4] sm:$0xf]
      %v3327 = vld [vmem:[%s3324 + $0x8] sm:$0xf]
      %v3328 = vld [vmem:[%s3324 + $0xc] sm:$0xf]
      %s3329 = scalar_lea.vmem %s6, 4
      %v3330 = vld [vmem:[%s3329] sm:$0x1]
      %v3335 = vunpack.c.l.b16 %v3320
      %v3336 = vunpack.c.l.b16 %v3321
      %v3337 = vunpack.c.l.b16 %v3322
      %v3338 = vunpack.c.l.b16 %v3323
      %v3339 = vpack.c.b16 %v3336, %v3335
      %v3340 = vpack.c.b16 %v3338, %v3337
      %v3344 = vsel %vm658, %v3315, 0
      %v3347 = vsel %vm658, %v3316, 0
      %v3350 = vsel %vm658, %v3317, 0
      %v3353 = vsel %vm658, %v3318, 0
      %3355 = vmatprep.subr.bf16.mxu0 0
      %3356 = vmatpush1.bf16.msra.mxu0 %v3339
      %3357 = vmatprep.subr.bf16.mxu0 0
      %3358 = vmatpush1.bf16.msra.mxu0 %v3340
      %3359 = vmatprep.subr.bf16.mxu0 0
      %3360 = vmatpush1.bf16.msra.mxu0 0
      %3361 = vmatprep.subr.bf16.mxu0 0
      %3362 = vmatpush1.bf16.msra.mxu0 0
      %3363 = vmatprep.subr.bf16.mxu0 0
      %3364 = vmatpush1.bf16.msra.mxu0 0
      %3365 = vmatprep.subr.bf16.mxu0 0
      %3366 = vmatpush1.bf16.msra.mxu0 0
      %3367 = vmatprep.subr.bf16.mxu0 0
      %3368 = vmatpush1.bf16.msra.mxu0 0
      %3369 = vmatprep.subr.bf16.mxu0 0
      %3370 = vmatpush1.bf16.msra.mxu0 0
      %3371 = vmatprep.subr.bf16.mxu0 0
      %3372 = vmatpush1.bf16.msra.mxu0 0
      %3373 = vmatprep.subr.bf16.mxu0 0
      %3374 = vmatpush1.bf16.msra.mxu0 0
      %3375 = vmatprep.subr.bf16.mxu0 0
      %3376 = vmatpush1.bf16.msra.mxu0 0
      %3377 = vmatprep.subr.bf16.mxu0 0
      %3378 = vmatpush1.bf16.msra.mxu0 0
      %3379 = vmatprep.subr.bf16.mxu0 0
      %3380 = vmatpush1.bf16.msra.mxu0 0
      %3381 = vmatprep.subr.bf16.mxu0 0
      %3382 = vmatpush1.bf16.msra.mxu0 0
      %3383 = vmatprep.subr.bf16.mxu0 0
      %3384 = vmatpush1.bf16.msra.mxu0 0
      %3385 = vmatprep.subr.bf16.mxu0 0
      %3386 = vmatpush1.bf16.msra.mxu0 0
      %3387 = vmatprep.mubr.bf16.mxu0 0
      %3388 = vmatmul.mubr.bf16.gmra.mrb[0].mxu0 %v3344
      %v3389 = vpop.f32.mrb[0].mxu0
      %v3390 = vadd.f32 0.0, %v3389
      %v3391 = vpop.f32.mrb[0].mxu0
      %v3392 = vpop.f32.mrb[0].mxu0
      %v3393 = vadd.f32 0.0, %v3392
      %v3394 = vpop.f32.mrb[0].mxu0
      %3395 = vmatprep.mubr.bf16.mxu0 0
      %3396 = vmatmul.mubr.bf16.gmra.mrb[0].mxu0 %v3347
      %v3397 = vpop.f32.mrb[0].mxu0
      %v3398 = vadd.f32 0.0, %v3397
      %v3399 = vpop.f32.mrb[0].mxu0
      %v3400 = vpop.f32.mrb[0].mxu0
      %v3401 = vadd.f32 0.0, %v3400
      %v3402 = vpop.f32.mrb[0].mxu0
      %3403 = vmatprep.mubr.bf16.mxu0 0
      %3404 = vmatmul.mubr.bf16.gmra.mrb[0].mxu0 %v3350
      %v3405 = vpop.f32.mrb[0].mxu0
      %v3406 = vadd.f32 0.0, %v3405
      %v3407 = vpop.f32.mrb[0].mxu0
      %v3408 = vpop.f32.mrb[0].mxu0
      %v3409 = vadd.f32 0.0, %v3408
      %v3410 = vpop.f32.mrb[0].mxu0
      %3411 = vmatprep.mubr.bf16.mxu0 0
      %3412 = vmatmul.mubr.bf16.gmra.mrb[0].mxu0 %v3353
      %v3413 = vpop.f32.mrb[0].mxu0
      %v3414 = vadd.f32 0.0, %v3413
      %v3415 = vpop.f32.mrb[0].mxu0
      %v3416 = vpop.f32.mrb[0].mxu0
      %v3417 = vadd.f32 0.0, %v3416
      %v3418 = vpop.f32.mrb[0].mxu0
      %3419 = vdwg.mxu0
      %v3420 = vpack.c.bf16 %v3393, %v3390
      %v3421 = vpack.c.bf16 %v3401, %v3398
      %v3422 = vpack.c.bf16 %v3409, %v3406
      %v3423 = vpack.c.bf16 %v3417, %v3414
      %v3425 = vsel %vm658, %v3330, 0
      %3427 = vmatprep.subr.bf16.mxu0 0
      %3428 = vmatpush1.bf16.xpose.msra.mxu0 %v3344
      %3429 = vmatprep.subr.bf16.mxu0 0
      %3430 = vmatpush1.bf16.xpose.msra.mxu0 %v3347
      %3431 = vmatprep.subr.bf16.mxu0 0
      %3432 = vmatpush1.bf16.xpose.msra.mxu0 %v3350
      %3433 = vmatprep.subr.bf16.mxu0 0
      %3434 = vmatpush1.bf16.xpose.msra.mxu0 %v3353
      %3435 = vmatprep.subr.bf16.mxu0 0
      %3436 = vmatpush1.bf16.xpose.msra.mxu0 0
      %3437 = vmatprep.subr.bf16.mxu0 0
      %3438 = vmatpush1.bf16.xpose.msra.mxu0 0
      %3439 = vmatprep.subr.bf16.mxu0 0
      %3440 = vmatpush1.bf16.xpose.msra.mxu0 0
      %3441 = vmatprep.subr.bf16.mxu0 0
      %3442 = vmatpush1.bf16.xpose.msra.mxu0 0
      %3443 = vmatprep.subr.bf16.mxu0 0
      %3444 = vmatpush1.bf16.xpose.msra.mxu0 0
      %3445 = vmatprep.subr.bf16.mxu0 0
      %3446 = vmatpush1.bf16.xpose.msra.mxu0 0
      %3447 = vmatprep.subr.bf16.mxu0 0
      %3448 = vmatpush1.bf16.xpose.msra.mxu0 0
      %3449 = vmatprep.subr.bf16.mxu0 0
      %3450 = vmatpush1.bf16.xpose.msra.mxu0 0
      %3451 = vmatprep.subr.bf16.mxu0 0
      %3452 = vmatpush1.bf16.xpose.msra.mxu0 0
      %3453 = vmatprep.subr.bf16.mxu0 0
      %3454 = vmatpush1.bf16.xpose.msra.mxu0 0
      %3455 = vmatprep.subr.bf16.mxu0 0
      %3456 = vmatpush1.bf16.xpose.msra.mxu0 0
      %3457 = vmatprep.subr.bf16.mxu0 0
      %3458 = vmatpush1.bf16.xpose.msra.mxu0 0
      %3459 = vmatprep.mubr.bf16.mxu0 0
      %3460 = vmatmul.mubr.bf16.gmra.mrb[0].mxu0 %v3425
      %v3461 = vpop.f32.mrb[0].mxu0
      %v3462 = vadd.f32 0.0, %v3461
      %v3463 = vpop.f32.mrb[0].mxu0
      %v3464 = vpop.f32.mrb[0].mxu0
      %v3465 = vpop.f32.mrb[0].mxu0
      %3466 = vdwg.mxu0
      %v3467 = vlaneseq
      %v3468 = vshrl.u32 %v3467, 7
      %v3469 = vsub.s32 0, %v3468
      %v3470 = vrot.slane %v3462, %v3469
      %v3472 = vsel %vm658, %v3420, 0
      %v3475 = vsel %vm658, %v3421, 0
      %v3478 = vsel %vm658, %v3422, 0
      %v3481 = vsel %vm658, %v3423, 0
      %3483 = vmatprep.subr.bf16.mxu0 0
      %3484 = vmatpush1.bf16.xpose.msra.mxu0 %v3344
      %3485 = vmatprep.subr.bf16.mxu0 0
      %3486 = vmatpush1.bf16.xpose.msra.mxu0 %v3347
      %3487 = vmatprep.subr.bf16.mxu0 0
      %3488 = vmatpush1.bf16.xpose.msra.mxu0 %v3350
      %3489 = vmatprep.subr.bf16.mxu0 0
      %3490 = vmatpush1.bf16.xpose.msra.mxu0 %v3353
      %3491 = vmatprep.subr.bf16.mxu0 0
      %3492 = vmatpush1.bf16.xpose.msra.mxu0 0
      %3493 = vmatprep.subr.bf16.mxu0 0
      %3494 = vmatpush1.bf16.xpose.msra.mxu0 0
      %3495 = vmatprep.subr.bf16.mxu0 0
      %3496 = vmatpush1.bf16.xpose.msra.mxu0 0
      %3497 = vmatprep.subr.bf16.mxu0 0
      %3498 = vmatpush1.bf16.xpose.msra.mxu0 0
      %3499 = vmatprep.subr.bf16.mxu0 0
      %3500 = vmatpush1.bf16.xpose.msra.mxu0 0
      %3501 = vmatprep.subr.bf16.mxu0 0
      %3502 = vmatpush1.bf16.xpose.msra.mxu0 0
      %3503 = vmatprep.subr.bf16.mxu0 0
      %3504 = vmatpush1.bf16.xpose.msra.mxu0 0
      %3505 = vmatprep.subr.bf16.mxu0 0
      %3506 = vmatpush1.bf16.xpose.msra.mxu0 0
      %3507 = vmatprep.subr.bf16.mxu0 0
      %3508 = vmatpush1.bf16.xpose.msra.mxu0 0
      %3509 = vmatprep.subr.bf16.mxu0 0
      %3510 = vmatpush1.bf16.xpose.msra.mxu0 0
      %3511 = vmatprep.subr.bf16.mxu0 0
      %3512 = vmatpush1.bf16.xpose.msra.mxu0 0
      %3513 = vmatprep.subr.bf16.mxu0 0
      %3514 = vmatpush1.bf16.xpose.msra.mxu0 0
      %3515 = vmatprep.mubr.bf16.mxu0 0
      %3516 = vmatmul.mubr.bf16.gmra.mrb[0].mxu0 %v3472
      %v3517 = vpop.f32.mrb[0].mxu0
      %v3518 = vadd.f32 %v3470, %v3517
      %v3519 = vpop.f32.mrb[0].mxu0
      %v3520 = vpop.f32.mrb[0].mxu0
      %v3521 = vadd.f32 %v3470, %v3520
      %v3522 = vpop.f32.mrb[0].mxu0
      %3523 = vmatprep.mubr.bf16.mxu0 0
      %3524 = vmatmul.mubr.bf16.gmra.mrb[0].mxu0 %v3475
      %v3525 = vpop.f32.mrb[0].mxu0
      %v3526 = vadd.f32 %v3470, %v3525
      %v3527 = vpop.f32.mrb[0].mxu0
      %v3528 = vpop.f32.mrb[0].mxu0
      %v3529 = vadd.f32 %v3470, %v3528
      %v3530 = vpop.f32.mrb[0].mxu0
      %3531 = vmatprep.mubr.bf16.mxu0 0
      %3532 = vmatmul.mubr.bf16.gmra.mrb[0].mxu0 %v3478
      %v3533 = vpop.f32.mrb[0].mxu0
      %v3534 = vadd.f32 %v3470, %v3533
      %v3535 = vpop.f32.mrb[0].mxu0
      %v3536 = vpop.f32.mrb[0].mxu0
      %v3537 = vadd.f32 %v3470, %v3536
      %v3538 = vpop.f32.mrb[0].mxu0
      %3539 = vmatprep.mubr.bf16.mxu0 0
      %3540 = vmatmul.mubr.bf16.gmra.mrb[0].mxu0 %v3481
      %v3541 = vpop.f32.mrb[0].mxu0
      %v3542 = vadd.f32 %v3470, %v3541
      %v3543 = vpop.f32.mrb[0].mxu0
      %v3544 = vpop.f32.mrb[0].mxu0
      %v3545 = vadd.f32 %v3470, %v3544
      %v3546 = vpop.f32.mrb[0].mxu0
      %3547 = vdwg.mxu0
      %v3548 = vsel %vm1022, %v3518, -inf
      %3549 = vmax.xlane.f32.xlu0 %v3548
      %v3550 = vpop.xlane.xlu0 %3549
      %v3551 = vsel %vm1022, %v3521, -inf
      %3552 = vmax.xlane.f32.xlu0 %v3551
      %v3553 = vpop.xlane.xlu0 %3552
      %v3554 = vsel %vm1022, %v3526, -inf
      %3555 = vmax.xlane.f32.xlu0 %v3554
      %v3556 = vpop.xlane.xlu0 %3555
      %v3557 = vsel %vm1022, %v3529, -inf
      %3558 = vmax.xlane.f32.xlu0 %v3557
      %v3559 = vpop.xlane.xlu0 %3558
      %v3560 = vsel %vm1022, %v3534, -inf
      %3561 = vmax.xlane.f32.xlu0 %v3560
      %v3562 = vpop.xlane.xlu0 %3561
      %v3563 = vsel %vm1022, %v3537, -inf
      %3564 = vmax.xlane.f32.xlu0 %v3563
      %v3565 = vpop.xlane.xlu0 %3564
      %v3566 = vsel %vm1022, %v3542, -inf
      %3567 = vmax.xlane.f32.xlu0 %v3566
      %v3568 = vpop.xlane.xlu0 %3567
      %v3569 = vsel %vm1022, %v3545, -inf
      %3570 = vmax.xlane.f32.xlu0 %v3569
      %v3571 = vpop.xlane.xlu0 %3570
      %v3572 = vsub.f32 %v3518, %v3550
      %v3573 = vsub.f32 %v3521, %v3553
      %v3574 = vsub.f32 %v3526, %v3556
      %v3575 = vsub.f32 %v3529, %v3559
      %v3576 = vsub.f32 %v3534, %v3562
      %v3577 = vsub.f32 %v3537, %v3565
      %v3578 = vsub.f32 %v3542, %v3568
      %v3579 = vsub.f32 %v3545, %v3571
      %v3580 = vmul.f32 %v3572, 1.442695
      %v3581 = vpow.pop %v3580
      %v3582 = vmul.f32 %v3573, 1.442695
      %v3583 = vpow.pop %v3582
      %v3584 = vmul.f32 %v3574, 1.442695
      %v3585 = vpow.pop %v3584
      %v3586 = vmul.f32 %v3575, 1.442695
      %v3587 = vpow.pop %v3586
      %v3588 = vmul.f32 %v3576, 1.442695
      %v3589 = vpow.pop %v3588
      %v3590 = vmul.f32 %v3577, 1.442695
      %v3591 = vpow.pop %v3590
      %v3592 = vmul.f32 %v3578, 1.442695
      %v3593 = vpow.pop %v3592
      %v3594 = vmul.f32 %v3579, 1.442695
      %v3595 = vpow.pop %v3594
      %v3596 = vsel %vm1022, %v3581, 0.0
      %3597 = vadd.xlane.f32.xlu0 %v3596
      %v3598 = vpop.xlane.xlu0 %3597
      %v3599 = vsel %vm1022, %v3583, 0.0
      %3600 = vadd.xlane.f32.xlu0 %v3599
      %v3601 = vpop.xlane.xlu0 %3600
      %v3602 = vsel %vm1022, %v3585, 0.0
      %3603 = vadd.xlane.f32.xlu0 %v3602
      %v3604 = vpop.xlane.xlu0 %3603
      %v3605 = vsel %vm1022, %v3587, 0.0
      %3606 = vadd.xlane.f32.xlu0 %v3605
      %v3607 = vpop.xlane.xlu0 %3606
      %v3608 = vsel %vm1022, %v3589, 0.0
      %3609 = vadd.xlane.f32.xlu0 %v3608
      %v3610 = vpop.xlane.xlu0 %3609
      %v3611 = vsel %vm1022, %v3591, 0.0
      %3612 = vadd.xlane.f32.xlu0 %v3611
      %v3613 = vpop.xlane.xlu0 %3612
      %v3614 = vsel %vm1022, %v3593, 0.0
      %3615 = vadd.xlane.f32.xlu0 %v3614
      %v3616 = vpop.xlane.xlu0 %3615
      %v3617 = vsel %vm1022, %v3595, 0.0
      %3618 = vadd.xlane.f32.xlu0 %v3617
      %v3619 = vpop.xlane.xlu0 %3618
      %v3620 = vrcp.pop %v3598
      %v3621 = vmul.f32 %v3581, %v3620
      %v3622 = vrcp.pop %v3601
      %v3623 = vmul.f32 %v3583, %v3622
      %v3624 = vrcp.pop %v3604
      %v3625 = vmul.f32 %v3585, %v3624
      %v3626 = vrcp.pop %v3607
      %v3627 = vmul.f32 %v3587, %v3626
      %v3628 = vrcp.pop %v3610
      %v3629 = vmul.f32 %v3589, %v3628
      %v3630 = vrcp.pop %v3613
      %v3631 = vmul.f32 %v3591, %v3630
      %v3632 = vrcp.pop %v3616
      %v3633 = vmul.f32 %v3593, %v3632
      %v3634 = vrcp.pop %v3619
      %v3635 = vmul.f32 %v3595, %v3634
      %v3640 = vunpack.c.l.b16 %v3325
      %v3641 = vunpack.c.l.b16 %v3326
      %v3642 = vunpack.c.l.b16 %v3327
      %v3643 = vunpack.c.l.b16 %v3328
      %v3644 = vpack.c.b16 %v3641, %v3640
      %v3645 = vpack.c.b16 %v3643, %v3642
      %3648 = vmatprep.subr.bf16.mxu0 0
      %3649 = vmatpush1.bf16.msra.mxu0 %v3644
      %3650 = vmatprep.subr.bf16.mxu0 0
      %3651 = vmatpush1.bf16.msra.mxu0 %v3645
      %3652 = vmatprep.subr.bf16.mxu0 0
      %3653 = vmatpush1.bf16.msra.mxu0 0
      %3654 = vmatprep.subr.bf16.mxu0 0
      %3655 = vmatpush1.bf16.msra.mxu0 0
      %3656 = vmatprep.subr.bf16.mxu0 0
      %3657 = vmatpush1.bf16.msra.mxu0 0
      %3658 = vmatprep.subr.bf16.mxu0 0
      %3659 = vmatpush1.bf16.msra.mxu0 0
      %3660 = vmatprep.subr.bf16.mxu0 0
      %3661 = vmatpush1.bf16.msra.mxu0 0
      %3662 = vmatprep.subr.bf16.mxu0 0
      %3663 = vmatpush1.bf16.msra.mxu0 0
      %3664 = vmatprep.subr.bf16.mxu0 0
      %3665 = vmatpush1.bf16.msra.mxu0 0
      %3666 = vmatprep.subr.bf16.mxu0 0
      %3667 = vmatpush1.bf16.msra.mxu0 0
      %3668 = vmatprep.subr.bf16.mxu0 0
      %3669 = vmatpush1.bf16.msra.mxu0 0
      %3670 = vmatprep.subr.bf16.mxu0 0
      %3671 = vmatpush1.bf16.msra.mxu0 0
      %3672 = vmatprep.subr.bf16.mxu0 0
      %3673 = vmatpush1.bf16.msra.mxu0 0
      %3674 = vmatprep.subr.bf16.mxu0 0
      %3675 = vmatpush1.bf16.msra.mxu0 0
      %3676 = vmatprep.subr.bf16.mxu0 0
      %3677 = vmatpush1.bf16.msra.mxu0 0
      %3678 = vmatprep.subr.bf16.mxu0 0
      %3679 = vmatpush1.bf16.msra.mxu0 0
      %3680 = vmatprep.mubr.bf16.mxu0 0
      %3681 = vmatmul.mubr.bf16.gmra.mrb[0].mxu0 %v3344
      %v3682 = vpop.f32.mrb[0].mxu0
      %v3683 = vadd.f32 0.0, %v3682
      %v3684 = vpop.f32.mrb[0].mxu0
      %v3685 = vpop.f32.mrb[0].mxu0
      %v3686 = vadd.f32 0.0, %v3685
      %v3687 = vpop.f32.mrb[0].mxu0
      %3688 = vmatprep.mubr.bf16.mxu0 0
      %3689 = vmatmul.mubr.bf16.gmra.mrb[0].mxu0 %v3347
      %v3690 = vpop.f32.mrb[0].mxu0
      %v3691 = vadd.f32 0.0, %v3690
      %v3692 = vpop.f32.mrb[0].mxu0
      %v3693 = vpop.f32.mrb[0].mxu0
      %v3694 = vadd.f32 0.0, %v3693
      %v3695 = vpop.f32.mrb[0].mxu0
      %3696 = vmatprep.mubr.bf16.mxu0 0
      %3697 = vmatmul.mubr.bf16.gmra.mrb[0].mxu0 %v3350
      %v3698 = vpop.f32.mrb[0].mxu0
      %v3699 = vadd.f32 0.0, %v3698
      %v3700 = vpop.f32.mrb[0].mxu0
      %v3701 = vpop.f32.mrb[0].mxu0
      %v3702 = vadd.f32 0.0, %v3701
      %v3703 = vpop.f32.mrb[0].mxu0
      %3704 = vmatprep.mubr.bf16.mxu0 0
      %3705 = vmatmul.mubr.bf16.gmra.mrb[0].mxu0 %v3353
      %v3706 = vpop.f32.mrb[0].mxu0
      %v3707 = vadd.f32 0.0, %v3706
      %v3708 = vpop.f32.mrb[0].mxu0
      %v3709 = vpop.f32.mrb[0].mxu0
      %v3710 = vadd.f32 0.0, %v3709
      %v3711 = vpop.f32.mrb[0].mxu0
      %3712 = vdwg.mxu0
      %v3713 = vpack.c.bf16 %v3623, %v3621
      %v3714 = vpack.c.bf16 %v3627, %v3625
      %v3715 = vpack.c.bf16 %v3631, %v3629
      %v3716 = vpack.c.bf16 %v3635, %v3633
      %v3717 = vpack.c.bf16 %v3686, %v3683
      %v3718 = vpack.c.bf16 %v3694, %v3691
      %v3719 = vpack.c.bf16 %v3702, %v3699
      %v3720 = vpack.c.bf16 %v3710, %v3707
      %s3721 = scalar_lea.vmem %s5, 80
      %v3722 = vld [vmem:[%s3721] sm:$0xf]
      %v3723 = vld [vmem:[%s3721 + $0x4] sm:$0xf]
      %v3724 = vld [vmem:[%s3721 + $0x8] sm:$0xf]
      %v3725 = vld [vmem:[%s3721 + $0xc] sm:$0xf]
      %s3726 = scalar_lea.vmem %s7, 80
      %v3727 = vld [vmem:[%s3726] sm:$0xf]
      %v3728 = vld [vmem:[%s3726 + $0x4] sm:$0xf]
      %v3729 = vld [vmem:[%s3726 + $0x8] sm:$0xf]
      %v3730 = vld [vmem:[%s3726 + $0xc] sm:$0xf]
      %s3731 = scalar_lea.vmem %s6, 5
      %v3732 = vld [vmem:[%s3731] sm:$0x1]
      %v3737 = vunpack.c.l.b16 %v3722
      %v3738 = vunpack.c.l.b16 %v3723
      %v3739 = vunpack.c.l.b16 %v3724
      %v3740 = vunpack.c.l.b16 %v3725
      %v3741 = vpack.c.b16 %v3738, %v3737
      %v3742 = vpack.c.b16 %v3740, %v3739
      %3745 = vmatprep.subr.bf16.mxu0 0
      %3746 = vmatpush1.bf16.msra.mxu0 %v3741
      %3747 = vmatprep.subr.bf16.mxu0 0
      %3748 = vmatpush1.bf16.msra.mxu0 %v3742
      %3749 = vmatprep.subr.bf16.mxu0 0
      %3750 = vmatpush1.bf16.msra.mxu0 0
      %3751 = vmatprep.subr.bf16.mxu0 0
      %3752 = vmatpush1.bf16.msra.mxu0 0
      %3753 = vmatprep.subr.bf16.mxu0 0
      %3754 = vmatpush1.bf16.msra.mxu0 0
      %3755 = vmatprep.subr.bf16.mxu0 0
      %3756 = vmatpush1.bf16.msra.mxu0 0
      %3757 = vmatprep.subr.bf16.mxu0 0
      %3758 = vmatpush1.bf16.msra.mxu0 0
      %3759 = vmatprep.subr.bf16.mxu0 0
      %3760 = vmatpush1.bf16.msra.mxu0 0
      %3761 = vmatprep.subr.bf16.mxu0 0
      %3762 = vmatpush1.bf16.msra.mxu0 0
      %3763 = vmatprep.subr.bf16.mxu0 0
      %3764 = vmatpush1.bf16.msra.mxu0 0
      %3765 = vmatprep.subr.bf16.mxu0 0
      %3766 = vmatpush1.bf16.msra.mxu0 0
      %3767 = vmatprep.subr.bf16.mxu0 0
      %3768 = vmatpush1.bf16.msra.mxu0 0
      %3769 = vmatprep.subr.bf16.mxu0 0
      %3770 = vmatpush1.bf16.msra.mxu0 0
      %3771 = vmatprep.subr.bf16.mxu0 0
      %3772 = vmatpush1.bf16.msra.mxu0 0
      %3773 = vmatprep.subr.bf16.mxu0 0
      %3774 = vmatpush1.bf16.msra.mxu0 0
      %3775 = vmatprep.subr.bf16.mxu0 0
      %3776 = vmatpush1.bf16.msra.mxu0 0
      %3777 = vmatprep.mubr.bf16.mxu0 0
      %3778 = vmatmul.mubr.bf16.gmra.mrb[0].mxu0 %v3344
      %v3779 = vpop.f32.mrb[0].mxu0
      %v3780 = vadd.f32 0.0, %v3779
      %v3781 = vpop.f32.mrb[0].mxu0
      %v3782 = vpop.f32.mrb[0].mxu0
      %v3783 = vadd.f32 0.0, %v3782
      %v3784 = vpop.f32.mrb[0].mxu0
      %3785 = vmatprep.mubr.bf16.mxu0 0
      %3786 = vmatmul.mubr.bf16.gmra.mrb[0].mxu0 %v3347
      %v3787 = vpop.f32.mrb[0].mxu0
      %v3788 = vadd.f32 0.0, %v3787
      %v3789 = vpop.f32.mrb[0].mxu0
      %v3790 = vpop.f32.mrb[0].mxu0
      %v3791 = vadd.f32 0.0, %v3790
      %v3792 = vpop.f32.mrb[0].mxu0
      %3793 = vmatprep.mubr.bf16.mxu0 0
      %3794 = vmatmul.mubr.bf16.gmra.mrb[0].mxu0 %v3350
      %v3795 = vpop.f32.mrb[0].mxu0
      %v3796 = vadd.f32 0.0, %v3795
      %v3797 = vpop.f32.mrb[0].mxu0
      %v3798 = vpop.f32.mrb[0].mxu0
      %v3799 = vadd.f32 0.0, %v3798
      %v3800 = vpop.f32.mrb[0].mxu0
      %3801 = vmatprep.mubr.bf16.mxu0 0
      %3802 = vmatmul.mubr.bf16.gmra.mrb[0].mxu0 %v3353
      %v3803 = vpop.f32.mrb[0].mxu0
      %v3804 = vadd.f32 0.0, %v3803
      %v3805 = vpop.f32.mrb[0].mxu0
      %v3806 = vpop.f32.mrb[0].mxu0
      %v3807 = vadd.f32 0.0, %v3806
      %v3808 = vpop.f32.mrb[0].mxu0
      %3809 = vdwg.mxu0
      %v3810 = vpack.c.bf16 %v3783, %v3780
      %v3811 = vpack.c.bf16 %v3791, %v3788
      %v3812 = vpack.c.bf16 %v3799, %v3796
      %v3813 = vpack.c.bf16 %v3807, %v3804
      %v3815 = vsel %vm658, %v3732, 0
      %3817 = vmatprep.subr.bf16.mxu0 0
      %3818 = vmatpush1.bf16.xpose.msra.mxu0 %v3344
      %3819 = vmatprep.subr.bf16.mxu0 0
      %3820 = vmatpush1.bf16.xpose.msra.mxu0 %v3347
      %3821 = vmatprep.subr.bf16.mxu0 0
      %3822 = vmatpush1.bf16.xpose.msra.mxu0 %v3350
      %3823 = vmatprep.subr.bf16.mxu0 0
      %3824 = vmatpush1.bf16.xpose.msra.mxu0 %v3353
      %3825 = vmatprep.subr.bf16.mxu0 0
      %3826 = vmatpush1.bf16.xpose.msra.mxu0 0
      %3827 = vmatprep.subr.bf16.mxu0 0
      %3828 = vmatpush1.bf16.xpose.msra.mxu0 0
      %3829 = vmatprep.subr.bf16.mxu0 0
      %3830 = vmatpush1.bf16.xpose.msra.mxu0 0
      %3831 = vmatprep.subr.bf16.mxu0 0
      %3832 = vmatpush1.bf16.xpose.msra.mxu0 0
      %3833 = vmatprep.subr.bf16.mxu0 0
      %3834 = vmatpush1.bf16.xpose.msra.mxu0 0
      %3835 = vmatprep.subr.bf16.mxu0 0
      %3836 = vmatpush1.bf16.xpose.msra.mxu0 0
      %3837 = vmatprep.subr.bf16.mxu0 0
      %3838 = vmatpush1.bf16.xpose.msra.mxu0 0
      %3839 = vmatprep.subr.bf16.mxu0 0
      %3840 = vmatpush1.bf16.xpose.msra.mxu0 0
      %3841 = vmatprep.subr.bf16.mxu0 0
      %3842 = vmatpush1.bf16.xpose.msra.mxu0 0
      %3843 = vmatprep.subr.bf16.mxu0 0
      %3844 = vmatpush1.bf16.xpose.msra.mxu0 0
      %3845 = vmatprep.subr.bf16.mxu0 0
      %3846 = vmatpush1.bf16.xpose.msra.mxu0 0
      %3847 = vmatprep.subr.bf16.mxu0 0
      %3848 = vmatpush1.bf16.xpose.msra.mxu0 0
      %3849 = vmatprep.mubr.bf16.mxu0 0
      %3850 = vmatmul.mubr.bf16.gmra.mrb[0].mxu0 %v3815
      %v3851 = vpop.f32.mrb[0].mxu0
      %v3852 = vadd.f32 0.0, %v3851
      %v3853 = vpop.f32.mrb[0].mxu0
      %v3854 = vpop.f32.mrb[0].mxu0
      %v3855 = vpop.f32.mrb[0].mxu0
      %3856 = vdwg.mxu0
      %v3857 = vlaneseq
      %v3858 = vshrl.u32 %v3857, 7
      %v3859 = vsub.s32 0, %v3858
      %v3860 = vrot.slane %v3852, %v3859
      %v3862 = vsel %vm658, %v3810, 0
      %v3865 = vsel %vm658, %v3811, 0
      %v3868 = vsel %vm658, %v3812, 0
      %v3871 = vsel %vm658, %v3813, 0
      %3873 = vmatprep.subr.bf16.mxu0 0
      %3874 = vmatpush1.bf16.xpose.msra.mxu0 %v3344
      %3875 = vmatprep.subr.bf16.mxu0 0
      %3876 = vmatpush1.bf16.xpose.msra.mxu0 %v3347
      %3877 = vmatprep.subr.bf16.mxu0 0
      %3878 = vmatpush1.bf16.xpose.msra.mxu0 %v3350
      %3879 = vmatprep.subr.bf16.mxu0 0
      %3880 = vmatpush1.bf16.xpose.msra.mxu0 %v3353
      %3881 = vmatprep.subr.bf16.mxu0 0
      %3882 = vmatpush1.bf16.xpose.msra.mxu0 0
      %3883 = vmatprep.subr.bf16.mxu0 0
      %3884 = vmatpush1.bf16.xpose.msra.mxu0 0
      %3885 = vmatprep.subr.bf16.mxu0 0
      %3886 = vmatpush1.bf16.xpose.msra.mxu0 0
      %3887 = vmatprep.subr.bf16.mxu0 0
      %3888 = vmatpush1.bf16.xpose.msra.mxu0 0
      %3889 = vmatprep.subr.bf16.mxu0 0
      %3890 = vmatpush1.bf16.xpose.msra.mxu0 0
      %3891 = vmatprep.subr.bf16.mxu0 0
      %3892 = vmatpush1.bf16.xpose.msra.mxu0 0
      %3893 = vmatprep.subr.bf16.mxu0 0
      %3894 = vmatpush1.bf16.xpose.msra.mxu0 0
      %3895 = vmatprep.subr.bf16.mxu0 0
      %3896 = vmatpush1.bf16.xpose.msra.mxu0 0
      %3897 = vmatprep.subr.bf16.mxu0 0
      %3898 = vmatpush1.bf16.xpose.msra.mxu0 0
      %3899 = vmatprep.subr.bf16.mxu0 0
      %3900 = vmatpush1.bf16.xpose.msra.mxu0 0
      %3901 = vmatprep.subr.bf16.mxu0 0
      %3902 = vmatpush1.bf16.xpose.msra.mxu0 0
      %3903 = vmatprep.subr.bf16.mxu0 0
      %3904 = vmatpush1.bf16.xpose.msra.mxu0 0
      %3905 = vmatprep.mubr.bf16.mxu0 0
      %3906 = vmatmul.mubr.bf16.gmra.mrb[0].mxu0 %v3862
      %v3907 = vpop.f32.mrb[0].mxu0
      %v3908 = vadd.f32 %v3860, %v3907
      %v3909 = vpop.f32.mrb[0].mxu0
      %v3910 = vpop.f32.mrb[0].mxu0
      %v3911 = vadd.f32 %v3860, %v3910
      %v3912 = vpop.f32.mrb[0].mxu0
      %3913 = vmatprep.mubr.bf16.mxu0 0
      %3914 = vmatmul.mubr.bf16.gmra.mrb[0].mxu0 %v3865
      %v3915 = vpop.f32.mrb[0].mxu0
      %v3916 = vadd.f32 %v3860, %v3915
      %v3917 = vpop.f32.mrb[0].mxu0
      %v3918 = vpop.f32.mrb[0].mxu0
      %v3919 = vadd.f32 %v3860, %v3918
      %v3920 = vpop.f32.mrb[0].mxu0
      %3921 = vmatprep.mubr.bf16.mxu0 0
      %3922 = vmatmul.mubr.bf16.gmra.mrb[0].mxu0 %v3868
      %v3923 = vpop.f32.mrb[0].mxu0
      %v3924 = vadd.f32 %v3860, %v3923
      %v3925 = vpop.f32.mrb[0].mxu0
      %v3926 = vpop.f32.mrb[0].mxu0
      %v3927 = vadd.f32 %v3860, %v3926
      %v3928 = vpop.f32.mrb[0].mxu0
      %3929 = vmatprep.mubr.bf16.mxu0 0
      %3930 = vmatmul.mubr.bf16.gmra.mrb[0].mxu0 %v3871
      %v3931 = vpop.f32.mrb[0].mxu0
      %v3932 = vadd.f32 %v3860, %v3931
      %v3933 = vpop.f32.mrb[0].mxu0
      %v3934 = vpop.f32.mrb[0].mxu0
      %v3935 = vadd.f32 %v3860, %v3934
      %v3936 = vpop.f32.mrb[0].mxu0
      %3937 = vdwg.mxu0
      %v3938 = vsel %vm1022, %v3908, -inf
      %3939 = vmax.xlane.f32.xlu0 %v3938
      %v3940 = vpop.xlane.xlu0 %3939
      %v3941 = vsel %vm1022, %v3911, -inf
      %3942 = vmax.xlane.f32.xlu0 %v3941
      %v3943 = vpop.xlane.xlu0 %3942
      %v3944 = vsel %vm1022, %v3916, -inf
      %3945 = vmax.xlane.f32.xlu0 %v3944
      %v3946 = vpop.xlane.xlu0 %3945
      %v3947 = vsel %vm1022, %v3919, -inf
      %3948 = vmax.xlane.f32.xlu0 %v3947
      %v3949 = vpop.xlane.xlu0 %3948
      %v3950 = vsel %vm1022, %v3924, -inf
      %3951 = vmax.xlane.f32.xlu0 %v3950
      %v3952 = vpop.xlane.xlu0 %3951
      %v3953 = vsel %vm1022, %v3927, -inf
      %3954 = vmax.xlane.f32.xlu0 %v3953
      %v3955 = vpop.xlane.xlu0 %3954
      %v3956 = vsel %vm1022, %v3932, -inf
      %3957 = vmax.xlane.f32.xlu0 %v3956
      %v3958 = vpop.xlane.xlu0 %3957
      %v3959 = vsel %vm1022, %v3935, -inf
      %3960 = vmax.xlane.f32.xlu0 %v3959
      %v3961 = vpop.xlane.xlu0 %3960
      %v3962 = vsub.f32 %v3908, %v3940
      %v3963 = vsub.f32 %v3911, %v3943
      %v3964 = vsub.f32 %v3916, %v3946
      %v3965 = vsub.f32 %v3919, %v3949
      %v3966 = vsub.f32 %v3924, %v3952
      %v3967 = vsub.f32 %v3927, %v3955
      %v3968 = vsub.f32 %v3932, %v3958
      %v3969 = vsub.f32 %v3935, %v3961
      %v3970 = vmul.f32 %v3962, 1.442695
      %v3971 = vpow.pop %v3970
      %v3972 = vmul.f32 %v3963, 1.442695
      %v3973 = vpow.pop %v3972
      %v3974 = vmul.f32 %v3964, 1.442695
      %v3975 = vpow.pop %v3974
      %v3976 = vmul.f32 %v3965, 1.442695
      %v3977 = vpow.pop %v3976
      %v3978 = vmul.f32 %v3966, 1.442695
      %v3979 = vpow.pop %v3978
      %v3980 = vmul.f32 %v3967, 1.442695
      %v3981 = vpow.pop %v3980
      %v3982 = vmul.f32 %v3968, 1.442695
      %v3983 = vpow.pop %v3982
      %v3984 = vmul.f32 %v3969, 1.442695
      %v3985 = vpow.pop %v3984
      %v3986 = vsel %vm1022, %v3971, 0.0
      %3987 = vadd.xlane.f32.xlu0 %v3986
      %v3988 = vpop.xlane.xlu0 %3987
      %v3989 = vsel %vm1022, %v3973, 0.0
      %3990 = vadd.xlane.f32.xlu0 %v3989
      %v3991 = vpop.xlane.xlu0 %3990
      %v3992 = vsel %vm1022, %v3975, 0.0
      %3993 = vadd.xlane.f32.xlu0 %v3992
      %v3994 = vpop.xlane.xlu0 %3993
      %v3995 = vsel %vm1022, %v3977, 0.0
      %3996 = vadd.xlane.f32.xlu0 %v3995
      %v3997 = vpop.xlane.xlu0 %3996
      %v3998 = vsel %vm1022, %v3979, 0.0
      %3999 = vadd.xlane.f32.xlu0 %v3998
      %v4000 = vpop.xlane.xlu0 %3999
      %v4001 = vsel %vm1022, %v3981, 0.0
      %4002 = vadd.xlane.f32.xlu0 %v4001
      %v4003 = vpop.xlane.xlu0 %4002
      %v4004 = vsel %vm1022, %v3983, 0.0
      %4005 = vadd.xlane.f32.xlu0 %v4004
      %v4006 = vpop.xlane.xlu0 %4005
      %v4007 = vsel %vm1022, %v3985, 0.0
      %4008 = vadd.xlane.f32.xlu0 %v4007
      %v4009 = vpop.xlane.xlu0 %4008
      %v4010 = vrcp.pop %v3988
      %v4011 = vmul.f32 %v3971, %v4010
      %v4012 = vrcp.pop %v3991
      %v4013 = vmul.f32 %v3973, %v4012
      %v4014 = vrcp.pop %v3994
      %v4015 = vmul.f32 %v3975, %v4014
      %v4016 = vrcp.pop %v3997
      %v4017 = vmul.f32 %v3977, %v4016
      %v4018 = vrcp.pop %v4000
      %v4019 = vmul.f32 %v3979, %v4018
      %v4020 = vrcp.pop %v4003
      %v4021 = vmul.f32 %v3981, %v4020
      %v4022 = vrcp.pop %v4006
      %v4023 = vmul.f32 %v3983, %v4022
      %v4024 = vrcp.pop %v4009
      %v4025 = vmul.f32 %v3985, %v4024
      %v4030 = vunpack.c.l.b16 %v3727
      %v4031 = vunpack.c.l.b16 %v3728
      %v4032 = vunpack.c.l.b16 %v3729
      %v4033 = vunpack.c.l.b16 %v3730
      %v4034 = vpack.c.b16 %v4031, %v4030
      %v4035 = vpack.c.b16 %v4033, %v4032
      %4038 = vmatprep.subr.bf16.mxu0 0
      %4039 = vmatpush1.bf16.msra.mxu0 %v4034
      %4040 = vmatprep.subr.bf16.mxu0 0
      %4041 = vmatpush1.bf16.msra.mxu0 %v4035
      %4042 = vmatprep.subr.bf16.mxu0 0
      %4043 = vmatpush1.bf16.msra.mxu0 0
      %4044 = vmatprep.subr.bf16.mxu0 0
      %4045 = vmatpush1.bf16.msra.mxu0 0
      %4046 = vmatprep.subr.bf16.mxu0 0
      %4047 = vmatpush1.bf16.msra.mxu0 0
      %4048 = vmatprep.subr.bf16.mxu0 0
      %4049 = vmatpush1.bf16.msra.mxu0 0
      %4050 = vmatprep.subr.bf16.mxu0 0
      %4051 = vmatpush1.bf16.msra.mxu0 0
      %4052 = vmatprep.subr.bf16.mxu0 0
      %4053 = vmatpush1.bf16.msra.mxu0 0
      %4054 = vmatprep.subr.bf16.mxu0 0
      %4055 = vmatpush1.bf16.msra.mxu0 0
      %4056 = vmatprep.subr.bf16.mxu0 0
      %4057 = vmatpush1.bf16.msra.mxu0 0
      %4058 = vmatprep.subr.bf16.mxu0 0
      %4059 = vmatpush1.bf16.msra.mxu0 0
      %4060 = vmatprep.subr.bf16.mxu0 0
      %4061 = vmatpush1.bf16.msra.mxu0 0
      %4062 = vmatprep.subr.bf16.mxu0 0
      %4063 = vmatpush1.bf16.msra.mxu0 0
      %4064 = vmatprep.subr.bf16.mxu0 0
      %4065 = vmatpush1.bf16.msra.mxu0 0
      %4066 = vmatprep.subr.bf16.mxu0 0
      %4067 = vmatpush1.bf16.msra.mxu0 0
      %4068 = vmatprep.subr.bf16.mxu0 0
      %4069 = vmatpush1.bf16.msra.mxu0 0
      %4070 = vmatprep.mubr.bf16.mxu0 0
      %4071 = vmatmul.mubr.bf16.gmra.mrb[0].mxu0 %v3344
      %v4072 = vpop.f32.mrb[0].mxu0
      %v4073 = vadd.f32 0.0, %v4072
      %v4074 = vpop.f32.mrb[0].mxu0
      %v4075 = vpop.f32.mrb[0].mxu0
      %v4076 = vadd.f32 0.0, %v4075
      %v4077 = vpop.f32.mrb[0].mxu0
      %4078 = vmatprep.mubr.bf16.mxu0 0
      %4079 = vmatmul.mubr.bf16.gmra.mrb[0].mxu0 %v3347
      %v4080 = vpop.f32.mrb[0].mxu0
      %v4081 = vadd.f32 0.0, %v4080
      %v4082 = vpop.f32.mrb[0].mxu0
      %v4083 = vpop.f32.mrb[0].mxu0
      %v4084 = vadd.f32 0.0, %v4083
      %v4085 = vpop.f32.mrb[0].mxu0
      %4086 = vmatprep.mubr.bf16.mxu0 0
      %4087 = vmatmul.mubr.bf16.gmra.mrb[0].mxu0 %v3350
      %v4088 = vpop.f32.mrb[0].mxu0
      %v4089 = vadd.f32 0.0, %v4088
      %v4090 = vpop.f32.mrb[0].mxu0
      %v4091 = vpop.f32.mrb[0].mxu0
      %v4092 = vadd.f32 0.0, %v4091
      %v4093 = vpop.f32.mrb[0].mxu0
      %4094 = vmatprep.mubr.bf16.mxu0 0
      %4095 = vmatmul.mubr.bf16.gmra.mrb[0].mxu0 %v3353
      %v4096 = vpop.f32.mrb[0].mxu0
      %v4097 = vadd.f32 0.0, %v4096
      %v4098 = vpop.f32.mrb[0].mxu0
      %v4099 = vpop.f32.mrb[0].mxu0
      %v4100 = vadd.f32 0.0, %v4099
      %v4101 = vpop.f32.mrb[0].mxu0
      %4102 = vdwg.mxu0
      %v4103 = vpack.c.bf16 %v4013, %v4011
      %v4104 = vpack.c.bf16 %v4017, %v4015
      %v4105 = vpack.c.bf16 %v4021, %v4019
      %v4106 = vpack.c.bf16 %v4025, %v4023
      %v4107 = vpack.c.bf16 %v4076, %v4073
      %v4108 = vpack.c.bf16 %v4084, %v4081
      %v4109 = vpack.c.bf16 %v4092, %v4089
      %v4110 = vpack.c.bf16 %v4100, %v4097
      %v4112 = vsel %vm1022, %v4103, 0
      %v4115 = vsel %vm1022, %v4104, 0
      %v4118 = vsel %vm1022, %v4105, 0
      %v4121 = vsel %vm1022, %v4106, 0
      %4123 = vmatprep.subr.bf16.mxu0 0
      %4124 = vmatpush1.bf16.msra.mxu0 %v4107
      %4125 = vmatprep.subr.bf16.mxu0 0
      %4126 = vmatpush1.bf16.msra.mxu0 %v4108
      %4127 = vmatprep.subr.bf16.mxu0 0
      %4128 = vmatpush1.bf16.msra.mxu0 %v4109
      %4129 = vmatprep.subr.bf16.mxu0 0
      %4130 = vmatpush1.bf16.msra.mxu0 %v4110
      %4131 = vmatprep.subr.bf16.mxu0 0
      %4132 = vmatpush1.bf16.msra.mxu0 0
      %4133 = vmatprep.subr.bf16.mxu0 0
      %4134 = vmatpush1.bf16.msra.mxu0 0
      %4135 = vmatprep.subr.bf16.mxu0 0
      %4136 = vmatpush1.bf16.msra.mxu0 0
      %4137 = vmatprep.subr.bf16.mxu0 0
      %4138 = vmatpush1.bf16.msra.mxu0 0
      %4139 = vmatprep.subr.bf16.mxu0 0
      %4140 = vmatpush1.bf16.msra.mxu0 0
      %4141 = vmatprep.subr.bf16.mxu0 0
      %4142 = vmatpush1.bf16.msra.mxu0 0
      %4143 = vmatprep.subr.bf16.mxu0 0
      %4144 = vmatpush1.bf16.msra.mxu0 0
      %4145 = vmatprep.subr.bf16.mxu0 0
      %4146 = vmatpush1.bf16.msra.mxu0 0
      %4147 = vmatprep.subr.bf16.mxu0 0
      %4148 = vmatpush1.bf16.msra.mxu0 0
      %4149 = vmatprep.subr.bf16.mxu0 0
      %4150 = vmatpush1.bf16.msra.mxu0 0
      %4151 = vmatprep.subr.bf16.mxu0 0
      %4152 = vmatpush1.bf16.msra.mxu0 0
      %4153 = vmatprep.subr.bf16.mxu0 0
      %4154 = vmatpush1.bf16.msra.mxu0 0
      %4155 = vmatprep.mubr.bf16.mxu0 0
      %4156 = vmatmul.mubr.bf16.gmra.mrb[0].mxu0 %v4112
      %v4157 = vpop.f32.mrb[0].mxu0
      %v4158 = vadd.f32 0.0, %v4157
      %v4159 = vpop.f32.mrb[0].mxu0
      %v4160 = vpop.f32.mrb[0].mxu0
      %v4161 = vadd.f32 0.0, %v4160
      %v4162 = vpop.f32.mrb[0].mxu0
      %4163 = vmatprep.mubr.bf16.mxu0 0
      %4164 = vmatmul.mubr.bf16.gmra.mrb[0].mxu0 %v4115
      %v4165 = vpop.f32.mrb[0].mxu0
      %v4166 = vadd.f32 0.0, %v4165
      %v4167 = vpop.f32.mrb[0].mxu0
      %v4168 = vpop.f32.mrb[0].mxu0
      %v4169 = vadd.f32 0.0, %v4168
      %v4170 = vpop.f32.mrb[0].mxu0
      %4171 = vmatprep.mubr.bf16.mxu0 0
      %4172 = vmatmul.mubr.bf16.gmra.mrb[0].mxu0 %v4118
      %v4173 = vpop.f32.mrb[0].mxu0
      %v4174 = vadd.f32 0.0, %v4173
      %v4175 = vpop.f32.mrb[0].mxu0
      %v4176 = vpop.f32.mrb[0].mxu0
      %v4177 = vadd.f32 0.0, %v4176
      %v4178 = vpop.f32.mrb[0].mxu0
      %4179 = vmatprep.mubr.bf16.mxu0 0
      %4180 = vmatmul.mubr.bf16.gmra.mrb[0].mxu0 %v4121
      %v4181 = vpop.f32.mrb[0].mxu0
      %v4182 = vadd.f32 0.0, %v4181
      %v4183 = vpop.f32.mrb[0].mxu0
      %v4184 = vpop.f32.mrb[0].mxu0
      %v4185 = vadd.f32 0.0, %v4184
      %v4186 = vpop.f32.mrb[0].mxu0
      %4187 = vdwg.mxu0
      %v4189 = vsel %vm1022, %v3713, 0
      %v4192 = vsel %vm1022, %v3714, 0
      %v4195 = vsel %vm1022, %v3715, 0
      %v4198 = vsel %vm1022, %v3716, 0
      %4200 = vmatprep.subr.bf16.mxu0 0
      %4201 = vmatpush1.bf16.msra.mxu0 %v3717
      %4202 = vmatprep.subr.bf16.mxu0 0
      %4203 = vmatpush1.bf16.msra.mxu0 %v3718
      %4204 = vmatprep.subr.bf16.mxu0 0
      %4205 = vmatpush1.bf16.msra.mxu0 %v3719
      %4206 = vmatprep.subr.bf16.mxu0 0
      %4207 = vmatpush1.bf16.msra.mxu0 %v3720
      %4208 = vmatprep.subr.bf16.mxu0 0
      %4209 = vmatpush1.bf16.msra.mxu0 0
      %4210 = vmatprep.subr.bf16.mxu0 0
      %4211 = vmatpush1.bf16.msra.mxu0 0
      %4212 = vmatprep.subr.bf16.mxu0 0
      %4213 = vmatpush1.bf16.msra.mxu0 0
      %4214 = vmatprep.subr.bf16.mxu0 0
      %4215 = vmatpush1.bf16.msra.mxu0 0
      %4216 = vmatprep.subr.bf16.mxu0 0
      %4217 = vmatpush1.bf16.msra.mxu0 0
      %4218 = vmatprep.subr.bf16.mxu0 0
      %4219 = vmatpush1.bf16.msra.mxu0 0
      %4220 = vmatprep.subr.bf16.mxu0 0
      %4221 = vmatpush1.bf16.msra.mxu0 0
      %4222 = vmatprep.subr.bf16.mxu0 0
      %4223 = vmatpush1.bf16.msra.mxu0 0
      %4224 = vmatprep.subr.bf16.mxu0 0
      %4225 = vmatpush1.bf16.msra.mxu0 0
      %4226 = vmatprep.subr.bf16.mxu0 0
      %4227 = vmatpush1.bf16.msra.mxu0 0
      %4228 = vmatprep.subr.bf16.mxu0 0
      %4229 = vmatpush1.bf16.msra.mxu0 0
      %4230 = vmatprep.subr.bf16.mxu0 0
      %4231 = vmatpush1.bf16.msra.mxu0 0
      %4232 = vmatprep.mubr.bf16.mxu0 0
      %4233 = vmatmul.mubr.bf16.gmra.mrb[0].mxu0 %v4189
      %v4234 = vpop.f32.mrb[0].mxu0
      %v4235 = vadd.f32 %v4158, %v4234
      %v4236 = vpop.f32.mrb[0].mxu0
      %v4237 = vpop.f32.mrb[0].mxu0
      %v4238 = vadd.f32 %v4161, %v4237
      %v4239 = vpop.f32.mrb[0].mxu0
      %4240 = vmatprep.mubr.bf16.mxu0 0
      %4241 = vmatmul.mubr.bf16.gmra.mrb[0].mxu0 %v4192
      %v4242 = vpop.f32.mrb[0].mxu0
      %v4243 = vadd.f32 %v4166, %v4242
      %v4244 = vpop.f32.mrb[0].mxu0
      %v4245 = vpop.f32.mrb[0].mxu0
      %v4246 = vadd.f32 %v4169, %v4245
      %v4247 = vpop.f32.mrb[0].mxu0
      %4248 = vmatprep.mubr.bf16.mxu0 0
      %4249 = vmatmul.mubr.bf16.gmra.mrb[0].mxu0 %v4195
      %v4250 = vpop.f32.mrb[0].mxu0
      %v4251 = vadd.f32 %v4174, %v4250
      %v4252 = vpop.f32.mrb[0].mxu0
      %v4253 = vpop.f32.mrb[0].mxu0
      %v4254 = vadd.f32 %v4177, %v4253
      %v4255 = vpop.f32.mrb[0].mxu0
      %4256 = vmatprep.mubr.bf16.mxu0 0
      %4257 = vmatmul.mubr.bf16.gmra.mrb[0].mxu0 %v4198
      %v4258 = vpop.f32.mrb[0].mxu0
      %v4259 = vadd.f32 %v4182, %v4258
      %v4260 = vpop.f32.mrb[0].mxu0
      %v4261 = vpop.f32.mrb[0].mxu0
      %v4262 = vadd.f32 %v4185, %v4261
      %v4263 = vpop.f32.mrb[0].mxu0
      %4264 = vdwg.mxu0
      %s4265 = scalar_lea.vmem %s5, 96
      %v4266 = vld [vmem:[%s4265] sm:$0xf]
      %v4267 = vld [vmem:[%s4265 + $0x4] sm:$0xf]
      %v4268 = vld [vmem:[%s4265 + $0x8] sm:$0xf]
      %v4269 = vld [vmem:[%s4265 + $0xc] sm:$0xf]
      %s4270 = scalar_lea.vmem %s7, 96
      %v4271 = vld [vmem:[%s4270] sm:$0xf]
      %v4272 = vld [vmem:[%s4270 + $0x4] sm:$0xf]
      %v4273 = vld [vmem:[%s4270 + $0x8] sm:$0xf]
      %v4274 = vld [vmem:[%s4270 + $0xc] sm:$0xf]
      %s4275 = scalar_lea.vmem %s6, 6
      %v4276 = vld [vmem:[%s4275] sm:$0x1]
      %v4281 = vunpack.c.l.b16 %v4266
      %v4282 = vunpack.c.l.b16 %v4267
      %v4283 = vunpack.c.l.b16 %v4268
      %v4284 = vunpack.c.l.b16 %v4269
      %v4285 = vpack.c.b16 %v4282, %v4281
      %v4286 = vpack.c.b16 %v4284, %v4283
      %4289 = vmatprep.subr.bf16.mxu0 0
      %4290 = vmatpush1.bf16.msra.mxu0 %v4285
      %4291 = vmatprep.subr.bf16.mxu0 0
      %4292 = vmatpush1.bf16.msra.mxu0 %v4286
      %4293 = vmatprep.subr.bf16.mxu0 0
      %4294 = vmatpush1.bf16.msra.mxu0 0
      %4295 = vmatprep.subr.bf16.mxu0 0
      %4296 = vmatpush1.bf16.msra.mxu0 0
      %4297 = vmatprep.subr.bf16.mxu0 0
      %4298 = vmatpush1.bf16.msra.mxu0 0
      %4299 = vmatprep.subr.bf16.mxu0 0
      %4300 = vmatpush1.bf16.msra.mxu0 0
      %4301 = vmatprep.subr.bf16.mxu0 0
      %4302 = vmatpush1.bf16.msra.mxu0 0
      %4303 = vmatprep.subr.bf16.mxu0 0
      %4304 = vmatpush1.bf16.msra.mxu0 0
      %4305 = vmatprep.subr.bf16.mxu0 0
      %4306 = vmatpush1.bf16.msra.mxu0 0
      %4307 = vmatprep.subr.bf16.mxu0 0
      %4308 = vmatpush1.bf16.msra.mxu0 0
      %4309 = vmatprep.subr.bf16.mxu0 0
      %4310 = vmatpush1.bf16.msra.mxu0 0
      %4311 = vmatprep.subr.bf16.mxu0 0
      %4312 = vmatpush1.bf16.msra.mxu0 0
      %4313 = vmatprep.subr.bf16.mxu0 0
      %4314 = vmatpush1.bf16.msra.mxu0 0
      %4315 = vmatprep.subr.bf16.mxu0 0
      %4316 = vmatpush1.bf16.msra.mxu0 0
      %4317 = vmatprep.subr.bf16.mxu0 0
      %4318 = vmatpush1.bf16.msra.mxu0 0
      %4319 = vmatprep.subr.bf16.mxu0 0
      %4320 = vmatpush1.bf16.msra.mxu0 0
      %4321 = vmatprep.mubr.bf16.mxu0 0
      %4322 = vmatmul.mubr.bf16.gmra.mrb[0].mxu0 %v3344
      %v4323 = vpop.f32.mrb[0].mxu0
      %v4324 = vadd.f32 0.0, %v4323
      %v4325 = vpop.f32.mrb[0].mxu0
      %v4326 = vpop.f32.mrb[0].mxu0
      %v4327 = vadd.f32 0.0, %v4326
      %v4328 = vpop.f32.mrb[0].mxu0
      %4329 = vmatprep.mubr.bf16.mxu0 0
      %4330 = vmatmul.mubr.bf16.gmra.mrb[0].mxu0 %v3347
      %v4331 = vpop.f32.mrb[0].mxu0
      %v4332 = vadd.f32 0.0, %v4331
      %v4333 = vpop.f32.mrb[0].mxu0
      %v4334 = vpop.f32.mrb[0].mxu0
      %v4335 = vadd.f32 0.0, %v4334
      %v4336 = vpop.f32.mrb[0].mxu0
      %4337 = vmatprep.mubr.bf16.mxu0 0
      %4338 = vmatmul.mubr.bf16.gmra.mrb[0].mxu0 %v3350
      %v4339 = vpop.f32.mrb[0].mxu0
      %v4340 = vadd.f32 0.0, %v4339
      %v4341 = vpop.f32.mrb[0].mxu0
      %v4342 = vpop.f32.mrb[0].mxu0
      %v4343 = vadd.f32 0.0, %v4342
      %v4344 = vpop.f32.mrb[0].mxu0
      %4345 = vmatprep.mubr.bf16.mxu0 0
      %4346 = vmatmul.mubr.bf16.gmra.mrb[0].mxu0 %v3353
      %v4347 = vpop.f32.mrb[0].mxu0
      %v4348 = vadd.f32 0.0, %v4347
      %v4349 = vpop.f32.mrb[0].mxu0
      %v4350 = vpop.f32.mrb[0].mxu0
      %v4351 = vadd.f32 0.0, %v4350
      %v4352 = vpop.f32.mrb[0].mxu0
      %4353 = vdwg.mxu0
      %v4354 = vpack.c.bf16 %v4327, %v4324
      %v4355 = vpack.c.bf16 %v4335, %v4332
      %v4356 = vpack.c.bf16 %v4343, %v4340
      %v4357 = vpack.c.bf16 %v4351, %v4348
      %v4359 = vsel %vm658, %v4276, 0
      %4361 = vmatprep.subr.bf16.mxu0 0
      %4362 = vmatpush1.bf16.xpose.msra.mxu0 %v3344
      %4363 = vmatprep.subr.bf16.mxu0 0
      %4364 = vmatpush1.bf16.xpose.msra.mxu0 %v3347
      %4365 = vmatprep.subr.bf16.mxu0 0
      %4366 = vmatpush1.bf16.xpose.msra.mxu0 %v3350
      %4367 = vmatprep.subr.bf16.mxu0 0
      %4368 = vmatpush1.bf16.xpose.msra.mxu0 %v3353
      %4369 = vmatprep.subr.bf16.mxu0 0
      %4370 = vmatpush1.bf16.xpose.msra.mxu0 0
      %4371 = vmatprep.subr.bf16.mxu0 0
      %4372 = vmatpush1.bf16.xpose.msra.mxu0 0
      %4373 = vmatprep.subr.bf16.mxu0 0
      %4374 = vmatpush1.bf16.xpose.msra.mxu0 0
      %4375 = vmatprep.subr.bf16.mxu0 0
      %4376 = vmatpush1.bf16.xpose.msra.mxu0 0
      %4377 = vmatprep.subr.bf16.mxu0 0
      %4378 = vmatpush1.bf16.xpose.msra.mxu0 0
      %4379 = vmatprep.subr.bf16.mxu0 0
      %4380 = vmatpush1.bf16.xpose.msra.mxu0 0
      %4381 = vmatprep.subr.bf16.mxu0 0
      %4382 = vmatpush1.bf16.xpose.msra.mxu0 0
      %4383 = vmatprep.subr.bf16.mxu0 0
      %4384 = vmatpush1.bf16.xpose.msra.mxu0 0
      %4385 = vmatprep.subr.bf16.mxu0 0
      %4386 = vmatpush1.bf16.xpose.msra.mxu0 0
      %4387 = vmatprep.subr.bf16.mxu0 0
      %4388 = vmatpush1.bf16.xpose.msra.mxu0 0
      %4389 = vmatprep.subr.bf16.mxu0 0
      %4390 = vmatpush1.bf16.xpose.msra.mxu0 0
      %4391 = vmatprep.subr.bf16.mxu0 0
      %4392 = vmatpush1.bf16.xpose.msra.mxu0 0
      %4393 = vmatprep.mubr.bf16.mxu0 0
      %4394 = vmatmul.mubr.bf16.gmra.mrb[0].mxu0 %v4359
      %v4395 = vpop.f32.mrb[0].mxu0
      %v4396 = vadd.f32 0.0, %v4395
      %v4397 = vpop.f32.mrb[0].mxu0
      %v4398 = vpop.f32.mrb[0].mxu0
      %v4399 = vpop.f32.mrb[0].mxu0
      %4400 = vdwg.mxu0
      %v4401 = vlaneseq
      %v4402 = vshrl.u32 %v4401, 7
      %v4403 = vsub.s32 0, %v4402
      %v4404 = vrot.slane %v4396, %v4403
      %v4406 = vsel %vm658, %v4354, 0
      %v4409 = vsel %vm658, %v4355, 0
      %v4412 = vsel %vm658, %v4356, 0
      %v4415 = vsel %vm658, %v4357, 0
      %4417 = vmatprep.subr.bf16.mxu0 0
      %4418 = vmatpush1.bf16.xpose.msra.mxu0 %v3344
      %4419 = vmatprep.subr.bf16.mxu0 0
      %4420 = vmatpush1.bf16.xpose.msra.mxu0 %v3347
      %4421 = vmatprep.subr.bf16.mxu0 0
      %4422 = vmatpush1.bf16.xpose.msra.mxu0 %v3350
      %4423 = vmatprep.subr.bf16.mxu0 0
      %4424 = vmatpush1.bf16.xpose.msra.mxu0 %v3353
      %4425 = vmatprep.subr.bf16.mxu0 0
      %4426 = vmatpush1.bf16.xpose.msra.mxu0 0
      %4427 = vmatprep.subr.bf16.mxu0 0
      %4428 = vmatpush1.bf16.xpose.msra.mxu0 0
      %4429 = vmatprep.subr.bf16.mxu0 0
      %4430 = vmatpush1.bf16.xpose.msra.mxu0 0
      %4431 = vmatprep.subr.bf16.mxu0 0
      %4432 = vmatpush1.bf16.xpose.msra.mxu0 0
      %4433 = vmatprep.subr.bf16.mxu0 0
      %4434 = vmatpush1.bf16.xpose.msra.mxu0 0
      %4435 = vmatprep.subr.bf16.mxu0 0
      %4436 = vmatpush1.bf16.xpose.msra.mxu0 0
      %4437 = vmatprep.subr.bf16.mxu0 0
      %4438 = vmatpush1.bf16.xpose.msra.mxu0 0
      %4439 = vmatprep.subr.bf16.mxu0 0
      %4440 = vmatpush1.bf16.xpose.msra.mxu0 0
      %4441 = vmatprep.subr.bf16.mxu0 0
      %4442 = vmatpush1.bf16.xpose.msra.mxu0 0
      %4443 = vmatprep.subr.bf16.mxu0 0
      %4444 = vmatpush1.bf16.xpose.msra.mxu0 0
      %4445 = vmatprep.subr.bf16.mxu0 0
      %4446 = vmatpush1.bf16.xpose.msra.mxu0 0
      %4447 = vmatprep.subr.bf16.mxu0 0
      %4448 = vmatpush1.bf16.xpose.msra.mxu0 0
      %4449 = vmatprep.mubr.bf16.mxu0 0
      %4450 = vmatmul.mubr.bf16.gmra.mrb[0].mxu0 %v4406
      %v4451 = vpop.f32.mrb[0].mxu0
      %v4452 = vadd.f32 %v4404, %v4451
      %v4453 = vpop.f32.mrb[0].mxu0
      %v4454 = vpop.f32.mrb[0].mxu0
      %v4455 = vadd.f32 %v4404, %v4454
      %v4456 = vpop.f32.mrb[0].mxu0
      %4457 = vmatprep.mubr.bf16.mxu0 0
      %4458 = vmatmul.mubr.bf16.gmra.mrb[0].mxu0 %v4409
      %v4459 = vpop.f32.mrb[0].mxu0
      %v4460 = vadd.f32 %v4404, %v4459
      %v4461 = vpop.f32.mrb[0].mxu0
      %v4462 = vpop.f32.mrb[0].mxu0
      %v4463 = vadd.f32 %v4404, %v4462
      %v4464 = vpop.f32.mrb[0].mxu0
      %4465 = vmatprep.mubr.bf16.mxu0 0
      %4466 = vmatmul.mubr.bf16.gmra.mrb[0].mxu0 %v4412
      %v4467 = vpop.f32.mrb[0].mxu0
      %v4468 = vadd.f32 %v4404, %v4467
      %v4469 = vpop.f32.mrb[0].mxu0
      %v4470 = vpop.f32.mrb[0].mxu0
      %v4471 = vadd.f32 %v4404, %v4470
      %v4472 = vpop.f32.mrb[0].mxu0
      %4473 = vmatprep.mubr.bf16.mxu0 0
      %4474 = vmatmul.mubr.bf16.gmra.mrb[0].mxu0 %v4415
      %v4475 = vpop.f32.mrb[0].mxu0
      %v4476 = vadd.f32 %v4404, %v4475
      %v4477 = vpop.f32.mrb[0].mxu0
      %v4478 = vpop.f32.mrb[0].mxu0
      %v4479 = vadd.f32 %v4404, %v4478
      %v4480 = vpop.f32.mrb[0].mxu0
      %4481 = vdwg.mxu0
      %v4482 = vsel %vm1022, %v4452, -inf
      %4483 = vmax.xlane.f32.xlu0 %v4482
      %v4484 = vpop.xlane.xlu0 %4483
      %v4485 = vsel %vm1022, %v4455, -inf
      %4486 = vmax.xlane.f32.xlu0 %v4485
      %v4487 = vpop.xlane.xlu0 %4486
      %v4488 = vsel %vm1022, %v4460, -inf
      %4489 = vmax.xlane.f32.xlu0 %v4488
      %v4490 = vpop.xlane.xlu0 %4489
      %v4491 = vsel %vm1022, %v4463, -inf
      %4492 = vmax.xlane.f32.xlu0 %v4491
      %v4493 = vpop.xlane.xlu0 %4492
      %v4494 = vsel %vm1022, %v4468, -inf
      %4495 = vmax.xlane.f32.xlu0 %v4494
      %v4496 = vpop.xlane.xlu0 %4495
      %v4497 = vsel %vm1022, %v4471, -inf
      %4498 = vmax.xlane.f32.xlu0 %v4497
      %v4499 = vpop.xlane.xlu0 %4498
      %v4500 = vsel %vm1022, %v4476, -inf
      %4501 = vmax.xlane.f32.xlu0 %v4500
      %v4502 = vpop.xlane.xlu0 %4501
      %v4503 = vsel %vm1022, %v4479, -inf
      %4504 = vmax.xlane.f32.xlu0 %v4503
      %v4505 = vpop.xlane.xlu0 %4504
      %v4506 = vsub.f32 %v4452, %v4484
      %v4507 = vsub.f32 %v4455, %v4487
      %v4508 = vsub.f32 %v4460, %v4490
      %v4509 = vsub.f32 %v4463, %v4493
      %v4510 = vsub.f32 %v4468, %v4496
      %v4511 = vsub.f32 %v4471, %v4499
      %v4512 = vsub.f32 %v4476, %v4502
      %v4513 = vsub.f32 %v4479, %v4505
      %v4514 = vmul.f32 %v4506, 1.442695
      %v4515 = vpow.pop %v4514
      %v4516 = vmul.f32 %v4507, 1.442695
      %v4517 = vpow.pop %v4516
      %v4518 = vmul.f32 %v4508, 1.442695
      %v4519 = vpow.pop %v4518
      %v4520 = vmul.f32 %v4509, 1.442695
      %v4521 = vpow.pop %v4520
      %v4522 = vmul.f32 %v4510, 1.442695
      %v4523 = vpow.pop %v4522
      %v4524 = vmul.f32 %v4511, 1.442695
      %v4525 = vpow.pop %v4524
      %v4526 = vmul.f32 %v4512, 1.442695
      %v4527 = vpow.pop %v4526
      %v4528 = vmul.f32 %v4513, 1.442695
      %v4529 = vpow.pop %v4528
      %v4530 = vsel %vm1022, %v4515, 0.0
      %4531 = vadd.xlane.f32.xlu0 %v4530
      %v4532 = vpop.xlane.xlu0 %4531
      %v4533 = vsel %vm1022, %v4517, 0.0
      %4534 = vadd.xlane.f32.xlu0 %v4533
      %v4535 = vpop.xlane.xlu0 %4534
      %v4536 = vsel %vm1022, %v4519, 0.0
      %4537 = vadd.xlane.f32.xlu0 %v4536
      %v4538 = vpop.xlane.xlu0 %4537
      %v4539 = vsel %vm1022, %v4521, 0.0
      %4540 = vadd.xlane.f32.xlu0 %v4539
      %v4541 = vpop.xlane.xlu0 %4540
      %v4542 = vsel %vm1022, %v4523, 0.0
      %4543 = vadd.xlane.f32.xlu0 %v4542
      %v4544 = vpop.xlane.xlu0 %4543
      %v4545 = vsel %vm1022, %v4525, 0.0
      %4546 = vadd.xlane.f32.xlu0 %v4545
      %v4547 = vpop.xlane.xlu0 %4546
      %v4548 = vsel %vm1022, %v4527, 0.0
      %4549 = vadd.xlane.f32.xlu0 %v4548
      %v4550 = vpop.xlane.xlu0 %4549
      %v4551 = vsel %vm1022, %v4529, 0.0
      %4552 = vadd.xlane.f32.xlu0 %v4551
      %v4553 = vpop.xlane.xlu0 %4552
      %v4554 = vrcp.pop %v4532
      %v4555 = vmul.f32 %v4515, %v4554
      %v4556 = vrcp.pop %v4535
      %v4557 = vmul.f32 %v4517, %v4556
      %v4558 = vrcp.pop %v4538
      %v4559 = vmul.f32 %v4519, %v4558
      %v4560 = vrcp.pop %v4541
      %v4561 = vmul.f32 %v4521, %v4560
      %v4562 = vrcp.pop %v4544
      %v4563 = vmul.f32 %v4523, %v4562
      %v4564 = vrcp.pop %v4547
      %v4565 = vmul.f32 %v4525, %v4564
      %v4566 = vrcp.pop %v4550
      %v4567 = vmul.f32 %v4527, %v4566
      %v4568 = vrcp.pop %v4553
      %v4569 = vmul.f32 %v4529, %v4568
      %v4574 = vunpack.c.l.b16 %v4271
      %v4575 = vunpack.c.l.b16 %v4272
      %v4576 = vunpack.c.l.b16 %v4273
      %v4577 = vunpack.c.l.b16 %v4274
      %v4578 = vpack.c.b16 %v4575, %v4574
      %v4579 = vpack.c.b16 %v4577, %v4576
      %4582 = vmatprep.subr.bf16.mxu0 0
      %4583 = vmatpush1.bf16.msra.mxu0 %v4578
      %4584 = vmatprep.subr.bf16.mxu0 0
      %4585 = vmatpush1.bf16.msra.mxu0 %v4579
      %4586 = vmatprep.subr.bf16.mxu0 0
      %4587 = vmatpush1.bf16.msra.mxu0 0
      %4588 = vmatprep.subr.bf16.mxu0 0
      %4589 = vmatpush1.bf16.msra.mxu0 0
      %4590 = vmatprep.subr.bf16.mxu0 0
      %4591 = vmatpush1.bf16.msra.mxu0 0
      %4592 = vmatprep.subr.bf16.mxu0 0
      %4593 = vmatpush1.bf16.msra.mxu0 0
      %4594 = vmatprep.subr.bf16.mxu0 0
      %4595 = vmatpush1.bf16.msra.mxu0 0
      %4596 = vmatprep.subr.bf16.mxu0 0
      %4597 = vmatpush1.bf16.msra.mxu0 0
      %4598 = vmatprep.subr.bf16.mxu0 0
      %4599 = vmatpush1.bf16.msra.mxu0 0
      %4600 = vmatprep.subr.bf16.mxu0 0
      %4601 = vmatpush1.bf16.msra.mxu0 0
      %4602 = vmatprep.subr.bf16.mxu0 0
      %4603 = vmatpush1.bf16.msra.mxu0 0
      %4604 = vmatprep.subr.bf16.mxu0 0
      %4605 = vmatpush1.bf16.msra.mxu0 0
      %4606 = vmatprep.subr.bf16.mxu0 0
      %4607 = vmatpush1.bf16.msra.mxu0 0
      %4608 = vmatprep.subr.bf16.mxu0 0
      %4609 = vmatpush1.bf16.msra.mxu0 0
      %4610 = vmatprep.subr.bf16.mxu0 0
      %4611 = vmatpush1.bf16.msra.mxu0 0
      %4612 = vmatprep.subr.bf16.mxu0 0
      %4613 = vmatpush1.bf16.msra.mxu0 0
      %4614 = vmatprep.mubr.bf16.mxu0 0
      %4615 = vmatmul.mubr.bf16.gmra.mrb[0].mxu0 %v3344
      %v4616 = vpop.f32.mrb[0].mxu0
      %v4617 = vadd.f32 0.0, %v4616
      %v4618 = vpop.f32.mrb[0].mxu0
      %v4619 = vpop.f32.mrb[0].mxu0
      %v4620 = vadd.f32 0.0, %v4619
      %v4621 = vpop.f32.mrb[0].mxu0
      %4622 = vmatprep.mubr.bf16.mxu0 0
      %4623 = vmatmul.mubr.bf16.gmra.mrb[0].mxu0 %v3347
      %v4624 = vpop.f32.mrb[0].mxu0
      %v4625 = vadd.f32 0.0, %v4624
      %v4626 = vpop.f32.mrb[0].mxu0
      %v4627 = vpop.f32.mrb[0].mxu0
      %v4628 = vadd.f32 0.0, %v4627
      %v4629 = vpop.f32.mrb[0].mxu0
      %4630 = vmatprep.mubr.bf16.mxu0 0
      %4631 = vmatmul.mubr.bf16.gmra.mrb[0].mxu0 %v3350
      %v4632 = vpop.f32.mrb[0].mxu0
      %v4633 = vadd.f32 0.0, %v4632
      %v4634 = vpop.f32.mrb[0].mxu0
      %v4635 = vpop.f32.mrb[0].mxu0
      %v4636 = vadd.f32 0.0, %v4635
      %v4637 = vpop.f32.mrb[0].mxu0
      %4638 = vmatprep.mubr.bf16.mxu0 0
      %4639 = vmatmul.mubr.bf16.gmra.mrb[0].mxu0 %v3353
      %v4640 = vpop.f32.mrb[0].mxu0
      %v4641 = vadd.f32 0.0, %v4640
      %v4642 = vpop.f32.mrb[0].mxu0
      %v4643 = vpop.f32.mrb[0].mxu0
      %v4644 = vadd.f32 0.0, %v4643
      %v4645 = vpop.f32.mrb[0].mxu0
      %4646 = vdwg.mxu0
      %v4647 = vpack.c.bf16 %v4557, %v4555
      %v4648 = vpack.c.bf16 %v4561, %v4559
      %v4649 = vpack.c.bf16 %v4565, %v4563
      %v4650 = vpack.c.bf16 %v4569, %v4567
      %v4651 = vpack.c.bf16 %v4620, %v4617
      %v4652 = vpack.c.bf16 %v4628, %v4625
      %v4653 = vpack.c.bf16 %v4636, %v4633
      %v4654 = vpack.c.bf16 %v4644, %v4641
      %v4656 = vsel %vm1022, %v4647, 0
      %v4659 = vsel %vm1022, %v4648, 0
      %v4662 = vsel %vm1022, %v4649, 0
      %v4665 = vsel %vm1022, %v4650, 0
      %4667 = vmatprep.subr.bf16.mxu0 0
      %4668 = vmatpush1.bf16.msra.mxu0 %v4651
      %4669 = vmatprep.subr.bf16.mxu0 0
      %4670 = vmatpush1.bf16.msra.mxu0 %v4652
      %4671 = vmatprep.subr.bf16.mxu0 0
      %4672 = vmatpush1.bf16.msra.mxu0 %v4653
      %4673 = vmatprep.subr.bf16.mxu0 0
      %4674 = vmatpush1.bf16.msra.mxu0 %v4654
      %4675 = vmatprep.subr.bf16.mxu0 0
      %4676 = vmatpush1.bf16.msra.mxu0 0
      %4677 = vmatprep.subr.bf16.mxu0 0
      %4678 = vmatpush1.bf16.msra.mxu0 0
      %4679 = vmatprep.subr.bf16.mxu0 0
      %4680 = vmatpush1.bf16.msra.mxu0 0
      %4681 = vmatprep.subr.bf16.mxu0 0
      %4682 = vmatpush1.bf16.msra.mxu0 0
      %4683 = vmatprep.subr.bf16.mxu0 0
      %4684 = vmatpush1.bf16.msra.mxu0 0
      %4685 = vmatprep.subr.bf16.mxu0 0
      %4686 = vmatpush1.bf16.msra.mxu0 0
      %4687 = vmatprep.subr.bf16.mxu0 0
      %4688 = vmatpush1.bf16.msra.mxu0 0
      %4689 = vmatprep.subr.bf16.mxu0 0
      %4690 = vmatpush1.bf16.msra.mxu0 0
      %4691 = vmatprep.subr.bf16.mxu0 0
      %4692 = vmatpush1.bf16.msra.mxu0 0
      %4693 = vmatprep.subr.bf16.mxu0 0
      %4694 = vmatpush1.bf16.msra.mxu0 0
      %4695 = vmatprep.subr.bf16.mxu0 0
      %4696 = vmatpush1.bf16.msra.mxu0 0
      %4697 = vmatprep.subr.bf16.mxu0 0
      %4698 = vmatpush1.bf16.msra.mxu0 0
      %4699 = vmatprep.mubr.bf16.mxu0 0
      %4700 = vmatmul.mubr.bf16.gmra.mrb[0].mxu0 %v4656
      %v4701 = vpop.f32.mrb[0].mxu0
      %v4702 = vadd.f32 0.0, %v4701
      %v4703 = vpop.f32.mrb[0].mxu0
      %v4704 = vpop.f32.mrb[0].mxu0
      %v4705 = vadd.f32 0.0, %v4704
      %v4706 = vpop.f32.mrb[0].mxu0
      %4707 = vmatprep.mubr.bf16.mxu0 0
      %4708 = vmatmul.mubr.bf16.gmra.mrb[0].mxu0 %v4659
      %v4709 = vpop.f32.mrb[0].mxu0
      %v4710 = vadd.f32 0.0, %v4709
      %v4711 = vpop.f32.mrb[0].mxu0
      %v4712 = vpop.f32.mrb[0].mxu0
      %v4713 = vadd.f32 0.0, %v4712
      %v4714 = vpop.f32.mrb[0].mxu0
      %4715 = vmatprep.mubr.bf16.mxu0 0
      %4716 = vmatmul.mubr.bf16.gmra.mrb[0].mxu0 %v4662
      %v4717 = vpop.f32.mrb[0].mxu0
      %v4718 = vadd.f32 0.0, %v4717
      %v4719 = vpop.f32.mrb[0].mxu0
      %v4720 = vpop.f32.mrb[0].mxu0
      %v4721 = vadd.f32 0.0, %v4720
      %v4722 = vpop.f32.mrb[0].mxu0
      %4723 = vmatprep.mubr.bf16.mxu0 0
      %4724 = vmatmul.mubr.bf16.gmra.mrb[0].mxu0 %v4665
      %v4725 = vpop.f32.mrb[0].mxu0
      %v4726 = vadd.f32 0.0, %v4725
      %v4727 = vpop.f32.mrb[0].mxu0
      %v4728 = vpop.f32.mrb[0].mxu0
      %v4729 = vadd.f32 0.0, %v4728
      %v4730 = vpop.f32.mrb[0].mxu0
      %4731 = vdwg.mxu0
      %v4732 = vadd.f32 %v4235, %v4702
      %v4733 = vadd.f32 %v4238, %v4705
      %v4734 = vadd.f32 %v4243, %v4710
      %v4735 = vadd.f32 %v4246, %v4713
      %v4736 = vadd.f32 %v4251, %v4718
      %v4737 = vadd.f32 %v4254, %v4721
      %v4738 = vadd.f32 %v4259, %v4726
      %v4739 = vadd.f32 %v4262, %v4729
      %s4740 = scalar_lea.vmem %s5, 112
      %v4741 = vld [vmem:[%s4740] sm:$0xf]
      %v4742 = vld [vmem:[%s4740 + $0x4] sm:$0xf]
      %v4743 = vld [vmem:[%s4740 + $0x8] sm:$0xf]
      %v4744 = vld [vmem:[%s4740 + $0xc] sm:$0xf]
      %s4745 = scalar_lea.vmem %s7, 112
      %v4746 = vld [vmem:[%s4745] sm:$0xf]
      %v4747 = vld [vmem:[%s4745 + $0x4] sm:$0xf]
      %v4748 = vld [vmem:[%s4745 + $0x8] sm:$0xf]
      %v4749 = vld [vmem:[%s4745 + $0xc] sm:$0xf]
      %s4750 = scalar_lea.vmem %s6, 7
      %v4751 = vld [vmem:[%s4750] sm:$0x1]
      %v4756 = vunpack.c.l.b16 %v4741
      %v4757 = vunpack.c.l.b16 %v4742
      %v4758 = vunpack.c.l.b16 %v4743
      %v4759 = vunpack.c.l.b16 %v4744
      %v4760 = vpack.c.b16 %v4757, %v4756
      %v4761 = vpack.c.b16 %v4759, %v4758
      %4764 = vmatprep.subr.bf16.mxu0 0
      %4765 = vmatpush1.bf16.msra.mxu0 %v4760
      %4766 = vmatprep.subr.bf16.mxu0 0
      %4767 = vmatpush1.bf16.msra.mxu0 %v4761
      %4768 = vmatprep.subr.bf16.mxu0 0
      %4769 = vmatpush1.bf16.msra.mxu0 0
      %4770 = vmatprep.subr.bf16.mxu0 0
      %4771 = vmatpush1.bf16.msra.mxu0 0
      %4772 = vmatprep.subr.bf16.mxu0 0
      %4773 = vmatpush1.bf16.msra.mxu0 0
      %4774 = vmatprep.subr.bf16.mxu0 0
      %4775 = vmatpush1.bf16.msra.mxu0 0
      %4776 = vmatprep.subr.bf16.mxu0 0
      %4777 = vmatpush1.bf16.msra.mxu0 0
      %4778 = vmatprep.subr.bf16.mxu0 0
      %4779 = vmatpush1.bf16.msra.mxu0 0
      %4780 = vmatprep.subr.bf16.mxu0 0
      %4781 = vmatpush1.bf16.msra.mxu0 0
      %4782 = vmatprep.subr.bf16.mxu0 0
      %4783 = vmatpush1.bf16.msra.mxu0 0
      %4784 = vmatprep.subr.bf16.mxu0 0
      %4785 = vmatpush1.bf16.msra.mxu0 0
      %4786 = vmatprep.subr.bf16.mxu0 0
      %4787 = vmatpush1.bf16.msra.mxu0 0
      %4788 = vmatprep.subr.bf16.mxu0 0
      %4789 = vmatpush1.bf16.msra.mxu0 0
      %4790 = vmatprep.subr.bf16.mxu0 0
      %4791 = vmatpush1.bf16.msra.mxu0 0
      %4792 = vmatprep.subr.bf16.mxu0 0
      %4793 = vmatpush1.bf16.msra.mxu0 0
      %4794 = vmatprep.subr.bf16.mxu0 0
      %4795 = vmatpush1.bf16.msra.mxu0 0
      %4796 = vmatprep.mubr.bf16.mxu0 0
      %4797 = vmatmul.mubr.bf16.gmra.mrb[0].mxu0 %v3344
      %v4798 = vpop.f32.mrb[0].mxu0
      %v4799 = vadd.f32 0.0, %v4798
      %v4800 = vpop.f32.mrb[0].mxu0
      %v4801 = vpop.f32.mrb[0].mxu0
      %v4802 = vadd.f32 0.0, %v4801
      %v4803 = vpop.f32.mrb[0].mxu0
      %4804 = vmatprep.mubr.bf16.mxu0 0
      %4805 = vmatmul.mubr.bf16.gmra.mrb[0].mxu0 %v3347
      %v4806 = vpop.f32.mrb[0].mxu0
      %v4807 = vadd.f32 0.0, %v4806
      %v4808 = vpop.f32.mrb[0].mxu0
      %v4809 = vpop.f32.mrb[0].mxu0
      %v4810 = vadd.f32 0.0, %v4809
      %v4811 = vpop.f32.mrb[0].mxu0
      %4812 = vmatprep.mubr.bf16.mxu0 0
      %4813 = vmatmul.mubr.bf16.gmra.mrb[0].mxu0 %v3350
      %v4814 = vpop.f32.mrb[0].mxu0
      %v4815 = vadd.f32 0.0, %v4814
      %v4816 = vpop.f32.mrb[0].mxu0
      %v4817 = vpop.f32.mrb[0].mxu0
      %v4818 = vadd.f32 0.0, %v4817
      %v4819 = vpop.f32.mrb[0].mxu0
      %4820 = vmatprep.mubr.bf16.mxu0 0
      %4821 = vmatmul.mubr.bf16.gmra.mrb[0].mxu0 %v3353
      %v4822 = vpop.f32.mrb[0].mxu0
      %v4823 = vadd.f32 0.0, %v4822
      %v4824 = vpop.f32.mrb[0].mxu0
      %v4825 = vpop.f32.mrb[0].mxu0
      %v4826 = vadd.f32 0.0, %v4825
      %v4827 = vpop.f32.mrb[0].mxu0
      %4828 = vdwg.mxu0
      %v4829 = vpack.c.bf16 %v4802, %v4799
      %v4830 = vpack.c.bf16 %v4810, %v4807
      %v4831 = vpack.c.bf16 %v4818, %v4815
      %v4832 = vpack.c.bf16 %v4826, %v4823
      %v4834 = vsel %vm658, %v4751, 0
      %4836 = vmatprep.subr.bf16.mxu0 0
      %4837 = vmatpush1.bf16.xpose.msra.mxu0 %v3344
      %4838 = vmatprep.subr.bf16.mxu0 0
      %4839 = vmatpush1.bf16.xpose.msra.mxu0 %v3347
      %4840 = vmatprep.subr.bf16.mxu0 0
      %4841 = vmatpush1.bf16.xpose.msra.mxu0 %v3350
      %4842 = vmatprep.subr.bf16.mxu0 0
      %4843 = vmatpush1.bf16.xpose.msra.mxu0 %v3353
      %4844 = vmatprep.subr.bf16.mxu0 0
      %4845 = vmatpush1.bf16.xpose.msra.mxu0 0
      %4846 = vmatprep.subr.bf16.mxu0 0
      %4847 = vmatpush1.bf16.xpose.msra.mxu0 0
      %4848 = vmatprep.subr.bf16.mxu0 0
      %4849 = vmatpush1.bf16.xpose.msra.mxu0 0
      %4850 = vmatprep.subr.bf16.mxu0 0
      %4851 = vmatpush1.bf16.xpose.msra.mxu0 0
      %4852 = vmatprep.subr.bf16.mxu0 0
      %4853 = vmatpush1.bf16.xpose.msra.mxu0 0
      %4854 = vmatprep.subr.bf16.mxu0 0
      %4855 = vmatpush1.bf16.xpose.msra.mxu0 0
      %4856 = vmatprep.subr.bf16.mxu0 0
      %4857 = vmatpush1.bf16.xpose.msra.mxu0 0
      %4858 = vmatprep.subr.bf16.mxu0 0
      %4859 = vmatpush1.bf16.xpose.msra.mxu0 0
      %4860 = vmatprep.subr.bf16.mxu0 0
      %4861 = vmatpush1.bf16.xpose.msra.mxu0 0
      %4862 = vmatprep.subr.bf16.mxu0 0
      %4863 = vmatpush1.bf16.xpose.msra.mxu0 0
      %4864 = vmatprep.subr.bf16.mxu0 0
      %4865 = vmatpush1.bf16.xpose.msra.mxu0 0
      %4866 = vmatprep.subr.bf16.mxu0 0
      %4867 = vmatpush1.bf16.xpose.msra.mxu0 0
      %4868 = vmatprep.mubr.bf16.mxu0 0
      %4869 = vmatmul.mubr.bf16.gmra.mrb[0].mxu0 %v4834
      %v4870 = vpop.f32.mrb[0].mxu0
      %v4871 = vadd.f32 0.0, %v4870
      %v4872 = vpop.f32.mrb[0].mxu0
      %v4873 = vpop.f32.mrb[0].mxu0
      %v4874 = vpop.f32.mrb[0].mxu0
      %4875 = vdwg.mxu0
      %v4876 = vlaneseq
      %v4877 = vshrl.u32 %v4876, 7
      %v4878 = vsub.s32 0, %v4877
      %v4879 = vrot.slane %v4871, %v4878
      %v4881 = vsel %vm658, %v4829, 0
      %v4884 = vsel %vm658, %v4830, 0
      %v4887 = vsel %vm658, %v4831, 0
      %v4890 = vsel %vm658, %v4832, 0
      %4892 = vmatprep.subr.bf16.mxu0 0
      %4893 = vmatpush1.bf16.xpose.msra.mxu0 %v3344
      %4894 = vmatprep.subr.bf16.mxu0 0
      %4895 = vmatpush1.bf16.xpose.msra.mxu0 %v3347
      %4896 = vmatprep.subr.bf16.mxu0 0
      %4897 = vmatpush1.bf16.xpose.msra.mxu0 %v3350
      %4898 = vmatprep.subr.bf16.mxu0 0
      %4899 = vmatpush1.bf16.xpose.msra.mxu0 %v3353
      %4900 = vmatprep.subr.bf16.mxu0 0
      %4901 = vmatpush1.bf16.xpose.msra.mxu0 0
      %4902 = vmatprep.subr.bf16.mxu0 0
      %4903 = vmatpush1.bf16.xpose.msra.mxu0 0
      %4904 = vmatprep.subr.bf16.mxu0 0
      %4905 = vmatpush1.bf16.xpose.msra.mxu0 0
      %4906 = vmatprep.subr.bf16.mxu0 0
      %4907 = vmatpush1.bf16.xpose.msra.mxu0 0
      %4908 = vmatprep.subr.bf16.mxu0 0
      %4909 = vmatpush1.bf16.xpose.msra.mxu0 0
      %4910 = vmatprep.subr.bf16.mxu0 0
      %4911 = vmatpush1.bf16.xpose.msra.mxu0 0
      %4912 = vmatprep.subr.bf16.mxu0 0
      %4913 = vmatpush1.bf16.xpose.msra.mxu0 0
      %4914 = vmatprep.subr.bf16.mxu0 0
      %4915 = vmatpush1.bf16.xpose.msra.mxu0 0
      %4916 = vmatprep.subr.bf16.mxu0 0
      %4917 = vmatpush1.bf16.xpose.msra.mxu0 0
      %4918 = vmatprep.subr.bf16.mxu0 0
      %4919 = vmatpush1.bf16.xpose.msra.mxu0 0
      %4920 = vmatprep.subr.bf16.mxu0 0
      %4921 = vmatpush1.bf16.xpose.msra.mxu0 0
      %4922 = vmatprep.subr.bf16.mxu0 0
      %4923 = vmatpush1.bf16.xpose.msra.mxu0 0
      %4924 = vmatprep.mubr.bf16.mxu0 0
      %4925 = vmatmul.mubr.bf16.gmra.mrb[0].mxu0 %v4881
      %v4926 = vpop.f32.mrb[0].mxu0
      %v4927 = vadd.f32 %v4879, %v4926
      %v4928 = vpop.f32.mrb[0].mxu0
      %v4929 = vpop.f32.mrb[0].mxu0
      %v4930 = vadd.f32 %v4879, %v4929
      %v4931 = vpop.f32.mrb[0].mxu0
      %4932 = vmatprep.mubr.bf16.mxu0 0
      %4933 = vmatmul.mubr.bf16.gmra.mrb[0].mxu0 %v4884
      %v4934 = vpop.f32.mrb[0].mxu0
      %v4935 = vadd.f32 %v4879, %v4934
      %v4936 = vpop.f32.mrb[0].mxu0
      %v4937 = vpop.f32.mrb[0].mxu0
      %v4938 = vadd.f32 %v4879, %v4937
      %v4939 = vpop.f32.mrb[0].mxu0
      %4940 = vmatprep.mubr.bf16.mxu0 0
      %4941 = vmatmul.mubr.bf16.gmra.mrb[0].mxu0 %v4887
      %v4942 = vpop.f32.mrb[0].mxu0
      %v4943 = vadd.f32 %v4879, %v4942
      %v4944 = vpop.f32.mrb[0].mxu0
      %v4945 = vpop.f32.mrb[0].mxu0
      %v4946 = vadd.f32 %v4879, %v4945
      %v4947 = vpop.f32.mrb[0].mxu0
      %4948 = vmatprep.mubr.bf16.mxu0 0
      %4949 = vmatmul.mubr.bf16.gmra.mrb[0].mxu0 %v4890
      %v4950 = vpop.f32.mrb[0].mxu0
      %v4951 = vadd.f32 %v4879, %v4950
      %v4952 = vpop.f32.mrb[0].mxu0
      %v4953 = vpop.f32.mrb[0].mxu0
      %v4954 = vadd.f32 %v4879, %v4953
      %v4955 = vpop.f32.mrb[0].mxu0
      %4956 = vdwg.mxu0
      %v4957 = vsel %vm1022, %v4927, -inf
      %4958 = vmax.xlane.f32.xlu0 %v4957
      %v4959 = vpop.xlane.xlu0 %4958
      %v4960 = vsel %vm1022, %v4930, -inf
      %4961 = vmax.xlane.f32.xlu0 %v4960
      %v4962 = vpop.xlane.xlu0 %4961
      %v4963 = vsel %vm1022, %v4935, -inf
      %4964 = vmax.xlane.f32.xlu0 %v4963
      %v4965 = vpop.xlane.xlu0 %4964
      %v4966 = vsel %vm1022, %v4938, -inf
      %4967 = vmax.xlane.f32.xlu0 %v4966
      %v4968 = vpop.xlane.xlu0 %4967
      %v4969 = vsel %vm1022, %v4943, -inf
      %4970 = vmax.xlane.f32.xlu0 %v4969
      %v4971 = vpop.xlane.xlu0 %4970
      %v4972 = vsel %vm1022, %v4946, -inf
      %4973 = vmax.xlane.f32.xlu0 %v4972
      %v4974 = vpop.xlane.xlu0 %4973
      %v4975 = vsel %vm1022, %v4951, -inf
      %4976 = vmax.xlane.f32.xlu0 %v4975
      %v4977 = vpop.xlane.xlu0 %4976
      %v4978 = vsel %vm1022, %v4954, -inf
      %4979 = vmax.xlane.f32.xlu0 %v4978
      %v4980 = vpop.xlane.xlu0 %4979
      %v4981 = vsub.f32 %v4927, %v4959
      %v4982 = vsub.f32 %v4930, %v4962
      %v4983 = vsub.f32 %v4935, %v4965
      %v4984 = vsub.f32 %v4938, %v4968
      %v4985 = vsub.f32 %v4943, %v4971
      %v4986 = vsub.f32 %v4946, %v4974
      %v4987 = vsub.f32 %v4951, %v4977
      %v4988 = vsub.f32 %v4954, %v4980
      %v4989 = vmul.f32 %v4981, 1.442695
      %v4990 = vpow.pop %v4989
      %v4991 = vmul.f32 %v4982, 1.442695
      %v4992 = vpow.pop %v4991
      %v4993 = vmul.f32 %v4983, 1.442695
      %v4994 = vpow.pop %v4993
      %v4995 = vmul.f32 %v4984, 1.442695
      %v4996 = vpow.pop %v4995
      %v4997 = vmul.f32 %v4985, 1.442695
      %v4998 = vpow.pop %v4997
      %v4999 = vmul.f32 %v4986, 1.442695
      %v5000 = vpow.pop %v4999
      %v5001 = vmul.f32 %v4987, 1.442695
      %v5002 = vpow.pop %v5001
      %v5003 = vmul.f32 %v4988, 1.442695
      %v5004 = vpow.pop %v5003
      %v5005 = vsel %vm1022, %v4990, 0.0
      %5006 = vadd.xlane.f32.xlu0 %v5005
      %v5007 = vpop.xlane.xlu0 %5006
      %v5008 = vsel %vm1022, %v4992, 0.0
      %5009 = vadd.xlane.f32.xlu0 %v5008
      %v5010 = vpop.xlane.xlu0 %5009
      %v5011 = vsel %vm1022, %v4994, 0.0
      %5012 = vadd.xlane.f32.xlu0 %v5011
      %v5013 = vpop.xlane.xlu0 %5012
      %v5014 = vsel %vm1022, %v4996, 0.0
      %5015 = vadd.xlane.f32.xlu0 %v5014
      %v5016 = vpop.xlane.xlu0 %5015
      %v5017 = vsel %vm1022, %v4998, 0.0
      %5018 = vadd.xlane.f32.xlu0 %v5017
      %v5019 = vpop.xlane.xlu0 %5018
      %v5020 = vsel %vm1022, %v5000, 0.0
      %5021 = vadd.xlane.f32.xlu0 %v5020
      %v5022 = vpop.xlane.xlu0 %5021
      %v5023 = vsel %vm1022, %v5002, 0.0
      %5024 = vadd.xlane.f32.xlu0 %v5023
      %v5025 = vpop.xlane.xlu0 %5024
      %v5026 = vsel %vm1022, %v5004, 0.0
      %5027 = vadd.xlane.f32.xlu0 %v5026
      %v5028 = vpop.xlane.xlu0 %5027
      %v5029 = vrcp.pop %v5007
      %v5030 = vmul.f32 %v4990, %v5029
      %v5031 = vrcp.pop %v5010
      %v5032 = vmul.f32 %v4992, %v5031
      %v5033 = vrcp.pop %v5013
      %v5034 = vmul.f32 %v4994, %v5033
      %v5035 = vrcp.pop %v5016
      %v5036 = vmul.f32 %v4996, %v5035
      %v5037 = vrcp.pop %v5019
      %v5038 = vmul.f32 %v4998, %v5037
      %v5039 = vrcp.pop %v5022
      %v5040 = vmul.f32 %v5000, %v5039
      %v5041 = vrcp.pop %v5025
      %v5042 = vmul.f32 %v5002, %v5041
      %v5043 = vrcp.pop %v5028
      %v5044 = vmul.f32 %v5004, %v5043
      %v5049 = vunpack.c.l.b16 %v4746
      %v5050 = vunpack.c.l.b16 %v4747
      %v5051 = vunpack.c.l.b16 %v4748
      %v5052 = vunpack.c.l.b16 %v4749
      %v5053 = vpack.c.b16 %v5050, %v5049
      %v5054 = vpack.c.b16 %v5052, %v5051
      %5057 = vmatprep.subr.bf16.mxu0 0
      %5058 = vmatpush1.bf16.msra.mxu0 %v5053
      %5059 = vmatprep.subr.bf16.mxu0 0
      %5060 = vmatpush1.bf16.msra.mxu0 %v5054
      %5061 = vmatprep.subr.bf16.mxu0 0
      %5062 = vmatpush1.bf16.msra.mxu0 0
      %5063 = vmatprep.subr.bf16.mxu0 0
      %5064 = vmatpush1.bf16.msra.mxu0 0
      %5065 = vmatprep.subr.bf16.mxu0 0
      %5066 = vmatpush1.bf16.msra.mxu0 0
      %5067 = vmatprep.subr.bf16.mxu0 0
      %5068 = vmatpush1.bf16.msra.mxu0 0
      %5069 = vmatprep.subr.bf16.mxu0 0
      %5070 = vmatpush1.bf16.msra.mxu0 0
      %5071 = vmatprep.subr.bf16.mxu0 0
      %5072 = vmatpush1.bf16.msra.mxu0 0
      %5073 = vmatprep.subr.bf16.mxu0 0
      %5074 = vmatpush1.bf16.msra.mxu0 0
      %5075 = vmatprep.subr.bf16.mxu0 0
      %5076 = vmatpush1.bf16.msra.mxu0 0
      %5077 = vmatprep.subr.bf16.mxu0 0
      %5078 = vmatpush1.bf16.msra.mxu0 0
      %5079 = vmatprep.subr.bf16.mxu0 0
      %5080 = vmatpush1.bf16.msra.mxu0 0
      %5081 = vmatprep.subr.bf16.mxu0 0
      %5082 = vmatpush1.bf16.msra.mxu0 0
      %5083 = vmatprep.subr.bf16.mxu0 0
      %5084 = vmatpush1.bf16.msra.mxu0 0
      %5085 = vmatprep.subr.bf16.mxu0 0
      %5086 = vmatpush1.bf16.msra.mxu0 0
      %5087 = vmatprep.subr.bf16.mxu0 0
      %5088 = vmatpush1.bf16.msra.mxu0 0
      %5089 = vmatprep.mubr.bf16.mxu0 0
      %5090 = vmatmul.mubr.bf16.gmra.mrb[0].mxu0 %v3344
      %v5091 = vpop.f32.mrb[0].mxu0
      %v5092 = vadd.f32 0.0, %v5091
      %v5093 = vpop.f32.mrb[0].mxu0
      %v5094 = vpop.f32.mrb[0].mxu0
      %v5095 = vadd.f32 0.0, %v5094
      %v5096 = vpop.f32.mrb[0].mxu0
      %5097 = vmatprep.mubr.bf16.mxu0 0
      %5098 = vmatmul.mubr.bf16.gmra.mrb[0].mxu0 %v3347
      %v5099 = vpop.f32.mrb[0].mxu0
      %v5100 = vadd.f32 0.0, %v5099
      %v5101 = vpop.f32.mrb[0].mxu0
      %v5102 = vpop.f32.mrb[0].mxu0
      %v5103 = vadd.f32 0.0, %v5102
      %v5104 = vpop.f32.mrb[0].mxu0
      %5105 = vmatprep.mubr.bf16.mxu0 0
      %5106 = vmatmul.mubr.bf16.gmra.mrb[0].mxu0 %v3350
      %v5107 = vpop.f32.mrb[0].mxu0
      %v5108 = vadd.f32 0.0, %v5107
      %v5109 = vpop.f32.mrb[0].mxu0
      %v5110 = vpop.f32.mrb[0].mxu0
      %v5111 = vadd.f32 0.0, %v5110
      %v5112 = vpop.f32.mrb[0].mxu0
      %5113 = vmatprep.mubr.bf16.mxu0 0
      %5114 = vmatmul.mubr.bf16.gmra.mrb[0].mxu0 %v3353
      %v5115 = vpop.f32.mrb[0].mxu0
      %v5116 = vadd.f32 0.0, %v5115
      %v5117 = vpop.f32.mrb[0].mxu0
      %v5118 = vpop.f32.mrb[0].mxu0
      %v5119 = vadd.f32 0.0, %v5118
      %v5120 = vpop.f32.mrb[0].mxu0
      %5121 = vdwg.mxu0
      %v5122 = vpack.c.bf16 %v5032, %v5030
      %v5123 = vpack.c.bf16 %v5036, %v5034
      %v5124 = vpack.c.bf16 %v5040, %v5038
      %v5125 = vpack.c.bf16 %v5044, %v5042
      %v5126 = vpack.c.bf16 %v5095, %v5092
      %v5127 = vpack.c.bf16 %v5103, %v5100
      %v5128 = vpack.c.bf16 %v5111, %v5108
      %v5129 = vpack.c.bf16 %v5119, %v5116
      %v5131 = vsel %vm1022, %v5122, 0
      %v5134 = vsel %vm1022, %v5123, 0
      %v5137 = vsel %vm1022, %v5124, 0
      %v5140 = vsel %vm1022, %v5125, 0
      %5142 = vmatprep.subr.bf16.mxu0 0
      %5143 = vmatpush1.bf16.msra.mxu0 %v5126
      %5144 = vmatprep.subr.bf16.mxu0 0
      %5145 = vmatpush1.bf16.msra.mxu0 %v5127
      %5146 = vmatprep.subr.bf16.mxu0 0
      %5147 = vmatpush1.bf16.msra.mxu0 %v5128
      %5148 = vmatprep.subr.bf16.mxu0 0
      %5149 = vmatpush1.bf16.msra.mxu0 %v5129
      %5150 = vmatprep.subr.bf16.mxu0 0
      %5151 = vmatpush1.bf16.msra.mxu0 0
      %5152 = vmatprep.subr.bf16.mxu0 0
      %5153 = vmatpush1.bf16.msra.mxu0 0
      %5154 = vmatprep.subr.bf16.mxu0 0
      %5155 = vmatpush1.bf16.msra.mxu0 0
      %5156 = vmatprep.subr.bf16.mxu0 0
      %5157 = vmatpush1.bf16.msra.mxu0 0
      %5158 = vmatprep.subr.bf16.mxu0 0
      %5159 = vmatpush1.bf16.msra.mxu0 0
      %5160 = vmatprep.subr.bf16.mxu0 0
      %5161 = vmatpush1.bf16.msra.mxu0 0
      %5162 = vmatprep.subr.bf16.mxu0 0
      %5163 = vmatpush1.bf16.msra.mxu0 0
      %5164 = vmatprep.subr.bf16.mxu0 0
      %5165 = vmatpush1.bf16.msra.mxu0 0
      %5166 = vmatprep.subr.bf16.mxu0 0
      %5167 = vmatpush1.bf16.msra.mxu0 0
      %5168 = vmatprep.subr.bf16.mxu0 0
      %5169 = vmatpush1.bf16.msra.mxu0 0
      %5170 = vmatprep.subr.bf16.mxu0 0
      %5171 = vmatpush1.bf16.msra.mxu0 0
      %5172 = vmatprep.subr.bf16.mxu0 0
      %5173 = vmatpush1.bf16.msra.mxu0 0
      %5174 = vmatprep.mubr.bf16.mxu0 0
      %5175 = vmatmul.mubr.bf16.gmra.mrb[0].mxu0 %v5131
      %v5176 = vpop.f32.mrb[0].mxu0
      %v5177 = vadd.f32 0.0, %v5176
      %v5178 = vpop.f32.mrb[0].mxu0
      %v5179 = vpop.f32.mrb[0].mxu0
      %v5180 = vadd.f32 0.0, %v5179
      %v5181 = vpop.f32.mrb[0].mxu0
      %5182 = vmatprep.mubr.bf16.mxu0 0
      %5183 = vmatmul.mubr.bf16.gmra.mrb[0].mxu0 %v5134
      %v5184 = vpop.f32.mrb[0].mxu0
      %v5185 = vadd.f32 0.0, %v5184
      %v5186 = vpop.f32.mrb[0].mxu0
      %v5187 = vpop.f32.mrb[0].mxu0
      %v5188 = vadd.f32 0.0, %v5187
      %v5189 = vpop.f32.mrb[0].mxu0
      %5190 = vmatprep.mubr.bf16.mxu0 0
      %5191 = vmatmul.mubr.bf16.gmra.mrb[0].mxu0 %v5137
      %v5192 = vpop.f32.mrb[0].mxu0
      %v5193 = vadd.f32 0.0, %v5192
      %v5194 = vpop.f32.mrb[0].mxu0
      %v5195 = vpop.f32.mrb[0].mxu0
      %v5196 = vadd.f32 0.0, %v5195
      %v5197 = vpop.f32.mrb[0].mxu0
      %5198 = vmatprep.mubr.bf16.mxu0 0
      %5199 = vmatmul.mubr.bf16.gmra.mrb[0].mxu0 %v5140
      %v5200 = vpop.f32.mrb[0].mxu0
      %v5201 = vadd.f32 0.0, %v5200
      %v5202 = vpop.f32.mrb[0].mxu0
      %v5203 = vpop.f32.mrb[0].mxu0
      %v5204 = vadd.f32 0.0, %v5203
      %v5205 = vpop.f32.mrb[0].mxu0
      %5206 = vdwg.mxu0
      %v5207 = vadd.f32 %v4732, %v5177
      %v5208 = vadd.f32 %v4733, %v5180
      %v5209 = vadd.f32 %v4734, %v5185
      %v5210 = vadd.f32 %v4735, %v5188
      %v5211 = vadd.f32 %v4736, %v5193
      %v5212 = vadd.f32 %v4737, %v5196
      %v5213 = vadd.f32 %v4738, %v5201
      %v5214 = vadd.f32 %v4739, %v5204
      %v5215 = vadd.f32 %v3171, %v5207
      %v5216 = vadd.f32 %v3172, %v5208
      %v5217 = vadd.f32 %v3173, %v5209
      %v5218 = vadd.f32 %v3174, %v5210
      %v5219 = vadd.f32 %v3175, %v5211
      %v5220 = vadd.f32 %v3176, %v5212
      %v5221 = vadd.f32 %v3177, %v5213
      %v5222 = vadd.f32 %v3178, %v5214
      %s5223 = scalar_lea.vmem %s8, 1
      %v5224 = vld [vmem:[%s5223] sm:$0x1]
      %v5226 = vlaneseq
      %v5227 = vshrl.u32 %v5226, 7
      %v5228 = vsub.s32 0, %v5227
      %v5229 = vrot.slane %v5224, %v5228
      %v5231 = vadd.f32 %v5215, %v5229
      %v5232 = vadd.f32 %v5216, %v5229
      %v5233 = vadd.f32 %v5217, %v5229
      %v5234 = vadd.f32 %v5218, %v5229
      %v5235 = vadd.f32 %v5219, %v5229
      %v5236 = vadd.f32 %v5220, %v5229
      %v5237 = vadd.f32 %v5221, %v5229
      %v5238 = vadd.f32 %v5222, %v5229
      %s5239 = scalar_lea.vmem %s9, 1
      %v5240 = vld [vmem:[%s5239] sm:$0x1]
      %s5241 = scalar_lea.vmem %s10, 1
      %v5242 = vld [vmem:[%s5241] sm:$0x1]
      %v5243 = vsel %vm658, %v5231, 0.0
      %5244 = vadd.xlane.f32.xlu0 %v5243
      %v5245 = vpop.xlane.xlu0 %5244
      %v5246 = vsel %vm658, %v5232, 0.0
      %5247 = vadd.xlane.f32.xlu0 %v5246
      %v5248 = vpop.xlane.xlu0 %5247
      %v5249 = vsel %vm658, %v5233, 0.0
      %5250 = vadd.xlane.f32.xlu0 %v5249
      %v5251 = vpop.xlane.xlu0 %5250
      %v5252 = vsel %vm658, %v5234, 0.0
      %5253 = vadd.xlane.f32.xlu0 %v5252
      %v5254 = vpop.xlane.xlu0 %5253
      %v5255 = vsel %vm658, %v5235, 0.0
      %5256 = vadd.xlane.f32.xlu0 %v5255
      %v5257 = vpop.xlane.xlu0 %5256
      %v5258 = vsel %vm658, %v5236, 0.0
      %5259 = vadd.xlane.f32.xlu0 %v5258
      %v5260 = vpop.xlane.xlu0 %5259
      %v5261 = vsel %vm658, %v5237, 0.0
      %5262 = vadd.xlane.f32.xlu0 %v5261
      %v5263 = vpop.xlane.xlu0 %5262
      %v5264 = vsel %vm658, %v5238, 0.0
      %5265 = vadd.xlane.f32.xlu0 %v5264
      %v5266 = vpop.xlane.xlu0 %5265
      %v5267 = vmul.f32 %v5245, %v683
      %v5268 = vmul.f32 %v5248, %v683
      %v5269 = vmul.f32 %v5251, %v683
      %v5270 = vmul.f32 %v5254, %v683
      %v5271 = vmul.f32 %v5257, %v683
      %v5272 = vmul.f32 %v5260, %v683
      %v5273 = vmul.f32 %v5263, %v683
      %v5274 = vmul.f32 %v5266, %v683
      %v5275 = vsub.f32 %v5231, %v5267
      %v5276 = vsub.f32 %v5232, %v5268
      %v5277 = vsub.f32 %v5233, %v5269
      %v5278 = vsub.f32 %v5234, %v5270
      %v5279 = vsub.f32 %v5235, %v5271
      %v5280 = vsub.f32 %v5236, %v5272
      %v5281 = vsub.f32 %v5237, %v5273
      %v5282 = vsub.f32 %v5238, %v5274
      %v5283 = vmul.f32 %v5275, %v5275
      %v5284 = vmul.f32 %v5276, %v5276
      %v5285 = vmul.f32 %v5277, %v5277
      %v5286 = vmul.f32 %v5278, %v5278
      %v5287 = vmul.f32 %v5279, %v5279
      %v5288 = vmul.f32 %v5280, %v5280
      %v5289 = vmul.f32 %v5281, %v5281
      %v5290 = vmul.f32 %v5282, %v5282
      %v5291 = vsel %vm658, %v5283, 0.0
      %5292 = vadd.xlane.f32.xlu0 %v5291
      %v5293 = vpop.xlane.xlu0 %5292
      %v5294 = vsel %vm658, %v5284, 0.0
      %5295 = vadd.xlane.f32.xlu0 %v5294
      %v5296 = vpop.xlane.xlu0 %5295
      %v5297 = vsel %vm658, %v5285, 0.0
      %5298 = vadd.xlane.f32.xlu0 %v5297
      %v5299 = vpop.xlane.xlu0 %5298
      %v5300 = vsel %vm658, %v5286, 0.0
      %5301 = vadd.xlane.f32.xlu0 %v5300
      %v5302 = vpop.xlane.xlu0 %5301
      %v5303 = vsel %vm658, %v5287, 0.0
      %5304 = vadd.xlane.f32.xlu0 %v5303
      %v5305 = vpop.xlane.xlu0 %5304
      %v5306 = vsel %vm658, %v5288, 0.0
      %5307 = vadd.xlane.f32.xlu0 %v5306
      %v5308 = vpop.xlane.xlu0 %5307
      %v5309 = vsel %vm658, %v5289, 0.0
      %5310 = vadd.xlane.f32.xlu0 %v5309
      %v5311 = vpop.xlane.xlu0 %5310
      %v5312 = vsel %vm658, %v5290, 0.0
      %5313 = vadd.xlane.f32.xlu0 %v5312
      %v5314 = vpop.xlane.xlu0 %5313
      %v5315 = vmul.f32 %v5293, %v683
      %v5316 = vmul.f32 %v5296, %v683
      %v5317 = vmul.f32 %v5299, %v683
      %v5318 = vmul.f32 %v5302, %v683
      %v5319 = vmul.f32 %v5305, %v683
      %v5320 = vmul.f32 %v5308, %v683
      %v5321 = vmul.f32 %v5311, %v683
      %v5322 = vmul.f32 %v5314, %v683
      %v5323 = vadd.f32 %v5315, 1e-06
      %v5324 = vadd.f32 %v5316, 1e-06
      %v5325 = vadd.f32 %v5317, 1e-06
      %v5326 = vadd.f32 %v5318, 1e-06
      %v5327 = vadd.f32 %v5319, 1e-06
      %v5328 = vadd.f32 %v5320, 1e-06
      %v5329 = vadd.f32 %v5321, 1e-06
      %v5330 = vadd.f32 %v5322, 1e-06
      %v5331 = vrsqrt.pop %v5323
      %v5332 = vrsqrt.pop %v5324
      %v5333 = vrsqrt.pop %v5325
      %v5334 = vrsqrt.pop %v5326
      %v5335 = vrsqrt.pop %v5327
      %v5336 = vrsqrt.pop %v5328
      %v5337 = vrsqrt.pop %v5329
      %v5338 = vrsqrt.pop %v5330
      %v5339 = vmul.f32 %v5275, %v5331
      %v5340 = vmul.f32 %v5276, %v5332
      %v5341 = vmul.f32 %v5277, %v5333
      %v5342 = vmul.f32 %v5278, %v5334
      %v5343 = vmul.f32 %v5279, %v5335
      %v5344 = vmul.f32 %v5280, %v5336
      %v5345 = vmul.f32 %v5281, %v5337
      %v5346 = vmul.f32 %v5282, %v5338
      %v5348 = vlaneseq
      %v5349 = vshrl.u32 %v5348, 7
      %v5350 = vsub.s32 0, %v5349
      %v5351 = vrot.slane %v5240, %v5350
      %v5353 = vmul.f32 %v5339, %v5351
      %v5354 = vmul.f32 %v5340, %v5351
      %v5355 = vmul.f32 %v5341, %v5351
      %v5356 = vmul.f32 %v5342, %v5351
      %v5357 = vmul.f32 %v5343, %v5351
      %v5358 = vmul.f32 %v5344, %v5351
      %v5359 = vmul.f32 %v5345, %v5351
      %v5360 = vmul.f32 %v5346, %v5351
      %v5362 = vlaneseq
      %v5363 = vshrl.u32 %v5362, 7
      %v5364 = vsub.s32 0, %v5363
      %v5365 = vrot.slane %v5242, %v5364
      %v5367 = vadd.f32 %v5353, %v5365
      %v5368 = vadd.f32 %v5354, %v5365
      %v5369 = vadd.f32 %v5355, %v5365
      %v5370 = vadd.f32 %v5356, %v5365
      %v5371 = vadd.f32 %v5357, %v5365
      %v5372 = vadd.f32 %v5358, %v5365
      %v5373 = vadd.f32 %v5359, %v5365
      %v5374 = vadd.f32 %v5360, %v5365
      %v5375 = vpack.c.bf16 %v5368, %v5367
      %v5376 = vpack.c.bf16 %v5370, %v5369
      %v5377 = vpack.c.bf16 %v5372, %v5371
      %v5378 = vpack.c.bf16 %v5374, %v5373
      %s5379 = scalar_lea.vmem %s11, 16
      %v5380 = vld [vmem:[%s5379] sm:$0xf]
      %v5381 = vld [vmem:[%s5379 + $0x4] sm:$0xf]
      %v5382 = vld [vmem:[%s5379 + $0x8] sm:$0xf]
      %v5383 = vld [vmem:[%s5379 + $0xc] sm:$0xf]
      %s5384 = scalar_lea.vmem %s12, 1
      %v5385 = vld [vmem:[%s5384] sm:$0x1]
      %v5387 = vlaneseq
      %v5388 = vshrl.u32 %v5387, 7
      %v5389 = vsub.s32 0, %v5388
      %v5390 = vrot.slane %v5385, %v5389
      %v5396 = vunpack.c.l.b16 %v5380
      %v5397 = vunpack.c.l.b16 %v5381
      %v5398 = vunpack.c.l.b16 %v5382
      %v5399 = vunpack.c.l.b16 %v5383
      %v5400 = vpack.c.b16 %v5397, %v5396
      %v5401 = vpack.c.b16 %v5399, %v5398
      %v5405 = vsel %vm658, %v5375, 0
      %v5408 = vsel %vm658, %v5376, 0
      %v5411 = vsel %vm658, %v5377, 0
      %v5414 = vsel %vm658, %v5378, 0
      %5416 = vmatprep.subr.bf16.mxu0 0
      %5417 = vmatpush1.bf16.msra.mxu0 %v5400
      %5418 = vmatprep.subr.bf16.mxu0 0
      %5419 = vmatpush1.bf16.msra.mxu0 %v5401
      %5420 = vmatprep.subr.bf16.mxu0 0
      %5421 = vmatpush1.bf16.msra.mxu0 0
      %5422 = vmatprep.subr.bf16.mxu0 0
      %5423 = vmatpush1.bf16.msra.mxu0 0
      %5424 = vmatprep.subr.bf16.mxu0 0
      %5425 = vmatpush1.bf16.msra.mxu0 0
      %5426 = vmatprep.subr.bf16.mxu0 0
      %5427 = vmatpush1.bf16.msra.mxu0 0
      %5428 = vmatprep.subr.bf16.mxu0 0
      %5429 = vmatpush1.bf16.msra.mxu0 0
      %5430 = vmatprep.subr.bf16.mxu0 0
      %5431 = vmatpush1.bf16.msra.mxu0 0
      %5432 = vmatprep.subr.bf16.mxu0 0
      %5433 = vmatpush1.bf16.msra.mxu0 0
      %5434 = vmatprep.subr.bf16.mxu0 0
      %5435 = vmatpush1.bf16.msra.mxu0 0
      %5436 = vmatprep.subr.bf16.mxu0 0
      %5437 = vmatpush1.bf16.msra.mxu0 0
      %5438 = vmatprep.subr.bf16.mxu0 0
      %5439 = vmatpush1.bf16.msra.mxu0 0
      %5440 = vmatprep.subr.bf16.mxu0 0
      %5441 = vmatpush1.bf16.msra.mxu0 0
      %5442 = vmatprep.subr.bf16.mxu0 0
      %5443 = vmatpush1.bf16.msra.mxu0 0
      %5444 = vmatprep.subr.bf16.mxu0 0
      %5445 = vmatpush1.bf16.msra.mxu0 0
      %5446 = vmatprep.subr.bf16.mxu0 0
      %5447 = vmatpush1.bf16.msra.mxu0 0
      %5448 = vmatprep.mubr.bf16.mxu0 0
      %5449 = vmatmul.mubr.bf16.gmra.mrb[0].mxu0 %v5405
      %v5450 = vpop.f32.mrb[0].mxu0
      %v5451 = vadd.f32 %v5390, %v5450
      %v5452 = vpop.f32.mrb[0].mxu0
      %v5453 = vpop.f32.mrb[0].mxu0
      %v5454 = vadd.f32 %v5390, %v5453
      %v5455 = vpop.f32.mrb[0].mxu0
      %5456 = vmatprep.mubr.bf16.mxu0 0
      %5457 = vmatmul.mubr.bf16.gmra.mrb[0].mxu0 %v5408
      %v5458 = vpop.f32.mrb[0].mxu0
      %v5459 = vadd.f32 %v5390, %v5458
      %v5460 = vpop.f32.mrb[0].mxu0
      %v5461 = vpop.f32.mrb[0].mxu0
      %v5462 = vadd.f32 %v5390, %v5461
      %v5463 = vpop.f32.mrb[0].mxu0
      %5464 = vmatprep.mubr.bf16.mxu0 0
      %5465 = vmatmul.mubr.bf16.gmra.mrb[0].mxu0 %v5411
      %v5466 = vpop.f32.mrb[0].mxu0
      %v5467 = vadd.f32 %v5390, %v5466
      %v5468 = vpop.f32.mrb[0].mxu0
      %v5469 = vpop.f32.mrb[0].mxu0
      %v5470 = vadd.f32 %v5390, %v5469
      %v5471 = vpop.f32.mrb[0].mxu0
      %5472 = vmatprep.mubr.bf16.mxu0 0
      %5473 = vmatmul.mubr.bf16.gmra.mrb[0].mxu0 %v5414
      %v5474 = vpop.f32.mrb[0].mxu0
      %v5475 = vadd.f32 %v5390, %v5474
      %v5476 = vpop.f32.mrb[0].mxu0
      %v5477 = vpop.f32.mrb[0].mxu0
      %v5478 = vadd.f32 %v5390, %v5477
      %v5479 = vpop.f32.mrb[0].mxu0
      %5480 = vdwg.mxu0
      %v5481 = vmul.f32 %v5451, %v5451
      %v5482 = vmul.f32 %v5454, %v5454
      %v5483 = vmul.f32 %v5459, %v5459
      %v5484 = vmul.f32 %v5462, %v5462
      %v5485 = vmul.f32 %v5467, %v5467
      %v5486 = vmul.f32 %v5470, %v5470
      %v5487 = vmul.f32 %v5475, %v5475
      %v5488 = vmul.f32 %v5478, %v5478
      %v5489 = vmul.f32 %v5451, %v5481
      %v5490 = vmul.f32 %v5454, %v5482
      %v5491 = vmul.f32 %v5459, %v5483
      %v5492 = vmul.f32 %v5462, %v5484
      %v5493 = vmul.f32 %v5467, %v5485
      %v5494 = vmul.f32 %v5470, %v5486
      %v5495 = vmul.f32 %v5475, %v5487
      %v5496 = vmul.f32 %v5478, %v5488
      %v5497 = vmul.f32 %v5489, 0.044715
      %v5498 = vmul.f32 %v5490, 0.044715
      %v5499 = vmul.f32 %v5491, 0.044715
      %v5500 = vmul.f32 %v5492, 0.044715
      %v5501 = vmul.f32 %v5493, 0.044715
      %v5502 = vmul.f32 %v5494, 0.044715
      %v5503 = vmul.f32 %v5495, 0.044715
      %v5504 = vmul.f32 %v5496, 0.044715
      %v5505 = vadd.f32 %v5451, %v5497
      %v5506 = vadd.f32 %v5454, %v5498
      %v5507 = vadd.f32 %v5459, %v5499
      %v5508 = vadd.f32 %v5462, %v5500
      %v5509 = vadd.f32 %v5467, %v5501
      %v5510 = vadd.f32 %v5470, %v5502
      %v5511 = vadd.f32 %v5475, %v5503
      %v5512 = vadd.f32 %v5478, %v5504
      %v5513 = vmul.f32 %v5505, 0.7978846
      %v5514 = vmul.f32 %v5506, 0.7978846
      %v5515 = vmul.f32 %v5507, 0.7978846
      %v5516 = vmul.f32 %v5508, 0.7978846
      %v5517 = vmul.f32 %v5509, 0.7978846
      %v5518 = vmul.f32 %v5510, 0.7978846
      %v5519 = vmul.f32 %v5511, 0.7978846
      %v5520 = vmul.f32 %v5512, 0.7978846
      %v5521 = vtanh.pop %v5513
      %v5522 = vtanh.pop %v5514
      %v5523 = vtanh.pop %v5515
      %v5524 = vtanh.pop %v5516
      %v5525 = vtanh.pop %v5517
      %v5526 = vtanh.pop %v5518
      %v5527 = vtanh.pop %v5519
      %v5528 = vtanh.pop %v5520
      %v5529 = vadd.f32 %v5521, 1.0
      %v5530 = vadd.f32 %v5522, 1.0
      %v5531 = vadd.f32 %v5523, 1.0
      %v5532 = vadd.f32 %v5524, 1.0
      %v5533 = vadd.f32 %v5525, 1.0
      %v5534 = vadd.f32 %v5526, 1.0
      %v5535 = vadd.f32 %v5527, 1.0
      %v5536 = vadd.f32 %v5528, 1.0
      %v5537 = vmul.f32 %v5529, 0.5
      %v5538 = vmul.f32 %v5530, 0.5
      %v5539 = vmul.f32 %v5531, 0.5
      %v5540 = vmul.f32 %v5532, 0.5
      %v5541 = vmul.f32 %v5533, 0.5
      %v5542 = vmul.f32 %v5534, 0.5
      %v5543 = vmul.f32 %v5535, 0.5
      %v5544 = vmul.f32 %v5536, 0.5
      %v5545 = vmul.f32 %v5451, %v5537
      %v5546 = vmul.f32 %v5454, %v5538
      %v5547 = vmul.f32 %v5459, %v5539
      %v5548 = vmul.f32 %v5462, %v5540
      %v5549 = vmul.f32 %v5467, %v5541
      %v5550 = vmul.f32 %v5470, %v5542
      %v5551 = vmul.f32 %v5475, %v5543
      %v5552 = vmul.f32 %v5478, %v5544
      %v5553 = vpack.c.bf16 %v5546, %v5545
      %v5554 = vpack.c.bf16 %v5548, %v5547
      %v5555 = vpack.c.bf16 %v5550, %v5549
      %v5556 = vpack.c.bf16 %v5552, %v5551
      %s5557 = scalar_lea.vmem %s13, 64
      %v5558 = vld [vmem:[%s5557] sm:$0xf]
      %v5559 = vld [vmem:[%s5557 + $0x4] sm:$0xf]
      %v5560 = vld [vmem:[%s5557 + $0x8] sm:$0xf]
      %v5561 = vld [vmem:[%s5557 + $0xc] sm:$0xf]
      %v5562 = vld [vmem:[%s5557 + $0x10] sm:$0xf]
      %v5563 = vld [vmem:[%s5557 + $0x14] sm:$0xf]
      %v5564 = vld [vmem:[%s5557 + $0x18] sm:$0xf]
      %v5565 = vld [vmem:[%s5557 + $0x1c] sm:$0xf]
      %v5566 = vld [vmem:[%s5557 + $0x20] sm:$0xf]
      %v5567 = vld [vmem:[%s5557 + $0x24] sm:$0xf]
      %v5568 = vld [vmem:[%s5557 + $0x28] sm:$0xf]
      %v5569 = vld [vmem:[%s5557 + $0x2c] sm:$0xf]
      %v5570 = vld [vmem:[%s5557 + $0x30] sm:$0xf]
      %v5571 = vld [vmem:[%s5557 + $0x34] sm:$0xf]
      %v5572 = vld [vmem:[%s5557 + $0x38] sm:$0xf]
      %v5573 = vld [vmem:[%s5557 + $0x3c] sm:$0xf]
      %v5590 = vunpack.c.l.b16 %v5558
      %v5591 = vunpack.c.l.b16 %v5559
      %v5592 = vunpack.c.l.b16 %v5560
      %v5593 = vunpack.c.l.b16 %v5561
      %v5594 = vunpack.c.l.b16 %v5562
      %v5595 = vunpack.c.l.b16 %v5563
      %v5596 = vunpack.c.l.b16 %v5564
      %v5597 = vunpack.c.l.b16 %v5565
      %v5598 = vunpack.c.l.b16 %v5566
      %v5599 = vunpack.c.l.b16 %v5567
      %v5600 = vunpack.c.l.b16 %v5568
      %v5601 = vunpack.c.l.b16 %v5569
      %v5602 = vunpack.c.l.b16 %v5570
      %v5603 = vunpack.c.l.b16 %v5571
      %v5604 = vunpack.c.l.b16 %v5572
      %v5605 = vunpack.c.l.b16 %v5573
      %v5606 = vpack.c.b16 %v5591, %v5590
      %v5607 = vpack.c.b16 %v5593, %v5592
      %v5608 = vpack.c.b16 %v5595, %v5594
      %v5609 = vpack.c.b16 %v5597, %v5596
      %v5610 = vpack.c.b16 %v5599, %v5598
      %v5611 = vpack.c.b16 %v5601, %v5600
      %v5612 = vpack.c.b16 %v5603, %v5602
      %v5613 = vpack.c.b16 %v5605, %v5604
      %5622 = vmatprep.subr.bf16.mxu0 0
      %5623 = vmatpush1.bf16.msra.mxu0 %v5606
      %5624 = vmatprep.subr.bf16.mxu0 0
      %5625 = vmatpush1.bf16.msra.mxu0 %v5607
      %5626 = vmatprep.subr.bf16.mxu0 0
      %5627 = vmatpush1.bf16.msra.mxu0 %v5608
      %5628 = vmatprep.subr.bf16.mxu0 0
      %5629 = vmatpush1.bf16.msra.mxu0 %v5609
      %5630 = vmatprep.subr.bf16.mxu0 0
      %5631 = vmatpush1.bf16.msra.mxu0 %v5610
      %5632 = vmatprep.subr.bf16.mxu0 0
      %5633 = vmatpush1.bf16.msra.mxu0 %v5611
      %5634 = vmatprep.subr.bf16.mxu0 0
      %5635 = vmatpush1.bf16.msra.mxu0 %v5612
      %5636 = vmatprep.subr.bf16.mxu0 0
      %5637 = vmatpush1.bf16.msra.mxu0 %v5613
      %5638 = vmatprep.subr.bf16.mxu0 0
      %5639 = vmatpush1.bf16.msra.mxu0 0
      %5640 = vmatprep.subr.bf16.mxu0 0
      %5641 = vmatpush1.bf16.msra.mxu0 0
      %5642 = vmatprep.subr.bf16.mxu0 0
      %5643 = vmatpush1.bf16.msra.mxu0 0
      %5644 = vmatprep.subr.bf16.mxu0 0
      %5645 = vmatpush1.bf16.msra.mxu0 0
      %5646 = vmatprep.subr.bf16.mxu0 0
      %5647 = vmatpush1.bf16.msra.mxu0 0
      %5648 = vmatprep.subr.bf16.mxu0 0
      %5649 = vmatpush1.bf16.msra.mxu0 0
      %5650 = vmatprep.subr.bf16.mxu0 0
      %5651 = vmatpush1.bf16.msra.mxu0 0
      %5652 = vmatprep.subr.bf16.mxu0 0
      %5653 = vmatpush1.bf16.msra.mxu0 0
      %5654 = vmatprep.mubr.bf16.mxu0 0
      %5655 = vmatmul.mubr.bf16.gmra.mrb[0].mxu0 %v5553
      %v5656 = vpop.f32.mrb[0].mxu0
      %v5657 = vadd.f32 0.0, %v5656
      %v5658 = vpop.f32.mrb[0].mxu0
      %v5659 = vpop.f32.mrb[0].mxu0
      %v5660 = vadd.f32 0.0, %v5659
      %v5661 = vpop.f32.mrb[0].mxu0
      %5662 = vmatprep.mubr.bf16.mxu0 0
      %5663 = vmatmul.mubr.bf16.gmra.mrb[0].mxu0 %v5554
      %v5664 = vpop.f32.mrb[0].mxu0
      %v5665 = vadd.f32 0.0, %v5664
      %v5666 = vpop.f32.mrb[0].mxu0
      %v5667 = vpop.f32.mrb[0].mxu0
      %v5668 = vadd.f32 0.0, %v5667
      %v5669 = vpop.f32.mrb[0].mxu0
      %5670 = vmatprep.mubr.bf16.mxu0 0
      %5671 = vmatmul.mubr.bf16.gmra.mrb[0].mxu0 %v5555
      %v5672 = vpop.f32.mrb[0].mxu0
      %v5673 = vadd.f32 0.0, %v5672
      %v5674 = vpop.f32.mrb[0].mxu0
      %v5675 = vpop.f32.mrb[0].mxu0
      %v5676 = vadd.f32 0.0, %v5675
      %v5677 = vpop.f32.mrb[0].mxu0
      %5678 = vmatprep.mubr.bf16.mxu0 0
      %5679 = vmatmul.mubr.bf16.gmra.mrb[0].mxu0 %v5556
      %v5680 = vpop.f32.mrb[0].mxu0
      %v5681 = vadd.f32 0.0, %v5680
      %v5682 = vpop.f32.mrb[0].mxu0
      %v5683 = vpop.f32.mrb[0].mxu0
      %v5684 = vadd.f32 0.0, %v5683
      %v5685 = vpop.f32.mrb[0].mxu0
      %5686 = vdwg.mxu0
      %v5687 = vadd.f32 %v5231, %v5657
      %v5688 = vadd.f32 %v5232, %v5660
      %v5689 = vadd.f32 %v5233, %v5665
      %v5690 = vadd.f32 %v5234, %v5668
      %v5691 = vadd.f32 %v5235, %v5673
      %v5692 = vadd.f32 %v5236, %v5676
      %v5693 = vadd.f32 %v5237, %v5681
      %v5694 = vadd.f32 %v5238, %v5684
      %s5695 = scalar_lea.vmem %s14, 1
      %v5696 = vld [vmem:[%s5695] sm:$0x1]
      %v5698 = vlaneseq
      %v5699 = vshrl.u32 %v5698, 7
      %v5700 = vsub.s32 0, %v5699
      %v5701 = vrot.slane %v5696, %v5700
      %v5703 = vadd.f32 %v5687, %v5701
      %v5704 = vadd.f32 %v5688, %v5701
      %v5705 = vadd.f32 %v5689, %v5701
      %v5706 = vadd.f32 %v5690, %v5701
      %v5707 = vadd.f32 %v5691, %v5701
      %v5708 = vadd.f32 %v5692, %v5701
      %v5709 = vadd.f32 %v5693, %v5701
      %v5710 = vadd.f32 %v5694, %v5701
      %v5711 = vld [vmem:[%s15] sm:$0x1]
      %v5712 = vld [vmem:[%s16] sm:$0x1]
      %v5713 = vsel %vm658, %v5703, 0.0
      %5714 = vadd.xlane.f32.xlu0 %v5713
      %v5715 = vpop.xlane.xlu0 %5714
      %v5716 = vsel %vm658, %v5704, 0.0
      %5717 = vadd.xlane.f32.xlu0 %v5716
      %v5718 = vpop.xlane.xlu0 %5717
      %v5719 = vsel %vm658, %v5705, 0.0
      %5720 = vadd.xlane.f32.xlu0 %v5719
      %v5721 = vpop.xlane.xlu0 %5720
      %v5722 = vsel %vm658, %v5706, 0.0
      %5723 = vadd.xlane.f32.xlu0 %v5722
      %v5724 = vpop.xlane.xlu0 %5723
      %v5725 = vsel %vm658, %v5707, 0.0
      %5726 = vadd.xlane.f32.xlu0 %v5725
      %v5727 = vpop.xlane.xlu0 %5726
      %v5728 = vsel %vm658, %v5708, 0.0
      %5729 = vadd.xlane.f32.xlu0 %v5728
      %v5730 = vpop.xlane.xlu0 %5729
      %v5731 = vsel %vm658, %v5709, 0.0
      %5732 = vadd.xlane.f32.xlu0 %v5731
      %v5733 = vpop.xlane.xlu0 %5732
      %v5734 = vsel %vm658, %v5710, 0.0
      %5735 = vadd.xlane.f32.xlu0 %v5734
      %v5736 = vpop.xlane.xlu0 %5735
      %v5737 = vmul.f32 %v5715, %v683
      %v5738 = vmul.f32 %v5718, %v683
      %v5739 = vmul.f32 %v5721, %v683
      %v5740 = vmul.f32 %v5724, %v683
      %v5741 = vmul.f32 %v5727, %v683
      %v5742 = vmul.f32 %v5730, %v683
      %v5743 = vmul.f32 %v5733, %v683
      %v5744 = vmul.f32 %v5736, %v683
      %v5745 = vsub.f32 %v5703, %v5737
      %v5746 = vsub.f32 %v5704, %v5738
      %v5747 = vsub.f32 %v5705, %v5739
      %v5748 = vsub.f32 %v5706, %v5740
      %v5749 = vsub.f32 %v5707, %v5741
      %v5750 = vsub.f32 %v5708, %v5742
      %v5751 = vsub.f32 %v5709, %v5743
      %v5752 = vsub.f32 %v5710, %v5744
      %v5753 = vmul.f32 %v5745, %v5745
      %v5754 = vmul.f32 %v5746, %v5746
      %v5755 = vmul.f32 %v5747, %v5747
      %v5756 = vmul.f32 %v5748, %v5748
      %v5757 = vmul.f32 %v5749, %v5749
      %v5758 = vmul.f32 %v5750, %v5750
      %v5759 = vmul.f32 %v5751, %v5751
      %v5760 = vmul.f32 %v5752, %v5752
      %v5761 = vsel %vm658, %v5753, 0.0
      %5762 = vadd.xlane.f32.xlu0 %v5761
      %v5763 = vpop.xlane.xlu0 %5762
      %v5764 = vsel %vm658, %v5754, 0.0
      %5765 = vadd.xlane.f32.xlu0 %v5764
      %v5766 = vpop.xlane.xlu0 %5765
      %v5767 = vsel %vm658, %v5755, 0.0
      %5768 = vadd.xlane.f32.xlu0 %v5767
      %v5769 = vpop.xlane.xlu0 %5768
      %v5770 = vsel %vm658, %v5756, 0.0
      %5771 = vadd.xlane.f32.xlu0 %v5770
      %v5772 = vpop.xlane.xlu0 %5771
      %v5773 = vsel %vm658, %v5757, 0.0
      %5774 = vadd.xlane.f32.xlu0 %v5773
      %v5775 = vpop.xlane.xlu0 %5774
      %v5776 = vsel %vm658, %v5758, 0.0
      %5777 = vadd.xlane.f32.xlu0 %v5776
      %v5778 = vpop.xlane.xlu0 %5777
      %v5779 = vsel %vm658, %v5759, 0.0
      %5780 = vadd.xlane.f32.xlu0 %v5779
      %v5781 = vpop.xlane.xlu0 %5780
      %v5782 = vsel %vm658, %v5760, 0.0
      %5783 = vadd.xlane.f32.xlu0 %v5782
      %v5784 = vpop.xlane.xlu0 %5783
      %v5785 = vmul.f32 %v5763, %v683
      %v5786 = vmul.f32 %v5766, %v683
      %v5787 = vmul.f32 %v5769, %v683
      %v5788 = vmul.f32 %v5772, %v683
      %v5789 = vmul.f32 %v5775, %v683
      %v5790 = vmul.f32 %v5778, %v683
      %v5791 = vmul.f32 %v5781, %v683
      %v5792 = vmul.f32 %v5784, %v683
      %v5793 = vadd.f32 %v5785, 1e-06
      %v5794 = vadd.f32 %v5786, 1e-06
      %v5795 = vadd.f32 %v5787, 1e-06
      %v5796 = vadd.f32 %v5788, 1e-06
      %v5797 = vadd.f32 %v5789, 1e-06
      %v5798 = vadd.f32 %v5790, 1e-06
      %v5799 = vadd.f32 %v5791, 1e-06
      %v5800 = vadd.f32 %v5792, 1e-06
      %v5801 = vrsqrt.pop %v5793
      %v5802 = vrsqrt.pop %v5794
      %v5803 = vrsqrt.pop %v5795
      %v5804 = vrsqrt.pop %v5796
      %v5805 = vrsqrt.pop %v5797
      %v5806 = vrsqrt.pop %v5798
      %v5807 = vrsqrt.pop %v5799
      %v5808 = vrsqrt.pop %v5800
      %v5809 = vmul.f32 %v5745, %v5801
      %v5810 = vmul.f32 %v5746, %v5802
      %v5811 = vmul.f32 %v5747, %v5803
      %v5812 = vmul.f32 %v5748, %v5804
      %v5813 = vmul.f32 %v5749, %v5805
      %v5814 = vmul.f32 %v5750, %v5806
      %v5815 = vmul.f32 %v5751, %v5807
      %v5816 = vmul.f32 %v5752, %v5808
      %v5818 = vlaneseq
      %v5819 = vshrl.u32 %v5818, 7
      %v5820 = vsub.s32 0, %v5819
      %v5821 = vrot.slane %v5711, %v5820
      %v5823 = vmul.f32 %v5809, %v5821
      %v5824 = vmul.f32 %v5810, %v5821
      %v5825 = vmul.f32 %v5811, %v5821
      %v5826 = vmul.f32 %v5812, %v5821
      %v5827 = vmul.f32 %v5813, %v5821
      %v5828 = vmul.f32 %v5814, %v5821
      %v5829 = vmul.f32 %v5815, %v5821
      %v5830 = vmul.f32 %v5816, %v5821
      %v5832 = vlaneseq
      %v5833 = vshrl.u32 %v5832, 7
      %v5834 = vsub.s32 0, %v5833
      %v5835 = vrot.slane %v5712, %v5834
      %v5837 = vadd.f32 %v5823, %v5835
      %v5838 = vadd.f32 %v5824, %v5835
      %v5839 = vadd.f32 %v5825, %v5835
      %v5840 = vadd.f32 %v5826, %v5835
      %v5841 = vadd.f32 %v5827, %v5835
      %v5842 = vadd.f32 %v5828, %v5835
      %v5843 = vadd.f32 %v5829, %v5835
      %v5844 = vadd.f32 %v5830, %v5835
      %5845 = vxpose.xlu0.b32.start [1/16] %v5837, 128
      %5846 = vxpose.xlu0.b32.cont [2/16] %v5838, 128
      %5847 = vxpose.xlu0.b32.cont [3/16] %v5839, 128
      %5848 = vxpose.xlu0.b32.cont [4/16] %v5840, 128
      %5849 = vxpose.xlu0.b32.cont [5/16] %v5841, 128
      %5850 = vxpose.xlu0.b32.cont [6/16] %v5842, 128
      %5851 = vxpose.xlu0.b32.cont [7/16] %v5843, 128
      %5852 = vxpose.xlu0.b32.cont [8/16] %v5844, 128
      %5853 = vxpose.xlu0.b32.cont [9/16] 0.0, 128
      %5854 = vxpose.xlu0.b32.cont [10/16] 0.0, 128
      %5855 = vxpose.xlu0.b32.cont [11/16] 0.0, 128
      %5856 = vxpose.xlu0.b32.cont [12/16] 0.0, 128
      %5857 = vxpose.xlu0.b32.cont [13/16] 0.0, 128
      %5858 = vxpose.xlu0.b32.cont [14/16] 0.0, 128
      %5859 = vxpose.xlu0.b32.cont [15/16] 0.0, 128
      %5860 = vxpose.xlu0.b32.end [16/16] 0.0, 128
      %v5861 = vpop.trf.xlu0
      %v5862 = vpop.trf.xlu0
      %v5863 = vpop.trf.xlu0
      %v5864 = vpop.trf.xlu0
      %v5865 = vpop.trf.xlu0
      %v5866 = vpop.trf.xlu0
      %v5867 = vpop.trf.xlu0
      %v5868 = vpop.trf.xlu0
      %v5869 = vpop.trf.xlu0
      %v5870 = vpop.trf.xlu0
      %v5871 = vpop.trf.xlu0
      %v5872 = vpop.trf.xlu0
      %v5873 = vpop.trf.xlu0
      %v5874 = vpop.trf.xlu0
      %v5875 = vpop.trf.xlu0
      %v5876 = vpop.trf.xlu0
      %5877 = vst.msk [vmem:[%s548] sm:$0xff] %vm1022, %v5861
      %5878 = vst.msk [vmem:[%s548 + $0x8] sm:$0xff] %vm1022, %v5862
      %5879 = vst.msk [vmem:[%s548 + $0x10] sm:$0xff] %vm1022, %v5863
      %5880 = vst.msk [vmem:[%s548 + $0x18] sm:$0xff] %vm1022, %v5864
      %p5881 = scmp.lt.s32.totalorder %s28, 1
      %s5882 = scalar_select %p5881, %s28, 1
      %s5883 = smul.addr %s5882, 4
      %s5884 = smul.addr %s5883, 8
      %s5885 = scalar_lea.vmem %s17, %s5884
      // Predicated region
      $region89: #{transformer_forward.1} parent=87 // pred_check
        %p5886 = pneg %p408
      $region90: #{transformer_forward.1} parent=87 // pred_check_branch
        %5888 = sbr.rel (%p5886) target = $region92
      $region91: #{transformer_forward.1} parent=87 // pred_region
        _
      $region92: #{transformer_forward.1} parent=87 // pred_fallthru
        _
    $region88: #{transformer_forward.1} parent=5 // pred_fallthru
      _
    %p5889 = scmp.le.s32.totalorder 2, %s23
    // Predicated region
    $region93: #{transformer_forward.1} parent=5 // pred_check
      %p5890 = pneg %p5889
    $region94: #{transformer_forward.1} parent=5 // pred_check_branch
      %5892 = sbr.rel (%p5890) target = $region96
    $region95: #{transformer_forward.1} parent=5 // pred_region
      %s5893 = ssub.s32 %s23, 2
      // Predicated region
      $region97: #{transformer_forward.1} parent=95 // pred_check
        %p5894 = pneg %p414
      $region98: #{transformer_forward.1} parent=95 // pred_check_branch
        %5896 = sbr.rel (%p5894) target = $region100
      $region99: #{transformer_forward.1} parent=95 // pred_region
        %p5897 = scmp.lt.s32.totalorder %s29, 1
        %s5898 = scalar_select %p5897, %s29, 1
        %s5899 = smul.addr %s5898, 4
        %s5900 = smul.addr %s5899, 8
        %s5901 = scalar_lea.vmem %s17, %s5900
      $region100: #{transformer_forward.1} parent=95 // pred_fallthru
        _
    $region96: #{transformer_forward.1} parent=5 // pred_fallthru
      _
  $region6: #{transformer_forward.1} parent=0 // loop_footer
    %s27 = sadd.s32 1, %s23
  $region7: #{transformer_forward.1} parent=0 // loop_footer_branch
    %22 = sbr.rel target = $region3
  $region8: #{transformer_forward.1} parent=0 // loop_exit
    _

</llo_original>
